<compile_context>
chip_gen: v7x
topology: tpu7x:2x2x1
jax: 0.10.0
libtpu: 0.0.40
codegen_flags: <defaults>
</compile_context>

<pallas_src>
import functools
import math

import jax
import jax.numpy as jnp
from jax.experimental import pallas as pl
from jax.experimental.pallas import tpu as pltpu

_LANE = 128


def _round_up(n, m):
    return ((n + m - 1) // m) * m


def _vmem_limit_bytes():
    cap = 64 * 1024 * 1024
    try:
        info_fn = getattr(pltpu, "get_tpu_info", None)
        if info_fn is not None:
            cap = int(getattr(info_fn(), "vmem_capacity_bytes", cap))
    except Exception:
        pass
    # Leave headroom for compiler-internal scratch; generation-aware:
    # 128 MiB parts -> ~112 MiB, 64 MiB (v7x) -> ~56 MiB.
    return max(32 * 1024 * 1024, (cap * 7) // 8)


_VMEM_LIMIT = _vmem_limit_bytes()


def _pad_channels(a, c):
    pad = c - a.shape[-1]
    if pad == 0:
        return a
    cfg = [(0, 0)] * (a.ndim - 1) + [(0, pad)]
    return jnp.pad(a, cfg)


def _pad2d(m, rows, cols):
    return jnp.pad(m, ((0, rows - m.shape[0]), (0, cols - m.shape[1])))


# ----------------------------------------------------------------------------
# Kernel 1: tiled per-channel sum / sum-of-squares reduction (stage-1 BN only;
# stage-2 stats come fused out of the stage-1 conv kernel).
# ----------------------------------------------------------------------------
def _channel_stats_kernel(x_ref, sum_ref, sq_ref):
    @pl.when(pl.program_id(0) == 0)
    def _init():
        sum_ref[...] = jnp.zeros_like(sum_ref)
        sq_ref[...] = jnp.zeros_like(sq_ref)

    x = x_ref[...].astype(jnp.float32)
    sum_ref[...] += jnp.sum(x, axis=0, keepdims=True)
    sq_ref[...] += jnp.sum(x * x, axis=0, keepdims=True)


def _channel_stats(x2d, true_rows):
    """mean/var over rows of (rows, C). Rows are zero-padded to a multiple of
    the tile (zeros leave sum/sumsq unchanged) so the tile never collapses."""
    m, c = x2d.shape
    tile = min(2048, _round_up(m, 8))
    m_pad = _round_up(m, tile)
    if m_pad != m:
        x2d = jnp.pad(x2d, ((0, m_pad - m), (0, 0)))
    sums, sqs = pl.pallas_call(
        _channel_stats_kernel,
        out_shape=(jax.ShapeDtypeStruct((1, c), jnp.float32),
                   jax.ShapeDtypeStruct((1, c), jnp.float32)),
        grid=(m_pad // tile,),
        in_specs=[pl.BlockSpec((tile, c), lambda i: (i, 0))],
        out_specs=[pl.BlockSpec((1, c), lambda i: (0, 0)),
                   pl.BlockSpec((1, c), lambda i: (0, 0))],
        compiler_params=pltpu.CompilerParams(
            dimension_semantics=("arbitrary",),
            vmem_limit_bytes=_VMEM_LIMIT),
    )(x2d)
    mean = sums[0] / true_rows
    # NOTE: single-pass E[x^2]-E[x]^2 in f32 (clamped); adequate for
    # activation-scale inputs.
    var = jnp.maximum(sqs[0] / true_rows - mean * mean, 0.0)
    return mean, var


def _affine_from_stats(mean, var, gamma, beta, cpad, eps=1e-5):
    scale = gamma.astype(jnp.float32) * jax.lax.rsqrt(var + eps)
    shift = beta.astype(jnp.float32) - mean * scale
    return (_pad_channels(scale, cpad).reshape(1, cpad),
            _pad_channels(shift, cpad).reshape(1, cpad))


# ----------------------------------------------------------------------------
# Kernel 2: fused  BN-affine -> Conv3x3(no bias) -> Swish
#           (+ broadcast temb add) (+ next-BN partial stats) (+ shortcut)
# Grid = (batch, row-band); halo rows arrive as two small side inputs.
# ----------------------------------------------------------------------------
def _fused_stage_kernel(*refs, BH, W, Cin, Cout, add_row, emit_stats, shortcut):
    it = iter(refs)
    x_ref = next(it)                      # (1, BH, W, Cin)   activation band
    top_ref = next(it)                    # (1, 1, W, Cin)    row above band
    bot_ref = next(it)                    # (1, 1, W, Cin)    row below band
    scale_ref = next(it)                  # (1, Cin) f32      folded BN scale
    shift_ref = next(it)                  # (1, Cin) f32      folded BN shift
    w_ref = next(it)                      # (3, 3*Cin, Cout)  bf16, dj folded in K
    add_ref = next(it) if add_row else None            # (1, 1, Cout) f32
    xs_ref = next(it) if shortcut != "none" else None  # (1, BH, W, Cs)
    if shortcut == "conv":
        ws_ref = next(it)                 # (Cs, Cout) bf16
        bs_ref = next(it)                 # (1, Cout)  f32
    o_ref = next(it)                      # (1, BH, W, Cout)
    if emit_stats:
        sum_ref = next(it)                # (1, 1, 8, Cout) f32 (row 0 = partial)
        sq_ref = next(it)
    halo_ref = next(it)                   # VMEM (BH+2, W+2, Cin) bf16

    r = pl.program_id(1)
    last = pl.num_programs(1) - 1

    scale = scale_ref[...].reshape(1, 1, Cin)
    shift = shift_ref[...].reshape(1, 1, Cin)

    # BN affine (batch stats already folded) in f32 on the VPU; the zero-padded
    # halo lives only in VMEM, stored as bf16 (the MXU operand dtype).
    y = x_ref[0].astype(jnp.float32) * scale + shift                 # (BH,W,Cin)
    halo_ref[1:BH + 1, 1:W + 1, :] = y.astype(halo_ref.dtype)

    # Halo rows from neighbouring bands, masked to zero at the image border
    # (PyTorch zero-pads *after* BN, so border padding must be 0, not `shift`).
    tmask = (r > 0).astype(jnp.float32)
    bmask = (r < last).astype(jnp.float32)
    trow = (top_ref[0].astype(jnp.float32) * scale + shift) * tmask  # (1,W,Cin)
    brow = (bot_ref[0].astype(jnp.float32) * scale + shift) * bmask
    halo_ref[0:1, 1:W + 1, :] = trow.astype(halo_ref.dtype)
    halo_ref[BH + 1:BH + 2, 1:W + 1, :] = brow.astype(halo_ref.dtype)

    # Only the left/right border columns are zeroed (O(BH) elements; no
    # full-area zero-fill). Re-written every step -> safe under megacore
    # sharding of the "parallel" grid axes.
    zcol = jnp.zeros((BH + 2, 1, Cin), halo_ref.dtype)
    halo_ref[:, 0:1, :] = zcol
    halo_ref[:, W + 1:W + 2, :] = zcol

    # 3x3 conv = 3 MXU matmuls with K = 3*Cin (dj taps folded into K), bf16
    # operands, one chained f32 accumulator (MRB-friendly on v7x).
    acc = jnp.zeros((BH * W, Cout), jnp.float32)
    for di in range(3):
        patch = jnp.concatenate(
            [halo_ref[di:di + BH, dj:dj + W, :] for dj in range(3)],
            axis=-1).reshape(BH * W, 3 * Cin)
        acc = acc + jnp.dot(patch, w_ref[di],
                            preferred_element_type=jnp.float32)

    out = acc * jax.nn.sigmoid(acc)                                  # Swish f32

    if add_row:
        # += Linear(t): precomputed outside, broadcast over spatial positions.
        out = out + add_ref[0]

    if emit_stats:
        # Partial channel stats of this stage's output for the *next* BN
        # (removes a whole HBM read pass over the intermediate activation).
        ps = jnp.sum(out, axis=0, keepdims=True)                     # (1, Cout)
        pq = jnp.sum(out * out, axis=0, keepdims=True)
        pad7 = jnp.zeros((7, Cout), jnp.float32)
        sum_ref[...] = jnp.concatenate([ps, pad7], 0).reshape(1, 1, 8, Cout)
        sq_ref[...] = jnp.concatenate([pq, pad7], 0).reshape(1, 1, 8, Cout)

    if shortcut == "identity":
        out = out + xs_ref[0].astype(jnp.float32).reshape(BH * W, Cout)
    elif shortcut == "conv":
        cs = xs_ref.shape[-1]
        xs = xs_ref[0].reshape(BH * W, cs).astype(jnp.bfloat16)
        out = out + (jnp.dot(xs, ws_ref[...],
                             preferred_element_type=jnp.float32) + bs_ref[...])

    o_ref[0] = out.reshape(BH, W, Cout).astype(o_ref.dtype)


def _pick_band_rows(h, w, cin, cout, in_bytes, out_bytes, sc_px_bytes):
    """Largest divisor of H whose per-step footprint fits the VMEM budget."""
    budget = _VMEM_LIMIT // 2
    fixed = (2 * 9 * cin * cout * 2        # conv taps bf16, double-buffered
             + 2 * cin * cout * 2          # optional 1x1 shortcut weight
             + 8 * (cin + cout) * 4        # scale/shift/bias/temb rows
             + 2 * 2 * 8 * cout * 4        # fused stats outputs
             + (1 << 20))                  # slack

    def step_bytes(band):
        io = (band * w * (cin * in_bytes + cout * out_bytes + sc_px_bytes)
              + 2 * w * cin * in_bytes)
        scr = (band + 2) * (w + 2) * cin * 2
        return fixed + 2 * io + scr

    for band in range(h, 0, -1):
        if h % band == 0 and step_bytes(band) <= budget:
            return band
    return 1


def _band_halos(a, band):
    """Rows just above / below each band (zeros at the image border)."""
    n, h, w, c = a.shape
    nb = h // band
    zrow = jnp.zeros((n, 1, w, c), a.dtype)
    if nb == 1:
        return zrow, zrow
    top = jnp.concatenate([zrow, a[:, band - 1:h - 1:band]], axis=1)
    bot = jnp.concatenate([a[:, band:h:band], zrow], axis=1)
    return top, bot


def _fused_stage(x, top, bot, scale, shift, w3, *, add_row=None, shortcut=None,
                 out_dtype, emit_stats, band_rows):
    n, h, w, cin = x.shape
    cout = w3.shape[-1]
    assert h % band_rows == 0, (h, band_rows)
    nb = h // band_rows
    sc_mode = "none" if shortcut is None else shortcut[0]

    in_specs = [
        pl.BlockSpec((1, band_rows, w, cin), lambda b, r: (b, r, 0, 0)),
        pl.BlockSpec((1, 1, w, cin), lambda b, r: (b, r, 0, 0)),
        pl.BlockSpec((1, 1, w, cin), lambda b, r: (b, r, 0, 0)),
        pl.BlockSpec((1, cin), lambda b, r: (0, 0)),
        pl.BlockSpec((1, cin), lambda b, r: (0, 0)),
        pl.BlockSpec((3, 3 * cin, cout), lambda b, r: (0, 0, 0)),
    ]
    args = [x, top, bot, scale, shift, w3]
    if add_row is not None:
        in_specs.append(pl.BlockSpec((1, 1, cout), lambda b, r: (b, 0, 0)))
        args.append(add_row)
    if sc_mode != "none":
        xs = shortcut[1]
        cs = xs.shape[-1]
        in_specs.append(
            pl.BlockSpec((1, band_rows, w, cs), lambda b, r: (b, r, 0, 0)))
        args.append(xs)
    if sc_mode == "conv":
        ws, bs = shortcut[2], shortcut[3]
        in_specs += [pl.BlockSpec(ws.shape, lambda b, r: (0, 0)),
                     pl.BlockSpec((1, cout), lambda b, r: (0, 0))]
        args += [ws, bs]

    out_shape = [jax.ShapeDtypeStruct((n, h, w, cout), out_dtype)]
    out_specs = [pl.BlockSpec((1, band_rows, w, cout), lambda b, r: (b, r, 0, 0))]
    if emit_stats:
        out_shape += [jax.ShapeDtypeStruct((n, nb, 8, cout), jnp.float32)] * 2
        out_specs += [pl.BlockSpec((1, 1, 8, cout), lambda b, r: (b, r, 0, 0))] * 2

    kernel = functools.partial(_fused_stage_kernel, BH=band_rows, W=w, Cin=cin,
                               Cout=cout, add_row=add_row is not None,
                               emit_stats=emit_stats, shortcut=sc_mode)
    res = pl.pallas_call(
        kernel,
        out_shape=tuple(out_shape),
        grid=(n, nb),
        in_specs=in_specs,
        out_specs=tuple(out_specs),
        scratch_shapes=[pltpu.VMEM((band_rows + 2, w + 2, cin), jnp.bfloat16)],
        compiler_params=pltpu.CompilerParams(
            dimension_semantics=("parallel", "parallel"),   # megacore on v7x
            vmem_limit_bytes=_VMEM_LIMIT),
    )(*args)
    return res if emit_stats else res[0]


def _prep_conv3x3(w_oihw, cin_p, cout_p):
    """(O, I, 3, 3) -> (3, 3*Cin_p, Cout_p) bf16 with the dj taps folded into K."""
    o, i, _, _ = w_oihw.shape
    wt = jnp.transpose(w_oihw, (2, 3, 1, 0)).astype(jnp.float32)   # (3,3,I,O)
    wt = jnp.pad(wt, ((0, 0), (0, 0), (0, cin_p - i), (0, cout_p - o)))
    return wt.reshape(3, 3 * cin_p, cout_p).astype(jnp.bfloat16)


# ----------------------------------------------------------------------------
# DoubleConv forward (PyTorch NCHW interface)
# ----------------------------------------------------------------------------
def double_conv_forward(params, x_nchw, t, *, band_rows=None):
    x = jnp.transpose(x_nchw, (0, 2, 3, 1)).astype(jnp.float32)     # -> NHWC
    n, h, w, cin = x.shape
    cout = params["conv1_w"].shape[0]
    cin_p, cout_p = _round_up(cin, _LANE), _round_up(cout, _LANE)
    cnt = n * h * w

    # ---- stage 1: BN1 (tiled Pallas reduction) folded into the fused conv ---
    mean1, var1 = _channel_stats(x.reshape(cnt, cin), cnt)
    scale1, shift1 = _affine_from_stats(mean1, var1, params["bn1_g"],
                                        params["bn1_b"], cin_p)
    xp = _pad_channels(x, cin_p)                        # lane-dense channels
    w1 = _prep_conv3x3(params["conv1_w"], cin_p, cout_p)

    # Linear(t) precomputed as one tiny XLA matmul; kernel only broadcast-adds.
    temb = (t.astype(jnp.float32) @ params["lin_w"].T.astype(jnp.float32)
            + params["lin_b"].astype(jnp.float32))
    temb = _pad_channels(temb, cout_p).reshape(n, 1, cout_p)

    br1 = band_rows if band_rows is not None else _pick_band_rows(
        h, w, cin_p, cout_p, 4, 2, 0)
    top1, bot1 = _band_halos(xp, br1)
    hmid, s_sum, s_sq = _fused_stage(
        xp, top1, bot1, scale1, shift1, w1, add_row=temb, shortcut=None,
        out_dtype=jnp.bfloat16, emit_stats=True, band_rows=br1)

    # ---- stage-2 BN affine straight from the fused stats (no extra HBM pass)
    mean2 = jnp.sum(s_sum, axis=(0, 1, 2)) / cnt
    var2 = jnp.maximum(jnp.sum(s_sq, axis=(0, 1, 2)) / cnt - mean2 * mean2, 0.0)
    scale2, shift2 = _affine_from_stats(
        mean2, var2, _pad_channels(params["bn2_g"], cout_p),
        _pad_channels(params["bn2_b"], cout_p), cout_p)

    w2 = _prep_conv3x3(params["conv2_w"], cout_p, cout_p)
    if "sc_w" in params:
        ws = _pad2d(params["sc_w"].reshape(cout, cin).T,
                    cin_p, cout_p).astype(jnp.bfloat16)
        bs = _pad_channels(params["sc_b"], cout_p).reshape(1, cout_p)
        shortcut = ("conv", xp.astype(jnp.bfloat16), ws, bs)
        sc_px = cin_p * 2
    else:
        shortcut = ("identity", xp)                     # cin_p == cout_p here
        sc_px = cout_p * 4

    br2 = band_rows if band_rows is not None else _pick_band_rows(
        h, w, cout_p, cout_p, 2, 4, sc_px)
    top2, bot2 = _band_halos(hmid, br2)
    out = _fused_stage(hmid, top2, bot2, scale2, shift2, w2, add_row=None,
                       shortcut=shortcut, out_dtype=jnp.float32,
                       emit_stats=False, band_rows=br2)
    return jnp.transpose(out[..., :cout], (0, 3, 1, 2))             # -> NCHW


# ----------------------------------------------------------------------------
# Deterministic PyTorch-like init
# ----------------------------------------------------------------------------
def init_double_conv(key, cin, cout, tdim):
    keys = jax.random.split(key, 6)

    def u(k, shape, fan_in):
        b = 1.0 / math.sqrt(fan_in)
        return jax.random.uniform(k, shape, jnp.float32, -b, b)

    p = {
        "bn1_g": jnp.ones((cin,), jnp.float32),
        "bn1_b": jnp.zeros((cin,), jnp.float32),
        "conv1_w": u(keys[0], (cout, cin, 3, 3), cin * 9),
        "bn2_g": jnp.ones((cout,), jnp.float32),
        "bn2_b": jnp.zeros((cout,), jnp.float32),
        "conv2_w": u(keys[1], (cout, cout, 3, 3), cout * 9),
        "lin_w": u(keys[2], (cout, tdim), tdim),
        "lin_b": u(keys[3], (cout,), tdim),
    }
    if cin != cout:
        p["sc_w"] = u(keys[4], (cout, cin, 1, 1), cin)
        p["sc_b"] = u(keys[5], (cout,), cin)
    return p


# ----------------------------------------------------------------------------
# Pure-JAX reference (f32) for correctness checking
# ----------------------------------------------------------------------------
def reference_double_conv(params, x, t, eps=1e-5):
    def bn(v, g, b):
        mean = jnp.mean(v, axis=(0, 2, 3), keepdims=True)
        var = jnp.mean(jnp.square(v - mean), axis=(0, 2, 3), keepdims=True)
        return ((v - mean) * jax.lax.rsqrt(var + eps)
                * g[None, :, None, None] + b[None, :, None, None])

    def conv(v, w, pad):
        return jax.lax.conv_general_dilated(
            v, w, (1, 1), ((pad, pad), (pad, pad)),
            dimension_numbers=("NCHW", "OIHW", "NCHW"))

    swish = lambda v: v * jax.nn.sigmoid(v)
    h = swish(conv(bn(x, params["bn1_g"], params["bn1_b"]), params["conv1_w"], 1))
    h = h + (t @ params["lin_w"].T + params["lin_b"])[:, :, None, None]
    h2 = swish(conv(bn(h, params["bn2_g"], params["bn2_b"]), params["conv2_w"], 1))
    if "sc_w" in params:
        sc = conv(x, params["sc_w"], 0) + params["sc_b"][None, :, None, None]
    else:
        sc = x
    return h2 + sc


# ----------------------------------------------------------------------------
# Main
# ----------------------------------------------------------------------------
if __name__ == "__main__":
    key = jax.random.PRNGKey(0)
    kp, kx, kt, kp2, kx2 = jax.random.split(key, 5)

    B, Cin, Cout, H, W, Tdim = 2, 4, 8, 16, 16, 32
    x = jax.random.normal(kx, (B, Cin, H, W), jnp.float32)
    t = jax.random.normal(kt, (B, Tdim), jnp.float32)

    fwd = jax.jit(double_conv_forward, static_argnames=("band_rows",))

    # in_channels != out_channels  ->  1x1-conv shortcut path (auto band size)
    params = init_double_conv(kp, Cin, Cout, Tdim)
    ref = reference_double_conv(params, x, t)
    out = fwd(params, x, t)
    jax.block_until_ready(out)
    assert out.shape == (B, Cout, H, W), out.shape
    assert bool(jnp.all(jnp.isfinite(out)))
    assert float(jnp.max(jnp.abs(out - ref))) < 0.2    # bf16 MXU / bf16 hmid

    # Same params, forced row-band tiling (nb=2) to exercise the halo masking.
    out_b = fwd(params, x, t, band_rows=8)
    jax.block_until_ready(out_b)
    assert float(jnp.max(jnp.abs(out_b - ref))) < 0.2

    # in_channels == out_channels  ->  identity shortcut path, nb=4 bands.
    params2 = init_double_conv(kp2, Cout, Cout, Tdim)
    x2 = jax.random.normal(kx2, (B, Cout, H, W), jnp.float32)
    out2 = fwd(params2, x2, t, band_rows=4)
    jax.block_until_ready(out2)
    ref2 = reference_double_conv(params2, x2, t)
    assert out2.shape == (B, Cout, H, W), out2.shape
    assert bool(jnp.all(jnp.isfinite(out2)))
    assert float(jnp.max(jnp.abs(out2 - ref2))) < 0.2

    print("KERNEL_OK")
</pallas_src>

<mosaic_0001>
module attributes {stable_mosaic.version = 11 : i64} {
  func.func @_channel_stats_kernel(%arg0: i32, %arg1: memref<512x4xf32, #tpu.memory_space<vmem>>, %arg2: memref<1x4xf32, #tpu.memory_space<vmem>>, %arg3: memref<1x4xf32, #tpu.memory_space<vmem>>) attributes {dimension_semantics = [#tpu.dimension_semantics<arbitrary>], iteration_bounds = array<i64: 1>, scalar_prefetch = 0 : i64, scratch_operands = 0 : i64, tpu.core_type = #tpu.core_type<tc>, window_params = [{transform_indices = @transform_0, window_bounds = array<i64: 512, 4>}, {pipeline_mode = #tpu.pipeline_mode<synchronous>, transform_indices = @transform_1, window_bounds = array<i64: 1, 4>}, {pipeline_mode = #tpu.pipeline_mode<synchronous>, transform_indices = @transform_2, window_bounds = array<i64: 1, 4>}]} {
    %c0_i32 = arith.constant 0 : i32
    %0 = arith.cmpi eq, %arg0, %c0_i32 : i32
    %1 = arith.extui %0 : i1 to i32
    %c0_i32_0 = arith.constant 0 : i32
    %2 = arith.cmpi ne, %1, %c0_i32_0 : i32
    scf.if %2 {
      %cst_11 = arith.constant 0.000000e+00 : f32
      %15 = vector.broadcast %cst_11 : f32 to vector<1x4xf32>
      %c0_12 = arith.constant 0 : index
      %c0_13 = arith.constant 0 : index
      %16 = vector.load %arg2[%c0_12, %c0_13] : memref<1x4xf32, #tpu.memory_space<vmem>>, vector<1x4xf32>
      tpu.vector_store %arg2[%c0_12, %c0_13], %15 {strides = array<i32>} : memref<1x4xf32, #tpu.memory_space<vmem>>, vector<1x4xf32>,
      %cst_14 = arith.constant 0.000000e+00 : f32
      %17 = vector.broadcast %cst_14 : f32 to vector<1x4xf32>
      %c0_15 = arith.constant 0 : index
      %c0_16 = arith.constant 0 : index
      %18 = vector.load %arg3[%c0_15, %c0_16] : memref<1x4xf32, #tpu.memory_space<vmem>>, vector<1x4xf32>
      tpu.vector_store %arg3[%c0_15, %c0_16], %17 {strides = array<i32>} : memref<1x4xf32, #tpu.memory_space<vmem>>, vector<1x4xf32>,
    } else {
    }
    %c0 = arith.constant 0 : index
    %c0_1 = arith.constant 0 : index
    %3 = vector.load %arg1[%c0, %c0_1] : memref<512x4xf32, #tpu.memory_space<vmem>>, vector<512x4xf32>
    %c0_2 = arith.constant 0 : index
    %c0_3 = arith.constant 0 : index
    %4 = vector.load %arg2[%c0_2, %c0_3] : memref<1x4xf32, #tpu.memory_space<vmem>>, vector<1x4xf32>
    %cst = arith.constant dense<0.000000e+00> : vector<4xf32>
    %5 = vector.multi_reduction <add>, %3, %cst [0] : vector<512x4xf32> to vector<4xf32>
    %6 = vector.shape_cast %5 : vector<4xf32> to vector<1x4xf32>
    %7 = arith.addf %4, %6 : vector<1x4xf32>
    %c0_4 = arith.constant 0 : index
    %c0_5 = arith.constant 0 : index
    %8 = vector.load %arg2[%c0_4, %c0_5] : memref<1x4xf32, #tpu.memory_space<vmem>>, vector<1x4xf32>
    tpu.vector_store %arg2[%c0_4, %c0_5], %7 {strides = array<i32>} : memref<1x4xf32, #tpu.memory_space<vmem>>, vector<1x4xf32>,
    %c0_6 = arith.constant 0 : index
    %c0_7 = arith.constant 0 : index
    %9 = vector.load %arg3[%c0_6, %c0_7] : memref<1x4xf32, #tpu.memory_space<vmem>>, vector<1x4xf32>
    %10 = arith.mulf %3, %3 : vector<512x4xf32>
    %cst_8 = arith.constant dense<0.000000e+00> : vector<4xf32>
    %11 = vector.multi_reduction <add>, %10, %cst_8 [0] : vector<512x4xf32> to vector<4xf32>
    %12 = vector.shape_cast %11 : vector<4xf32> to vector<1x4xf32>
    %13 = arith.addf %9, %12 : vector<1x4xf32>
    %c0_9 = arith.constant 0 : index
    %c0_10 = arith.constant 0 : index
    %14 = vector.load %arg3[%c0_9, %c0_10] : memref<1x4xf32, #tpu.memory_space<vmem>>, vector<1x4xf32>
    tpu.vector_store %arg3[%c0_9, %c0_10], %13 {strides = array<i32>} : memref<1x4xf32, #tpu.memory_space<vmem>>, vector<1x4xf32>,
    return
  }
  func.func @transform_0(%arg0: i32) -> (i32, i32) {
    %c0_i32 = arith.constant 0 : i32
    %c0_i32_0 = arith.constant 0 : i32
    return %arg0, %c0_i32 : i32, i32
  }
  func.func @transform_1(%arg0: i32) -> (i32, i32) {
    %c0_i32 = arith.constant 0 : i32
    %c0_i32_0 = arith.constant 0 : i32
    %c0_i32_1 = arith.constant 0 : i32
    return %c0_i32, %c0_i32_0 : i32, i32
  }
  func.func @transform_2(%arg0: i32) -> (i32, i32) {
    %c0_i32 = arith.constant 0 : i32
    %c0_i32_0 = arith.constant 0 : i32
    %c0_i32_1 = arith.constant 0 : i32
    return %c0_i32, %c0_i32_0 : i32, i32
  }
}

module attributes {stable_mosaic.version = 11 : i64} {
  func.func @_fused_stage_kernel(%arg0: i32, %arg1: i32, %arg2: memref<1x16x16x128xf32, #tpu.memory_space<vmem>>, %arg3: memref<1x1x16x128xf32, #tpu.memory_space<vmem>>, %arg4: memref<1x1x16x128xf32, #tpu.memory_space<vmem>>, %arg5: memref<1x128xf32, #tpu.memory_space<vmem>>, %arg6: memref<1x128xf32, #tpu.memory_space<vmem>>, %arg7: memref<3x384x128xbf16, #tpu.memory_space<vmem>>, %arg8: memref<1x1x128xf32, #tpu.memory_space<vmem>>, %arg9: memref<1x16x16x128xbf16, #tpu.memory_space<vmem>>, %arg10: memref<1x1x8x128xf32, #tpu.memory_space<vmem>>, %arg11: memref<1x1x8x128xf32, #tpu.memory_space<vmem>>, %arg12: memref<18x18x128xbf16, #tpu.memory_space<vmem>>) attributes {dimension_semantics = [#tpu.dimension_semantics<parallel>, #tpu.dimension_semantics<parallel>], iteration_bounds = array<i64: 2, 1>, scalar_prefetch = 0 : i64, scratch_operands = 1 : i64, tpu.core_type = #tpu.core_type<tc>, window_params = [{transform_indices = @transform_0, window_bounds = array<i64: 1, 16, 16, 128>}, {transform_indices = @transform_1, window_bounds = array<i64: 1, 1, 16, 128>}, {transform_indices = @transform_2, window_bounds = array<i64: 1, 1, 16, 128>}, {pipeline_mode = #tpu.pipeline_mode<synchronous>, transform_indices = @transform_3, window_bounds = array<i64: 1, 128>}, {pipeline_mode = #tpu.pipeline_mode<synchronous>, transform_indices = @transform_4, window_bounds = array<i64: 1, 128>}, {pipeline_mode = #tpu.pipeline_mode<synchronous>, transform_indices = @transform_5, window_bounds = array<i64: 3, 384, 128>}, {transform_indices = @transform_6, window_bounds = array<i64: 1, 1, 128>}, {transform_indices = @transform_7, window_bounds = array<i64: 1, 16, 16, 128>}, {transform_indices = @transform_8, window_bounds = array<i64: 1, 1, 8, 128>}, {transform_indices = @transform_9, window_bounds = array<i64: 1, 1, 8, 128>}]} {
    %c0 = arith.constant 0 : index
    %c0_0 = arith.constant 0 : index
    %0 = vector.load %arg5[%c0, %c0_0] : memref<1x128xf32, #tpu.memory_space<vmem>>, vector<1x128xf32>
    %1 = vector.shape_cast %0 : vector<1x128xf32> to vector<1x1x128xf32>
    %c0_1 = arith.constant 0 : index
    %c0_2 = arith.constant 0 : index
    %2 = vector.load %arg6[%c0_1, %c0_2] : memref<1x128xf32, #tpu.memory_space<vmem>>, vector<1x128xf32>
    %3 = vector.shape_cast %2 : vector<1x128xf32> to vector<1x1x128xf32>
    %c0_3 = arith.constant 0 : index
    %c0_4 = arith.constant 0 : index
    %c0_5 = arith.constant 0 : index
    %c0_6 = arith.constant 0 : index
    %4 = vector.load %arg2[%c0_3, %c0_4, %c0_5, %c0_6] : memref<1x16x16x128xf32, #tpu.memory_space<vmem>>, vector<1x16x16x128xf32>
    %5 = vector.shape_cast %4 : vector<1x16x16x128xf32> to vector<16x16x128xf32>
    %6 = vector.broadcast %1 : vector<1x1x128xf32> to vector<16x16x128xf32>
    %7 = arith.mulf %5, %6 : vector<16x16x128xf32>
    %8 = vector.broadcast %3 : vector<1x1x128xf32> to vector<16x16x128xf32>
    %9 = arith.addf %7, %8 : vector<16x16x128xf32>
    %10 = arith.truncf %9 : vector<16x16x128xf32> to vector<16x16x128xbf16>
    %c1 = arith.constant 1 : index
    %c1_7 = arith.constant 1 : index
    %c0_8 = arith.constant 0 : index
    %11 = vector.load %arg12[%c1, %c1_7, %c0_8] : memref<18x18x128xbf16, #tpu.memory_space<vmem>>, vector<16x16x128xbf16>
    tpu.vector_store %arg12[%c1, %c1_7, %c0_8], %10 {strides = array<i32>} : memref<18x18x128xbf16, #tpu.memory_space<vmem>>, vector<16x16x128xbf16>,
    %c0_i32 = arith.constant 0 : i32
    %12 = arith.cmpi sgt, %arg1, %c0_i32 : i32
    %13 = arith.extui %12 : i1 to i32
    %14 = arith.sitofp %13 : i32 to f32
    %c0_i32_9 = arith.constant 0 : i32
    %15 = arith.cmpi slt, %arg1, %c0_i32_9 : i32
    %16 = arith.extui %15 : i1 to i32
    %17 = arith.sitofp %16 : i32 to f32
    %c0_10 = arith.constant 0 : index
    %c0_11 = arith.constant 0 : index
    %c0_12 = arith.constant 0 : index
    %c0_13 = arith.constant 0 : index
    %18 = vector.load %arg3[%c0_10, %c0_11, %c0_12, %c0_13] : memref<1x1x16x128xf32, #tpu.memory_space<vmem>>, vector<1x1x16x128xf32>
    %19 = vector.shape_cast %18 : vector<1x1x16x128xf32> to vector<1x16x128xf32>
    %20 = vector.broadcast %1 : vector<1x1x128xf32> to vector<1x16x128xf32>
    %21 = arith.mulf %19, %20 : vector<1x16x128xf32>
    %22 = vector.broadcast %3 : vector<1x1x128xf32> to vector<1x16x128xf32>
    %23 = arith.addf %21, %22 : vector<1x16x128xf32>
    %24 = vector.broadcast %14 : f32 to vector<1x16x128xf32>
    %25 = arith.mulf %23, %24 : vector<1x16x128xf32>
    %c0_14 = arith.constant 0 : index
    %c0_15 = arith.constant 0 : index
    %c0_16 = arith.constant 0 : index
    %c0_17 = arith.constant 0 : index
    %26 = vector.load %arg4[%c0_14, %c0_15, %c0_16, %c0_17] : memref<1x1x16x128xf32, #tpu.memory_space<vmem>>, vector<1x1x16x128xf32>
    %27 = vector.shape_cast %26 : vector<1x1x16x128xf32> to vector<1x16x128xf32>
    %28 = vector.broadcast %1 : vector<1x1x128xf32> to vector<1x16x128xf32>
    %29 = arith.mulf %27, %28 : vector<1x16x128xf32>
    %30 = vector.broadcast %3 : vector<1x1x128xf32> to vector<1x16x128xf32>
    %31 = arith.addf %29, %30 : vector<1x16x128xf32>
    %32 = vector.broadcast %17 : f32 to vector<1x16x128xf32>
    %33 = arith.mulf %31, %32 : vector<1x16x128xf32>
    %34 = arith.truncf %25 : vector<1x16x128xf32> to vector<1x16x128xbf16>
    %c0_18 = arith.constant 0 : index
    %c1_19 = arith.constant 1 : index
    %c0_20 = arith.constant 0 : index
    %35 = vector.load %arg12[%c0_18, %c1_19, %c0_20] : memref<18x18x128xbf16, #tpu.memory_space<vmem>>, vector<1x16x128xbf16>
    tpu.vector_store %arg12[%c0_18, %c1_19, %c0_20], %34 {strides = array<i32>} : memref<18x18x128xbf16, #tpu.memory_space<vmem>>, vector<1x16x128xbf16>,
    %36 = arith.truncf %33 : vector<1x16x128xf32> to vector<1x16x128xbf16>
    %c17 = arith.constant 17 : index
    %c1_21 = arith.constant 1 : index
    %c0_22 = arith.constant 0 : index
    %37 = vector.load %arg12[%c17, %c1_21, %c0_22] : memref<18x18x128xbf16, #tpu.memory_space<vmem>>, vector<1x16x128xbf16>
    tpu.vector_store %arg12[%c17, %c1_21, %c0_22], %36 {strides = array<i32>} : memref<18x18x128xbf16, #tpu.memory_space<vmem>>, vector<1x16x128xbf16>,
    %cst = arith.constant 0.000000e+00 : bf16
    %38 = vector.broadcast %cst : bf16 to vector<18x1x128xbf16>
    %c0_23 = arith.constant 0 : index
    %c0_24 = arith.constant 0 : index
    %c0_25 = arith.constant 0 : index
    %39 = vector.load %arg12[%c0_23, %c0_24, %c0_25] : memref<18x18x128xbf16, #tpu.memory_space<vmem>>, vector<18x1x128xbf16>
    tpu.vector_store %arg12[%c0_23, %c0_24, %c0_25], %38 {strides = array<i32>} : memref<18x18x128xbf16, #tpu.memory_space<vmem>>, vector<18x1x128xbf16>,
    %c0_26 = arith.constant 0 : index
    %c17_27 = arith.constant 17 : index
    %c0_28 = arith.constant 0 : index
    %40 = vector.load %arg12[%c0_26, %c17_27, %c0_28] : memref<18x18x128xbf16, #tpu.memory_space<vmem>>, vector<18x1x128xbf16>
    tpu.vector_store %arg12[%c0_26, %c17_27, %c0_28], %38 {strides = array<i32>} : memref<18x18x128xbf16, #tpu.memory_space<vmem>>, vector<18x1x128xbf16>,
    %cst_29 = arith.constant 0.000000e+00 : f32
    %41 = vector.broadcast %cst_29 : f32 to vector<256x128xf32>
    %c0_30 = arith.constant 0 : index
    %c0_31 = arith.constant 0 : index
    %c0_32 = arith.constant 0 : index
    %42 = vector.load %arg12[%c0_30, %c0_31, %c0_32] : memref<18x18x128xbf16, #tpu.memory_space<vmem>>, vector<16x16x128xbf16>
    %c0_33 = arith.constant 0 : index
    %c1_34 = arith.constant 1 : index
    %c0_35 = arith.constant 0 : index
    %43 = vector.load %arg12[%c0_33, %c1_34, %c0_35] : memref<18x18x128xbf16, #tpu.memory_space<vmem>>, vector<16x16x128xbf16>
    %c0_36 = arith.constant 0 : index
    %c2 = arith.constant 2 : index
    %c0_37 = arith.constant 0 : index
    %44 = vector.load %arg12[%c0_36, %c2, %c0_37] : memref<18x18x128xbf16, #tpu.memory_space<vmem>>, vector<16x16x128xbf16>
    %45 = tpu.concatenate %42, %43, %44 in 2 : vector<16x16x128xbf16>, vector<16x16x128xbf16>, vector<16x16x128xbf16> -> vector<16x16x384xbf16>
    %46 = vector.shape_cast %45 : vector<16x16x384xbf16> to vector<256x384xbf16>
    %c0_38 = arith.constant 0 : index
    %c0_39 = arith.constant 0 : index
    %c0_40 = arith.constant 0 : index
    %47 = vector.load %arg7[%c0_38, %c0_39, %c0_40] : memref<3x384x128xbf16, #tpu.memory_space<vmem>>, vector<1x384x128xbf16>
    %48 = vector.shape_cast %47 : vector<1x384x128xbf16> to vector<384x128xbf16>
    %cst_41 = arith.constant dense<0.000000e+00> : vector<256x128xf32>
    %49 = tpu.matmul %46, %48, %cst_41 {dimension_numbers = #tpu.dot_dimension_numbers<[1], [0], [0], [1], [0, 0, 1, 1], [], []>} : vector<256x384xbf16>, vector<384x128xbf16>, vector<256x128xf32> -> vector<256x128xf32>
    %50 = arith.addf %41, %49 : vector<256x128xf32>
    %c1_42 = arith.constant 1 : index
    %c0_43 = arith.constant 0 : index
    %c0_44 = arith.constant 0 : index
    %51 = vector.load %arg12[%c1_42, %c0_43, %c0_44] : memref<18x18x128xbf16, #tpu.memory_space<vmem>>, vector<16x16x128xbf16>
    %c1_45 = arith.constant 1 : index
    %c1_46 = arith.constant 1 : index
    %c0_47 = arith.constant 0 : index
    %52 = vector.load %arg12[%c1_45, %c1_46, %c0_47] : memref<18x18x128xbf16, #tpu.memory_space<vmem>>, vector<16x16x128xbf16>
    %c1_48 = arith.constant 1 : index
    %c2_49 = arith.constant 2 : index
    %c0_50 = arith.constant 0 : index
    %53 = vector.load %arg12[%c1_48, %c2_49, %c0_50] : memref<18x18x128xbf16, #tpu.memory_space<vmem>>, vector<16x16x128xbf16>
    %54 = tpu.concatenate %51, %52, %53 in 2 : vector<16x16x128xbf16>, vector<16x16x128xbf16>, vector<16x16x128xbf16> -> vector<16x16x384xbf16>
    %55 = vector.shape_cast %54 : vector<16x16x384xbf16> to vector<256x384xbf16>
    %c1_51 = arith.constant 1 : index
    %c0_52 = arith.constant 0 : index
    %c0_53 = arith.constant 0 : index
    %56 = vector.load %arg7[%c1_51, %c0_52, %c0_53] : memref<3x384x128xbf16, #tpu.memory_space<vmem>>, vector<1x384x128xbf16>
    %57 = vector.shape_cast %56 : vector<1x384x128xbf16> to vector<384x128xbf16>
    %cst_54 = arith.constant dense<0.000000e+00> : vector<256x128xf32>
    %58 = tpu.matmul %55, %57, %cst_54 {dimension_numbers = #tpu.dot_dimension_numbers<[1], [0], [0], [1], [0, 0, 1, 1], [], []>} : vector<256x384xbf16>, vector<384x128xbf16>, vector<256x128xf32> -> vector<256x128xf32>
    %59 = arith.addf %50, %58 : vector<256x128xf32>
    %c2_55 = arith.constant 2 : index
    %c0_56 = arith.constant 0 : index
    %c0_57 = arith.constant 0 : index
    %60 = vector.load %arg12[%c2_55, %c0_56, %c0_57] : memref<18x18x128xbf16, #tpu.memory_space<vmem>>, vector<16x16x128xbf16>
    %c2_58 = arith.constant 2 : index
    %c1_59 = arith.constant 1 : index
    %c0_60 = arith.constant 0 : index
    %61 = vector.load %arg12[%c2_58, %c1_59, %c0_60] : memref<18x18x128xbf16, #tpu.memory_space<vmem>>, vector<16x16x128xbf16>
    %c2_61 = arith.constant 2 : index
    %c2_62 = arith.constant 2 : index
    %c0_63 = arith.constant 0 : index
    %62 = vector.load %arg12[%c2_61, %c2_62, %c0_63] : memref<18x18x128xbf16, #tpu.memory_space<vmem>>, vector<16x16x128xbf16>
    %63 = tpu.concatenate %60, %61, %62 in 2 : vector<16x16x128xbf16>, vector<16x16x128xbf16>, vector<16x16x128xbf16> -> vector<16x16x384xbf16>
    %64 = vector.shape_cast %63 : vector<16x16x384xbf16> to vector<256x384xbf16>
    %c2_64 = arith.constant 2 : index
    %c0_65 = arith.constant 0 : index
    %c0_66 = arith.constant 0 : index
    %65 = vector.load %arg7[%c2_64, %c0_65, %c0_66] : memref<3x384x128xbf16, #tpu.memory_space<vmem>>, vector<1x384x128xbf16>
    %66 = vector.shape_cast %65 : vector<1x384x128xbf16> to vector<384x128xbf16>
    %cst_67 = arith.constant dense<0.000000e+00> : vector<256x128xf32>
    %67 = tpu.matmul %64, %66, %cst_67 {dimension_numbers = #tpu.dot_dimension_numbers<[1], [0], [0], [1], [0, 0, 1, 1], [], []>} : vector<256x384xbf16>, vector<384x128xbf16>, vector<256x128xf32> -> vector<256x128xf32>
    %68 = arith.addf %59, %67 : vector<256x128xf32>
    %69 = arith.negf %68 : vector<256x128xf32>
    %70 = math.exp %69 : vector<256x128xf32>
    %cst_68 = arith.constant 1.000000e+00 : f32
    %71 = vector.broadcast %cst_68 : f32 to vector<256x128xf32>
    %72 = arith.addf %71, %70 : vector<256x128xf32>
    %73 = arith.divf %71, %72 : vector<256x128xf32>
    %74 = arith.mulf %68, %73 : vector<256x128xf32>
    %c0_69 = arith.constant 0 : index
    %c0_70 = arith.constant 0 : index
    %c0_71 = arith.constant 0 : index
    %75 = vector.load %arg8[%c0_69, %c0_70, %c0_71] : memref<1x1x128xf32, #tpu.memory_space<vmem>>, vector<1x1x128xf32>
    %76 = vector.shape_cast %75 : vector<1x1x128xf32> to vector<1x128xf32>
    %77 = vector.broadcast %76 : vector<1x128xf32> to vector<256x128xf32>
    %78 = arith.addf %74, %77 : vector<256x128xf32>
    %cst_72 = arith.constant dense<0.000000e+00> : vector<128xf32>
    %79 = vector.multi_reduction <add>, %78, %cst_72 [0] : vector<256x128xf32> to vector<128xf32>
    %80 = vector.shape_cast %79 : vector<128xf32> to vector<1x128xf32>
    %81 = arith.mulf %78, %78 : vector<256x128xf32>
    %cst_73 = arith.constant dense<0.000000e+00> : vector<128xf32>
    %82 = vector.multi_reduction <add>, %81, %cst_73 [0] : vector<256x128xf32> to vector<128xf32>
    %83 = vector.shape_cast %82 : vector<128xf32> to vector<1x128xf32>
    %cst_74 = arith.constant 0.000000e+00 : f32
    %84 = vector.broadcast %cst_74 : f32 to vector<7x128xf32>
    %85 = tpu.concatenate %80, %84 in 0 : vector<1x128xf32>, vector<7x128xf32> -> vector<8x128xf32>
    %86 = vector.shape_cast %85 : vector<8x128xf32> to vector<1x1x8x128xf32>
    %c0_75 = arith.constant 0 : index
    %c0_76 = arith.constant 0 : index
    %c0_77 = arith.constant 0 : index
    %c0_78 = arith.constant 0 : index
    %87 = vector.load %arg10[%c0_75, %c0_76, %c0_77, %c0_78] : memref<1x1x8x128xf32, #tpu.memory_space<vmem>>, vector<1x1x8x128xf32>
    tpu.vector_store %arg10[%c0_75, %c0_76, %c0_77, %c0_78], %86 {strides = array<i32>} : memref<1x1x8x128xf32, #tpu.memory_space<vmem>>, vector<1x1x8x128xf32>,
    %88 = tpu.concatenate %83, %84 in 0 : vector<1x128xf32>, vector<7x128xf32> -> vector<8x128xf32>
    %89 = vector.shape_cast %88 : vector<8x128xf32> to vector<1x1x8x128xf32>
    %c0_79 = arith.constant 0 : index
    %c0_80 = arith.constant 0 : index
    %c0_81 = arith.constant 0 : index
    %c0_82 = arith.constant 0 : index
    %90 = vector.load %arg11[%c0_79, %c0_80, %c0_81, %c0_82] : memref<1x1x8x128xf32, #tpu.memory_space<vmem>>, vector<1x1x8x128xf32>
    tpu.vector_store %arg11[%c0_79, %c0_80, %c0_81, %c0_82], %89 {strides = array<i32>} : memref<1x1x8x128xf32, #tpu.memory_space<vmem>>, vector<1x1x8x128xf32>,
    %91 = vector.shape_cast %78 : vector<256x128xf32> to vector<16x16x128xf32>
    %92 = arith.truncf %91 : vector<16x16x128xf32> to vector<16x16x128xbf16>
    %c0_83 = arith.constant 0 : index
    %c0_84 = arith.constant 0 : index
    %c0_85 = arith.constant 0 : index
    %c0_86 = arith.constant 0 : index
    %93 = vector.load %arg9[%c0_83, %c0_84, %c0_85, %c0_86] : memref<1x16x16x128xbf16, #tpu.memory_space<vmem>>, vector<1x16x16x128xbf16>
    %94 = vector.shape_cast %93 : vector<1x16x16x128xbf16> to vector<16x16x128xbf16>
    %95 = vector.shape_cast %92 : vector<16x16x128xbf16> to vector<1x16x16x128xbf16>
    tpu.vector_store %arg9[%c0_83, %c0_84, %c0_85, %c0_86], %95 {strides = array<i32>} : memref<1x16x16x128xbf16, #tpu.memory_space<vmem>>, vector<1x16x16x128xbf16>,
    return
  }
  func.func @transform_0(%arg0: i32, %arg1: i32) -> (i32, i32, i32, i32) {
    %c0_i32 = arith.constant 0 : i32
    %c0_i32_0 = arith.constant 0 : i32
    %c0_i32_1 = arith.constant 0 : i32
    return %arg0, %arg1, %c0_i32, %c0_i32_0 : i32, i32, i32, i32
  }
  func.func @transform_1(%arg0: i32, %arg1: i32) -> (i32, i32, i32, i32) {
    %c0_i32 = arith.constant 0 : i32
    %c0_i32_0 = arith.constant 0 : i32
    %c0_i32_1 = arith.constant 0 : i32
    return %arg0, %arg1, %c0_i32, %c0_i32_0 : i32, i32, i32, i32
  }
  func.func @transform_2(%arg0: i32, %arg1: i32) -> (i32, i32, i32, i32) {
    %c0_i32 = arith.constant 0 : i32
    %c0_i32_0 = arith.constant 0 : i32
    %c0_i32_1 = arith.constant 0 : i32
    return %arg0, %arg1, %c0_i32, %c0_i32_0 : i32, i32, i32, i32
  }
  func.func @transform_3(%arg0: i32, %arg1: i32) -> (i32, i32) {
    %c0_i32 = arith.constant 0 : i32
    %c0_i32_0 = arith.constant 0 : i32
    %c0_i32_1 = arith.constant 0 : i32
    return %c0_i32, %c0_i32_0 : i32, i32
  }
  func.func @transform_4(%arg0: i32, %arg1: i32) -> (i32, i32) {
    %c0_i32 = arith.constant 0 : i32
    %c0_i32_0 = arith.constant 0 : i32
    %c0_i32_1 = arith.constant 0 : i32
    return %c0_i32, %c0_i32_0 : i32, i32
  }
  func.func @transform_5(%arg0: i32, %arg1: i32) -> (i32, i32, i32) {
    %c0_i32 = arith.constant 0 : i32
    %c0_i32_0 = arith.constant 0 : i32
    %c0_i32_1 = arith.constant 0 : i32
    %c0_i32_2 = arith.constant 0 : i32
    return %c0_i32, %c0_i32_0, %c0_i32_1 : i32, i32, i32
  }
  func.func @transform_6(%arg0: i32, %arg1: i32) -> (i32, i32, i32) {
    %c0_i32 = arith.constant 0 : i32
    %c0_i32_0 = arith.constant 0 : i32
    %c0_i32_1 = arith.constant 0 : i32
    return %arg0, %c0_i32, %c0_i32_0 : i32, i32, i32
  }
  func.func @transform_7(%arg0: i32, %arg1: i32) -> (i32, i32, i32, i32) {
    %c0_i32 = arith.constant 0 : i32
    %c0_i32_0 = arith.constant 0 : i32
    %c0_i32_1 = arith.constant 0 : i32
    return %arg0, %arg1, %c0_i32, %c0_i32_0 : i32, i32, i32, i32
  }
  func.func @transform_8(%arg0: i32, %arg1: i32) -> (i32, i32, i32, i32) {
    %c0_i32 = arith.constant 0 : i32
    %c0_i32_0 = arith.constant 0 : i32
    %c0_i32_1 = arith.constant 0 : i32
    return %arg0, %arg1, %c0_i32, %c0_i32_0 : i32, i32, i32, i32
  }
  func.func @transform_9(%arg0: i32, %arg1: i32) -> (i32, i32, i32, i32) {
    %c0_i32 = arith.constant 0 : i32
    %c0_i32_0 = arith.constant 0 : i32
    %c0_i32_1 = arith.constant 0 : i32
    return %arg0, %arg1, %c0_i32, %c0_i32_0 : i32, i32, i32, i32
  }
}

module attributes {stable_mosaic.version = 11 : i64} {
  func.func @_fused_stage_kernel(%arg0: i32, %arg1: i32, %arg2: memref<1x16x16x128xbf16, #tpu.memory_space<vmem>>, %arg3: memref<1x1x16x128xbf16, #tpu.memory_space<vmem>>, %arg4: memref<1x1x16x128xbf16, #tpu.memory_space<vmem>>, %arg5: memref<1x128xf32, #tpu.memory_space<vmem>>, %arg6: memref<1x128xf32, #tpu.memory_space<vmem>>, %arg7: memref<3x384x128xbf16, #tpu.memory_space<vmem>>, %arg8: memref<1x16x16x128xbf16, #tpu.memory_space<vmem>>, %arg9: memref<128x128xbf16, #tpu.memory_space<vmem>>, %arg10: memref<1x128xf32, #tpu.memory_space<vmem>>, %arg11: memref<1x16x16x128xf32, #tpu.memory_space<vmem>>, %arg12: memref<18x18x128xbf16, #tpu.memory_space<vmem>>) attributes {dimension_semantics = [#tpu.dimension_semantics<parallel>, #tpu.dimension_semantics<parallel>], iteration_bounds = array<i64: 2, 1>, scalar_prefetch = 0 : i64, scratch_operands = 1 : i64, tpu.core_type = #tpu.core_type<tc>, window_params = [{transform_indices = @transform_0, window_bounds = array<i64: 1, 16, 16, 128>}, {transform_indices = @transform_1, window_bounds = array<i64: 1, 1, 16, 128>}, {transform_indices = @transform_2, window_bounds = array<i64: 1, 1, 16, 128>}, {pipeline_mode = #tpu.pipeline_mode<synchronous>, transform_indices = @transform_3, window_bounds = array<i64: 1, 128>}, {pipeline_mode = #tpu.pipeline_mode<synchronous>, transform_indices = @transform_4, window_bounds = array<i64: 1, 128>}, {pipeline_mode = #tpu.pipeline_mode<synchronous>, transform_indices = @transform_5, window_bounds = array<i64: 3, 384, 128>}, {transform_indices = @transform_6, window_bounds = array<i64: 1, 16, 16, 128>}, {pipeline_mode = #tpu.pipeline_mode<synchronous>, transform_indices = @transform_7, window_bounds = array<i64: 128, 128>}, {pipeline_mode = #tpu.pipeline_mode<synchronous>, transform_indices = @transform_8, window_bounds = array<i64: 1, 128>}, {transform_indices = @transform_9, window_bounds = array<i64: 1, 16, 16, 128>}]} {
    %c0 = arith.constant 0 : index
    %c0_0 = arith.constant 0 : index
    %0 = vector.load %arg5[%c0, %c0_0] : memref<1x128xf32, #tpu.memory_space<vmem>>, vector<1x128xf32>
    %1 = vector.shape_cast %0 : vector<1x128xf32> to vector<1x1x128xf32>
    %c0_1 = arith.constant 0 : index
    %c0_2 = arith.constant 0 : index
    %2 = vector.load %arg6[%c0_1, %c0_2] : memref<1x128xf32, #tpu.memory_space<vmem>>, vector<1x128xf32>
    %3 = vector.shape_cast %2 : vector<1x128xf32> to vector<1x1x128xf32>
    %c0_3 = arith.constant 0 : index
    %c0_4 = arith.constant 0 : index
    %c0_5 = arith.constant 0 : index
    %c0_6 = arith.constant 0 : index
    %4 = vector.load %arg2[%c0_3, %c0_4, %c0_5, %c0_6] : memref<1x16x16x128xbf16, #tpu.memory_space<vmem>>, vector<1x16x16x128xbf16>
    %5 = vector.shape_cast %4 : vector<1x16x16x128xbf16> to vector<16x16x128xbf16>
    %6 = arith.extf %5 : vector<16x16x128xbf16> to vector<16x16x128xf32>
    %7 = vector.broadcast %1 : vector<1x1x128xf32> to vector<16x16x128xf32>
    %8 = arith.mulf %6, %7 : vector<16x16x128xf32>
    %9 = vector.broadcast %3 : vector<1x1x128xf32> to vector<16x16x128xf32>
    %10 = arith.addf %8, %9 : vector<16x16x128xf32>
    %11 = arith.truncf %10 : vector<16x16x128xf32> to vector<16x16x128xbf16>
    %c1 = arith.constant 1 : index
    %c1_7 = arith.constant 1 : index
    %c0_8 = arith.constant 0 : index
    %12 = vector.load %arg12[%c1, %c1_7, %c0_8] : memref<18x18x128xbf16, #tpu.memory_space<vmem>>, vector<16x16x128xbf16>
    tpu.vector_store %arg12[%c1, %c1_7, %c0_8], %11 {strides = array<i32>} : memref<18x18x128xbf16, #tpu.memory_space<vmem>>, vector<16x16x128xbf16>,
    %c0_i32 = arith.constant 0 : i32
    %13 = arith.cmpi sgt, %arg1, %c0_i32 : i32
    %14 = arith.extui %13 : i1 to i32
    %15 = arith.sitofp %14 : i32 to f32
    %c0_i32_9 = arith.constant 0 : i32
    %16 = arith.cmpi slt, %arg1, %c0_i32_9 : i32
    %17 = arith.extui %16 : i1 to i32
    %18 = arith.sitofp %17 : i32 to f32
    %c0_10 = arith.constant 0 : index
    %c0_11 = arith.constant 0 : index
    %c0_12 = arith.constant 0 : index
    %c0_13 = arith.constant 0 : index
    %19 = vector.load %arg3[%c0_10, %c0_11, %c0_12, %c0_13] : memref<1x1x16x128xbf16, #tpu.memory_space<vmem>>, vector<1x1x16x128xbf16>
    %20 = vector.shape_cast %19 : vector<1x1x16x128xbf16> to vector<1x16x128xbf16>
    %21 = arith.extf %20 : vector<1x16x128xbf16> to vector<1x16x128xf32>
    %22 = vector.broadcast %1 : vector<1x1x128xf32> to vector<1x16x128xf32>
    %23 = arith.mulf %21, %22 : vector<1x16x128xf32>
    %24 = vector.broadcast %3 : vector<1x1x128xf32> to vector<1x16x128xf32>
    %25 = arith.addf %23, %24 : vector<1x16x128xf32>
    %26 = vector.broadcast %15 : f32 to vector<1x16x128xf32>
    %27 = arith.mulf %25, %26 : vector<1x16x128xf32>
    %c0_14 = arith.constant 0 : index
    %c0_15 = arith.constant 0 : index
    %c0_16 = arith.constant 0 : index
    %c0_17 = arith.constant 0 : index
    %28 = vector.load %arg4[%c0_14, %c0_15, %c0_16, %c0_17] : memref<1x1x16x128xbf16, #tpu.memory_space<vmem>>, vector<1x1x16x128xbf16>
    %29 = vector.shape_cast %28 : vector<1x1x16x128xbf16> to vector<1x16x128xbf16>
    %30 = arith.extf %29 : vector<1x16x128xbf16> to vector<1x16x128xf32>
    %31 = vector.broadcast %1 : vector<1x1x128xf32> to vector<1x16x128xf32>
    %32 = arith.mulf %30, %31 : vector<1x16x128xf32>
    %33 = vector.broadcast %3 : vector<1x1x128xf32> to vector<1x16x128xf32>
    %34 = arith.addf %32, %33 : vector<1x16x128xf32>
    %35 = vector.broadcast %18 : f32 to vector<1x16x128xf32>
    %36 = arith.mulf %34, %35 : vector<1x16x128xf32>
    %37 = arith.truncf %27 : vector<1x16x128xf32> to vector<1x16x128xbf16>
    %c0_18 = arith.constant 0 : index
    %c1_19 = arith.constant 1 : index
    %c0_20 = arith.constant 0 : index
    %38 = vector.load %arg12[%c0_18, %c1_19, %c0_20] : memref<18x18x128xbf16, #tpu.memory_space<vmem>>, vector<1x16x128xbf16>
    tpu.vector_store %arg12[%c0_18, %c1_19, %c0_20], %37 {strides = array<i32>} : memref<18x18x128xbf16, #tpu.memory_space<vmem>>, vector<1x16x128xbf16>,
    %39 = arith.truncf %36 : vector<1x16x128xf32> to vector<1x16x128xbf16>
    %c17 = arith.constant 17 : index
    %c1_21 = arith.constant 1 : index
    %c0_22 = arith.constant 0 : index
    %40 = vector.load %arg12[%c17, %c1_21, %c0_22] : memref<18x18x128xbf16, #tpu.memory_space<vmem>>, vector<1x16x128xbf16>
    tpu.vector_store %arg12[%c17, %c1_21, %c0_22], %39 {strides = array<i32>} : memref<18x18x128xbf16, #tpu.memory_space<vmem>>, vector<1x16x128xbf16>,
    %cst = arith.constant 0.000000e+00 : bf16
    %41 = vector.broadcast %cst : bf16 to vector<18x1x128xbf16>
    %c0_23 = arith.constant 0 : index
    %c0_24 = arith.constant 0 : index
    %c0_25 = arith.constant 0 : index
    %42 = vector.load %arg12[%c0_23, %c0_24, %c0_25] : memref<18x18x128xbf16, #tpu.memory_space<vmem>>, vector<18x1x128xbf16>
    tpu.vector_store %arg12[%c0_23, %c0_24, %c0_25], %41 {strides = array<i32>} : memref<18x18x128xbf16, #tpu.memory_space<vmem>>, vector<18x1x128xbf16>,
    %c0_26 = arith.constant 0 : index
    %c17_27 = arith.constant 17 : index
    %c0_28 = arith.constant 0 : index
    %43 = vector.load %arg12[%c0_26, %c17_27, %c0_28] : memref<18x18x128xbf16, #tpu.memory_space<vmem>>, vector<18x1x128xbf16>
    tpu.vector_store %arg12[%c0_26, %c17_27, %c0_28], %41 {strides = array<i32>} : memref<18x18x128xbf16, #tpu.memory_space<vmem>>, vector<18x1x128xbf16>,
    %cst_29 = arith.constant 0.000000e+00 : f32
    %44 = vector.broadcast %cst_29 : f32 to vector<256x128xf32>
    %c0_30 = arith.constant 0 : index
    %c0_31 = arith.constant 0 : index
    %c0_32 = arith.constant 0 : index
    %45 = vector.load %arg12[%c0_30, %c0_31, %c0_32] : memref<18x18x128xbf16, #tpu.memory_space<vmem>>, vector<16x16x128xbf16>
    %c0_33 = arith.constant 0 : index
    %c1_34 = arith.constant 1 : index
    %c0_35 = arith.constant 0 : index
    %46 = vector.load %arg12[%c0_33, %c1_34, %c0_35] : memref<18x18x128xbf16, #tpu.memory_space<vmem>>, vector<16x16x128xbf16>
    %c0_36 = arith.constant 0 : index
    %c2 = arith.constant 2 : index
    %c0_37 = arith.constant 0 : index
    %47 = vector.load %arg12[%c0_36, %c2, %c0_37] : memref<18x18x128xbf16, #tpu.memory_space<vmem>>, vector<16x16x128xbf16>
    %48 = tpu.concatenate %45, %46, %47 in 2 : vector<16x16x128xbf16>, vector<16x16x128xbf16>, vector<16x16x128xbf16> -> vector<16x16x384xbf16>
    %49 = vector.shape_cast %48 : vector<16x16x384xbf16> to vector<256x384xbf16>
    %c0_38 = arith.constant 0 : index
    %c0_39 = arith.constant 0 : index
    %c0_40 = arith.constant 0 : index
    %50 = vector.load %arg7[%c0_38, %c0_39, %c0_40] : memref<3x384x128xbf16, #tpu.memory_space<vmem>>, vector<1x384x128xbf16>
    %51 = vector.shape_cast %50 : vector<1x384x128xbf16> to vector<384x128xbf16>
    %cst_41 = arith.constant dense<0.000000e+00> : vector<256x128xf32>
    %52 = tpu.matmul %49, %51, %cst_41 {dimension_numbers = #tpu.dot_dimension_numbers<[1], [0], [0], [1], [0, 0, 1, 1], [], []>} : vector<256x384xbf16>, vector<384x128xbf16>, vector<256x128xf32> -> vector<256x128xf32>
    %53 = arith.addf %44, %52 : vector<256x128xf32>
    %c1_42 = arith.constant 1 : index
    %c0_43 = arith.constant 0 : index
    %c0_44 = arith.constant 0 : index
    %54 = vector.load %arg12[%c1_42, %c0_43, %c0_44] : memref<18x18x128xbf16, #tpu.memory_space<vmem>>, vector<16x16x128xbf16>
    %c1_45 = arith.constant 1 : index
    %c1_46 = arith.constant 1 : index
    %c0_47 = arith.constant 0 : index
    %55 = vector.load %arg12[%c1_45, %c1_46, %c0_47] : memref<18x18x128xbf16, #tpu.memory_space<vmem>>, vector<16x16x128xbf16>
    %c1_48 = arith.constant 1 : index
    %c2_49 = arith.constant 2 : index
    %c0_50 = arith.constant 0 : index
    %56 = vector.load %arg12[%c1_48, %c2_49, %c0_50] : memref<18x18x128xbf16, #tpu.memory_space<vmem>>, vector<16x16x128xbf16>
    %57 = tpu.concatenate %54, %55, %56 in 2 : vector<16x16x128xbf16>, vector<16x16x128xbf16>, vector<16x16x128xbf16> -> vector<16x16x384xbf16>
    %58 = vector.shape_cast %57 : vector<16x16x384xbf16> to vector<256x384xbf16>
    %c1_51 = arith.constant 1 : index
    %c0_52 = arith.constant 0 : index
    %c0_53 = arith.constant 0 : index
    %59 = vector.load %arg7[%c1_51, %c0_52, %c0_53] : memref<3x384x128xbf16, #tpu.memory_space<vmem>>, vector<1x384x128xbf16>
    %60 = vector.shape_cast %59 : vector<1x384x128xbf16> to vector<384x128xbf16>
    %cst_54 = arith.constant dense<0.000000e+00> : vector<256x128xf32>
    %61 = tpu.matmul %58, %60, %cst_54 {dimension_numbers = #tpu.dot_dimension_numbers<[1], [0], [0], [1], [0, 0, 1, 1], [], []>} : vector<256x384xbf16>, vector<384x128xbf16>, vector<256x128xf32> -> vector<256x128xf32>
    %62 = arith.addf %53, %61 : vector<256x128xf32>
    %c2_55 = arith.constant 2 : index
    %c0_56 = arith.constant 0 : index
    %c0_57 = arith.constant 0 : index
    %63 = vector.load %arg12[%c2_55, %c0_56, %c0_57] : memref<18x18x128xbf16, #tpu.memory_space<vmem>>, vector<16x16x128xbf16>
    %c2_58 = arith.constant 2 : index
    %c1_59 = arith.constant 1 : index
    %c0_60 = arith.constant 0 : index
    %64 = vector.load %arg12[%c2_58, %c1_59, %c0_60] : memref<18x18x128xbf16, #tpu.memory_space<vmem>>, vector<16x16x128xbf16>
    %c2_61 = arith.constant 2 : index
    %c2_62 = arith.constant 2 : index
    %c0_63 = arith.constant 0 : index
    %65 = vector.load %arg12[%c2_61, %c2_62, %c0_63] : memref<18x18x128xbf16, #tpu.memory_space<vmem>>, vector<16x16x128xbf16>
    %66 = tpu.concatenate %63, %64, %65 in 2 : vector<16x16x128xbf16>, vector<16x16x128xbf16>, vector<16x16x128xbf16> -> vector<16x16x384xbf16>
    %67 = vector.shape_cast %66 : vector<16x16x384xbf16> to vector<256x384xbf16>
    %c2_64 = arith.constant 2 : index
    %c0_65 = arith.constant 0 : index
    %c0_66 = arith.constant 0 : index
    %68 = vector.load %arg7[%c2_64, %c0_65, %c0_66] : memref<3x384x128xbf16, #tpu.memory_space<vmem>>, vector<1x384x128xbf16>
    %69 = vector.shape_cast %68 : vector<1x384x128xbf16> to vector<384x128xbf16>
    %cst_67 = arith.constant dense<0.000000e+00> : vector<256x128xf32>
    %70 = tpu.matmul %67, %69, %cst_67 {dimension_numbers = #tpu.dot_dimension_numbers<[1], [0], [0], [1], [0, 0, 1, 1], [], []>} : vector<256x384xbf16>, vector<384x128xbf16>, vector<256x128xf32> -> vector<256x128xf32>
    %71 = arith.addf %62, %70 : vector<256x128xf32>
    %72 = arith.negf %71 : vector<256x128xf32>
    %73 = math.exp %72 : vector<256x128xf32>
    %cst_68 = arith.constant 1.000000e+00 : f32
    %74 = vector.broadcast %cst_68 : f32 to vector<256x128xf32>
    %75 = arith.addf %74, %73 : vector<256x128xf32>
    %76 = arith.divf %74, %75 : vector<256x128xf32>
    %77 = arith.mulf %71, %76 : vector<256x128xf32>
    %c0_69 = arith.constant 0 : index
    %c0_70 = arith.constant 0 : index
    %c0_71 = arith.constant 0 : index
    %c0_72 = arith.constant 0 : index
    %78 = vector.load %arg8[%c0_69, %c0_70, %c0_71, %c0_72] : memref<1x16x16x128xbf16, #tpu.memory_space<vmem>>, vector<1x16x16x128xbf16>
    %79 = vector.shape_cast %78 : vector<1x16x16x128xbf16> to vector<16x16x128xbf16>
    %80 = vector.shape_cast %79 : vector<16x16x128xbf16> to vector<256x128xbf16>
    %c0_73 = arith.constant 0 : index
    %c0_74 = arith.constant 0 : index
    %81 = vector.load %arg9[%c0_73, %c0_74] : memref<128x128xbf16, #tpu.memory_space<vmem>>, vector<128x128xbf16>
    %cst_75 = arith.constant dense<0.000000e+00> : vector<256x128xf32>
    %82 = tpu.matmul %80, %81, %cst_75 {dimension_numbers = #tpu.dot_dimension_numbers<[1], [0], [0], [1], [0, 0, 1, 1], [], []>} : vector<256x128xbf16>, vector<128x128xbf16>, vector<256x128xf32> -> vector<256x128xf32>
    %c0_76 = arith.constant 0 : index
    %c0_77 = arith.constant 0 : index
    %83 = vector.load %arg10[%c0_76, %c0_77] : memref<1x128xf32, #tpu.memory_space<vmem>>, vector<1x128xf32>
    %84 = vector.broadcast %83 : vector<1x128xf32> to vector<256x128xf32>
    %85 = arith.addf %82, %84 : vector<256x128xf32>
    %86 = arith.addf %77, %85 : vector<256x128xf32>
    %87 = vector.shape_cast %86 : vector<256x128xf32> to vector<16x16x128xf32>
    %c0_78 = arith.constant 0 : index
    %c0_79 = arith.constant 0 : index
    %c0_80 = arith.constant 0 : index
    %c0_81 = arith.constant 0 : index
    %88 = vector.load %arg11[%c0_78, %c0_79, %c0_80, %c0_81] : memref<1x16x16x128xf32, #tpu.memory_space<vmem>>, vector<1x16x16x128xf32>
    %89 = vector.shape_cast %88 : vector<1x16x16x128xf32> to vector<16x16x128xf32>
    %90 = vector.shape_cast %87 : vector<16x16x128xf32> to vector<1x16x16x128xf32>
    tpu.vector_store %arg11[%c0_78, %c0_79, %c0_80, %c0_81], %90 {strides = array<i32>} : memref<1x16x16x128xf32, #tpu.memory_space<vmem>>, vector<1x16x16x128xf32>,
    return
  }
  func.func @transform_0(%arg0: i32, %arg1: i32) -> (i32, i32, i32, i32) {
    %c0_i32 = arith.constant 0 : i32
    %c0_i32_0 = arith.constant 0 : i32
    %c0_i32_1 = arith.constant 0 : i32
    return %arg0, %arg1, %c0_i32, %c0_i32_0 : i32, i32, i32, i32
  }
  func.func @transform_1(%arg0: i32, %arg1: i32) -> (i32, i32, i32, i32) {
    %c0_i32 = arith.constant 0 : i32
    %c0_i32_0 = arith.constant 0 : i32
    %c0_i32_1 = arith.constant 0 : i32
    return %arg0, %arg1, %c0_i32, %c0_i32_0 : i32, i32, i32, i32
  }
  func.func @transform_2(%arg0: i32, %arg1: i32) -> (i32, i32, i32, i32) {
    %c0_i32 = arith.constant 0 : i32
    %c0_i32_0 = arith.constant 0 : i32
    %c0_i32_1 = arith.constant 0 : i32
    return %arg0, %arg1, %c0_i32, %c0_i32_0 : i32, i32, i32, i32
  }
  func.func @transform_3(%arg0: i32, %arg1: i32) -> (i32, i32) {
    %c0_i32 = arith.constant 0 : i32
    %c0_i32_0 = arith.constant 0 : i32
    %c0_i32_1 = arith.constant 0 : i32
    return %c0_i32, %c0_i32_0 : i32, i32
  }
  func.func @transform_4(%arg0: i32, %arg1: i32) -> (i32, i32) {
    %c0_i32 = arith.constant 0 : i32
    %c0_i32_0 = arith.constant 0 : i32
    %c0_i32_1 = arith.constant 0 : i32
    return %c0_i32, %c0_i32_0 : i32, i32
  }
  func.func @transform_5(%arg0: i32, %arg1: i32) -> (i32, i32, i32) {
    %c0_i32 = arith.constant 0 : i32
    %c0_i32_0 = arith.constant 0 : i32
    %c0_i32_1 = arith.constant 0 : i32
    %c0_i32_2 = arith.constant 0 : i32
    return %c0_i32, %c0_i32_0, %c0_i32_1 : i32, i32, i32
  }
  func.func @transform_6(%arg0: i32, %arg1: i32) -> (i32, i32, i32, i32) {
    %c0_i32 = arith.constant 0 : i32
    %c0_i32_0 = arith.constant 0 : i32
    %c0_i32_1 = arith.constant 0 : i32
    return %arg0, %arg1, %c0_i32, %c0_i32_0 : i32, i32, i32, i32
  }
  func.func @transform_7(%arg0: i32, %arg1: i32) -> (i32, i32) {
    %c0_i32 = arith.constant 0 : i32
    %c0_i32_0 = arith.constant 0 : i32
    %c0_i32_1 = arith.constant 0 : i32
    return %c0_i32, %c0_i32_0 : i32, i32
  }
  func.func @transform_8(%arg0: i32, %arg1: i32) -> (i32, i32) {
    %c0_i32 = arith.constant 0 : i32
    %c0_i32_0 = arith.constant 0 : i32
    %c0_i32_1 = arith.constant 0 : i32
    return %c0_i32, %c0_i32_0 : i32, i32
  }
  func.func @transform_9(%arg0: i32, %arg1: i32) -> (i32, i32, i32, i32) {
    %c0_i32 = arith.constant 0 : i32
    %c0_i32_0 = arith.constant 0 : i32
    %c0_i32_1 = arith.constant 0 : i32
    return %arg0, %arg1, %c0_i32, %c0_i32_0 : i32, i32, i32, i32
  }
}

</mosaic_0001>

<llo_original>
// kernel: double_conv_forward.3
$region0: #{double_conv_forward.3}
  #allocation0 [shape = 'u32[]', space=smem, size = 0x4, offset = 0x4, fixed_abs, tag = 'smem constant byte address 0x4 - core index']
  #allocation1 [shape = 'u32[144,128]{1,0:T(1,128)}', space=vmem, size = 0x12000, scoped, tag = 'internal scratch']
  %s0 = inlined_call_operand.vmem [shape: f32[512,4], index: 0, kind: input, shape index: {}]
  %s1 = inlined_call_operand.vmem [shape: f32[1,4], index: 1, kind: output, shape index: {0}]
  %s2 = inlined_call_operand.vmem [shape: f32[1,4], index: 2, kind: output, shape index: {1}]
  %3 = xla_tuple %s1, %s2
  %s4 = sld [smem:[#allocation0]]
  $region26: #{double_conv_forward.3} parent=0
    _
  %s6 = ssub.s32 1, %s4
  %s7 = scalar_select 0, %s6, %s4
  // Predicated region
  $region2: #{double_conv_forward.3} parent=0 // pred_check
    _
  $region3: #{double_conv_forward.3} parent=0 // pred_check_branch
    %9 = sbr.rel (0) target = $region5
  $region4: #{double_conv_forward.3} parent=0 // pred_region
    _
  $region5: #{double_conv_forward.3} parent=0 // pred_fallthru
    _
  %p10 = scmp.eq.s32.totalorder 0, 0
  // Predicated region
  $region6: #{double_conv_forward.3} parent=0 // pred_check
    %p11 = pneg %p10
  $region7: #{double_conv_forward.3} parent=0 // pred_check_branch
    %13 = sbr.rel (%p11) target = $region9
  $region8: #{double_conv_forward.3} parent=0 // pred_region
    %vm14 = vcmask 24576
    %15 = vst.msk [vmem:[%s1] sm:$0x1] %vm14, 0.0
    %16 = vst.msk [vmem:[%s2] sm:$0x1] %vm14, 0.0
  $region9: #{double_conv_forward.3} parent=0 // pred_fallthru
    _
  %v17 = vld [vmem:[%s0] sm:$0xff]
  %v18 = vld [vmem:[%s0 + $0x8] sm:$0xff]
  %v19 = vld [vmem:[%s0 + $0x10] sm:$0xff]
  %v20 = vld [vmem:[%s0 + $0x18] sm:$0xff]
  %v21 = vld [vmem:[%s0 + $0x20] sm:$0xff]
  %v22 = vld [vmem:[%s0 + $0x28] sm:$0xff]
  %v23 = vld [vmem:[%s0 + $0x30] sm:$0xff]
  %v24 = vld [vmem:[%s0 + $0x38] sm:$0xff]
  %v25 = vld [vmem:[%s0 + $0x40] sm:$0xff]
  %v26 = vld [vmem:[%s0 + $0x48] sm:$0xff]
  %v27 = vld [vmem:[%s0 + $0x50] sm:$0xff]
  %v28 = vld [vmem:[%s0 + $0x58] sm:$0xff]
  %v29 = vld [vmem:[%s0 + $0x60] sm:$0xff]
  %v30 = vld [vmem:[%s0 + $0x68] sm:$0xff]
  %v31 = vld [vmem:[%s0 + $0x70] sm:$0xff]
  %v32 = vld [vmem:[%s0 + $0x78] sm:$0xff]
  %v33 = vld [vmem:[%s0 + $0x80] sm:$0xff]
  %v34 = vld [vmem:[%s0 + $0x88] sm:$0xff]
  %v35 = vld [vmem:[%s0 + $0x90] sm:$0xff]
  %v36 = vld [vmem:[%s0 + $0x98] sm:$0xff]
  %v37 = vld [vmem:[%s0 + $0xa0] sm:$0xff]
  %v38 = vld [vmem:[%s0 + $0xa8] sm:$0xff]
  %v39 = vld [vmem:[%s0 + $0xb0] sm:$0xff]
  %v40 = vld [vmem:[%s0 + $0xb8] sm:$0xff]
  %v41 = vld [vmem:[%s0 + $0xc0] sm:$0xff]
  %v42 = vld [vmem:[%s0 + $0xc8] sm:$0xff]
  %v43 = vld [vmem:[%s0 + $0xd0] sm:$0xff]
  %v44 = vld [vmem:[%s0 + $0xd8] sm:$0xff]
  %v45 = vld [vmem:[%s0 + $0xe0] sm:$0xff]
  %v46 = vld [vmem:[%s0 + $0xe8] sm:$0xff]
  %v47 = vld [vmem:[%s0 + $0xf0] sm:$0xff]
  %v48 = vld [vmem:[%s0 + $0xf8] sm:$0xff]
  %v49 = vld [vmem:[%s0 + $0x100] sm:$0xff]
  %v50 = vld [vmem:[%s0 + $0x108] sm:$0xff]
  %v51 = vld [vmem:[%s0 + $0x110] sm:$0xff]
  %v52 = vld [vmem:[%s0 + $0x118] sm:$0xff]
  %v53 = vld [vmem:[%s0 + $0x120] sm:$0xff]
  %v54 = vld [vmem:[%s0 + $0x128] sm:$0xff]
  %v55 = vld [vmem:[%s0 + $0x130] sm:$0xff]
  %v56 = vld [vmem:[%s0 + $0x138] sm:$0xff]
  %v57 = vld [vmem:[%s0 + $0x140] sm:$0xff]
  %v58 = vld [vmem:[%s0 + $0x148] sm:$0xff]
  %v59 = vld [vmem:[%s0 + $0x150] sm:$0xff]
  %v60 = vld [vmem:[%s0 + $0x158] sm:$0xff]
  %v61 = vld [vmem:[%s0 + $0x160] sm:$0xff]
  %v62 = vld [vmem:[%s0 + $0x168] sm:$0xff]
  %v63 = vld [vmem:[%s0 + $0x170] sm:$0xff]
  %v64 = vld [vmem:[%s0 + $0x178] sm:$0xff]
  %v65 = vld [vmem:[%s0 + $0x180] sm:$0xff]
  %v66 = vld [vmem:[%s0 + $0x188] sm:$0xff]
  %v67 = vld [vmem:[%s0 + $0x190] sm:$0xff]
  %v68 = vld [vmem:[%s0 + $0x198] sm:$0xff]
  %v69 = vld [vmem:[%s0 + $0x1a0] sm:$0xff]
  %v70 = vld [vmem:[%s0 + $0x1a8] sm:$0xff]
  %v71 = vld [vmem:[%s0 + $0x1b0] sm:$0xff]
  %v72 = vld [vmem:[%s0 + $0x1b8] sm:$0xff]
  %v73 = vld [vmem:[%s0 + $0x1c0] sm:$0xff]
  %v74 = vld [vmem:[%s0 + $0x1c8] sm:$0xff]
  %v75 = vld [vmem:[%s0 + $0x1d0] sm:$0xff]
  %v76 = vld [vmem:[%s0 + $0x1d8] sm:$0xff]
  %v77 = vld [vmem:[%s0 + $0x1e0] sm:$0xff]
  %v78 = vld [vmem:[%s0 + $0x1e8] sm:$0xff]
  %v79 = vld [vmem:[%s0 + $0x1f0] sm:$0xff]
  %v80 = vld [vmem:[%s0 + $0x1f8] sm:$0xff]
  %v81 = vld [vmem:[%s1] sm:$0x1]
  %vm82 = vcmask 31744
  %v83 = vsel %vm82, %v17, 0.0
  %v84 = vsel %vm82, %v18, 0.0
  %v85 = vadd.f32 %v83, %v84
  %v86 = vsel %vm82, %v19, 0.0
  %v87 = vadd.f32 %v85, %v86
  %v88 = vsel %vm82, %v20, 0.0
  %v89 = vadd.f32 %v87, %v88
  %v90 = vsel %vm82, %v21, 0.0
  %v91 = vadd.f32 %v89, %v90
  %v92 = vsel %vm82, %v22, 0.0
  %v93 = vadd.f32 %v91, %v92
  %v94 = vsel %vm82, %v23, 0.0
  %v95 = vadd.f32 %v93, %v94
  %v96 = vsel %vm82, %v24, 0.0
  %v97 = vadd.f32 %v95, %v96
  %v98 = vsel %vm82, %v25, 0.0
  %v99 = vadd.f32 %v97, %v98
  %v100 = vsel %vm82, %v26, 0.0
  %v101 = vadd.f32 %v99, %v100
  %v102 = vsel %vm82, %v27, 0.0
  %v103 = vadd.f32 %v101, %v102
  %v104 = vsel %vm82, %v28, 0.0
  %v105 = vadd.f32 %v103, %v104
  %v106 = vsel %vm82, %v29, 0.0
  %v107 = vadd.f32 %v105, %v106
  %v108 = vsel %vm82, %v30, 0.0
  %v109 = vadd.f32 %v107, %v108
  %v110 = vsel %vm82, %v31, 0.0
  %v111 = vadd.f32 %v109, %v110
  %v112 = vsel %vm82, %v32, 0.0
  %v113 = vadd.f32 %v111, %v112
  %v114 = vsel %vm82, %v33, 0.0
  %v115 = vadd.f32 %v113, %v114
  %v116 = vsel %vm82, %v34, 0.0
  %v117 = vadd.f32 %v115, %v116
  %v118 = vsel %vm82, %v35, 0.0
  %v119 = vadd.f32 %v117, %v118
  %v120 = vsel %vm82, %v36, 0.0
  %v121 = vadd.f32 %v119, %v120
  %v122 = vsel %vm82, %v37, 0.0
  %v123 = vadd.f32 %v121, %v122
  %v124 = vsel %vm82, %v38, 0.0
  %v125 = vadd.f32 %v123, %v124
  %v126 = vsel %vm82, %v39, 0.0
  %v127 = vadd.f32 %v125, %v126
  %v128 = vsel %vm82, %v40, 0.0
  %v129 = vadd.f32 %v127, %v128
  %v130 = vsel %vm82, %v41, 0.0
  %v131 = vadd.f32 %v129, %v130
  %v132 = vsel %vm82, %v42, 0.0
  %v133 = vadd.f32 %v131, %v132
  %v134 = vsel %vm82, %v43, 0.0
  %v135 = vadd.f32 %v133, %v134
  %v136 = vsel %vm82, %v44, 0.0
  %v137 = vadd.f32 %v135, %v136
  %v138 = vsel %vm82, %v45, 0.0
  %v139 = vadd.f32 %v137, %v138
  %v140 = vsel %vm82, %v46, 0.0
  %v141 = vadd.f32 %v139, %v140
  %v142 = vsel %vm82, %v47, 0.0
  %v143 = vadd.f32 %v141, %v142
  %v144 = vsel %vm82, %v48, 0.0
  %v145 = vadd.f32 %v143, %v144
  %v146 = vsel %vm82, %v49, 0.0
  %v147 = vadd.f32 %v145, %v146
  %v148 = vsel %vm82, %v50, 0.0
  %v149 = vadd.f32 %v147, %v148
  %v150 = vsel %vm82, %v51, 0.0
  %v151 = vadd.f32 %v149, %v150
  %v152 = vsel %vm82, %v52, 0.0
  %v153 = vadd.f32 %v151, %v152
  %v154 = vsel %vm82, %v53, 0.0
  %v155 = vadd.f32 %v153, %v154
  %v156 = vsel %vm82, %v54, 0.0
  %v157 = vadd.f32 %v155, %v156
  %v158 = vsel %vm82, %v55, 0.0
  %v159 = vadd.f32 %v157, %v158
  %v160 = vsel %vm82, %v56, 0.0
  %v161 = vadd.f32 %v159, %v160
  %v162 = vsel %vm82, %v57, 0.0
  %v163 = vadd.f32 %v161, %v162
  %v164 = vsel %vm82, %v58, 0.0
  %v165 = vadd.f32 %v163, %v164
  %v166 = vsel %vm82, %v59, 0.0
  %v167 = vadd.f32 %v165, %v166
  %v168 = vsel %vm82, %v60, 0.0
  %v169 = vadd.f32 %v167, %v168
  %v170 = vsel %vm82, %v61, 0.0
  %v171 = vadd.f32 %v169, %v170
  %v172 = vsel %vm82, %v62, 0.0
  %v173 = vadd.f32 %v171, %v172
  %v174 = vsel %vm82, %v63, 0.0
  %v175 = vadd.f32 %v173, %v174
  %v176 = vsel %vm82, %v64, 0.0
  %v177 = vadd.f32 %v175, %v176
  %v178 = vsel %vm82, %v65, 0.0
  %v179 = vadd.f32 %v177, %v178
  %v180 = vsel %vm82, %v66, 0.0
  %v181 = vadd.f32 %v179, %v180
  %v182 = vsel %vm82, %v67, 0.0
  %v183 = vadd.f32 %v181, %v182
  %v184 = vsel %vm82, %v68, 0.0
  %v185 = vadd.f32 %v183, %v184
  %v186 = vsel %vm82, %v69, 0.0
  %v187 = vadd.f32 %v185, %v186
  %v188 = vsel %vm82, %v70, 0.0
  %v189 = vadd.f32 %v187, %v188
  %v190 = vsel %vm82, %v71, 0.0
  %v191 = vadd.f32 %v189, %v190
  %v192 = vsel %vm82, %v72, 0.0
  %v193 = vadd.f32 %v191, %v192
  %v194 = vsel %vm82, %v73, 0.0
  %v195 = vadd.f32 %v193, %v194
  %v196 = vsel %vm82, %v74, 0.0
  %v197 = vadd.f32 %v195, %v196
  %v198 = vsel %vm82, %v75, 0.0
  %v199 = vadd.f32 %v197, %v198
  %v200 = vsel %vm82, %v76, 0.0
  %v201 = vadd.f32 %v199, %v200
  %v202 = vsel %vm82, %v77, 0.0
  %v203 = vadd.f32 %v201, %v202
  %v204 = vsel %vm82, %v78, 0.0
  %v205 = vadd.f32 %v203, %v204
  %v206 = vsel %vm82, %v79, 0.0
  %v207 = vadd.f32 %v205, %v206
  %v208 = vsel %vm82, %v80, 0.0
  %v209 = vadd.f32 %v207, %v208
  %v210 = vrot.slane %v209, 4
  %v211 = vadd.f32 %v209, %v210
  %v212 = vrot.slane %v211, 2
  %v213 = vadd.f32 %v211, %v212
  %v214 = vrot.slane %v213, 1
  %v215 = vadd.f32 %v213, %v214
  %v216 = vadd.f32 %v81, %v215
  %vm217 = vcmask 24576
  %218 = vst.msk [vmem:[%s1] sm:$0x1] %vm217, %v216
  %v219 = vld [vmem:[%s2] sm:$0x1]
  %v220 = vmul.f32 %v17, %v17
  %v221 = vmul.f32 %v18, %v18
  %v222 = vmul.f32 %v19, %v19
  %v223 = vmul.f32 %v20, %v20
  %v224 = vmul.f32 %v21, %v21
  %v225 = vmul.f32 %v22, %v22
  %v226 = vmul.f32 %v23, %v23
  %v227 = vmul.f32 %v24, %v24
  %v228 = vmul.f32 %v25, %v25
  %v229 = vmul.f32 %v26, %v26
  %v230 = vmul.f32 %v27, %v27
  %v231 = vmul.f32 %v28, %v28
  %v232 = vmul.f32 %v29, %v29
  %v233 = vmul.f32 %v30, %v30
  %v234 = vmul.f32 %v31, %v31
  %v235 = vmul.f32 %v32, %v32
  %v236 = vmul.f32 %v33, %v33
  %v237 = vmul.f32 %v34, %v34
  %v238 = vmul.f32 %v35, %v35
  %v239 = vmul.f32 %v36, %v36
  %v240 = vmul.f32 %v37, %v37
  %v241 = vmul.f32 %v38, %v38
  %v242 = vmul.f32 %v39, %v39
  %v243 = vmul.f32 %v40, %v40
  %v244 = vmul.f32 %v41, %v41
  %v245 = vmul.f32 %v42, %v42
  %v246 = vmul.f32 %v43, %v43
  %v247 = vmul.f32 %v44, %v44
  %v248 = vmul.f32 %v45, %v45
  %v249 = vmul.f32 %v46, %v46
  %v250 = vmul.f32 %v47, %v47
  %v251 = vmul.f32 %v48, %v48
  %v252 = vmul.f32 %v49, %v49
  %v253 = vmul.f32 %v50, %v50
  %v254 = vmul.f32 %v51, %v51
  %v255 = vmul.f32 %v52, %v52
  %v256 = vmul.f32 %v53, %v53
  %v257 = vmul.f32 %v54, %v54
  %v258 = vmul.f32 %v55, %v55
  %v259 = vmul.f32 %v56, %v56
  %v260 = vmul.f32 %v57, %v57
  %v261 = vmul.f32 %v58, %v58
  %v262 = vmul.f32 %v59, %v59
  %v263 = vmul.f32 %v60, %v60
  %v264 = vmul.f32 %v61, %v61
  %v265 = vmul.f32 %v62, %v62
  %v266 = vmul.f32 %v63, %v63
  %v267 = vmul.f32 %v64, %v64
  %v268 = vmul.f32 %v65, %v65
  %v269 = vmul.f32 %v66, %v66
  %v270 = vmul.f32 %v67, %v67
  %v271 = vmul.f32 %v68, %v68
  %v272 = vmul.f32 %v69, %v69
  %v273 = vmul.f32 %v70, %v70
  %v274 = vmul.f32 %v71, %v71
  %v275 = vmul.f32 %v72, %v72
  %v276 = vmul.f32 %v73, %v73
  %v277 = vmul.f32 %v74, %v74
  %v278 = vmul.f32 %v75, %v75
  %v279 = vmul.f32 %v76, %v76
  %v280 = vmul.f32 %v77, %v77
  %v281 = vmul.f32 %v78, %v78
  %v282 = vmul.f32 %v79, %v79
  %v283 = vmul.f32 %v80, %v80
  %v284 = vsel %vm82, %v220, 0.0
  %v285 = vsel %vm82, %v221, 0.0
  %v286 = vadd.f32 %v284, %v285
  %v287 = vsel %vm82, %v222, 0.0
  %v288 = vadd.f32 %v286, %v287
  %v289 = vsel %vm82, %v223, 0.0
  %v290 = vadd.f32 %v288, %v289
  %v291 = vsel %vm82, %v224, 0.0
  %v292 = vadd.f32 %v290, %v291
  %v293 = vsel %vm82, %v225, 0.0
  %v294 = vadd.f32 %v292, %v293
  %v295 = vsel %vm82, %v226, 0.0
  %v296 = vadd.f32 %v294, %v295
  %v297 = vsel %vm82, %v227, 0.0
  %v298 = vadd.f32 %v296, %v297
  %v299 = vsel %vm82, %v228, 0.0
  %v300 = vadd.f32 %v298, %v299
  %v301 = vsel %vm82, %v229, 0.0
  %v302 = vadd.f32 %v300, %v301
  %v303 = vsel %vm82, %v230, 0.0
  %v304 = vadd.f32 %v302, %v303
  %v305 = vsel %vm82, %v231, 0.0
  %v306 = vadd.f32 %v304, %v305
  %v307 = vsel %vm82, %v232, 0.0
  %v308 = vadd.f32 %v306, %v307
  %v309 = vsel %vm82, %v233, 0.0
  %v310 = vadd.f32 %v308, %v309
  %v311 = vsel %vm82, %v234, 0.0
  %v312 = vadd.f32 %v310, %v311
  %v313 = vsel %vm82, %v235, 0.0
  %v314 = vadd.f32 %v312, %v313
  %v315 = vsel %vm82, %v236, 0.0
  %v316 = vadd.f32 %v314, %v315
  %v317 = vsel %vm82, %v237, 0.0
  %v318 = vadd.f32 %v316, %v317
  %v319 = vsel %vm82, %v238, 0.0
  %v320 = vadd.f32 %v318, %v319
  %v321 = vsel %vm82, %v239, 0.0
  %v322 = vadd.f32 %v320, %v321
  %v323 = vsel %vm82, %v240, 0.0
  %v324 = vadd.f32 %v322, %v323
  %v325 = vsel %vm82, %v241, 0.0
  %v326 = vadd.f32 %v324, %v325
  %v327 = vsel %vm82, %v242, 0.0
  %v328 = vadd.f32 %v326, %v327
  %v329 = vsel %vm82, %v243, 0.0
  %v330 = vadd.f32 %v328, %v329
  %v331 = vsel %vm82, %v244, 0.0
  %v332 = vadd.f32 %v330, %v331
  %v333 = vsel %vm82, %v245, 0.0
  %v334 = vadd.f32 %v332, %v333
  %v335 = vsel %vm82, %v246, 0.0
  %v336 = vadd.f32 %v334, %v335
  %v337 = vsel %vm82, %v247, 0.0
  %v338 = vadd.f32 %v336, %v337
  %v339 = vsel %vm82, %v248, 0.0
  %v340 = vadd.f32 %v338, %v339
  %v341 = vsel %vm82, %v249, 0.0
  %v342 = vadd.f32 %v340, %v341
  %v343 = vsel %vm82, %v250, 0.0
  %v344 = vadd.f32 %v342, %v343
  %v345 = vsel %vm82, %v251, 0.0
  %v346 = vadd.f32 %v344, %v345
  %v347 = vsel %vm82, %v252, 0.0
  %v348 = vadd.f32 %v346, %v347
  %v349 = vsel %vm82, %v253, 0.0
  %v350 = vadd.f32 %v348, %v349
  %v351 = vsel %vm82, %v254, 0.0
  %v352 = vadd.f32 %v350, %v351
  %v353 = vsel %vm82, %v255, 0.0
  %v354 = vadd.f32 %v352, %v353
  %v355 = vsel %vm82, %v256, 0.0
  %v356 = vadd.f32 %v354, %v355
  %v357 = vsel %vm82, %v257, 0.0
  %v358 = vadd.f32 %v356, %v357
  %v359 = vsel %vm82, %v258, 0.0
  %v360 = vadd.f32 %v358, %v359
  %v361 = vsel %vm82, %v259, 0.0
  %v362 = vadd.f32 %v360, %v361
  %v363 = vsel %vm82, %v260, 0.0
  %v364 = vadd.f32 %v362, %v363
  %v365 = vsel %vm82, %v261, 0.0
  %v366 = vadd.f32 %v364, %v365
  %v367 = vsel %vm82, %v262, 0.0
  %v368 = vadd.f32 %v366, %v367
  %v369 = vsel %vm82, %v263, 0.0
  %v370 = vadd.f32 %v368, %v369
  %v371 = vsel %vm82, %v264, 0.0
  %v372 = vadd.f32 %v370, %v371
  %v373 = vsel %vm82, %v265, 0.0
  %v374 = vadd.f32 %v372, %v373
  %v375 = vsel %vm82, %v266, 0.0
  %v376 = vadd.f32 %v374, %v375
  %v377 = vsel %vm82, %v267, 0.0
  %v378 = vadd.f32 %v376, %v377
  %v379 = vsel %vm82, %v268, 0.0
  %v380 = vadd.f32 %v378, %v379
  %v381 = vsel %vm82, %v269, 0.0
  %v382 = vadd.f32 %v380, %v381
  %v383 = vsel %vm82, %v270, 0.0
  %v384 = vadd.f32 %v382, %v383
  %v385 = vsel %vm82, %v271, 0.0
  %v386 = vadd.f32 %v384, %v385
  %v387 = vsel %vm82, %v272, 0.0
  %v388 = vadd.f32 %v386, %v387
  %v389 = vsel %vm82, %v273, 0.0
  %v390 = vadd.f32 %v388, %v389
  %v391 = vsel %vm82, %v274, 0.0
  %v392 = vadd.f32 %v390, %v391
  %v393 = vsel %vm82, %v275, 0.0
  %v394 = vadd.f32 %v392, %v393
  %v395 = vsel %vm82, %v276, 0.0
  %v396 = vadd.f32 %v394, %v395
  %v397 = vsel %vm82, %v277, 0.0
  %v398 = vadd.f32 %v396, %v397
  %v399 = vsel %vm82, %v278, 0.0
  %v400 = vadd.f32 %v398, %v399
  %v401 = vsel %vm82, %v279, 0.0
  %v402 = vadd.f32 %v400, %v401
  %v403 = vsel %vm82, %v280, 0.0
  %v404 = vadd.f32 %v402, %v403
  %v405 = vsel %vm82, %v281, 0.0
  %v406 = vadd.f32 %v404, %v405
  %v407 = vsel %vm82, %v282, 0.0
  %v408 = vadd.f32 %v406, %v407
  %v409 = vsel %vm82, %v283, 0.0
  %v410 = vadd.f32 %v408, %v409
  %v411 = vrot.slane %v410, 4
  %v412 = vadd.f32 %v410, %v411
  %v413 = vrot.slane %v412, 2
  %v414 = vadd.f32 %v412, %v413
  %v415 = vrot.slane %v414, 1
  %v416 = vadd.f32 %v414, %v415
  %v417 = vadd.f32 %v219, %v416
  %418 = vst.msk [vmem:[%s2] sm:$0x1] %vm217, %v417
  // Predicated region
  $region10: #{double_conv_forward.3} parent=0 // pred_check
    _
  $region11: #{double_conv_forward.3} parent=0 // pred_check_branch
    %420 = sbr.rel (0) target = $region13
  $region12: #{double_conv_forward.3} parent=0 // pred_region
    _
  $region13: #{double_conv_forward.3} parent=0 // pred_fallthru
    _
  // Predicated region
  $region14: #{double_conv_forward.3} parent=0 // pred_check
    _
  $region15: #{double_conv_forward.3} parent=0 // pred_check_branch
    %422 = sbr.rel (0) target = $region17
  $region16: #{double_conv_forward.3} parent=0 // pred_region
    _
  $region17: #{double_conv_forward.3} parent=0 // pred_fallthru
    _
  // Predicated region
  $region18: #{double_conv_forward.3} parent=0 // pred_check
    _
  $region19: #{double_conv_forward.3} parent=0 // pred_check_branch
    %424 = sbr.rel (0) target = $region21
  $region20: #{double_conv_forward.3} parent=0 // pred_region
    _
  $region21: #{double_conv_forward.3} parent=0 // pred_fallthru
    _
  // Predicated region
  $region22: #{double_conv_forward.3} parent=0 // pred_check
    _
  $region23: #{double_conv_forward.3} parent=0 // pred_check_branch
    %426 = sbr.rel (0) target = $region25
  $region24: #{double_conv_forward.3} parent=0 // pred_region
    _
  $region25: #{double_conv_forward.3} parent=0 // pred_fallthru
    _

// kernel: double_conv_forward.4
$region0: #{double_conv_forward.4}
  #allocation0 [shape = 'u32[]', space=smem, size = 0x4, offset = 0x4, fixed_abs, tag = 'smem constant byte address 0x4 - core index']
  #allocation1 [shape = 'u32[144,128]{1,0:T(1,128)}', space=vmem, size = 0x12000, scoped, tag = 'internal scratch']
  #allocation2 [shape = 'bf16[18,18,128]{2,1,0:T(8,128)(2,1)}', space=vmem, size = 0x1b000, scoped, tag = 'scratch operand']
  %s0 = inlined_call_operand.vmem [shape: f32[2,16,16,128], index: 0, kind: input, shape index: {}]
  %s1 = inlined_call_operand.vmem [shape: f32[2,1,16,128], index: 1, kind: input, shape index: {}, may-alias: {1,2}]
  %s2 = inlined_call_operand.vmem [shape: f32[2,1,16,128], index: 2, kind: input, shape index: {}, may-alias: {1,2}]
  %s3 = inlined_call_operand.vmem [shape: f32[1,128], index: 3, kind: input, shape index: {}]
  %s4 = inlined_call_operand.vmem [shape: f32[1,128], index: 4, kind: input, shape index: {}]
  %s5 = inlined_call_operand.vmem [shape: bf16[3,384,128], index: 5, kind: input, shape index: {}]
  %s6 = inlined_call_operand.vmem [shape: f32[2,1,128], index: 6, kind: input, shape index: {}]
  %s7 = inlined_call_operand.vmem [shape: bf16[2,16,16,128], index: 7, kind: output, shape index: {0}]
  %s8 = inlined_call_operand.vmem [shape: f32[2,1,8,128], index: 8, kind: output, shape index: {1}]
  %s9 = inlined_call_operand.vmem [shape: f32[2,1,8,128], index: 9, kind: output, shape index: {2}]
  %10 = xla_tuple %s7, %s8, %s9
  %s11 = sld [smem:[#allocation0]]
  $region77: #{double_conv_forward.4} parent=0
    _
  %s13 = ssub.s32 1, %s11
  %s14 = scalar_select 0, %s13, %s11
  loop: start=0, step=1, limit=4
  $region2: #{double_conv_forward.4} parent=0 // loop_pre_header
    _
  $region3: #{double_conv_forward.4} parent=0 // loop_header
    %s16 = sphi 0, %s20
    %p17 = scmp.ge.s32.totalorder %s16, 4
    %s23 = sphi 0, %s35
    %s24 = sphi 0, %s31
    %s25 = sphi 0, %s23
    %s26 = sphi 0, %s24
    %s27 = sphi 0, %s25
    %s28 = sphi 0, %s26
    %s40 = sphi 0, %s42
    %s43 = sphi 0, %s40
    %s44 = sphi 0, %s43
    %s60 = sphi 0, %s44
    %s68 = sphi 0, %s70
    %s71 = sphi 0, %s68
    %s72 = sphi 0, %s71
    %s88 = sphi 0, %s72
    %s96 = sphi 0, %s98
    %s99 = sphi 0, %s96
    %s100 = sphi 0, %s99
    %s116 = sphi 0, %s100
    %s120 = sphi 0, %s120
    %s122 = sphi 0, %s120
    %s123 = sphi 0, %s122
    %s137 = sphi 0, %s123
    %s141 = sphi 0, %s141
    %s143 = sphi 0, %s141
    %s144 = sphi 0, %s143
    %s158 = sphi 0, %s144
    %s162 = sphi 0, %s162
    %s164 = sphi 0, %s162
    %s165 = sphi 0, %s164
    %s179 = sphi 0, %s165
    %s185 = sphi 0, %s187
    %s188 = sphi 0, %s185
    %s189 = sphi 0, %s188
    %s205 = sphi 0, %s189
    %s213 = sphi 0, %s215
    %s216 = sphi 0, %s213
    %s217 = sphi 0, %s216
    %s233 = sphi 0, %s217
    %s241 = sphi 0, %s243
    %s244 = sphi 0, %s241
    %s245 = sphi 0, %s244
    %s261 = sphi 0, %s245
    %s269 = sphi 0, %s271
    %s272 = sphi 0, %s269
    %s273 = sphi 0, %s272
    %s289 = sphi 0, %s273
  $region4: #{double_conv_forward.4} parent=0 // loop_header_branch
    %19 = sbr.rel (%p17) target = $region8
  $region5: #{double_conv_forward.4} parent=0 // loop_body
    %s21 = ssub.s32 %s16, 1
    %s22 = ssub.s32 %s16, 2
    %s29 = sadd.s32 1, %s24
    %p30 = scmp.ge.s32.totalorder %s29, 1
    %s31 = scalar_select %p30, 0, %s29
    %s32 = sadd.s32 1, %s23
    %s33 = scalar_select %p30, %s32, %s23
    %p34 = scmp.ge.s32.totalorder %s33, 2
    %s35 = scalar_select %p34, 0, %s33
    %s36 = ssub.s32 %s23, %s35
    %s37 = ssub.s32 %s24, %s31
    %s38 = sor.u32 %s36, %s37
    %p39 = scmp.eq.s32.totalorder %s38, 0
    %s41 = sadd.s32 %s40, 1
    %s42 = scalar_select %p39, %s40, %s41
    %p45 = pneg %p39
    %p46 = scmp.eq.s32.totalorder %s16, 1
    %p47 = por %p45, %p46
    %p48 = scmp.ne.s32.totalorder %s40, %s43
    %p49 = scmp.eq.s32.totalorder %s16, 0
    %p50 = por %p48, %p49
    %p51 = scmp.ne.s32.totalorder %s40, %s43
    %p52 = scmp.eq.s32.totalorder %s21, 1
    %p53 = por %p51, %p52
    %p54 = scmp.ne.s32.totalorder %s43, %s44
    %p55 = scmp.eq.s32.totalorder %s21, 0
    %p56 = por %p54, %p55
    %p57 = scmp.ne.s32.totalorder %s43, %s44
    %p58 = scmp.eq.s32.totalorder %s22, 1
    %p59 = por %p57, %p58
    %p61 = scmp.ne.s32.totalorder %s44, %s60
    %p62 = scmp.eq.s32.totalorder %s22, 0
    %p63 = por %p61, %p62
    %s64 = ssub.s32 %s23, %s35
    %s65 = ssub.s32 %s24, %s31
    %s66 = sor.u32 %s64, %s65
    %p67 = scmp.eq.s32.totalorder %s66, 0
    %s69 = sadd.s32 %s68, 1
    %s70 = scalar_select %p67, %s68, %s69
    %p73 = pneg %p67
    %p74 = scmp.eq.s32.totalorder %s16, 1
    %p75 = por %p73, %p74
    %p76 = scmp.ne.s32.totalorder %s68, %s71
    %p77 = scmp.eq.s32.totalorder %s16, 0
    %p78 = por %p76, %p77
    %p79 = scmp.ne.s32.totalorder %s68, %s71
    %p80 = scmp.eq.s32.totalorder %s21, 1
    %p81 = por %p79, %p80
    %p82 = scmp.ne.s32.totalorder %s71, %s72
    %p83 = scmp.eq.s32.totalorder %s21, 0
    %p84 = por %p82, %p83
    %p85 = scmp.ne.s32.totalorder %s71, %s72
    %p86 = scmp.eq.s32.totalorder %s22, 1
    %p87 = por %p85, %p86
    %p89 = scmp.ne.s32.totalorder %s72, %s88
    %p90 = scmp.eq.s32.totalorder %s22, 0
    %p91 = por %p89, %p90
    %s92 = ssub.s32 %s23, %s35
    %s93 = ssub.s32 %s24, %s31
    %s94 = sor.u32 %s92, %s93
    %p95 = scmp.eq.s32.totalorder %s94, 0
    %s97 = sadd.s32 %s96, 1
    %s98 = scalar_select %p95, %s96, %s97
    %p101 = pneg %p95
    %p102 = scmp.eq.s32.totalorder %s16, 1
    %p103 = por %p101, %p102
    %p104 = scmp.ne.s32.totalorder %s96, %s99
    %p105 = scmp.eq.s32.totalorder %s16, 0
    %p106 = por %p104, %p105
    %p107 = scmp.ne.s32.totalorder %s96, %s99
    %p108 = scmp.eq.s32.totalorder %s21, 1
    %p109 = por %p107, %p108
    %p110 = scmp.ne.s32.totalorder %s99, %s100
    %p111 = scmp.eq.s32.totalorder %s21, 0
    %p112 = por %p110, %p111
    %p113 = scmp.ne.s32.totalorder %s99, %s100
    %p114 = scmp.eq.s32.totalorder %s22, 1
    %p115 = por %p113, %p114
    %p117 = scmp.ne.s32.totalorder %s100, %s116
    %p118 = scmp.eq.s32.totalorder %s22, 0
    %p119 = por %p117, %p118
    %s121 = sadd.s32 %s120, 1
    %p124 = scmp.eq.s32.totalorder %s16, 1
    %p125 = scmp.ne.s32.totalorder %s120, %s122
    %p126 = scmp.eq.s32.totalorder %s16, 0
    %p127 = por %p125, %p126
    %p128 = scmp.ne.s32.totalorder %s120, %s122
    %p129 = scmp.eq.s32.totalorder %s21, 1
    %p130 = por %p128, %p129
    %p131 = scmp.ne.s32.totalorder %s122, %s123
    %p132 = scmp.eq.s32.totalorder %s21, 0
    %p133 = por %p131, %p132
    %p134 = scmp.ne.s32.totalorder %s122, %s123
    %p135 = scmp.eq.s32.totalorder %s22, 1
    %p136 = por %p134, %p135
    %p138 = scmp.ne.s32.totalorder %s123, %s137
    %p139 = scmp.eq.s32.totalorder %s22, 0
    %p140 = por %p138, %p139
    %s142 = sadd.s32 %s141, 1
    %p145 = scmp.eq.s32.totalorder %s16, 1
    %p146 = scmp.ne.s32.totalorder %s141, %s143
    %p147 = scmp.eq.s32.totalorder %s16, 0
    %p148 = por %p146, %p147
    %p149 = scmp.ne.s32.totalorder %s141, %s143
    %p150 = scmp.eq.s32.totalorder %s21, 1
    %p151 = por %p149, %p150
    %p152 = scmp.ne.s32.totalorder %s143, %s144
    %p153 = scmp.eq.s32.totalorder %s21, 0
    %p154 = por %p152, %p153
    %p155 = scmp.ne.s32.totalorder %s143, %s144
    %p156 = scmp.eq.s32.totalorder %s22, 1
    %p157 = por %p155, %p156
    %p159 = scmp.ne.s32.totalorder %s144, %s158
    %p160 = scmp.eq.s32.totalorder %s22, 0
    %p161 = por %p159, %p160
    %s163 = sadd.s32 %s162, 1
    %p166 = scmp.eq.s32.totalorder %s16, 1
    %p167 = scmp.ne.s32.totalorder %s162, %s164
    %p168 = scmp.eq.s32.totalorder %s16, 0
    %p169 = por %p167, %p168
    %p170 = scmp.ne.s32.totalorder %s162, %s164
    %p171 = scmp.eq.s32.totalorder %s21, 1
    %p172 = por %p170, %p171
    %p173 = scmp.ne.s32.totalorder %s164, %s165
    %p174 = scmp.eq.s32.totalorder %s21, 0
    %p175 = por %p173, %p174
    %p176 = scmp.ne.s32.totalorder %s164, %s165
    %p177 = scmp.eq.s32.totalorder %s22, 1
    %p178 = por %p176, %p177
    %p180 = scmp.ne.s32.totalorder %s165, %s179
    %p181 = scmp.eq.s32.totalorder %s22, 0
    %p182 = por %p180, %p181
    %s183 = ssub.s32 %s23, %s35
    %p184 = scmp.eq.s32.totalorder %s183, 0
    %s186 = sadd.s32 %s185, 1
    %s187 = scalar_select %p184, %s185, %s186
    %p190 = pneg %p184
    %p191 = scmp.eq.s32.totalorder %s16, 1
    %p192 = por %p190, %p191
    %p193 = scmp.ne.s32.totalorder %s185, %s188
    %p194 = scmp.eq.s32.totalorder %s16, 0
    %p195 = por %p193, %p194
    %p196 = scmp.ne.s32.totalorder %s185, %s188
    %p197 = scmp.eq.s32.totalorder %s21, 1
    %p198 = por %p196, %p197
    %p199 = scmp.ne.s32.totalorder %s188, %s189
    %p200 = scmp.eq.s32.totalorder %s21, 0
    %p201 = por %p199, %p200
    %p202 = scmp.ne.s32.totalorder %s188, %s189
    %p203 = scmp.eq.s32.totalorder %s22, 1
    %p204 = por %p202, %p203
    %p206 = scmp.ne.s32.totalorder %s189, %s205
    %p207 = scmp.eq.s32.totalorder %s22, 0
    %p208 = por %p206, %p207
    %s209 = ssub.s32 %s23, %s35
    %s210 = ssub.s32 %s24, %s31
    %s211 = sor.u32 %s209, %s210
    %p212 = scmp.eq.s32.totalorder %s211, 0
    %s214 = sadd.s32 %s213, 1
    %s215 = scalar_select %p212, %s213, %s214
    %p218 = pneg %p212
    %p219 = scmp.eq.s32.totalorder %s16, 1
    %p220 = por %p218, %p219
    %p221 = scmp.ne.s32.totalorder %s213, %s216
    %p222 = scmp.eq.s32.totalorder %s16, 0
    %p223 = por %p221, %p222
    %p224 = scmp.ne.s32.totalorder %s213, %s216
    %p225 = scmp.eq.s32.totalorder %s21, 1
    %p226 = por %p224, %p225
    %p227 = scmp.ne.s32.totalorder %s216, %s217
    %p228 = scmp.eq.s32.totalorder %s21, 0
    %p229 = por %p227, %p228
    %p230 = scmp.ne.s32.totalorder %s216, %s217
    %p231 = scmp.eq.s32.totalorder %s22, 1
    %p232 = por %p230, %p231
    %p234 = scmp.ne.s32.totalorder %s217, %s233
    %p235 = scmp.eq.s32.totalorder %s22, 0
    %p236 = por %p234, %p235
    %s237 = ssub.s32 %s23, %s35
    %s238 = ssub.s32 %s24, %s31
    %s239 = sor.u32 %s237, %s238
    %p240 = scmp.eq.s32.totalorder %s239, 0
    %s242 = sadd.s32 %s241, 1
    %s243 = scalar_select %p240, %s241, %s242
    %p246 = pneg %p240
    %p247 = scmp.eq.s32.totalorder %s16, 1
    %p248 = por %p246, %p247
    %p249 = scmp.ne.s32.totalorder %s241, %s244
    %p250 = scmp.eq.s32.totalorder %s16, 0
    %p251 = por %p249, %p250
    %p252 = scmp.ne.s32.totalorder %s241, %s244
    %p253 = scmp.eq.s32.totalorder %s21, 1
    %p254 = por %p252, %p253
    %p255 = scmp.ne.s32.totalorder %s244, %s245
    %p256 = scmp.eq.s32.totalorder %s21, 0
    %p257 = por %p255, %p256
    %p258 = scmp.ne.s32.totalorder %s244, %s245
    %p259 = scmp.eq.s32.totalorder %s22, 1
    %p260 = por %p258, %p259
    %p262 = scmp.ne.s32.totalorder %s245, %s261
    %p263 = scmp.eq.s32.totalorder %s22, 0
    %p264 = por %p262, %p263
    %s265 = ssub.s32 %s23, %s35
    %s266 = ssub.s32 %s24, %s31
    %s267 = sor.u32 %s265, %s266
    %p268 = scmp.eq.s32.totalorder %s267, 0
    %s270 = sadd.s32 %s269, 1
    %s271 = scalar_select %p268, %s269, %s270
    %p274 = pneg %p268
    %p275 = scmp.eq.s32.totalorder %s16, 1
    %p276 = por %p274, %p275
    %p277 = scmp.ne.s32.totalorder %s269, %s272
    %p278 = scmp.eq.s32.totalorder %s16, 0
    %p279 = por %p277, %p278
    %p280 = scmp.ne.s32.totalorder %s269, %s272
    %p281 = scmp.eq.s32.totalorder %s21, 1
    %p282 = por %p280, %p281
    %p283 = scmp.ne.s32.totalorder %s272, %s273
    %p284 = scmp.eq.s32.totalorder %s21, 0
    %p285 = por %p283, %p284
    %p286 = scmp.ne.s32.totalorder %s272, %s273
    %p287 = scmp.eq.s32.totalorder %s22, 1
    %p288 = por %p286, %p287
    %p290 = scmp.ne.s32.totalorder %s273, %s289
    %p291 = scmp.eq.s32.totalorder %s22, 0
    %p292 = por %p290, %p291
    %p293 = scmp.le.s32.totalorder 1, %s16
    %p294 = scmp.lt.s32.totalorder %s16, 3
    %p295 = pnand %p293, %p294
    %p296 = pneg %p295
    // Predicated region
    $region9: #{double_conv_forward.4} parent=5 // pred_check
      _
    $region10: #{double_conv_forward.4} parent=5 // pred_check_branch
      %298 = sbr.rel (%p295) target = $region12
    $region11: #{double_conv_forward.4} parent=5 // pred_region
      %s299 = ssub.s32 %s16, 1
      // Predicated region
      $region13: #{double_conv_forward.4} parent=11 // pred_check
        %p300 = pneg %p133
      $region14: #{double_conv_forward.4} parent=11 // pred_check_branch
        %302 = sbr.rel (%p300) target = $region16
      $region15: #{double_conv_forward.4} parent=11 // pred_region
        _
      $region16: #{double_conv_forward.4} parent=11 // pred_fallthru
        _
      // Predicated region
      $region17: #{double_conv_forward.4} parent=11 // pred_check
        %p303 = pneg %p154
      $region18: #{double_conv_forward.4} parent=11 // pred_check_branch
        %305 = sbr.rel (%p303) target = $region20
      $region19: #{double_conv_forward.4} parent=11 // pred_region
        _
      $region20: #{double_conv_forward.4} parent=11 // pred_fallthru
        _
      // Predicated region
      $region21: #{double_conv_forward.4} parent=11 // pred_check
        %p306 = pneg %p175
      $region22: #{double_conv_forward.4} parent=11 // pred_check_branch
        %308 = sbr.rel (%p306) target = $region24
      $region23: #{double_conv_forward.4} parent=11 // pred_region
        _
      $region24: #{double_conv_forward.4} parent=11 // pred_fallthru
        _
    $region12: #{double_conv_forward.4} parent=5 // pred_fallthru
      _
    %p309 = scmp.lt.s32.totalorder %s16, 2
    // Predicated region
    $region25: #{double_conv_forward.4} parent=5 // pred_check
      %p310 = pneg %p309
    $region26: #{double_conv_forward.4} parent=5 // pred_check_branch
      %312 = sbr.rel (%p310) target = $region28
    $region27: #{double_conv_forward.4} parent=5 // pred_region
      // Predicated region
      $region29: #{double_conv_forward.4} parent=27 // pred_check
        %p313 = pneg %p50
      $region30: #{double_conv_forward.4} parent=27 // pred_check_branch
        %315 = sbr.rel (%p313) target = $region32
      $region31: #{double_conv_forward.4} parent=27 // pred_region
        %s316 = smul.u32 16, %s24
        %p317 = scmp.lt.s32.totalorder %s23, 1
        %s318 = scalar_select %p317, %s23, 1
        %p319 = scmp.lt.s32.totalorder %s316, 15
        %s320 = scalar_select %p319, %s316, 15
        %s321 = smul.addr %s320, 2
        %s322 = smul.addr %s318, 32
        %s323 = sadd.s32 %s321, %s322
        %s324 = smul.addr %s323, 8
        %s325 = scalar_lea.vmem %s0, %s324
        %s326 = smul.u32 16, %s24
      $region32: #{double_conv_forward.4} parent=27 // pred_fallthru
        _
      // Predicated region
      $region33: #{double_conv_forward.4} parent=27 // pred_check
        %p327 = pneg %p78
      $region34: #{double_conv_forward.4} parent=27 // pred_check_branch
        %329 = sbr.rel (%p327) target = $region36
      $region35: #{double_conv_forward.4} parent=27 // pred_region
        %p330 = scmp.lt.s32.totalorder %s23, 1
        %s331 = scalar_select %p330, %s23, 1
        %p332 = scmp.lt.s32.totalorder %s24, 0
        %s333 = scalar_select %p332, %s24, 0
        %s334 = smul.addr %s333, 2
        %s335 = smul.addr %s331, 2
        %s336 = sadd.s32 %s334, %s335
        %s337 = smul.addr %s336, 8
        %s338 = scalar_lea.vmem %s1, %s337
      $region36: #{double_conv_forward.4} parent=27 // pred_fallthru
        _
      // Predicated region
      $region37: #{double_conv_forward.4} parent=27 // pred_check
        %p339 = pneg %p106
      $region38: #{double_conv_forward.4} parent=27 // pred_check_branch
        %341 = sbr.rel (%p339) target = $region40
      $region39: #{double_conv_forward.4} parent=27 // pred_region
        %p342 = scmp.lt.s32.totalorder %s23, 1
        %s343 = scalar_select %p342, %s23, 1
        %p344 = scmp.lt.s32.totalorder %s24, 0
        %s345 = scalar_select %p344, %s24, 0
        %s346 = smul.addr %s345, 2
        %s347 = smul.addr %s343, 2
        %s348 = sadd.s32 %s346, %s347
        %s349 = smul.addr %s348, 8
        %s350 = scalar_lea.vmem %s2, %s349
      $region40: #{double_conv_forward.4} parent=27 // pred_fallthru
        _
      // Predicated region
      $region41: #{double_conv_forward.4} parent=27 // pred_check
        %p351 = pneg %p195
      $region42: #{double_conv_forward.4} parent=27 // pred_check_branch
        %353 = sbr.rel (%p351) target = $region44
      $region43: #{double_conv_forward.4} parent=27 // pred_region
        %p354 = scmp.lt.s32.totalorder %s23, 1
        %s355 = scalar_select %p354, %s23, 1
        %s356 = scalar_lea.vmem %s6, %s355
      $region44: #{double_conv_forward.4} parent=27 // pred_fallthru
        _
    $region28: #{double_conv_forward.4} parent=5 // pred_fallthru
      _
    %p357 = scmp.le.s32.totalorder 1, %s16
    %p358 = scmp.lt.s32.totalorder %s16, 3
    %p359 = pnand %p357, %p358
    %p360 = pneg %p359
    // Predicated region
    $region45: #{double_conv_forward.4} parent=5 // pred_check
      _
    $region46: #{double_conv_forward.4} parent=5 // pred_check_branch
      %362 = sbr.rel (%p359) target = $region48
    $region47: #{double_conv_forward.4} parent=5 // pred_region
      %s363 = ssub.s32 %s16, 1
      %s364 = smul.u32 16, %s26
      %p365 = scmp.lt.s32.totalorder %s25, 1
      %s366 = scalar_select %p365, %s25, 1
      %p367 = scmp.lt.s32.totalorder %s364, 15
      %s368 = scalar_select %p367, %s364, 15
      %s369 = smul.addr %s368, 2
      %s370 = smul.addr %s366, 32
      %s371 = sadd.s32 %s369, %s370
      %s372 = smul.addr %s371, 8
      %s373 = scalar_lea.vmem %s0, %s372
      %p374 = pneg %p56
      %p375 = pneg %p53
      %p376 = scmp.lt.s32.totalorder %s25, 1
      %s377 = scalar_select %p376, %s25, 1
      %p378 = scmp.lt.s32.totalorder %s26, 0
      %s379 = scalar_select %p378, %s26, 0
      %s380 = smul.addr %s379, 2
      %s381 = smul.addr %s377, 2
      %s382 = sadd.s32 %s380, %s381
      %s383 = smul.addr %s382, 8
      %s384 = scalar_lea.vmem %s1, %s383
      %p385 = pneg %p84
      %p386 = pneg %p81
      %p387 = scmp.lt.s32.totalorder %s25, 1
      %s388 = scalar_select %p387, %s25, 1
      %p389 = scmp.lt.s32.totalorder %s26, 0
      %s390 = scalar_select %p389, %s26, 0
      %s391 = smul.addr %s390, 2
      %s392 = smul.addr %s388, 2
      %s393 = sadd.s32 %s391, %s392
      %s394 = smul.addr %s393, 8
      %s395 = scalar_lea.vmem %s2, %s394
      %p396 = pneg %p112
      %p397 = pneg %p109
      %p398 = pneg %p133
      %p399 = pneg %p130
      %p400 = pneg %p154
      %p401 = pneg %p151
      %p402 = pneg %p175
      %p403 = pneg %p172
      %p404 = scmp.lt.s32.totalorder %s25, 1
      %s405 = scalar_select %p404, %s25, 1
      %s406 = scalar_lea.vmem %s6, %s405
      %p407 = pneg %p201
      %p408 = pneg %p198
      %p409 = pneg %p229
      %p410 = pneg %p226
      %s411 = smul.u32 16, %s26
      %p412 = scmp.lt.s32.totalorder %s25, 1
      %s413 = scalar_select %p412, %s25, 1
      %p414 = scmp.lt.s32.totalorder %s411, 15
      %s415 = scalar_select %p414, %s411, 15
      %s416 = smul.addr %s415, 2
      %s417 = smul.addr %s413, 32
      %s418 = sadd.s32 %s416, %s417
      %s419 = smul.addr %s418, 4
      %s420 = scalar_lea.vmem %s7, %s419
      %p421 = pneg %p257
      %p422 = pneg %p254
      %p423 = scmp.lt.s32.totalorder %s25, 1
      %s424 = scalar_select %p423, %s25, 1
      %p425 = scmp.lt.s32.totalorder %s26, 0
      %s426 = scalar_select %p425, %s26, 0
      %s427 = sadd.s32 %s426, %s424
      %s428 = smul.addr %s427, 8
      %s429 = scalar_lea.vmem %s8, %s428
      %p430 = pneg %p285
      %p431 = pneg %p282
      %p432 = scmp.lt.s32.totalorder %s25, 1
      %s433 = scalar_select %p432, %s25, 1
      %p434 = scmp.lt.s32.totalorder %s26, 0
      %s435 = scalar_select %p434, %s26, 0
      %s436 = sadd.s32 %s435, %s433
      %s437 = smul.addr %s436, 8
      %s438 = scalar_lea.vmem %s9, %s437
      %s439 = smul.u32 16, %s26
      %p440 = scmp.lt.s32.totalorder %s25, 1
      %s441 = scalar_select %p440, %s25, 1
      %p442 = scmp.lt.s32.totalorder %s439, 15
      %s443 = scalar_select %p442, %s439, 15
      %s444 = smul.addr %s443, 2
      %s445 = smul.addr %s441, 32
      %s446 = sadd.s32 %s444, %s445
      %s447 = smul.addr %s446, 8
      %s448 = scalar_lea.vmem %s0, %s447
      %s449 = smul.u32 16, %s26
      %p450 = scmp.lt.s32.totalorder %s25, 1
      %s451 = scalar_select %p450, %s25, 1
      %p452 = scmp.lt.s32.totalorder %s26, 0
      %s453 = scalar_select %p452, %s26, 0
      %s454 = smul.addr %s453, 2
      %s455 = smul.addr %s451, 2
      %s456 = sadd.s32 %s454, %s455
      %s457 = smul.addr %s456, 8
      %s458 = scalar_lea.vmem %s1, %s457
      %p459 = scmp.lt.s32.totalorder %s25, 1
      %s460 = scalar_select %p459, %s25, 1
      %p461 = scmp.lt.s32.totalorder %s26, 0
      %s462 = scalar_select %p461, %s26, 0
      %s463 = smul.addr %s462, 2
      %s464 = smul.addr %s460, 2
      %s465 = sadd.s32 %s463, %s464
      %s466 = smul.addr %s465, 8
      %s467 = scalar_lea.vmem %s2, %s466
      %p468 = scmp.lt.s32.totalorder %s25, 1
      %s469 = scalar_select %p468, %s25, 1
      %s470 = scalar_lea.vmem %s6, %s469
      %s471 = smul.u32 16, %s26
      %p472 = scmp.lt.s32.totalorder %s25, 1
      %s473 = scalar_select %p472, %s25, 1
      %p474 = scmp.lt.s32.totalorder %s471, 15
      %s475 = scalar_select %p474, %s471, 15
      %s476 = smul.addr %s475, 2
      %s477 = smul.addr %s473, 32
      %s478 = sadd.s32 %s476, %s477
      %s479 = smul.addr %s478, 4
      %s480 = scalar_lea.vmem %s7, %s479
      %s481 = smul.u32 16, %s26
      %p482 = scmp.lt.s32.totalorder %s25, 1
      %s483 = scalar_select %p482, %s25, 1
      %p484 = scmp.lt.s32.totalorder %s26, 0
      %s485 = scalar_select %p484, %s26, 0
      %s486 = sadd.s32 %s485, %s483
      %s487 = smul.addr %s486, 8
      %s488 = scalar_lea.vmem %s8, %s487
      %p489 = scmp.lt.s32.totalorder %s25, 1
      %s490 = scalar_select %p489, %s25, 1
      %p491 = scmp.lt.s32.totalorder %s26, 0
      %s492 = scalar_select %p491, %s26, 0
      %s493 = sadd.s32 %s492, %s490
      %s494 = smul.addr %s493, 8
      %s495 = scalar_lea.vmem %s9, %s494
      %v497 = vld [vmem:[%s3] sm:$0x1]
      %v498 = vld [vmem:[%s4] sm:$0x1]
      %v499 = vld [vmem:[%s448] sm:$0xff]
      %v500 = vld [vmem:[%s448 + $0x8] sm:$0xff]
      %v501 = vld [vmem:[%s448 + $0x10] sm:$0xff]
      %v502 = vld [vmem:[%s448 + $0x18] sm:$0xff]
      %v503 = vld [vmem:[%s448 + $0x20] sm:$0xff]
      %v504 = vld [vmem:[%s448 + $0x28] sm:$0xff]
      %v505 = vld [vmem:[%s448 + $0x30] sm:$0xff]
      %v506 = vld [vmem:[%s448 + $0x38] sm:$0xff]
      %v507 = vld [vmem:[%s448 + $0x40] sm:$0xff]
      %v508 = vld [vmem:[%s448 + $0x48] sm:$0xff]
      %v509 = vld [vmem:[%s448 + $0x50] sm:$0xff]
      %v510 = vld [vmem:[%s448 + $0x58] sm:$0xff]
      %v511 = vld [vmem:[%s448 + $0x60] sm:$0xff]
      %v512 = vld [vmem:[%s448 + $0x68] sm:$0xff]
      %v513 = vld [vmem:[%s448 + $0x70] sm:$0xff]
      %v514 = vld [vmem:[%s448 + $0x78] sm:$0xff]
      %v515 = vld [vmem:[%s448 + $0x80] sm:$0xff]
      %v516 = vld [vmem:[%s448 + $0x88] sm:$0xff]
      %v517 = vld [vmem:[%s448 + $0x90] sm:$0xff]
      %v518 = vld [vmem:[%s448 + $0x98] sm:$0xff]
      %v519 = vld [vmem:[%s448 + $0xa0] sm:$0xff]
      %v520 = vld [vmem:[%s448 + $0xa8] sm:$0xff]
      %v521 = vld [vmem:[%s448 + $0xb0] sm:$0xff]
      %v522 = vld [vmem:[%s448 + $0xb8] sm:$0xff]
      %v523 = vld [vmem:[%s448 + $0xc0] sm:$0xff]
      %v524 = vld [vmem:[%s448 + $0xc8] sm:$0xff]
      %v525 = vld [vmem:[%s448 + $0xd0] sm:$0xff]
      %v526 = vld [vmem:[%s448 + $0xd8] sm:$0xff]
      %v527 = vld [vmem:[%s448 + $0xe0] sm:$0xff]
      %v528 = vld [vmem:[%s448 + $0xe8] sm:$0xff]
      %v529 = vld [vmem:[%s448 + $0xf0] sm:$0xff]
      %v530 = vld [vmem:[%s448 + $0xf8] sm:$0xff]
      %v532 = vlaneseq
      %v533 = vshrl.u32 %v532, 7
      %v534 = vsub.s32 0, %v533
      %v535 = vrot.slane %v497, %v534
      %v537 = vmul.f32 %v499, %v535
      %v538 = vmul.f32 %v500, %v535
      %v539 = vmul.f32 %v501, %v535
      %v540 = vmul.f32 %v502, %v535
      %v541 = vmul.f32 %v503, %v535
      %v542 = vmul.f32 %v504, %v535
      %v543 = vmul.f32 %v505, %v535
      %v544 = vmul.f32 %v506, %v535
      %v545 = vmul.f32 %v507, %v535
      %v546 = vmul.f32 %v508, %v535
      %v547 = vmul.f32 %v509, %v535
      %v548 = vmul.f32 %v510, %v535
      %v549 = vmul.f32 %v511, %v535
      %v550 = vmul.f32 %v512, %v535
      %v551 = vmul.f32 %v513, %v535
      %v552 = vmul.f32 %v514, %v535
      %v553 = vmul.f32 %v515, %v535
      %v554 = vmul.f32 %v516, %v535
      %v555 = vmul.f32 %v517, %v535
      %v556 = vmul.f32 %v518, %v535
      %v557 = vmul.f32 %v519, %v535
      %v558 = vmul.f32 %v520, %v535
      %v559 = vmul.f32 %v521, %v535
      %v560 = vmul.f32 %v522, %v535
      %v561 = vmul.f32 %v523, %v535
      %v562 = vmul.f32 %v524, %v535
      %v563 = vmul.f32 %v525, %v535
      %v564 = vmul.f32 %v526, %v535
      %v565 = vmul.f32 %v527, %v535
      %v566 = vmul.f32 %v528, %v535
      %v567 = vmul.f32 %v529, %v535
      %v568 = vmul.f32 %v530, %v535
      %v570 = vlaneseq
      %v571 = vshrl.u32 %v570, 7
      %v572 = vsub.s32 0, %v571
      %v573 = vrot.slane %v498, %v572
      %v575 = vadd.f32 %v537, %v573
      %v576 = vadd.f32 %v538, %v573
      %v577 = vadd.f32 %v539, %v573
      %v578 = vadd.f32 %v540, %v573
      %v579 = vadd.f32 %v541, %v573
      %v580 = vadd.f32 %v542, %v573
      %v581 = vadd.f32 %v543, %v573
      %v582 = vadd.f32 %v544, %v573
      %v583 = vadd.f32 %v545, %v573
      %v584 = vadd.f32 %v546, %v573
      %v585 = vadd.f32 %v547, %v573
      %v586 = vadd.f32 %v548, %v573
      %v587 = vadd.f32 %v549, %v573
      %v588 = vadd.f32 %v550, %v573
      %v589 = vadd.f32 %v551, %v573
      %v590 = vadd.f32 %v552, %v573
      %v591 = vadd.f32 %v553, %v573
      %v592 = vadd.f32 %v554, %v573
      %v593 = vadd.f32 %v555, %v573
      %v594 = vadd.f32 %v556, %v573
      %v595 = vadd.f32 %v557, %v573
      %v596 = vadd.f32 %v558, %v573
      %v597 = vadd.f32 %v559, %v573
      %v598 = vadd.f32 %v560, %v573
      %v599 = vadd.f32 %v561, %v573
      %v600 = vadd.f32 %v562, %v573
      %v601 = vadd.f32 %v563, %v573
      %v602 = vadd.f32 %v564, %v573
      %v603 = vadd.f32 %v565, %v573
      %v604 = vadd.f32 %v566, %v573
      %v605 = vadd.f32 %v567, %v573
      %v606 = vadd.f32 %v568, %v573
      %v607 = vpack.c.bf16 %v576, %v575
      %v608 = vpack.c.bf16 %v578, %v577
      %v609 = vpack.c.bf16 %v580, %v579
      %v610 = vpack.c.bf16 %v582, %v581
      %v611 = vpack.c.bf16 %v584, %v583
      %v612 = vpack.c.bf16 %v586, %v585
      %v613 = vpack.c.bf16 %v588, %v587
      %v614 = vpack.c.bf16 %v590, %v589
      %v615 = vpack.c.bf16 %v592, %v591
      %v616 = vpack.c.bf16 %v594, %v593
      %v617 = vpack.c.bf16 %v596, %v595
      %v618 = vpack.c.bf16 %v598, %v597
      %v619 = vpack.c.bf16 %v600, %v599
      %v620 = vpack.c.bf16 %v602, %v601
      %v621 = vpack.c.bf16 %v604, %v603
      %v622 = vpack.c.bf16 %v606, %v605
      %v639 = vunpack.c.l.b16 %v607
      %v640 = vunpack.c.h.b16 %v607
      %v641 = vunpack.c.l.b16 %v608
      %v642 = vunpack.c.h.b16 %v608
      %v643 = vunpack.c.l.b16 %v609
      %v644 = vunpack.c.h.b16 %v609
      %v645 = vunpack.c.l.b16 %v610
      %v646 = vunpack.c.h.b16 %v610
      %v647 = vunpack.c.l.b16 %v611
      %v648 = vunpack.c.h.b16 %v611
      %v649 = vunpack.c.l.b16 %v612
      %v650 = vunpack.c.h.b16 %v612
      %v651 = vunpack.c.l.b16 %v613
      %v652 = vunpack.c.h.b16 %v613
      %v653 = vunpack.c.l.b16 %v614
      %v654 = vunpack.c.h.b16 %v614
      %v655 = vunpack.c.l.b16 %v615
      %v656 = vunpack.c.h.b16 %v615
      %v657 = vunpack.c.l.b16 %v616
      %v658 = vunpack.c.h.b16 %v616
      %v659 = vunpack.c.l.b16 %v617
      %v660 = vunpack.c.h.b16 %v617
      %v661 = vunpack.c.l.b16 %v618
      %v662 = vunpack.c.h.b16 %v618
      %v663 = vunpack.c.l.b16 %v619
      %v664 = vunpack.c.h.b16 %v619
      %v665 = vunpack.c.l.b16 %v620
      %v666 = vunpack.c.h.b16 %v620
      %v667 = vunpack.c.l.b16 %v621
      %v668 = vunpack.c.h.b16 %v621
      %v669 = vunpack.c.l.b16 %v622
      %v670 = vunpack.c.h.b16 %v622
      %v671 = vpack.c.b16 %v639, %v639
      %v672 = vpack.c.b16 %v640, %v640
      %v673 = vpack.c.b16 %v641, %v641
      %v674 = vpack.c.b16 %v642, %v642
      %v675 = vpack.c.b16 %v643, %v643
      %v676 = vpack.c.b16 %v644, %v644
      %v677 = vpack.c.b16 %v645, %v645
      %v678 = vpack.c.b16 %v646, %v646
      %v679 = vpack.c.b16 %v647, %v647
      %v680 = vpack.c.b16 %v648, %v648
      %v681 = vpack.c.b16 %v649, %v649
      %v682 = vpack.c.b16 %v650, %v650
      %v683 = vpack.c.b16 %v651, %v651
      %v684 = vpack.c.b16 %v652, %v652
      %v685 = vpack.c.b16 %v653, %v653
      %v686 = vpack.c.b16 %v654, %v654
      %v687 = vpack.c.b16 %v655, %v655
      %v688 = vpack.c.b16 %v656, %v656
      %v689 = vpack.c.b16 %v657, %v657
      %v690 = vpack.c.b16 %v658, %v658
      %v691 = vpack.c.b16 %v659, %v659
      %v692 = vpack.c.b16 %v660, %v660
      %v693 = vpack.c.b16 %v661, %v661
      %v694 = vpack.c.b16 %v662, %v662
      %v695 = vpack.c.b16 %v663, %v663
      %v696 = vpack.c.b16 %v664, %v664
      %v697 = vpack.c.b16 %v665, %v665
      %v698 = vpack.c.b16 %v666, %v666
      %v699 = vpack.c.b16 %v667, %v667
      %v700 = vpack.c.b16 %v668, %v668
      %v701 = vpack.c.b16 %v669, %v669
      %v702 = vpack.c.b16 %v670, %v670
      %vm703 = vsmask.f32 256
      %vm704 = vsmask.f32 4368
      %vm705 = vmor %vm703, %vm704
      %v707 = vshrl.u32 %v671, 16
      %v709 = vrot.slane %v707, 7
      %v710 = vshll.u32 %v671, 16
      %v712 = vor.u32 %v709, %v710
      %v713 = vrot.slane %v709, 4
      %v715 = vshrl.u32 %v672, 16
      %v717 = vrot.slane %v715, 7
      %v718 = vshll.u32 %v672, 16
      %v720 = vor.u32 %v717, %v718
      %v721 = vsel %vm705, %v713, %v720
      %v722 = vrot.slane %v717, 4
      %v724 = vshrl.u32 %v673, 16
      %v726 = vrot.slane %v724, 7
      %v727 = vshll.u32 %v673, 16
      %v729 = vor.u32 %v726, %v727
      %v730 = vrot.slane %v726, 4
      %v732 = vshrl.u32 %v674, 16
      %v734 = vrot.slane %v732, 7
      %v735 = vshll.u32 %v674, 16
      %v737 = vor.u32 %v734, %v735
      %v738 = vsel %vm705, %v730, %v737
      %v739 = vrot.slane %v734, 4
      %v741 = vshrl.u32 %v675, 16
      %v743 = vrot.slane %v741, 7
      %v744 = vshll.u32 %v675, 16
      %v746 = vor.u32 %v743, %v744
      %v747 = vrot.slane %v743, 4
      %v749 = vshrl.u32 %v676, 16
      %v751 = vrot.slane %v749, 7
      %v752 = vshll.u32 %v676, 16
      %v754 = vor.u32 %v751, %v752
      %v755 = vsel %vm705, %v747, %v754
      %v756 = vrot.slane %v751, 4
      %v758 = vshrl.u32 %v677, 16
      %v760 = vrot.slane %v758, 7
      %v761 = vshll.u32 %v677, 16
      %v763 = vor.u32 %v760, %v761
      %v764 = vrot.slane %v760, 4
      %v766 = vshrl.u32 %v678, 16
      %v768 = vrot.slane %v766, 7
      %v769 = vshll.u32 %v678, 16
      %v771 = vor.u32 %v768, %v769
      %v772 = vsel %vm705, %v764, %v771
      %v773 = vrot.slane %v768, 4
      %v775 = vshrl.u32 %v679, 16
      %v777 = vrot.slane %v775, 7
      %v778 = vshll.u32 %v679, 16
      %v780 = vor.u32 %v777, %v778
      %v781 = vrot.slane %v777, 4
      %v783 = vshrl.u32 %v680, 16
      %v785 = vrot.slane %v783, 7
      %v786 = vshll.u32 %v680, 16
      %v788 = vor.u32 %v785, %v786
      %v789 = vsel %vm705, %v781, %v788
      %v790 = vrot.slane %v785, 4
      %v792 = vshrl.u32 %v681, 16
      %v794 = vrot.slane %v792, 7
      %v795 = vshll.u32 %v681, 16
      %v797 = vor.u32 %v794, %v795
      %v798 = vrot.slane %v794, 4
      %v800 = vshrl.u32 %v682, 16
      %v802 = vrot.slane %v800, 7
      %v803 = vshll.u32 %v682, 16
      %v805 = vor.u32 %v802, %v803
      %v806 = vsel %vm705, %v798, %v805
      %v807 = vrot.slane %v802, 4
      %v809 = vshrl.u32 %v683, 16
      %v811 = vrot.slane %v809, 7
      %v812 = vshll.u32 %v683, 16
      %v814 = vor.u32 %v811, %v812
      %v815 = vrot.slane %v811, 4
      %v817 = vshrl.u32 %v684, 16
      %v819 = vrot.slane %v817, 7
      %v820 = vshll.u32 %v684, 16
      %v822 = vor.u32 %v819, %v820
      %v823 = vsel %vm705, %v815, %v822
      %v824 = vrot.slane %v819, 4
      %v826 = vshrl.u32 %v685, 16
      %v828 = vrot.slane %v826, 7
      %v829 = vshll.u32 %v685, 16
      %v831 = vor.u32 %v828, %v829
      %v832 = vrot.slane %v828, 4
      %v834 = vshrl.u32 %v686, 16
      %v836 = vrot.slane %v834, 7
      %v837 = vshll.u32 %v686, 16
      %v839 = vor.u32 %v836, %v837
      %v840 = vsel %vm705, %v832, %v839
      %v841 = vrot.slane %v836, 4
      %v843 = vshrl.u32 %v687, 16
      %v845 = vrot.slane %v843, 7
      %v846 = vshll.u32 %v687, 16
      %v848 = vor.u32 %v845, %v846
      %v849 = vrot.slane %v845, 4
      %v851 = vshrl.u32 %v688, 16
      %v853 = vrot.slane %v851, 7
      %v854 = vshll.u32 %v688, 16
      %v856 = vor.u32 %v853, %v854
      %v857 = vsel %vm705, %v849, %v856
      %v858 = vrot.slane %v853, 4
      %v860 = vshrl.u32 %v689, 16
      %v862 = vrot.slane %v860, 7
      %v863 = vshll.u32 %v689, 16
      %v865 = vor.u32 %v862, %v863
      %v866 = vrot.slane %v862, 4
      %v868 = vshrl.u32 %v690, 16
      %v870 = vrot.slane %v868, 7
      %v871 = vshll.u32 %v690, 16
      %v873 = vor.u32 %v870, %v871
      %v874 = vsel %vm705, %v866, %v873
      %v875 = vrot.slane %v870, 4
      %v877 = vshrl.u32 %v691, 16
      %v879 = vrot.slane %v877, 7
      %v880 = vshll.u32 %v691, 16
      %v882 = vor.u32 %v879, %v880
      %v883 = vrot.slane %v879, 4
      %v885 = vshrl.u32 %v692, 16
      %v887 = vrot.slane %v885, 7
      %v888 = vshll.u32 %v692, 16
      %v890 = vor.u32 %v887, %v888
      %v891 = vsel %vm705, %v883, %v890
      %v892 = vrot.slane %v887, 4
      %v894 = vshrl.u32 %v693, 16
      %v896 = vrot.slane %v894, 7
      %v897 = vshll.u32 %v693, 16
      %v899 = vor.u32 %v896, %v897
      %v900 = vrot.slane %v896, 4
      %v902 = vshrl.u32 %v694, 16
      %v904 = vrot.slane %v902, 7
      %v905 = vshll.u32 %v694, 16
      %v907 = vor.u32 %v904, %v905
      %v908 = vsel %vm705, %v900, %v907
      %v909 = vrot.slane %v904, 4
      %v911 = vshrl.u32 %v695, 16
      %v913 = vrot.slane %v911, 7
      %v914 = vshll.u32 %v695, 16
      %v916 = vor.u32 %v913, %v914
      %v917 = vrot.slane %v913, 4
      %v919 = vshrl.u32 %v696, 16
      %v921 = vrot.slane %v919, 7
      %v922 = vshll.u32 %v696, 16
      %v924 = vor.u32 %v921, %v922
      %v925 = vsel %vm705, %v917, %v924
      %v926 = vrot.slane %v921, 4
      %v928 = vshrl.u32 %v697, 16
      %v930 = vrot.slane %v928, 7
      %v931 = vshll.u32 %v697, 16
      %v933 = vor.u32 %v930, %v931
      %v934 = vrot.slane %v930, 4
      %v936 = vshrl.u32 %v698, 16
      %v938 = vrot.slane %v936, 7
      %v939 = vshll.u32 %v698, 16
      %v941 = vor.u32 %v938, %v939
      %v942 = vsel %vm705, %v934, %v941
      %v943 = vrot.slane %v938, 4
      %v945 = vshrl.u32 %v699, 16
      %v947 = vrot.slane %v945, 7
      %v948 = vshll.u32 %v699, 16
      %v950 = vor.u32 %v947, %v948
      %v951 = vrot.slane %v947, 4
      %v953 = vshrl.u32 %v700, 16
      %v955 = vrot.slane %v953, 7
      %v956 = vshll.u32 %v700, 16
      %v958 = vor.u32 %v955, %v956
      %v959 = vsel %vm705, %v951, %v958
      %v960 = vrot.slane %v955, 4
      %v962 = vshrl.u32 %v701, 16
      %v964 = vrot.slane %v962, 7
      %v965 = vshll.u32 %v701, 16
      %v967 = vor.u32 %v964, %v965
      %v968 = vrot.slane %v964, 4
      %v970 = vshrl.u32 %v702, 16
      %v972 = vrot.slane %v970, 7
      %v973 = vshll.u32 %v702, 16
      %v975 = vor.u32 %v972, %v973
      %v976 = vsel %vm705, %v968, %v975
      %v977 = vrot.slane %v972, 4
      %s1026 = scalar_lea.vmem [#allocation2], 12
      %vm1027 = vcmask 1043456
      %vm1028 = vsmask.f32 7938
      %vm1029 = vmand %vm1027, %vm1028
      %v1030 = vld [vmem:[%s1026] sm:$0xf]
      %v1031 = vsel %vm1029, %v712, %v1030
      %1032 = vst [vmem:[%s1026] sm:$0xf] %v1031
      %1033 = vst [vmem:[%s1026 + $0x4] sm:$0xf] %v721
      %vm1034 = vcmask 1040384
      %vm1035 = vmand %vm1034, %vm703
      %v1036 = vld [vmem:[%s1026 + $0x8] sm:$0x1]
      %v1037 = vsel %vm1035, %v722, %v1036
      %1038 = vst [vmem:[%s1026 + $0x8] sm:$0x1] %v1037
      %v1039 = vld [vmem:[%s1026 + $0xc] sm:$0xf]
      %v1040 = vsel %vm1029, %v729, %v1039
      %1041 = vst [vmem:[%s1026 + $0xc] sm:$0xf] %v1040
      %1042 = vst [vmem:[%s1026 + $0x10] sm:$0xf] %v738
      %v1043 = vld [vmem:[%s1026 + $0x14] sm:$0x1]
      %v1044 = vsel %vm1035, %v739, %v1043
      %1045 = vst [vmem:[%s1026 + $0x14] sm:$0x1] %v1044
      %v1046 = vld [vmem:[%s1026 + $0x18] sm:$0xf]
      %v1047 = vsel %vm1029, %v746, %v1046
      %1048 = vst [vmem:[%s1026 + $0x18] sm:$0xf] %v1047
      %1049 = vst [vmem:[%s1026 + $0x1c] sm:$0xf] %v755
      %v1050 = vld [vmem:[%s1026 + $0x20] sm:$0x1]
      %v1051 = vsel %vm1035, %v756, %v1050
      %1052 = vst [vmem:[%s1026 + $0x20] sm:$0x1] %v1051
      %v1053 = vld [vmem:[%s1026 + $0x24] sm:$0xf]
      %v1054 = vsel %vm1029, %v763, %v1053
      %1055 = vst [vmem:[%s1026 + $0x24] sm:$0xf] %v1054
      %1056 = vst [vmem:[%s1026 + $0x28] sm:$0xf] %v772
      %v1057 = vld [vmem:[%s1026 + $0x2c] sm:$0x1]
      %v1058 = vsel %vm1035, %v773, %v1057
      %1059 = vst [vmem:[%s1026 + $0x2c] sm:$0x1] %v1058
      %v1060 = vld [vmem:[%s1026 + $0x30] sm:$0xf]
      %v1061 = vsel %vm1029, %v780, %v1060
      %1062 = vst [vmem:[%s1026 + $0x30] sm:$0xf] %v1061
      %1063 = vst [vmem:[%s1026 + $0x34] sm:$0xf] %v789
      %v1064 = vld [vmem:[%s1026 + $0x38] sm:$0x1]
      %v1065 = vsel %vm1035, %v790, %v1064
      %1066 = vst [vmem:[%s1026 + $0x38] sm:$0x1] %v1065
      %v1067 = vld [vmem:[%s1026 + $0x3c] sm:$0xf]
      %v1068 = vsel %vm1029, %v797, %v1067
      %1069 = vst [vmem:[%s1026 + $0x3c] sm:$0xf] %v1068
      %1070 = vst [vmem:[%s1026 + $0x40] sm:$0xf] %v806
      %v1071 = vld [vmem:[%s1026 + $0x44] sm:$0x1]
      %v1072 = vsel %vm1035, %v807, %v1071
      %1073 = vst [vmem:[%s1026 + $0x44] sm:$0x1] %v1072
      %v1074 = vld [vmem:[%s1026 + $0x48] sm:$0xf]
      %v1075 = vsel %vm1029, %v814, %v1074
      %1076 = vst [vmem:[%s1026 + $0x48] sm:$0xf] %v1075
      %1077 = vst [vmem:[%s1026 + $0x4c] sm:$0xf] %v823
      %v1078 = vld [vmem:[%s1026 + $0x50] sm:$0x1]
      %v1079 = vsel %vm1035, %v824, %v1078
      %1080 = vst [vmem:[%s1026 + $0x50] sm:$0x1] %v1079
      %v1081 = vld [vmem:[%s1026 + $0x54] sm:$0xf]
      %v1082 = vsel %vm1029, %v831, %v1081
      %1083 = vst [vmem:[%s1026 + $0x54] sm:$0xf] %v1082
      %1084 = vst [vmem:[%s1026 + $0x58] sm:$0xf] %v840
      %v1085 = vld [vmem:[%s1026 + $0x5c] sm:$0x1]
      %v1086 = vsel %vm1035, %v841, %v1085
      %1087 = vst [vmem:[%s1026 + $0x5c] sm:$0x1] %v1086
      %v1088 = vld [vmem:[%s1026 + $0x60] sm:$0xf]
      %v1089 = vsel %vm1029, %v848, %v1088
      %1090 = vst [vmem:[%s1026 + $0x60] sm:$0xf] %v1089
      %1091 = vst [vmem:[%s1026 + $0x64] sm:$0xf] %v857
      %v1092 = vld [vmem:[%s1026 + $0x68] sm:$0x1]
      %v1093 = vsel %vm1035, %v858, %v1092
      %1094 = vst [vmem:[%s1026 + $0x68] sm:$0x1] %v1093
      %v1095 = vld [vmem:[%s1026 + $0x6c] sm:$0xf]
      %v1096 = vsel %vm1029, %v865, %v1095
      %1097 = vst [vmem:[%s1026 + $0x6c] sm:$0xf] %v1096
      %1098 = vst [vmem:[%s1026 + $0x70] sm:$0xf] %v874
      %v1099 = vld [vmem:[%s1026 + $0x74] sm:$0x1]
      %v1100 = vsel %vm1035, %v875, %v1099
      %1101 = vst [vmem:[%s1026 + $0x74] sm:$0x1] %v1100
      %v1102 = vld [vmem:[%s1026 + $0x78] sm:$0xf]
      %v1103 = vsel %vm1029, %v882, %v1102
      %1104 = vst [vmem:[%s1026 + $0x78] sm:$0xf] %v1103
      %1105 = vst [vmem:[%s1026 + $0x7c] sm:$0xf] %v891
      %v1106 = vld [vmem:[%s1026 + $0x80] sm:$0x1]
      %v1107 = vsel %vm1035, %v892, %v1106
      %1108 = vst [vmem:[%s1026 + $0x80] sm:$0x1] %v1107
      %v1109 = vld [vmem:[%s1026 + $0x84] sm:$0xf]
      %v1110 = vsel %vm1029, %v899, %v1109
      %1111 = vst [vmem:[%s1026 + $0x84] sm:$0xf] %v1110
      %1112 = vst [vmem:[%s1026 + $0x88] sm:$0xf] %v908
      %v1113 = vld [vmem:[%s1026 + $0x8c] sm:$0x1]
      %v1114 = vsel %vm1035, %v909, %v1113
      %1115 = vst [vmem:[%s1026 + $0x8c] sm:$0x1] %v1114
      %v1116 = vld [vmem:[%s1026 + $0x90] sm:$0xf]
      %v1117 = vsel %vm1029, %v916, %v1116
      %1118 = vst [vmem:[%s1026 + $0x90] sm:$0xf] %v1117
      %1119 = vst [vmem:[%s1026 + $0x94] sm:$0xf] %v925
      %v1120 = vld [vmem:[%s1026 + $0x98] sm:$0x1]
      %v1121 = vsel %vm1035, %v926, %v1120
      %1122 = vst [vmem:[%s1026 + $0x98] sm:$0x1] %v1121
      %v1123 = vld [vmem:[%s1026 + $0x9c] sm:$0xf]
      %v1124 = vsel %vm1029, %v933, %v1123
      %1125 = vst [vmem:[%s1026 + $0x9c] sm:$0xf] %v1124
      %1126 = vst [vmem:[%s1026 + $0xa0] sm:$0xf] %v942
      %v1127 = vld [vmem:[%s1026 + $0xa4] sm:$0x1]
      %v1128 = vsel %vm1035, %v943, %v1127
      %1129 = vst [vmem:[%s1026 + $0xa4] sm:$0x1] %v1128
      %v1130 = vld [vmem:[%s1026 + $0xa8] sm:$0xf]
      %v1131 = vsel %vm1029, %v950, %v1130
      %1132 = vst [vmem:[%s1026 + $0xa8] sm:$0xf] %v1131
      %1133 = vst [vmem:[%s1026 + $0xac] sm:$0xf] %v959
      %v1134 = vld [vmem:[%s1026 + $0xb0] sm:$0x1]
      %v1135 = vsel %vm1035, %v960, %v1134
      %1136 = vst [vmem:[%s1026 + $0xb0] sm:$0x1] %v1135
      %v1137 = vld [vmem:[%s1026 + $0xb4] sm:$0xf]
      %v1138 = vsel %vm1029, %v967, %v1137
      %1139 = vst [vmem:[%s1026 + $0xb4] sm:$0xf] %v1138
      %1140 = vst [vmem:[%s1026 + $0xb8] sm:$0xf] %v976
      %v1141 = vld [vmem:[%s1026 + $0xbc] sm:$0x1]
      %v1142 = vsel %vm1035, %v977, %v1141
      %1143 = vst [vmem:[%s1026 + $0xbc] sm:$0x1] %v1142
      %p1144 = scmp.gt.s32.totalorder %s26, 0
      %s1145 = scalar_select %p1144, 1, 0
      %s1146 = scvt.s32.f32 %s1145
      %p1147 = scmp.lt.s32.totalorder %s26, 0
      %s1148 = scalar_select %p1147, 1, 0
      %s1149 = scvt.s32.f32 %s1148
      %v1150 = vld [vmem:[%s458] sm:$0xff]
      %v1151 = vld [vmem:[%s458 + $0x8] sm:$0xff]
      %v1152 = vmul.f32 %v1150, %v535
      %v1153 = vmul.f32 %v1151, %v535
      %v1154 = vadd.f32 %v1152, %v573
      %v1155 = vadd.f32 %v1153, %v573
      %v1156 = vstv %s1146
      %v1157 = vmul.f32 %v1154, %v1156
      %v1158 = vmul.f32 %v1155, %v1156
      %v1159 = vld [vmem:[%s467] sm:$0xff]
      %v1160 = vld [vmem:[%s467 + $0x8] sm:$0xff]
      %v1161 = vmul.f32 %v1159, %v535
      %v1162 = vmul.f32 %v1160, %v535
      %v1163 = vadd.f32 %v1161, %v573
      %v1164 = vadd.f32 %v1162, %v573
      %v1165 = vstv %s1149
      %v1166 = vmul.f32 %v1163, %v1165
      %v1167 = vmul.f32 %v1164, %v1165
      %v1168 = vpack.c.bf16 %v1158, %v1157
      %v1170 = vunpack.c.l.b16 %v1168
      %v1171 = vunpack.c.h.b16 %v1168
      %v1172 = vpack.c.b16 %v1170, %v1170
      %v1173 = vpack.c.b16 %v1171, %v1171
      %v1175 = vshrl.u32 %v1172, 16
      %v1177 = vrot.slane %v1175, 7
      %v1178 = vshll.u32 %v1172, 16
      %v1180 = vor.u32 %v1177, %v1178
      %v1181 = vrot.slane %v1177, 4
      %v1183 = vshrl.u32 %v1173, 16
      %v1185 = vrot.slane %v1183, 7
      %v1186 = vshll.u32 %v1173, 16
      %v1188 = vor.u32 %v1185, %v1186
      %v1189 = vsel %vm705, %v1181, %v1188
      %v1190 = vrot.slane %v1185, 4
      %v1194 = vld [vmem:[#allocation2] sm:$0xf]
      %v1195 = vsel %vm1029, %v1180, %v1194
      %1196 = vst [vmem:[#allocation2] sm:$0xf] %v1195
      %1197 = vst [vmem:[#allocation2 + $0x4] sm:$0xf] %v1189
      %v1198 = vld [vmem:[#allocation2 + $0x8] sm:$0x1]
      %v1199 = vsel %vm1035, %v1190, %v1198
      %1200 = vst [vmem:[#allocation2 + $0x8] sm:$0x1] %v1199
      %v1201 = vpack.c.bf16 %v1167, %v1166
      %v1203 = vunpack.c.l.b16 %v1201
      %v1204 = vunpack.c.h.b16 %v1201
      %v1205 = vpack.c.b16 %v1203, %v1203
      %v1206 = vpack.c.b16 %v1204, %v1204
      %v1208 = vshrl.u32 %v1205, 16
      %v1210 = vrot.slane %v1208, 7
      %v1211 = vshll.u32 %v1205, 16
      %v1213 = vor.u32 %v1210, %v1211
      %v1214 = vrot.slane %v1210, 4
      %v1216 = vshrl.u32 %v1206, 16
      %v1218 = vrot.slane %v1216, 7
      %v1219 = vshll.u32 %v1206, 16
      %v1221 = vor.u32 %v1218, %v1219
      %v1222 = vsel %vm705, %v1214, %v1221
      %v1223 = vrot.slane %v1218, 4
      %s1227 = scalar_lea.vmem [#allocation2], 204
      %v1228 = vld [vmem:[%s1227] sm:$0xf]
      %v1229 = vsel %vm1029, %v1213, %v1228
      %1230 = vst [vmem:[%s1227] sm:$0xf] %v1229
      %1231 = vst [vmem:[%s1227 + $0x4] sm:$0xf] %v1222
      %v1232 = vld [vmem:[%s1227 + $0x8] sm:$0x1]
      %v1233 = vsel %vm1035, %v1223, %v1232
      %1234 = vst [vmem:[%s1227 + $0x8] sm:$0x1] %v1233
      %v1235 = vld [vmem:[#allocation2] sm:$0x1]
      %v1236 = vsel %vm1035, 0, %v1235
      %1237 = vst [vmem:[#allocation2] sm:$0x1] %v1236
      %v1238 = vld [vmem:[#allocation2 + $0xc] sm:$0x1]
      %v1239 = vsel %vm1035, 0, %v1238
      %1240 = vst [vmem:[#allocation2 + $0xc] sm:$0x1] %v1239
      %v1241 = vld [vmem:[#allocation2 + $0x18] sm:$0x1]
      %v1242 = vsel %vm1035, 0, %v1241
      %1243 = vst [vmem:[#allocation2 + $0x18] sm:$0x1] %v1242
      %v1244 = vld [vmem:[#allocation2 + $0x24] sm:$0x1]
      %v1245 = vsel %vm1035, 0, %v1244
      %1246 = vst [vmem:[#allocation2 + $0x24] sm:$0x1] %v1245
      %v1247 = vld [vmem:[#allocation2 + $0x30] sm:$0x1]
      %v1248 = vsel %vm1035, 0, %v1247
      %1249 = vst [vmem:[#allocation2 + $0x30] sm:$0x1] %v1248
      %v1250 = vld [vmem:[#allocation2 + $0x3c] sm:$0x1]
      %v1251 = vsel %vm1035, 0, %v1250
      %1252 = vst [vmem:[#allocation2 + $0x3c] sm:$0x1] %v1251
      %v1253 = vld [vmem:[#allocation2 + $0x48] sm:$0x1]
      %v1254 = vsel %vm1035, 0, %v1253
      %1255 = vst [vmem:[#allocation2 + $0x48] sm:$0x1] %v1254
      %v1256 = vld [vmem:[#allocation2 + $0x54] sm:$0x1]
      %v1257 = vsel %vm1035, 0, %v1256
      %1258 = vst [vmem:[#allocation2 + $0x54] sm:$0x1] %v1257
      %v1259 = vld [vmem:[#allocation2 + $0x60] sm:$0x1]
      %v1260 = vsel %vm1035, 0, %v1259
      %1261 = vst [vmem:[#allocation2 + $0x60] sm:$0x1] %v1260
      %v1262 = vld [vmem:[#allocation2 + $0x6c] sm:$0x1]
      %v1263 = vsel %vm1035, 0, %v1262
      %1264 = vst [vmem:[#allocation2 + $0x6c] sm:$0x1] %v1263
      %v1265 = vld [vmem:[#allocation2 + $0x78] sm:$0x1]
      %v1266 = vsel %vm1035, 0, %v1265
      %1267 = vst [vmem:[#allocation2 + $0x78] sm:$0x1] %v1266
      %v1268 = vld [vmem:[#allocation2 + $0x84] sm:$0x1]
      %v1269 = vsel %vm1035, 0, %v1268
      %1270 = vst [vmem:[#allocation2 + $0x84] sm:$0x1] %v1269
      %v1271 = vld [vmem:[#allocation2 + $0x90] sm:$0x1]
      %v1272 = vsel %vm1035, 0, %v1271
      %1273 = vst [vmem:[#allocation2 + $0x90] sm:$0x1] %v1272
      %v1274 = vld [vmem:[#allocation2 + $0x9c] sm:$0x1]
      %v1275 = vsel %vm1035, 0, %v1274
      %1276 = vst [vmem:[#allocation2 + $0x9c] sm:$0x1] %v1275
      %v1277 = vld [vmem:[#allocation2 + $0xa8] sm:$0x1]
      %v1278 = vsel %vm1035, 0, %v1277
      %1279 = vst [vmem:[#allocation2 + $0xa8] sm:$0x1] %v1278
      %v1280 = vld [vmem:[#allocation2 + $0xb4] sm:$0x1]
      %v1281 = vsel %vm1035, 0, %v1280
      %1282 = vst [vmem:[#allocation2 + $0xb4] sm:$0x1] %v1281
      %v1283 = vld [vmem:[#allocation2 + $0xc0] sm:$0x1]
      %v1284 = vsel %vm1035, 0, %v1283
      %1285 = vst [vmem:[#allocation2 + $0xc0] sm:$0x1] %v1284
      %v1286 = vld [vmem:[#allocation2 + $0xcc] sm:$0x1]
      %v1287 = vsel %vm1035, 0, %v1286
      %1288 = vst [vmem:[#allocation2 + $0xcc] sm:$0x1] %v1287
      %vm1289 = vmand %vm1034, %vm1028
      %v1290 = vld [vmem:[#allocation2 + $0x8] sm:$0x1]
      %v1291 = vsel %vm1289, 0, %v1290
      %1292 = vst [vmem:[#allocation2 + $0x8] sm:$0x1] %v1291
      %v1293 = vld [vmem:[#allocation2 + $0x14] sm:$0x1]
      %v1294 = vsel %vm1289, 0, %v1293
      %1295 = vst [vmem:[#allocation2 + $0x14] sm:$0x1] %v1294
      %v1296 = vld [vmem:[#allocation2 + $0x20] sm:$0x1]
      %v1297 = vsel %vm1289, 0, %v1296
      %1298 = vst [vmem:[#allocation2 + $0x20] sm:$0x1] %v1297
      %v1299 = vld [vmem:[#allocation2 + $0x2c] sm:$0x1]
      %v1300 = vsel %vm1289, 0, %v1299
      %1301 = vst [vmem:[#allocation2 + $0x2c] sm:$0x1] %v1300
      %v1302 = vld [vmem:[#allocation2 + $0x38] sm:$0x1]
      %v1303 = vsel %vm1289, 0, %v1302
      %1304 = vst [vmem:[#allocation2 + $0x38] sm:$0x1] %v1303
      %v1305 = vld [vmem:[#allocation2 + $0x44] sm:$0x1]
      %v1306 = vsel %vm1289, 0, %v1305
      %1307 = vst [vmem:[#allocation2 + $0x44] sm:$0x1] %v1306
      %v1308 = vld [vmem:[#allocation2 + $0x50] sm:$0x1]
      %v1309 = vsel %vm1289, 0, %v1308
      %1310 = vst [vmem:[#allocation2 + $0x50] sm:$0x1] %v1309
      %v1311 = vld [vmem:[#allocation2 + $0x5c] sm:$0x1]
      %v1312 = vsel %vm1289, 0, %v1311
      %1313 = vst [vmem:[#allocation2 + $0x5c] sm:$0x1] %v1312
      %v1314 = vld [vmem:[#allocation2 + $0x68] sm:$0x1]
      %v1315 = vsel %vm1289, 0, %v1314
      %1316 = vst [vmem:[#allocation2 + $0x68] sm:$0x1] %v1315
      %v1317 = vld [vmem:[#allocation2 + $0x74] sm:$0x1]
      %v1318 = vsel %vm1289, 0, %v1317
      %1319 = vst [vmem:[#allocation2 + $0x74] sm:$0x1] %v1318
      %v1320 = vld [vmem:[#allocation2 + $0x80] sm:$0x1]
      %v1321 = vsel %vm1289, 0, %v1320
      %1322 = vst [vmem:[#allocation2 + $0x80] sm:$0x1] %v1321
      %v1323 = vld [vmem:[#allocation2 + $0x8c] sm:$0x1]
      %v1324 = vsel %vm1289, 0, %v1323
      %1325 = vst [vmem:[#allocation2 + $0x8c] sm:$0x1] %v1324
      %v1326 = vld [vmem:[#allocation2 + $0x98] sm:$0x1]
      %v1327 = vsel %vm1289, 0, %v1326
      %1328 = vst [vmem:[#allocation2 + $0x98] sm:$0x1] %v1327
      %v1329 = vld [vmem:[#allocation2 + $0xa4] sm:$0x1]
      %v1330 = vsel %vm1289, 0, %v1329
      %1331 = vst [vmem:[#allocation2 + $0xa4] sm:$0x1] %v1330
      %v1332 = vld [vmem:[#allocation2 + $0xb0] sm:$0x1]
      %v1333 = vsel %vm1289, 0, %v1332
      %1334 = vst [vmem:[#allocation2 + $0xb0] sm:$0x1] %v1333
      %v1335 = vld [vmem:[#allocation2 + $0xbc] sm:$0x1]
      %v1336 = vsel %vm1289, 0, %v1335
      %1337 = vst [vmem:[#allocation2 + $0xbc] sm:$0x1] %v1336
      %v1338 = vld [vmem:[#allocation2 + $0xc8] sm:$0x1]
      %v1339 = vsel %vm1289, 0, %v1338
      %1340 = vst [vmem:[#allocation2 + $0xc8] sm:$0x1] %v1339
      %v1341 = vld [vmem:[#allocation2 + $0xd4] sm:$0x1]
      %v1342 = vsel %vm1289, 0, %v1341
      %1343 = vst [vmem:[#allocation2 + $0xd4] sm:$0x1] %v1342
      %v1344 = vld [vmem:[#allocation2] sm:$0xf]
      %v1345 = vld [vmem:[#allocation2 + $0x4] sm:$0xf]
      %v1346 = vld [vmem:[#allocation2 + $0xc] sm:$0xf]
      %v1347 = vld [vmem:[#allocation2 + $0x10] sm:$0xf]
      %v1348 = vld [vmem:[#allocation2 + $0x18] sm:$0xf]
      %v1349 = vld [vmem:[#allocation2 + $0x1c] sm:$0xf]
      %v1350 = vld [vmem:[#allocation2 + $0x24] sm:$0xf]
      %v1351 = vld [vmem:[#allocation2 + $0x28] sm:$0xf]
      %v1352 = vld [vmem:[#allocation2 + $0x30] sm:$0xf]
      %v1353 = vld [vmem:[#allocation2 + $0x34] sm:$0xf]
      %v1354 = vld [vmem:[#allocation2 + $0x3c] sm:$0xf]
      %v1355 = vld [vmem:[#allocation2 + $0x40] sm:$0xf]
      %v1356 = vld [vmem:[#allocation2 + $0x48] sm:$0xf]
      %v1357 = vld [vmem:[#allocation2 + $0x4c] sm:$0xf]
      %v1358 = vld [vmem:[#allocation2 + $0x54] sm:$0xf]
      %v1359 = vld [vmem:[#allocation2 + $0x58] sm:$0xf]
      %v1360 = vld [vmem:[#allocation2 + $0x60] sm:$0xf]
      %v1361 = vld [vmem:[#allocation2 + $0x64] sm:$0xf]
      %v1362 = vld [vmem:[#allocation2 + $0x6c] sm:$0xf]
      %v1363 = vld [vmem:[#allocation2 + $0x70] sm:$0xf]
      %v1364 = vld [vmem:[#allocation2 + $0x78] sm:$0xf]
      %v1365 = vld [vmem:[#allocation2 + $0x7c] sm:$0xf]
      %v1366 = vld [vmem:[#allocation2 + $0x84] sm:$0xf]
      %v1367 = vld [vmem:[#allocation2 + $0x88] sm:$0xf]
      %v1368 = vld [vmem:[#allocation2 + $0x90] sm:$0xf]
      %v1369 = vld [vmem:[#allocation2 + $0x94] sm:$0xf]
      %v1370 = vld [vmem:[#allocation2 + $0x9c] sm:$0xf]
      %v1371 = vld [vmem:[#allocation2 + $0xa0] sm:$0xf]
      %v1372 = vld [vmem:[#allocation2 + $0xa8] sm:$0xf]
      %v1373 = vld [vmem:[#allocation2 + $0xac] sm:$0xf]
      %v1374 = vld [vmem:[#allocation2 + $0xb4] sm:$0xf]
      %v1375 = vld [vmem:[#allocation2 + $0xb8] sm:$0xf]
      %v1376 = vld [vmem:[#allocation2 + $0x8] sm:$0x1]
      %v1377 = vld [vmem:[#allocation2 + $0x14] sm:$0x1]
      %v1378 = vld [vmem:[#allocation2 + $0x20] sm:$0x1]
      %v1379 = vld [vmem:[#allocation2 + $0x2c] sm:$0x1]
      %v1380 = vld [vmem:[#allocation2 + $0x38] sm:$0x1]
      %v1381 = vld [vmem:[#allocation2 + $0x44] sm:$0x1]
      %v1382 = vld [vmem:[#allocation2 + $0x50] sm:$0x1]
      %v1383 = vld [vmem:[#allocation2 + $0x5c] sm:$0x1]
      %v1384 = vld [vmem:[#allocation2 + $0x68] sm:$0x1]
      %v1385 = vld [vmem:[#allocation2 + $0x74] sm:$0x1]
      %v1386 = vld [vmem:[#allocation2 + $0x80] sm:$0x1]
      %v1387 = vld [vmem:[#allocation2 + $0x8c] sm:$0x1]
      %v1388 = vld [vmem:[#allocation2 + $0x98] sm:$0x1]
      %v1389 = vld [vmem:[#allocation2 + $0xa4] sm:$0x1]
      %v1390 = vld [vmem:[#allocation2 + $0xb0] sm:$0x1]
      %v1391 = vld [vmem:[#allocation2 + $0xbc] sm:$0x1]
      %v1392 = vld [vmem:[#allocation2] sm:$0xe]
      %v1393 = vld [vmem:[#allocation2 + $0xc] sm:$0xe]
      %v1394 = vld [vmem:[#allocation2 + $0x18] sm:$0xe]
      %v1395 = vld [vmem:[#allocation2 + $0x24] sm:$0xe]
      %v1396 = vld [vmem:[#allocation2 + $0x30] sm:$0xe]
      %v1397 = vld [vmem:[#allocation2 + $0x3c] sm:$0xe]
      %v1398 = vld [vmem:[#allocation2 + $0x48] sm:$0xe]
      %v1399 = vld [vmem:[#allocation2 + $0x54] sm:$0xe]
      %v1400 = vld [vmem:[#allocation2 + $0x60] sm:$0xe]
      %v1401 = vld [vmem:[#allocation2 + $0x6c] sm:$0xe]
      %v1402 = vld [vmem:[#allocation2 + $0x78] sm:$0xe]
      %v1403 = vld [vmem:[#allocation2 + $0x84] sm:$0xe]
      %v1404 = vld [vmem:[#allocation2 + $0x90] sm:$0xe]
      %v1405 = vld [vmem:[#allocation2 + $0x9c] sm:$0xe]
      %v1406 = vld [vmem:[#allocation2 + $0xa8] sm:$0xe]
      %v1407 = vld [vmem:[#allocation2 + $0xb4] sm:$0xe]
      %v1440 = vunpack.c.l.b16 %v1344
      %v1441 = vunpack.c.l.b16 %v1345
      %v1442 = vunpack.c.l.b16 %v1346
      %v1443 = vunpack.c.l.b16 %v1347
      %v1444 = vunpack.c.l.b16 %v1348
      %v1445 = vunpack.c.l.b16 %v1349
      %v1446 = vunpack.c.l.b16 %v1350
      %v1447 = vunpack.c.l.b16 %v1351
      %v1448 = vunpack.c.l.b16 %v1352
      %v1449 = vunpack.c.l.b16 %v1353
      %v1450 = vunpack.c.l.b16 %v1354
      %v1451 = vunpack.c.l.b16 %v1355
      %v1452 = vunpack.c.l.b16 %v1356
      %v1453 = vunpack.c.l.b16 %v1357
      %v1454 = vunpack.c.l.b16 %v1358
      %v1455 = vunpack.c.l.b16 %v1359
      %v1456 = vunpack.c.l.b16 %v1360
      %v1457 = vunpack.c.l.b16 %v1361
      %v1458 = vunpack.c.l.b16 %v1362
      %v1459 = vunpack.c.l.b16 %v1363
      %v1460 = vunpack.c.l.b16 %v1364
      %v1461 = vunpack.c.l.b16 %v1365
      %v1462 = vunpack.c.l.b16 %v1366
      %v1463 = vunpack.c.l.b16 %v1367
      %v1464 = vunpack.c.l.b16 %v1368
      %v1465 = vunpack.c.l.b16 %v1369
      %v1466 = vunpack.c.l.b16 %v1370
      %v1467 = vunpack.c.l.b16 %v1371
      %v1468 = vunpack.c.l.b16 %v1372
      %v1469 = vunpack.c.l.b16 %v1373
      %v1470 = vunpack.c.l.b16 %v1374
      %v1471 = vunpack.c.l.b16 %v1375
      %v1472 = vpack.c.b16 %v1441, %v1440
      %v1473 = vpack.c.b16 %v1443, %v1442
      %v1474 = vpack.c.b16 %v1445, %v1444
      %v1475 = vpack.c.b16 %v1447, %v1446
      %v1476 = vpack.c.b16 %v1449, %v1448
      %v1477 = vpack.c.b16 %v1451, %v1450
      %v1478 = vpack.c.b16 %v1453, %v1452
      %v1479 = vpack.c.b16 %v1455, %v1454
      %v1480 = vpack.c.b16 %v1457, %v1456
      %v1481 = vpack.c.b16 %v1459, %v1458
      %v1482 = vpack.c.b16 %v1461, %v1460
      %v1483 = vpack.c.b16 %v1463, %v1462
      %v1484 = vpack.c.b16 %v1465, %v1464
      %v1485 = vpack.c.b16 %v1467, %v1466
      %v1486 = vpack.c.b16 %v1469, %v1468
      %v1487 = vpack.c.b16 %v1471, %v1470
      %v1520 = vunpack.c.l.b16 %v1376
      %v1521 = vunpack.c.l.b16 %v1377
      %v1522 = vunpack.c.l.b16 %v1378
      %v1523 = vunpack.c.l.b16 %v1379
      %v1524 = vunpack.c.l.b16 %v1380
      %v1525 = vunpack.c.l.b16 %v1381
      %v1526 = vunpack.c.l.b16 %v1382
      %v1527 = vunpack.c.l.b16 %v1383
      %v1528 = vunpack.c.l.b16 %v1384
      %v1529 = vunpack.c.l.b16 %v1385
      %v1530 = vunpack.c.l.b16 %v1386
      %v1531 = vunpack.c.l.b16 %v1387
      %v1532 = vunpack.c.l.b16 %v1388
      %v1533 = vunpack.c.l.b16 %v1389
      %v1534 = vunpack.c.l.b16 %v1390
      %v1535 = vunpack.c.l.b16 %v1391
      %v1536 = vpack.c.b16 %v1520, %v1520
      %v1537 = vpack.c.b16 %v1521, %v1521
      %v1538 = vpack.c.b16 %v1522, %v1522
      %v1539 = vpack.c.b16 %v1523, %v1523
      %v1540 = vpack.c.b16 %v1524, %v1524
      %v1541 = vpack.c.b16 %v1525, %v1525
      %v1542 = vpack.c.b16 %v1526, %v1526
      %v1543 = vpack.c.b16 %v1527, %v1527
      %v1544 = vpack.c.b16 %v1528, %v1528
      %v1545 = vpack.c.b16 %v1529, %v1529
      %v1546 = vpack.c.b16 %v1530, %v1530
      %v1547 = vpack.c.b16 %v1531, %v1531
      %v1548 = vpack.c.b16 %v1532, %v1532
      %v1549 = vpack.c.b16 %v1533, %v1533
      %v1550 = vpack.c.b16 %v1534, %v1534
      %v1551 = vpack.c.b16 %v1535, %v1535
      %vm1552 = vsmask.f32 7424
      %v1554 = vshrl.u32 %v1472, 16
      %v1556 = vshll.u32 %v1472, 16
      %v1558 = vrot.slane %v1556, 1
      %v1559 = vor.u32 %v1554, %v1558
      %v1561 = vshll.u32 %v1536, 16
      %v1563 = vrot.slane %v1561, 1
      %v1564 = vsel %vm1552, %v1559, %v1563
      %v1566 = vshrl.u32 %v1473, 16
      %v1568 = vshll.u32 %v1473, 16
      %v1570 = vrot.slane %v1568, 1
      %v1571 = vor.u32 %v1566, %v1570
      %v1573 = vshll.u32 %v1537, 16
      %v1575 = vrot.slane %v1573, 1
      %v1576 = vsel %vm1552, %v1571, %v1575
      %v1578 = vshrl.u32 %v1474, 16
      %v1580 = vshll.u32 %v1474, 16
      %v1582 = vrot.slane %v1580, 1
      %v1583 = vor.u32 %v1578, %v1582
      %v1585 = vshll.u32 %v1538, 16
      %v1587 = vrot.slane %v1585, 1
      %v1588 = vsel %vm1552, %v1583, %v1587
      %v1590 = vshrl.u32 %v1475, 16
      %v1592 = vshll.u32 %v1475, 16
      %v1594 = vrot.slane %v1592, 1
      %v1595 = vor.u32 %v1590, %v1594
      %v1597 = vshll.u32 %v1539, 16
      %v1599 = vrot.slane %v1597, 1
      %v1600 = vsel %vm1552, %v1595, %v1599
      %v1602 = vshrl.u32 %v1476, 16
      %v1604 = vshll.u32 %v1476, 16
      %v1606 = vrot.slane %v1604, 1
      %v1607 = vor.u32 %v1602, %v1606
      %v1609 = vshll.u32 %v1540, 16
      %v1611 = vrot.slane %v1609, 1
      %v1612 = vsel %vm1552, %v1607, %v1611
      %v1614 = vshrl.u32 %v1477, 16
      %v1616 = vshll.u32 %v1477, 16
      %v1618 = vrot.slane %v1616, 1
      %v1619 = vor.u32 %v1614, %v1618
      %v1621 = vshll.u32 %v1541, 16
      %v1623 = vrot.slane %v1621, 1
      %v1624 = vsel %vm1552, %v1619, %v1623
      %v1626 = vshrl.u32 %v1478, 16
      %v1628 = vshll.u32 %v1478, 16
      %v1630 = vrot.slane %v1628, 1
      %v1631 = vor.u32 %v1626, %v1630
      %v1633 = vshll.u32 %v1542, 16
      %v1635 = vrot.slane %v1633, 1
      %v1636 = vsel %vm1552, %v1631, %v1635
      %v1638 = vshrl.u32 %v1479, 16
      %v1640 = vshll.u32 %v1479, 16
      %v1642 = vrot.slane %v1640, 1
      %v1643 = vor.u32 %v1638, %v1642
      %v1645 = vshll.u32 %v1543, 16
      %v1647 = vrot.slane %v1645, 1
      %v1648 = vsel %vm1552, %v1643, %v1647
      %v1650 = vshrl.u32 %v1480, 16
      %v1652 = vshll.u32 %v1480, 16
      %v1654 = vrot.slane %v1652, 1
      %v1655 = vor.u32 %v1650, %v1654
      %v1657 = vshll.u32 %v1544, 16
      %v1659 = vrot.slane %v1657, 1
      %v1660 = vsel %vm1552, %v1655, %v1659
      %v1662 = vshrl.u32 %v1481, 16
      %v1664 = vshll.u32 %v1481, 16
      %v1666 = vrot.slane %v1664, 1
      %v1667 = vor.u32 %v1662, %v1666
      %v1669 = vshll.u32 %v1545, 16
      %v1671 = vrot.slane %v1669, 1
      %v1672 = vsel %vm1552, %v1667, %v1671
      %v1674 = vshrl.u32 %v1482, 16
      %v1676 = vshll.u32 %v1482, 16
      %v1678 = vrot.slane %v1676, 1
      %v1679 = vor.u32 %v1674, %v1678
      %v1681 = vshll.u32 %v1546, 16
      %v1683 = vrot.slane %v1681, 1
      %v1684 = vsel %vm1552, %v1679, %v1683
      %v1686 = vshrl.u32 %v1483, 16
      %v1688 = vshll.u32 %v1483, 16
      %v1690 = vrot.slane %v1688, 1
      %v1691 = vor.u32 %v1686, %v1690
      %v1693 = vshll.u32 %v1547, 16
      %v1695 = vrot.slane %v1693, 1
      %v1696 = vsel %vm1552, %v1691, %v1695
      %v1698 = vshrl.u32 %v1484, 16
      %v1700 = vshll.u32 %v1484, 16
      %v1702 = vrot.slane %v1700, 1
      %v1703 = vor.u32 %v1698, %v1702
      %v1705 = vshll.u32 %v1548, 16
      %v1707 = vrot.slane %v1705, 1
      %v1708 = vsel %vm1552, %v1703, %v1707
      %v1710 = vshrl.u32 %v1485, 16
      %v1712 = vshll.u32 %v1485, 16
      %v1714 = vrot.slane %v1712, 1
      %v1715 = vor.u32 %v1710, %v1714
      %v1717 = vshll.u32 %v1549, 16
      %v1719 = vrot.slane %v1717, 1
      %v1720 = vsel %vm1552, %v1715, %v1719
      %v1722 = vshrl.u32 %v1486, 16
      %v1724 = vshll.u32 %v1486, 16
      %v1726 = vrot.slane %v1724, 1
      %v1727 = vor.u32 %v1722, %v1726
      %v1729 = vshll.u32 %v1550, 16
      %v1731 = vrot.slane %v1729, 1
      %v1732 = vsel %vm1552, %v1727, %v1731
      %v1734 = vshrl.u32 %v1487, 16
      %v1736 = vshll.u32 %v1487, 16
      %v1738 = vrot.slane %v1736, 1
      %v1739 = vor.u32 %v1734, %v1738
      %v1741 = vshll.u32 %v1551, 16
      %v1743 = vrot.slane %v1741, 1
      %v1744 = vsel %vm1552, %v1739, %v1743
      %v1777 = vunpack.c.l.b16 %v1392
      %v1778 = vunpack.c.l.b16 %v1393
      %v1779 = vunpack.c.l.b16 %v1394
      %v1780 = vunpack.c.l.b16 %v1395
      %v1781 = vunpack.c.l.b16 %v1396
      %v1782 = vunpack.c.l.b16 %v1397
      %v1783 = vunpack.c.l.b16 %v1398
      %v1784 = vunpack.c.l.b16 %v1399
      %v1785 = vunpack.c.l.b16 %v1400
      %v1786 = vunpack.c.l.b16 %v1401
      %v1787 = vunpack.c.l.b16 %v1402
      %v1788 = vunpack.c.l.b16 %v1403
      %v1789 = vunpack.c.l.b16 %v1404
      %v1790 = vunpack.c.l.b16 %v1405
      %v1791 = vunpack.c.l.b16 %v1406
      %v1792 = vunpack.c.l.b16 %v1407
      %v1793 = vpack.c.b16 %v1441, %v1777
      %v1794 = vpack.c.b16 %v1443, %v1778
      %v1795 = vpack.c.b16 %v1445, %v1779
      %v1796 = vpack.c.b16 %v1447, %v1780
      %v1797 = vpack.c.b16 %v1449, %v1781
      %v1798 = vpack.c.b16 %v1451, %v1782
      %v1799 = vpack.c.b16 %v1453, %v1783
      %v1800 = vpack.c.b16 %v1455, %v1784
      %v1801 = vpack.c.b16 %v1457, %v1785
      %v1802 = vpack.c.b16 %v1459, %v1786
      %v1803 = vpack.c.b16 %v1461, %v1787
      %v1804 = vpack.c.b16 %v1463, %v1788
      %v1805 = vpack.c.b16 %v1465, %v1789
      %v1806 = vpack.c.b16 %v1467, %v1790
      %v1807 = vpack.c.b16 %v1469, %v1791
      %v1808 = vpack.c.b16 %v1471, %v1792
      %vm1809 = vcmask 1046528
      %v1810 = vrot.slane %v1793, 1
      %v1811 = vrot.slane %v1536, 1
      %v1812 = vsel %vm1809, %v1810, %v1811
      %v1813 = vrot.slane %v1794, 1
      %v1814 = vrot.slane %v1537, 1
      %v1815 = vsel %vm1809, %v1813, %v1814
      %v1816 = vrot.slane %v1795, 1
      %v1817 = vrot.slane %v1538, 1
      %v1818 = vsel %vm1809, %v1816, %v1817
      %v1819 = vrot.slane %v1796, 1
      %v1820 = vrot.slane %v1539, 1
      %v1821 = vsel %vm1809, %v1819, %v1820
      %v1822 = vrot.slane %v1797, 1
      %v1823 = vrot.slane %v1540, 1
      %v1824 = vsel %vm1809, %v1822, %v1823
      %v1825 = vrot.slane %v1798, 1
      %v1826 = vrot.slane %v1541, 1
      %v1827 = vsel %vm1809, %v1825, %v1826
      %v1828 = vrot.slane %v1799, 1
      %v1829 = vrot.slane %v1542, 1
      %v1830 = vsel %vm1809, %v1828, %v1829
      %v1831 = vrot.slane %v1800, 1
      %v1832 = vrot.slane %v1543, 1
      %v1833 = vsel %vm1809, %v1831, %v1832
      %v1834 = vrot.slane %v1801, 1
      %v1835 = vrot.slane %v1544, 1
      %v1836 = vsel %vm1809, %v1834, %v1835
      %v1837 = vrot.slane %v1802, 1
      %v1838 = vrot.slane %v1545, 1
      %v1839 = vsel %vm1809, %v1837, %v1838
      %v1840 = vrot.slane %v1803, 1
      %v1841 = vrot.slane %v1546, 1
      %v1842 = vsel %vm1809, %v1840, %v1841
      %v1843 = vrot.slane %v1804, 1
      %v1844 = vrot.slane %v1547, 1
      %v1845 = vsel %vm1809, %v1843, %v1844
      %v1846 = vrot.slane %v1805, 1
      %v1847 = vrot.slane %v1548, 1
      %v1848 = vsel %vm1809, %v1846, %v1847
      %v1849 = vrot.slane %v1806, 1
      %v1850 = vrot.slane %v1549, 1
      %v1851 = vsel %vm1809, %v1849, %v1850
      %v1852 = vrot.slane %v1807, 1
      %v1853 = vrot.slane %v1550, 1
      %v1854 = vsel %vm1809, %v1852, %v1853
      %v1855 = vrot.slane %v1808, 1
      %v1856 = vrot.slane %v1551, 1
      %v1857 = vsel %vm1809, %v1855, %v1856
      %v1874 = vld [vmem:[%s5] sm:$0xf]
      %v1875 = vld [vmem:[%s5 + $0x4] sm:$0xf]
      %v1876 = vld [vmem:[%s5 + $0x8] sm:$0xf]
      %v1877 = vld [vmem:[%s5 + $0xc] sm:$0xf]
      %v1878 = vld [vmem:[%s5 + $0x10] sm:$0xf]
      %v1879 = vld [vmem:[%s5 + $0x14] sm:$0xf]
      %v1880 = vld [vmem:[%s5 + $0x18] sm:$0xf]
      %v1881 = vld [vmem:[%s5 + $0x1c] sm:$0xf]
      %v1882 = vld [vmem:[%s5 + $0x20] sm:$0xf]
      %v1883 = vld [vmem:[%s5 + $0x24] sm:$0xf]
      %v1884 = vld [vmem:[%s5 + $0x28] sm:$0xf]
      %v1885 = vld [vmem:[%s5 + $0x2c] sm:$0xf]
      %v1886 = vld [vmem:[%s5 + $0x30] sm:$0xf]
      %v1887 = vld [vmem:[%s5 + $0x34] sm:$0xf]
      %v1888 = vld [vmem:[%s5 + $0x38] sm:$0xf]
      %v1889 = vld [vmem:[%s5 + $0x3c] sm:$0xf]
      %v1890 = vld [vmem:[%s5 + $0x40] sm:$0xf]
      %v1891 = vld [vmem:[%s5 + $0x44] sm:$0xf]
      %v1892 = vld [vmem:[%s5 + $0x48] sm:$0xf]
      %v1893 = vld [vmem:[%s5 + $0x4c] sm:$0xf]
      %v1894 = vld [vmem:[%s5 + $0x50] sm:$0xf]
      %v1895 = vld [vmem:[%s5 + $0x54] sm:$0xf]
      %v1896 = vld [vmem:[%s5 + $0x58] sm:$0xf]
      %v1897 = vld [vmem:[%s5 + $0x5c] sm:$0xf]
      %v1898 = vld [vmem:[%s5 + $0x60] sm:$0xf]
      %v1899 = vld [vmem:[%s5 + $0x64] sm:$0xf]
      %v1900 = vld [vmem:[%s5 + $0x68] sm:$0xf]
      %v1901 = vld [vmem:[%s5 + $0x6c] sm:$0xf]
      %v1902 = vld [vmem:[%s5 + $0x70] sm:$0xf]
      %v1903 = vld [vmem:[%s5 + $0x74] sm:$0xf]
      %v1904 = vld [vmem:[%s5 + $0x78] sm:$0xf]
      %v1905 = vld [vmem:[%s5 + $0x7c] sm:$0xf]
      %v1906 = vld [vmem:[%s5 + $0x80] sm:$0xf]
      %v1907 = vld [vmem:[%s5 + $0x84] sm:$0xf]
      %v1908 = vld [vmem:[%s5 + $0x88] sm:$0xf]
      %v1909 = vld [vmem:[%s5 + $0x8c] sm:$0xf]
      %v1910 = vld [vmem:[%s5 + $0x90] sm:$0xf]
      %v1911 = vld [vmem:[%s5 + $0x94] sm:$0xf]
      %v1912 = vld [vmem:[%s5 + $0x98] sm:$0xf]
      %v1913 = vld [vmem:[%s5 + $0x9c] sm:$0xf]
      %v1914 = vld [vmem:[%s5 + $0xa0] sm:$0xf]
      %v1915 = vld [vmem:[%s5 + $0xa4] sm:$0xf]
      %v1916 = vld [vmem:[%s5 + $0xa8] sm:$0xf]
      %v1917 = vld [vmem:[%s5 + $0xac] sm:$0xf]
      %v1918 = vld [vmem:[%s5 + $0xb0] sm:$0xf]
      %v1919 = vld [vmem:[%s5 + $0xb4] sm:$0xf]
      %v1920 = vld [vmem:[%s5 + $0xb8] sm:$0xf]
      %v1921 = vld [vmem:[%s5 + $0xbc] sm:$0xf]
      %v1922 = vld [vmem:[%s1026] sm:$0xf]
      %v1923 = vld [vmem:[%s1026 + $0x4] sm:$0xf]
      %v1924 = vld [vmem:[%s1026 + $0xc] sm:$0xf]
      %v1925 = vld [vmem:[%s1026 + $0x10] sm:$0xf]
      %v1926 = vld [vmem:[%s1026 + $0x18] sm:$0xf]
      %v1927 = vld [vmem:[%s1026 + $0x1c] sm:$0xf]
      %v1928 = vld [vmem:[%s1026 + $0x24] sm:$0xf]
      %v1929 = vld [vmem:[%s1026 + $0x28] sm:$0xf]
      %v1930 = vld [vmem:[%s1026 + $0x30] sm:$0xf]
      %v1931 = vld [vmem:[%s1026 + $0x34] sm:$0xf]
      %v1932 = vld [vmem:[%s1026 + $0x3c] sm:$0xf]
      %v1933 = vld [vmem:[%s1026 + $0x40] sm:$0xf]
      %v1934 = vld [vmem:[%s1026 + $0x48] sm:$0xf]
      %v1935 = vld [vmem:[%s1026 + $0x4c] sm:$0xf]
      %v1936 = vld [vmem:[%s1026 + $0x54] sm:$0xf]
      %v1937 = vld [vmem:[%s1026 + $0x58] sm:$0xf]
      %v1938 = vld [vmem:[%s1026 + $0x60] sm:$0xf]
      %v1939 = vld [vmem:[%s1026 + $0x64] sm:$0xf]
      %v1940 = vld [vmem:[%s1026 + $0x6c] sm:$0xf]
      %v1941 = vld [vmem:[%s1026 + $0x70] sm:$0xf]
      %v1942 = vld [vmem:[%s1026 + $0x78] sm:$0xf]
      %v1943 = vld [vmem:[%s1026 + $0x7c] sm:$0xf]
      %v1944 = vld [vmem:[%s1026 + $0x84] sm:$0xf]
      %v1945 = vld [vmem:[%s1026 + $0x88] sm:$0xf]
      %v1946 = vld [vmem:[%s1026 + $0x90] sm:$0xf]
      %v1947 = vld [vmem:[%s1026 + $0x94] sm:$0xf]
      %v1948 = vld [vmem:[%s1026 + $0x9c] sm:$0xf]
      %v1949 = vld [vmem:[%s1026 + $0xa0] sm:$0xf]
      %v1950 = vld [vmem:[%s1026 + $0xa8] sm:$0xf]
      %v1951 = vld [vmem:[%s1026 + $0xac] sm:$0xf]
      %v1952 = vld [vmem:[%s1026 + $0xb4] sm:$0xf]
      %v1953 = vld [vmem:[%s1026 + $0xb8] sm:$0xf]
      %v1954 = vld [vmem:[%s1026 + $0x8] sm:$0x1]
      %v1955 = vld [vmem:[%s1026 + $0x14] sm:$0x1]
      %v1956 = vld [vmem:[%s1026 + $0x20] sm:$0x1]
      %v1957 = vld [vmem:[%s1026 + $0x2c] sm:$0x1]
      %v1958 = vld [vmem:[%s1026 + $0x38] sm:$0x1]
      %v1959 = vld [vmem:[%s1026 + $0x44] sm:$0x1]
      %v1960 = vld [vmem:[%s1026 + $0x50] sm:$0x1]
      %v1961 = vld [vmem:[%s1026 + $0x5c] sm:$0x1]
      %v1962 = vld [vmem:[%s1026 + $0x68] sm:$0x1]
      %v1963 = vld [vmem:[%s1026 + $0x74] sm:$0x1]
      %v1964 = vld [vmem:[%s1026 + $0x80] sm:$0x1]
      %v1965 = vld [vmem:[%s1026 + $0x8c] sm:$0x1]
      %v1966 = vld [vmem:[%s1026 + $0x98] sm:$0x1]
      %v1967 = vld [vmem:[%s1026 + $0xa4] sm:$0x1]
      %v1968 = vld [vmem:[%s1026 + $0xb0] sm:$0x1]
      %v1969 = vld [vmem:[%s1026 + $0xbc] sm:$0x1]
      %v1970 = vld [vmem:[%s1026] sm:$0xe]
      %v1971 = vld [vmem:[%s1026 + $0xc] sm:$0xe]
      %v1972 = vld [vmem:[%s1026 + $0x18] sm:$0xe]
      %v1973 = vld [vmem:[%s1026 + $0x24] sm:$0xe]
      %v1974 = vld [vmem:[%s1026 + $0x30] sm:$0xe]
      %v1975 = vld [vmem:[%s1026 + $0x3c] sm:$0xe]
      %v1976 = vld [vmem:[%s1026 + $0x48] sm:$0xe]
      %v1977 = vld [vmem:[%s1026 + $0x54] sm:$0xe]
      %v1978 = vld [vmem:[%s1026 + $0x60] sm:$0xe]
      %v1979 = vld [vmem:[%s1026 + $0x6c] sm:$0xe]
      %v1980 = vld [vmem:[%s1026 + $0x78] sm:$0xe]
      %v1981 = vld [vmem:[%s1026 + $0x84] sm:$0xe]
      %v1982 = vld [vmem:[%s1026 + $0x90] sm:$0xe]
      %v1983 = vld [vmem:[%s1026 + $0x9c] sm:$0xe]
      %v1984 = vld [vmem:[%s1026 + $0xa8] sm:$0xe]
      %v1985 = vld [vmem:[%s1026 + $0xb4] sm:$0xe]
      %v2018 = vunpack.c.l.b16 %v1922
      %v2019 = vunpack.c.l.b16 %v1923
      %v2020 = vunpack.c.l.b16 %v1924
      %v2021 = vunpack.c.l.b16 %v1925
      %v2022 = vunpack.c.l.b16 %v1926
      %v2023 = vunpack.c.l.b16 %v1927
      %v2024 = vunpack.c.l.b16 %v1928
      %v2025 = vunpack.c.l.b16 %v1929
      %v2026 = vunpack.c.l.b16 %v1930
      %v2027 = vunpack.c.l.b16 %v1931
      %v2028 = vunpack.c.l.b16 %v1932
      %v2029 = vunpack.c.l.b16 %v1933
      %v2030 = vunpack.c.l.b16 %v1934
      %v2031 = vunpack.c.l.b16 %v1935
      %v2032 = vunpack.c.l.b16 %v1936
      %v2033 = vunpack.c.l.b16 %v1937
      %v2034 = vunpack.c.l.b16 %v1938
      %v2035 = vunpack.c.l.b16 %v1939
      %v2036 = vunpack.c.l.b16 %v1940
      %v2037 = vunpack.c.l.b16 %v1941
      %v2038 = vunpack.c.l.b16 %v1942
      %v2039 = vunpack.c.l.b16 %v1943
      %v2040 = vunpack.c.l.b16 %v1944
      %v2041 = vunpack.c.l.b16 %v1945
      %v2042 = vunpack.c.l.b16 %v1946
      %v2043 = vunpack.c.l.b16 %v1947
      %v2044 = vunpack.c.l.b16 %v1948
      %v2045 = vunpack.c.l.b16 %v1949
      %v2046 = vunpack.c.l.b16 %v1950
      %v2047 = vunpack.c.l.b16 %v1951
      %v2048 = vunpack.c.l.b16 %v1952
      %v2049 = vunpack.c.l.b16 %v1953
      %v2050 = vpack.c.b16 %v2019, %v2018
      %v2051 = vpack.c.b16 %v2021, %v2020
      %v2052 = vpack.c.b16 %v2023, %v2022
      %v2053 = vpack.c.b16 %v2025, %v2024
      %v2054 = vpack.c.b16 %v2027, %v2026
      %v2055 = vpack.c.b16 %v2029, %v2028
      %v2056 = vpack.c.b16 %v2031, %v2030
      %v2057 = vpack.c.b16 %v2033, %v2032
      %v2058 = vpack.c.b16 %v2035, %v2034
      %v2059 = vpack.c.b16 %v2037, %v2036
      %v2060 = vpack.c.b16 %v2039, %v2038
      %v2061 = vpack.c.b16 %v2041, %v2040
      %v2062 = vpack.c.b16 %v2043, %v2042
      %v2063 = vpack.c.b16 %v2045, %v2044
      %v2064 = vpack.c.b16 %v2047, %v2046
      %v2065 = vpack.c.b16 %v2049, %v2048
      %v2098 = vunpack.c.l.b16 %v1954
      %v2099 = vunpack.c.l.b16 %v1955
      %v2100 = vunpack.c.l.b16 %v1956
      %v2101 = vunpack.c.l.b16 %v1957
      %v2102 = vunpack.c.l.b16 %v1958
      %v2103 = vunpack.c.l.b16 %v1959
      %v2104 = vunpack.c.l.b16 %v1960
      %v2105 = vunpack.c.l.b16 %v1961
      %v2106 = vunpack.c.l.b16 %v1962
      %v2107 = vunpack.c.l.b16 %v1963
      %v2108 = vunpack.c.l.b16 %v1964
      %v2109 = vunpack.c.l.b16 %v1965
      %v2110 = vunpack.c.l.b16 %v1966
      %v2111 = vunpack.c.l.b16 %v1967
      %v2112 = vunpack.c.l.b16 %v1968
      %v2113 = vunpack.c.l.b16 %v1969
      %v2114 = vpack.c.b16 %v2098, %v2098
      %v2115 = vpack.c.b16 %v2099, %v2099
      %v2116 = vpack.c.b16 %v2100, %v2100
      %v2117 = vpack.c.b16 %v2101, %v2101
      %v2118 = vpack.c.b16 %v2102, %v2102
      %v2119 = vpack.c.b16 %v2103, %v2103
      %v2120 = vpack.c.b16 %v2104, %v2104
      %v2121 = vpack.c.b16 %v2105, %v2105
      %v2122 = vpack.c.b16 %v2106, %v2106
      %v2123 = vpack.c.b16 %v2107, %v2107
      %v2124 = vpack.c.b16 %v2108, %v2108
      %v2125 = vpack.c.b16 %v2109, %v2109
      %v2126 = vpack.c.b16 %v2110, %v2110
      %v2127 = vpack.c.b16 %v2111, %v2111
      %v2128 = vpack.c.b16 %v2112, %v2112
      %v2129 = vpack.c.b16 %v2113, %v2113
      %v2131 = vshrl.u32 %v2050, 16
      %v2133 = vshll.u32 %v2050, 16
      %v2135 = vrot.slane %v2133, 1
      %v2136 = vor.u32 %v2131, %v2135
      %v2138 = vshll.u32 %v2114, 16
      %v2140 = vrot.slane %v2138, 1
      %v2141 = vsel %vm1552, %v2136, %v2140
      %v2143 = vshrl.u32 %v2051, 16
      %v2145 = vshll.u32 %v2051, 16
      %v2147 = vrot.slane %v2145, 1
      %v2148 = vor.u32 %v2143, %v2147
      %v2150 = vshll.u32 %v2115, 16
      %v2152 = vrot.slane %v2150, 1
      %v2153 = vsel %vm1552, %v2148, %v2152
      %v2155 = vshrl.u32 %v2052, 16
      %v2157 = vshll.u32 %v2052, 16
      %v2159 = vrot.slane %v2157, 1
      %v2160 = vor.u32 %v2155, %v2159
      %v2162 = vshll.u32 %v2116, 16
      %v2164 = vrot.slane %v2162, 1
      %v2165 = vsel %vm1552, %v2160, %v2164
      %v2167 = vshrl.u32 %v2053, 16
      %v2169 = vshll.u32 %v2053, 16
      %v2171 = vrot.slane %v2169, 1
      %v2172 = vor.u32 %v2167, %v2171
      %v2174 = vshll.u32 %v2117, 16
      %v2176 = vrot.slane %v2174, 1
      %v2177 = vsel %vm1552, %v2172, %v2176
      %v2179 = vshrl.u32 %v2054, 16
      %v2181 = vshll.u32 %v2054, 16
      %v2183 = vrot.slane %v2181, 1
      %v2184 = vor.u32 %v2179, %v2183
      %v2186 = vshll.u32 %v2118, 16
      %v2188 = vrot.slane %v2186, 1
      %v2189 = vsel %vm1552, %v2184, %v2188
      %v2191 = vshrl.u32 %v2055, 16
      %v2193 = vshll.u32 %v2055, 16
      %v2195 = vrot.slane %v2193, 1
      %v2196 = vor.u32 %v2191, %v2195
      %v2198 = vshll.u32 %v2119, 16
      %v2200 = vrot.slane %v2198, 1
      %v2201 = vsel %vm1552, %v2196, %v2200
      %v2203 = vshrl.u32 %v2056, 16
      %v2205 = vshll.u32 %v2056, 16
      %v2207 = vrot.slane %v2205, 1
      %v2208 = vor.u32 %v2203, %v2207
      %v2210 = vshll.u32 %v2120, 16
      %v2212 = vrot.slane %v2210, 1
      %v2213 = vsel %vm1552, %v2208, %v2212
      %v2215 = vshrl.u32 %v2057, 16
      %v2217 = vshll.u32 %v2057, 16
      %v2219 = vrot.slane %v2217, 1
      %v2220 = vor.u32 %v2215, %v2219
      %v2222 = vshll.u32 %v2121, 16
      %v2224 = vrot.slane %v2222, 1
      %v2225 = vsel %vm1552, %v2220, %v2224
      %v2227 = vshrl.u32 %v2058, 16
      %v2229 = vshll.u32 %v2058, 16
      %v2231 = vrot.slane %v2229, 1
      %v2232 = vor.u32 %v2227, %v2231
      %v2234 = vshll.u32 %v2122, 16
      %v2236 = vrot.slane %v2234, 1
      %v2237 = vsel %vm1552, %v2232, %v2236
      %v2239 = vshrl.u32 %v2059, 16
      %v2241 = vshll.u32 %v2059, 16
      %v2243 = vrot.slane %v2241, 1
      %v2244 = vor.u32 %v2239, %v2243
      %v2246 = vshll.u32 %v2123, 16
      %v2248 = vrot.slane %v2246, 1
      %v2249 = vsel %vm1552, %v2244, %v2248
      %v2251 = vshrl.u32 %v2060, 16
      %v2253 = vshll.u32 %v2060, 16
      %v2255 = vrot.slane %v2253, 1
      %v2256 = vor.u32 %v2251, %v2255
      %v2258 = vshll.u32 %v2124, 16
      %v2260 = vrot.slane %v2258, 1
      %v2261 = vsel %vm1552, %v2256, %v2260
      %v2263 = vshrl.u32 %v2061, 16
      %v2265 = vshll.u32 %v2061, 16
      %v2267 = vrot.slane %v2265, 1
      %v2268 = vor.u32 %v2263, %v2267
      %v2270 = vshll.u32 %v2125, 16
      %v2272 = vrot.slane %v2270, 1
      %v2273 = vsel %vm1552, %v2268, %v2272
      %v2275 = vshrl.u32 %v2062, 16
      %v2277 = vshll.u32 %v2062, 16
      %v2279 = vrot.slane %v2277, 1
      %v2280 = vor.u32 %v2275, %v2279
      %v2282 = vshll.u32 %v2126, 16
      %v2284 = vrot.slane %v2282, 1
      %v2285 = vsel %vm1552, %v2280, %v2284
      %v2287 = vshrl.u32 %v2063, 16
      %v2289 = vshll.u32 %v2063, 16
      %v2291 = vrot.slane %v2289, 1
      %v2292 = vor.u32 %v2287, %v2291
      %v2294 = vshll.u32 %v2127, 16
      %v2296 = vrot.slane %v2294, 1
      %v2297 = vsel %vm1552, %v2292, %v2296
      %v2299 = vshrl.u32 %v2064, 16
      %v2301 = vshll.u32 %v2064, 16
      %v2303 = vrot.slane %v2301, 1
      %v2304 = vor.u32 %v2299, %v2303
      %v2306 = vshll.u32 %v2128, 16
      %v2308 = vrot.slane %v2306, 1
      %v2309 = vsel %vm1552, %v2304, %v2308
      %v2311 = vshrl.u32 %v2065, 16
      %v2313 = vshll.u32 %v2065, 16
      %v2315 = vrot.slane %v2313, 1
      %v2316 = vor.u32 %v2311, %v2315
      %v2318 = vshll.u32 %v2129, 16
      %v2320 = vrot.slane %v2318, 1
      %v2321 = vsel %vm1552, %v2316, %v2320
      %v2354 = vunpack.c.l.b16 %v1970
      %v2355 = vunpack.c.l.b16 %v1971
      %v2356 = vunpack.c.l.b16 %v1972
      %v2357 = vunpack.c.l.b16 %v1973
      %v2358 = vunpack.c.l.b16 %v1974
      %v2359 = vunpack.c.l.b16 %v1975
      %v2360 = vunpack.c.l.b16 %v1976
      %v2361 = vunpack.c.l.b16 %v1977
      %v2362 = vunpack.c.l.b16 %v1978
      %v2363 = vunpack.c.l.b16 %v1979
      %v2364 = vunpack.c.l.b16 %v1980
      %v2365 = vunpack.c.l.b16 %v1981
      %v2366 = vunpack.c.l.b16 %v1982
      %v2367 = vunpack.c.l.b16 %v1983
      %v2368 = vunpack.c.l.b16 %v1984
      %v2369 = vunpack.c.l.b16 %v1985
      %v2370 = vpack.c.b16 %v2019, %v2354
      %v2371 = vpack.c.b16 %v2021, %v2355
      %v2372 = vpack.c.b16 %v2023, %v2356
      %v2373 = vpack.c.b16 %v2025, %v2357
      %v2374 = vpack.c.b16 %v2027, %v2358
      %v2375 = vpack.c.b16 %v2029, %v2359
      %v2376 = vpack.c.b16 %v2031, %v2360
      %v2377 = vpack.c.b16 %v2033, %v2361
      %v2378 = vpack.c.b16 %v2035, %v2362
      %v2379 = vpack.c.b16 %v2037, %v2363
      %v2380 = vpack.c.b16 %v2039, %v2364
      %v2381 = vpack.c.b16 %v2041, %v2365
      %v2382 = vpack.c.b16 %v2043, %v2366
      %v2383 = vpack.c.b16 %v2045, %v2367
      %v2384 = vpack.c.b16 %v2047, %v2368
      %v2385 = vpack.c.b16 %v2049, %v2369
      %v2386 = vrot.slane %v2370, 1
      %v2387 = vrot.slane %v2114, 1
      %v2388 = vsel %vm1809, %v2386, %v2387
      %v2389 = vrot.slane %v2371, 1
      %v2390 = vrot.slane %v2115, 1
      %v2391 = vsel %vm1809, %v2389, %v2390
      %v2392 = vrot.slane %v2372, 1
      %v2393 = vrot.slane %v2116, 1
      %v2394 = vsel %vm1809, %v2392, %v2393
      %v2395 = vrot.slane %v2373, 1
      %v2396 = vrot.slane %v2117, 1
      %v2397 = vsel %vm1809, %v2395, %v2396
      %v2398 = vrot.slane %v2374, 1
      %v2399 = vrot.slane %v2118, 1
      %v2400 = vsel %vm1809, %v2398, %v2399
      %v2401 = vrot.slane %v2375, 1
      %v2402 = vrot.slane %v2119, 1
      %v2403 = vsel %vm1809, %v2401, %v2402
      %v2404 = vrot.slane %v2376, 1
      %v2405 = vrot.slane %v2120, 1
      %v2406 = vsel %vm1809, %v2404, %v2405
      %v2407 = vrot.slane %v2377, 1
      %v2408 = vrot.slane %v2121, 1
      %v2409 = vsel %vm1809, %v2407, %v2408
      %v2410 = vrot.slane %v2378, 1
      %v2411 = vrot.slane %v2122, 1
      %v2412 = vsel %vm1809, %v2410, %v2411
      %v2413 = vrot.slane %v2379, 1
      %v2414 = vrot.slane %v2123, 1
      %v2415 = vsel %vm1809, %v2413, %v2414
      %v2416 = vrot.slane %v2380, 1
      %v2417 = vrot.slane %v2124, 1
      %v2418 = vsel %vm1809, %v2416, %v2417
      %v2419 = vrot.slane %v2381, 1
      %v2420 = vrot.slane %v2125, 1
      %v2421 = vsel %vm1809, %v2419, %v2420
      %v2422 = vrot.slane %v2382, 1
      %v2423 = vrot.slane %v2126, 1
      %v2424 = vsel %vm1809, %v2422, %v2423
      %v2425 = vrot.slane %v2383, 1
      %v2426 = vrot.slane %v2127, 1
      %v2427 = vsel %vm1809, %v2425, %v2426
      %v2428 = vrot.slane %v2384, 1
      %v2429 = vrot.slane %v2128, 1
      %v2430 = vsel %vm1809, %v2428, %v2429
      %v2431 = vrot.slane %v2385, 1
      %v2432 = vrot.slane %v2129, 1
      %v2433 = vsel %vm1809, %v2431, %v2432
      %s2450 = scalar_lea.vmem %s5, 192
      %v2451 = vld [vmem:[%s2450] sm:$0xf]
      %v2452 = vld [vmem:[%s2450 + $0x4] sm:$0xf]
      %v2453 = vld [vmem:[%s2450 + $0x8] sm:$0xf]
      %v2454 = vld [vmem:[%s2450 + $0xc] sm:$0xf]
      %v2455 = vld [vmem:[%s2450 + $0x10] sm:$0xf]
      %v2456 = vld [vmem:[%s2450 + $0x14] sm:$0xf]
      %v2457 = vld [vmem:[%s2450 + $0x18] sm:$0xf]
      %v2458 = vld [vmem:[%s2450 + $0x1c] sm:$0xf]
      %v2459 = vld [vmem:[%s2450 + $0x20] sm:$0xf]
      %v2460 = vld [vmem:[%s2450 + $0x24] sm:$0xf]
      %v2461 = vld [vmem:[%s2450 + $0x28] sm:$0xf]
      %v2462 = vld [vmem:[%s2450 + $0x2c] sm:$0xf]
      %v2463 = vld [vmem:[%s2450 + $0x30] sm:$0xf]
      %v2464 = vld [vmem:[%s2450 + $0x34] sm:$0xf]
      %v2465 = vld [vmem:[%s2450 + $0x38] sm:$0xf]
      %v2466 = vld [vmem:[%s2450 + $0x3c] sm:$0xf]
      %v2467 = vld [vmem:[%s2450 + $0x40] sm:$0xf]
      %v2468 = vld [vmem:[%s2450 + $0x44] sm:$0xf]
      %v2469 = vld [vmem:[%s2450 + $0x48] sm:$0xf]
      %v2470 = vld [vmem:[%s2450 + $0x4c] sm:$0xf]
      %v2471 = vld [vmem:[%s2450 + $0x50] sm:$0xf]
      %v2472 = vld [vmem:[%s2450 + $0x54] sm:$0xf]
      %v2473 = vld [vmem:[%s2450 + $0x58] sm:$0xf]
      %v2474 = vld [vmem:[%s2450 + $0x5c] sm:$0xf]
      %v2475 = vld [vmem:[%s2450 + $0x60] sm:$0xf]
      %v2476 = vld [vmem:[%s2450 + $0x64] sm:$0xf]
      %v2477 = vld [vmem:[%s2450 + $0x68] sm:$0xf]
      %v2478 = vld [vmem:[%s2450 + $0x6c] sm:$0xf]
      %v2479 = vld [vmem:[%s2450 + $0x70] sm:$0xf]
      %v2480 = vld [vmem:[%s2450 + $0x74] sm:$0xf]
      %v2481 = vld [vmem:[%s2450 + $0x78] sm:$0xf]
      %v2482 = vld [vmem:[%s2450 + $0x7c] sm:$0xf]
      %v2483 = vld [vmem:[%s2450 + $0x80] sm:$0xf]
      %v2484 = vld [vmem:[%s2450 + $0x84] sm:$0xf]
      %v2485 = vld [vmem:[%s2450 + $0x88] sm:$0xf]
      %v2486 = vld [vmem:[%s2450 + $0x8c] sm:$0xf]
      %v2487 = vld [vmem:[%s2450 + $0x90] sm:$0xf]
      %v2488 = vld [vmem:[%s2450 + $0x94] sm:$0xf]
      %v2489 = vld [vmem:[%s2450 + $0x98] sm:$0xf]
      %v2490 = vld [vmem:[%s2450 + $0x9c] sm:$0xf]
      %v2491 = vld [vmem:[%s2450 + $0xa0] sm:$0xf]
      %v2492 = vld [vmem:[%s2450 + $0xa4] sm:$0xf]
      %v2493 = vld [vmem:[%s2450 + $0xa8] sm:$0xf]
      %v2494 = vld [vmem:[%s2450 + $0xac] sm:$0xf]
      %v2495 = vld [vmem:[%s2450 + $0xb0] sm:$0xf]
      %v2496 = vld [vmem:[%s2450 + $0xb4] sm:$0xf]
      %v2497 = vld [vmem:[%s2450 + $0xb8] sm:$0xf]
      %v2498 = vld [vmem:[%s2450 + $0xbc] sm:$0xf]
      %v2547 = vunpack.c.l.b16 %v2451
      %v2548 = vunpack.c.l.b16 %v2452
      %v2549 = vunpack.c.l.b16 %v2453
      %v2550 = vunpack.c.l.b16 %v2454
      %v2551 = vunpack.c.l.b16 %v2455
      %v2552 = vunpack.c.l.b16 %v2456
      %v2553 = vunpack.c.l.b16 %v2457
      %v2554 = vunpack.c.l.b16 %v2458
      %v2555 = vunpack.c.l.b16 %v2459
      %v2556 = vunpack.c.l.b16 %v2460
      %v2557 = vunpack.c.l.b16 %v2461
      %v2558 = vunpack.c.l.b16 %v2462
      %v2559 = vunpack.c.l.b16 %v2463
      %v2560 = vunpack.c.l.b16 %v2464
      %v2561 = vunpack.c.l.b16 %v2465
      %v2562 = vunpack.c.l.b16 %v2466
      %v2563 = vunpack.c.l.b16 %v2467
      %v2564 = vunpack.c.l.b16 %v2468
      %v2565 = vunpack.c.l.b16 %v2469
      %v2566 = vunpack.c.l.b16 %v2470
      %v2567 = vunpack.c.l.b16 %v2471
      %v2568 = vunpack.c.l.b16 %v2472
      %v2569 = vunpack.c.l.b16 %v2473
      %v2570 = vunpack.c.l.b16 %v2474
      %v2571 = vunpack.c.l.b16 %v2475
      %v2572 = vunpack.c.l.b16 %v2476
      %v2573 = vunpack.c.l.b16 %v2477
      %v2574 = vunpack.c.l.b16 %v2478
      %v2575 = vunpack.c.l.b16 %v2479
      %v2576 = vunpack.c.l.b16 %v2480
      %v2577 = vunpack.c.l.b16 %v2481
      %v2578 = vunpack.c.l.b16 %v2482
      %v2579 = vunpack.c.l.b16 %v2483
      %v2580 = vunpack.c.l.b16 %v2484
      %v2581 = vunpack.c.l.b16 %v2485
      %v2582 = vunpack.c.l.b16 %v2486
      %v2583 = vunpack.c.l.b16 %v2487
      %v2584 = vunpack.c.l.b16 %v2488
      %v2585 = vunpack.c.l.b16 %v2489
      %v2586 = vunpack.c.l.b16 %v2490
      %v2587 = vunpack.c.l.b16 %v2491
      %v2588 = vunpack.c.l.b16 %v2492
      %v2589 = vunpack.c.l.b16 %v2493
      %v2590 = vunpack.c.l.b16 %v2494
      %v2591 = vunpack.c.l.b16 %v2495
      %v2592 = vunpack.c.l.b16 %v2496
      %v2593 = vunpack.c.l.b16 %v2497
      %v2594 = vunpack.c.l.b16 %v2498
      %v2595 = vpack.c.b16 %v2548, %v2547
      %v2596 = vpack.c.b16 %v2550, %v2549
      %v2597 = vpack.c.b16 %v2552, %v2551
      %v2598 = vpack.c.b16 %v2554, %v2553
      %v2599 = vpack.c.b16 %v2556, %v2555
      %v2600 = vpack.c.b16 %v2558, %v2557
      %v2601 = vpack.c.b16 %v2560, %v2559
      %v2602 = vpack.c.b16 %v2562, %v2561
      %v2603 = vpack.c.b16 %v2564, %v2563
      %v2604 = vpack.c.b16 %v2566, %v2565
      %v2605 = vpack.c.b16 %v2568, %v2567
      %v2606 = vpack.c.b16 %v2570, %v2569
      %v2607 = vpack.c.b16 %v2572, %v2571
      %v2608 = vpack.c.b16 %v2574, %v2573
      %v2609 = vpack.c.b16 %v2576, %v2575
      %v2610 = vpack.c.b16 %v2578, %v2577
      %v2611 = vpack.c.b16 %v2580, %v2579
      %v2612 = vpack.c.b16 %v2582, %v2581
      %v2613 = vpack.c.b16 %v2584, %v2583
      %v2614 = vpack.c.b16 %v2586, %v2585
      %v2615 = vpack.c.b16 %v2588, %v2587
      %v2616 = vpack.c.b16 %v2590, %v2589
      %v2617 = vpack.c.b16 %v2592, %v2591
      %v2618 = vpack.c.b16 %v2594, %v2593
      %2643 = vmatprep.subr.bf16.mxu0 0
      %2644 = vmatpush1.bf16.msra.mxu0 %v2595
      %2645 = vmatprep.subr.bf16.mxu0 0
      %2646 = vmatpush1.bf16.msra.mxu0 %v2596
      %2647 = vmatprep.subr.bf16.mxu0 0
      %2648 = vmatpush1.bf16.msra.mxu0 %v2597
      %2649 = vmatprep.subr.bf16.mxu0 0
      %2650 = vmatpush1.bf16.msra.mxu0 %v2598
      %2651 = vmatprep.subr.bf16.mxu0 0
      %2652 = vmatpush1.bf16.msra.mxu0 %v2599
      %2653 = vmatprep.subr.bf16.mxu0 0
      %2654 = vmatpush1.bf16.msra.mxu0 %v2600
      %2655 = vmatprep.subr.bf16.mxu0 0
      %2656 = vmatpush1.bf16.msra.mxu0 %v2601
      %2657 = vmatprep.subr.bf16.mxu0 0
      %2658 = vmatpush1.bf16.msra.mxu0 %v2602
      %2659 = vmatprep.subr.bf16.mxu0 0
      %2660 = vmatpush1.bf16.msra.mxu0 %v2603
      %2661 = vmatprep.subr.bf16.mxu0 0
      %2662 = vmatpush1.bf16.msra.mxu0 %v2604
      %2663 = vmatprep.subr.bf16.mxu0 0
      %2664 = vmatpush1.bf16.msra.mxu0 %v2605
      %2665 = vmatprep.subr.bf16.mxu0 0
      %2666 = vmatpush1.bf16.msra.mxu0 %v2606
      %2667 = vmatprep.subr.bf16.mxu0 0
      %2668 = vmatpush1.bf16.msra.mxu0 %v2607
      %2669 = vmatprep.subr.bf16.mxu0 0
      %2670 = vmatpush1.bf16.msra.mxu0 %v2608
      %2671 = vmatprep.subr.bf16.mxu0 0
      %2672 = vmatpush1.bf16.msra.mxu0 %v2609
      %2673 = vmatprep.subr.bf16.mxu0 0
      %2674 = vmatpush1.bf16.msra.mxu0 %v2610
      %2675 = vmatprep.mubr.bf16.mxu0 %v2141
      %2676 = vmatmul.mubr.bf16.gmra.mrb[0].mxu0 %v2050
      %v2677 = vpop.f32.mrb[0].mxu0
      %v2678 = vadd.f32 0.0, %v2677
      %v2679 = vpop.f32.mrb[0].mxu0
      %v2680 = vpop.f32.mrb[0].mxu0
      %v2681 = vadd.f32 0.0, %v2680
      %v2682 = vpop.f32.mrb[0].mxu0
      %2683 = vmatprep.mubr.bf16.mxu0 %v2153
      %2684 = vmatmul.mubr.bf16.gmra.mrb[0].mxu0 %v2051
      %v2685 = vpop.f32.mrb[0].mxu0
      %v2686 = vadd.f32 0.0, %v2685
      %v2687 = vpop.f32.mrb[0].mxu0
      %v2688 = vpop.f32.mrb[0].mxu0
      %v2689 = vadd.f32 0.0, %v2688
      %v2690 = vpop.f32.mrb[0].mxu0
      %2691 = vmatprep.mubr.bf16.mxu0 %v2165
      %2692 = vmatmul.mubr.bf16.gmra.mrb[0].mxu0 %v2052
      %v2693 = vpop.f32.mrb[0].mxu0
      %v2694 = vadd.f32 0.0, %v2693
      %v2695 = vpop.f32.mrb[0].mxu0
      %v2696 = vpop.f32.mrb[0].mxu0
      %v2697 = vadd.f32 0.0, %v2696
      %v2698 = vpop.f32.mrb[0].mxu0
      %2699 = vmatprep.mubr.bf16.mxu0 %v2177
      %2700 = vmatmul.mubr.bf16.gmra.mrb[0].mxu0 %v2053
      %v2701 = vpop.f32.mrb[0].mxu0
      %v2702 = vadd.f32 0.0, %v2701
      %v2703 = vpop.f32.mrb[0].mxu0
      %v2704 = vpop.f32.mrb[0].mxu0
      %v2705 = vadd.f32 0.0, %v2704
      %v2706 = vpop.f32.mrb[0].mxu0
      %2707 = vmatprep.mubr.bf16.mxu0 %v2189
      %2708 = vmatmul.mubr.bf16.gmra.mrb[0].mxu0 %v2054
      %v2709 = vpop.f32.mrb[0].mxu0
      %v2710 = vadd.f32 0.0, %v2709
      %v2711 = vpop.f32.mrb[0].mxu0
      %v2712 = vpop.f32.mrb[0].mxu0
      %v2713 = vadd.f32 0.0, %v2712
      %v2714 = vpop.f32.mrb[0].mxu0
      %2715 = vmatprep.mubr.bf16.mxu0 %v2201
      %2716 = vmatmul.mubr.bf16.gmra.mrb[0].mxu0 %v2055
      %v2717 = vpop.f32.mrb[0].mxu0
      %v2718 = vadd.f32 0.0, %v2717
      %v2719 = vpop.f32.mrb[0].mxu0
      %v2720 = vpop.f32.mrb[0].mxu0
      %v2721 = vadd.f32 0.0, %v2720
      %v2722 = vpop.f32.mrb[0].mxu0
      %2723 = vmatprep.mubr.bf16.mxu0 %v2213
      %2724 = vmatmul.mubr.bf16.gmra.mrb[0].mxu0 %v2056
      %v2725 = vpop.f32.mrb[0].mxu0
      %v2726 = vadd.f32 0.0, %v2725
      %v2727 = vpop.f32.mrb[0].mxu0
      %v2728 = vpop.f32.mrb[0].mxu0
      %v2729 = vadd.f32 0.0, %v2728
      %v2730 = vpop.f32.mrb[0].mxu0
      %2731 = vmatprep.mubr.bf16.mxu0 %v2225
      %2732 = vmatmul.mubr.bf16.gmra.mrb[0].mxu0 %v2057
      %v2733 = vpop.f32.mrb[0].mxu0
      %v2734 = vadd.f32 0.0, %v2733
      %v2735 = vpop.f32.mrb[0].mxu0
      %v2736 = vpop.f32.mrb[0].mxu0
      %v2737 = vadd.f32 0.0, %v2736
      %v2738 = vpop.f32.mrb[0].mxu0
      %2739 = vmatprep.mubr.bf16.mxu0 %v2237
      %2740 = vmatmul.mubr.bf16.gmra.mrb[0].mxu0 %v2058
      %v2741 = vpop.f32.mrb[0].mxu0
      %v2742 = vadd.f32 0.0, %v2741
      %v2743 = vpop.f32.mrb[0].mxu0
      %v2744 = vpop.f32.mrb[0].mxu0
      %v2745 = vadd.f32 0.0, %v2744
      %v2746 = vpop.f32.mrb[0].mxu0
      %2747 = vmatprep.mubr.bf16.mxu0 %v2249
      %2748 = vmatmul.mubr.bf16.gmra.mrb[0].mxu0 %v2059
      %v2749 = vpop.f32.mrb[0].mxu0
      %v2750 = vadd.f32 0.0, %v2749
      %v2751 = vpop.f32.mrb[0].mxu0
      %v2752 = vpop.f32.mrb[0].mxu0
      %v2753 = vadd.f32 0.0, %v2752
      %v2754 = vpop.f32.mrb[0].mxu0
      %2755 = vmatprep.mubr.bf16.mxu0 %v2261
      %2756 = vmatmul.mubr.bf16.gmra.mrb[0].mxu0 %v2060
      %v2757 = vpop.f32.mrb[0].mxu0
      %v2758 = vadd.f32 0.0, %v2757
      %v2759 = vpop.f32.mrb[0].mxu0
      %v2760 = vpop.f32.mrb[0].mxu0
      %v2761 = vadd.f32 0.0, %v2760
      %v2762 = vpop.f32.mrb[0].mxu0
      %2763 = vmatprep.mubr.bf16.mxu0 %v2273
      %2764 = vmatmul.mubr.bf16.gmra.mrb[0].mxu0 %v2061
      %v2765 = vpop.f32.mrb[0].mxu0
      %v2766 = vadd.f32 0.0, %v2765
      %v2767 = vpop.f32.mrb[0].mxu0
      %v2768 = vpop.f32.mrb[0].mxu0
      %v2769 = vadd.f32 0.0, %v2768
      %v2770 = vpop.f32.mrb[0].mxu0
      %2771 = vmatprep.mubr.bf16.mxu0 %v2285
      %2772 = vmatmul.mubr.bf16.gmra.mrb[0].mxu0 %v2062
      %v2773 = vpop.f32.mrb[0].mxu0
      %v2774 = vadd.f32 0.0, %v2773
      %v2775 = vpop.f32.mrb[0].mxu0
      %v2776 = vpop.f32.mrb[0].mxu0
      %v2777 = vadd.f32 0.0, %v2776
      %v2778 = vpop.f32.mrb[0].mxu0
      %2779 = vmatprep.mubr.bf16.mxu0 %v2297
      %2780 = vmatmul.mubr.bf16.gmra.mrb[0].mxu0 %v2063
      %v2781 = vpop.f32.mrb[0].mxu0
      %v2782 = vadd.f32 0.0, %v2781
      %v2783 = vpop.f32.mrb[0].mxu0
      %v2784 = vpop.f32.mrb[0].mxu0
      %v2785 = vadd.f32 0.0, %v2784
      %v2786 = vpop.f32.mrb[0].mxu0
      %2787 = vmatprep.mubr.bf16.mxu0 %v2309
      %2788 = vmatmul.mubr.bf16.gmra.mrb[0].mxu0 %v2064
      %v2789 = vpop.f32.mrb[0].mxu0
      %v2790 = vadd.f32 0.0, %v2789
      %v2791 = vpop.f32.mrb[0].mxu0
      %v2792 = vpop.f32.mrb[0].mxu0
      %v2793 = vadd.f32 0.0, %v2792
      %v2794 = vpop.f32.mrb[0].mxu0
      %2795 = vmatprep.mubr.bf16.mxu0 %v2321
      %2796 = vmatmul.mubr.bf16.gmra.mrb[0].mxu0 %v2065
      %v2797 = vpop.f32.mrb[0].mxu0
      %v2798 = vadd.f32 0.0, %v2797
      %v2799 = vpop.f32.mrb[0].mxu0
      %v2800 = vpop.f32.mrb[0].mxu0
      %v2801 = vadd.f32 0.0, %v2800
      %v2802 = vpop.f32.mrb[0].mxu0
      %2803 = vdwg.mxu0
      %2804 = vmatprep.subr.bf16.mxu0 0
      %2805 = vmatpush1.bf16.msra.mxu0 %v2611
      %2806 = vmatprep.subr.bf16.mxu0 0
      %2807 = vmatpush1.bf16.msra.mxu0 %v2612
      %2808 = vmatprep.subr.bf16.mxu0 0
      %2809 = vmatpush1.bf16.msra.mxu0 %v2613
      %2810 = vmatprep.subr.bf16.mxu0 0
      %2811 = vmatpush1.bf16.msra.mxu0 %v2614
      %2812 = vmatprep.subr.bf16.mxu0 0
      %2813 = vmatpush1.bf16.msra.mxu0 %v2615
      %2814 = vmatprep.subr.bf16.mxu0 0
      %2815 = vmatpush1.bf16.msra.mxu0 %v2616
      %2816 = vmatprep.subr.bf16.mxu0 0
      %2817 = vmatpush1.bf16.msra.mxu0 %v2617
      %2818 = vmatprep.subr.bf16.mxu0 0
      %2819 = vmatpush1.bf16.msra.mxu0 %v2618
      %2820 = vmatprep.subr.bf16.mxu0 0
      %2821 = vmatpush1.bf16.msra.mxu0 0
      %2822 = vmatprep.subr.bf16.mxu0 0
      %2823 = vmatpush1.bf16.msra.mxu0 0
      %2824 = vmatprep.subr.bf16.mxu0 0
      %2825 = vmatpush1.bf16.msra.mxu0 0
      %2826 = vmatprep.subr.bf16.mxu0 0
      %2827 = vmatpush1.bf16.msra.mxu0 0
      %2828 = vmatprep.subr.bf16.mxu0 0
      %2829 = vmatpush1.bf16.msra.mxu0 0
      %2830 = vmatprep.subr.bf16.mxu0 0
      %2831 = vmatpush1.bf16.msra.mxu0 0
      %2832 = vmatprep.subr.bf16.mxu0 0
      %2833 = vmatpush1.bf16.msra.mxu0 0
      %2834 = vmatprep.subr.bf16.mxu0 0
      %2835 = vmatpush1.bf16.msra.mxu0 0
      %2836 = vmatprep.mubr.bf16.mxu0 0
      %2837 = vmatmul.mubr.bf16.gmra.mrb[0].mxu0 %v2388
      %v2838 = vpop.f32.mrb[0].mxu0
      %v2839 = vadd.f32 %v2678, %v2838
      %v2840 = vpop.f32.mrb[0].mxu0
      %v2841 = vpop.f32.mrb[0].mxu0
      %v2842 = vadd.f32 %v2681, %v2841
      %v2843 = vpop.f32.mrb[0].mxu0
      %2844 = vmatprep.mubr.bf16.mxu0 0
      %2845 = vmatmul.mubr.bf16.gmra.mrb[0].mxu0 %v2391
      %v2846 = vpop.f32.mrb[0].mxu0
      %v2847 = vadd.f32 %v2686, %v2846
      %v2848 = vpop.f32.mrb[0].mxu0
      %v2849 = vpop.f32.mrb[0].mxu0
      %v2850 = vadd.f32 %v2689, %v2849
      %v2851 = vpop.f32.mrb[0].mxu0
      %2852 = vmatprep.mubr.bf16.mxu0 0
      %2853 = vmatmul.mubr.bf16.gmra.mrb[0].mxu0 %v2394
      %v2854 = vpop.f32.mrb[0].mxu0
      %v2855 = vadd.f32 %v2694, %v2854
      %v2856 = vpop.f32.mrb[0].mxu0
      %v2857 = vpop.f32.mrb[0].mxu0
      %v2858 = vadd.f32 %v2697, %v2857
      %v2859 = vpop.f32.mrb[0].mxu0
      %2860 = vmatprep.mubr.bf16.mxu0 0
      %2861 = vmatmul.mubr.bf16.gmra.mrb[0].mxu0 %v2397
      %v2862 = vpop.f32.mrb[0].mxu0
      %v2863 = vadd.f32 %v2702, %v2862
      %v2864 = vpop.f32.mrb[0].mxu0
      %v2865 = vpop.f32.mrb[0].mxu0
      %v2866 = vadd.f32 %v2705, %v2865
      %v2867 = vpop.f32.mrb[0].mxu0
      %2868 = vmatprep.mubr.bf16.mxu0 0
      %2869 = vmatmul.mubr.bf16.gmra.mrb[0].mxu0 %v2400
      %v2870 = vpop.f32.mrb[0].mxu0
      %v2871 = vadd.f32 %v2710, %v2870
      %v2872 = vpop.f32.mrb[0].mxu0
      %v2873 = vpop.f32.mrb[0].mxu0
      %v2874 = vadd.f32 %v2713, %v2873
      %v2875 = vpop.f32.mrb[0].mxu0
      %2876 = vmatprep.mubr.bf16.mxu0 0
      %2877 = vmatmul.mubr.bf16.gmra.mrb[0].mxu0 %v2403
      %v2878 = vpop.f32.mrb[0].mxu0
      %v2879 = vadd.f32 %v2718, %v2878
      %v2880 = vpop.f32.mrb[0].mxu0
      %v2881 = vpop.f32.mrb[0].mxu0
      %v2882 = vadd.f32 %v2721, %v2881
      %v2883 = vpop.f32.mrb[0].mxu0
      %2884 = vmatprep.mubr.bf16.mxu0 0
      %2885 = vmatmul.mubr.bf16.gmra.mrb[0].mxu0 %v2406
      %v2886 = vpop.f32.mrb[0].mxu0
      %v2887 = vadd.f32 %v2726, %v2886
      %v2888 = vpop.f32.mrb[0].mxu0
      %v2889 = vpop.f32.mrb[0].mxu0
      %v2890 = vadd.f32 %v2729, %v2889
      %v2891 = vpop.f32.mrb[0].mxu0
      %2892 = vmatprep.mubr.bf16.mxu0 0
      %2893 = vmatmul.mubr.bf16.gmra.mrb[0].mxu0 %v2409
      %v2894 = vpop.f32.mrb[0].mxu0
      %v2895 = vadd.f32 %v2734, %v2894
      %v2896 = vpop.f32.mrb[0].mxu0
      %v2897 = vpop.f32.mrb[0].mxu0
      %v2898 = vadd.f32 %v2737, %v2897
      %v2899 = vpop.f32.mrb[0].mxu0
      %2900 = vmatprep.mubr.bf16.mxu0 0
      %2901 = vmatmul.mubr.bf16.gmra.mrb[0].mxu0 %v2412
      %v2902 = vpop.f32.mrb[0].mxu0
      %v2903 = vadd.f32 %v2742, %v2902
      %v2904 = vpop.f32.mrb[0].mxu0
      %v2905 = vpop.f32.mrb[0].mxu0
      %v2906 = vadd.f32 %v2745, %v2905
      %v2907 = vpop.f32.mrb[0].mxu0
      %2908 = vmatprep.mubr.bf16.mxu0 0
      %2909 = vmatmul.mubr.bf16.gmra.mrb[0].mxu0 %v2415
      %v2910 = vpop.f32.mrb[0].mxu0
      %v2911 = vadd.f32 %v2750, %v2910
      %v2912 = vpop.f32.mrb[0].mxu0
      %v2913 = vpop.f32.mrb[0].mxu0
      %v2914 = vadd.f32 %v2753, %v2913
      %v2915 = vpop.f32.mrb[0].mxu0
      %2916 = vmatprep.mubr.bf16.mxu0 0
      %2917 = vmatmul.mubr.bf16.gmra.mrb[0].mxu0 %v2418
      %v2918 = vpop.f32.mrb[0].mxu0
      %v2919 = vadd.f32 %v2758, %v2918
      %v2920 = vpop.f32.mrb[0].mxu0
      %v2921 = vpop.f32.mrb[0].mxu0
      %v2922 = vadd.f32 %v2761, %v2921
      %v2923 = vpop.f32.mrb[0].mxu0
      %2924 = vmatprep.mubr.bf16.mxu0 0
      %2925 = vmatmul.mubr.bf16.gmra.mrb[0].mxu0 %v2421
      %v2926 = vpop.f32.mrb[0].mxu0
      %v2927 = vadd.f32 %v2766, %v2926
      %v2928 = vpop.f32.mrb[0].mxu0
      %v2929 = vpop.f32.mrb[0].mxu0
      %v2930 = vadd.f32 %v2769, %v2929
      %v2931 = vpop.f32.mrb[0].mxu0
      %2932 = vmatprep.mubr.bf16.mxu0 0
      %2933 = vmatmul.mubr.bf16.gmra.mrb[0].mxu0 %v2424
      %v2934 = vpop.f32.mrb[0].mxu0
      %v2935 = vadd.f32 %v2774, %v2934
      %v2936 = vpop.f32.mrb[0].mxu0
      %v2937 = vpop.f32.mrb[0].mxu0
      %v2938 = vadd.f32 %v2777, %v2937
      %v2939 = vpop.f32.mrb[0].mxu0
      %2940 = vmatprep.mubr.bf16.mxu0 0
      %2941 = vmatmul.mubr.bf16.gmra.mrb[0].mxu0 %v2427
      %v2942 = vpop.f32.mrb[0].mxu0
      %v2943 = vadd.f32 %v2782, %v2942
      %v2944 = vpop.f32.mrb[0].mxu0
      %v2945 = vpop.f32.mrb[0].mxu0
      %v2946 = vadd.f32 %v2785, %v2945
      %v2947 = vpop.f32.mrb[0].mxu0
      %2948 = vmatprep.mubr.bf16.mxu0 0
      %2949 = vmatmul.mubr.bf16.gmra.mrb[0].mxu0 %v2430
      %v2950 = vpop.f32.mrb[0].mxu0
      %v2951 = vadd.f32 %v2790, %v2950
      %v2952 = vpop.f32.mrb[0].mxu0
      %v2953 = vpop.f32.mrb[0].mxu0
      %v2954 = vadd.f32 %v2793, %v2953
      %v2955 = vpop.f32.mrb[0].mxu0
      %2956 = vmatprep.mubr.bf16.mxu0 0
      %2957 = vmatmul.mubr.bf16.gmra.mrb[0].mxu0 %v2433
      %v2958 = vpop.f32.mrb[0].mxu0
      %v2959 = vadd.f32 %v2798, %v2958
      %v2960 = vpop.f32.mrb[0].mxu0
      %v2961 = vpop.f32.mrb[0].mxu0
      %v2962 = vadd.f32 %v2801, %v2961
      %v2963 = vpop.f32.mrb[0].mxu0
      %2964 = vdwg.mxu0
      %v3013 = vunpack.c.l.b16 %v1874
      %v3014 = vunpack.c.l.b16 %v1875
      %v3015 = vunpack.c.l.b16 %v1876
      %v3016 = vunpack.c.l.b16 %v1877
      %v3017 = vunpack.c.l.b16 %v1878
      %v3018 = vunpack.c.l.b16 %v1879
      %v3019 = vunpack.c.l.b16 %v1880
      %v3020 = vunpack.c.l.b16 %v1881
      %v3021 = vunpack.c.l.b16 %v1882
      %v3022 = vunpack.c.l.b16 %v1883
      %v3023 = vunpack.c.l.b16 %v1884
      %v3024 = vunpack.c.l.b16 %v1885
      %v3025 = vunpack.c.l.b16 %v1886
      %v3026 = vunpack.c.l.b16 %v1887
      %v3027 = vunpack.c.l.b16 %v1888
      %v3028 = vunpack.c.l.b16 %v1889
      %v3029 = vunpack.c.l.b16 %v1890
      %v3030 = vunpack.c.l.b16 %v1891
      %v3031 = vunpack.c.l.b16 %v1892
      %v3032 = vunpack.c.l.b16 %v1893
      %v3033 = vunpack.c.l.b16 %v1894
      %v3034 = vunpack.c.l.b16 %v1895
      %v3035 = vunpack.c.l.b16 %v1896
      %v3036 = vunpack.c.l.b16 %v1897
      %v3037 = vunpack.c.l.b16 %v1898
      %v3038 = vunpack.c.l.b16 %v1899
      %v3039 = vunpack.c.l.b16 %v1900
      %v3040 = vunpack.c.l.b16 %v1901
      %v3041 = vunpack.c.l.b16 %v1902
      %v3042 = vunpack.c.l.b16 %v1903
      %v3043 = vunpack.c.l.b16 %v1904
      %v3044 = vunpack.c.l.b16 %v1905
      %v3045 = vunpack.c.l.b16 %v1906
      %v3046 = vunpack.c.l.b16 %v1907
      %v3047 = vunpack.c.l.b16 %v1908
      %v3048 = vunpack.c.l.b16 %v1909
      %v3049 = vunpack.c.l.b16 %v1910
      %v3050 = vunpack.c.l.b16 %v1911
      %v3051 = vunpack.c.l.b16 %v1912
      %v3052 = vunpack.c.l.b16 %v1913
      %v3053 = vunpack.c.l.b16 %v1914
      %v3054 = vunpack.c.l.b16 %v1915
      %v3055 = vunpack.c.l.b16 %v1916
      %v3056 = vunpack.c.l.b16 %v1917
      %v3057 = vunpack.c.l.b16 %v1918
      %v3058 = vunpack.c.l.b16 %v1919
      %v3059 = vunpack.c.l.b16 %v1920
      %v3060 = vunpack.c.l.b16 %v1921
      %v3061 = vpack.c.b16 %v3014, %v3013
      %v3062 = vpack.c.b16 %v3016, %v3015
      %v3063 = vpack.c.b16 %v3018, %v3017
      %v3064 = vpack.c.b16 %v3020, %v3019
      %v3065 = vpack.c.b16 %v3022, %v3021
      %v3066 = vpack.c.b16 %v3024, %v3023
      %v3067 = vpack.c.b16 %v3026, %v3025
      %v3068 = vpack.c.b16 %v3028, %v3027
      %v3069 = vpack.c.b16 %v3030, %v3029
      %v3070 = vpack.c.b16 %v3032, %v3031
      %v3071 = vpack.c.b16 %v3034, %v3033
      %v3072 = vpack.c.b16 %v3036, %v3035
      %v3073 = vpack.c.b16 %v3038, %v3037
      %v3074 = vpack.c.b16 %v3040, %v3039
      %v3075 = vpack.c.b16 %v3042, %v3041
      %v3076 = vpack.c.b16 %v3044, %v3043
      %v3077 = vpack.c.b16 %v3046, %v3045
      %v3078 = vpack.c.b16 %v3048, %v3047
      %v3079 = vpack.c.b16 %v3050, %v3049
      %v3080 = vpack.c.b16 %v3052, %v3051
      %v3081 = vpack.c.b16 %v3054, %v3053
      %v3082 = vpack.c.b16 %v3056, %v3055
      %v3083 = vpack.c.b16 %v3058, %v3057
      %v3084 = vpack.c.b16 %v3060, %v3059
      %3109 = vmatprep.subr.bf16.mxu0 0
      %3110 = vmatpush1.bf16.msra.mxu0 %v3061
      %3111 = vmatprep.subr.bf16.mxu0 0
      %3112 = vmatpush1.bf16.msra.mxu0 %v3062
      %3113 = vmatprep.subr.bf16.mxu0 0
      %3114 = vmatpush1.bf16.msra.mxu0 %v3063
      %3115 = vmatprep.subr.bf16.mxu0 0
      %3116 = vmatpush1.bf16.msra.mxu0 %v3064
      %3117 = vmatprep.subr.bf16.mxu0 0
      %3118 = vmatpush1.bf16.msra.mxu0 %v3065
      %3119 = vmatprep.subr.bf16.mxu0 0
      %3120 = vmatpush1.bf16.msra.mxu0 %v3066
      %3121 = vmatprep.subr.bf16.mxu0 0
      %3122 = vmatpush1.bf16.msra.mxu0 %v3067
      %3123 = vmatprep.subr.bf16.mxu0 0
      %3124 = vmatpush1.bf16.msra.mxu0 %v3068
      %3125 = vmatprep.subr.bf16.mxu0 0
      %3126 = vmatpush1.bf16.msra.mxu0 %v3069
      %3127 = vmatprep.subr.bf16.mxu0 0
      %3128 = vmatpush1.bf16.msra.mxu0 %v3070
      %3129 = vmatprep.subr.bf16.mxu0 0
      %3130 = vmatpush1.bf16.msra.mxu0 %v3071
      %3131 = vmatprep.subr.bf16.mxu0 0
      %3132 = vmatpush1.bf16.msra.mxu0 %v3072
      %3133 = vmatprep.subr.bf16.mxu0 0
      %3134 = vmatpush1.bf16.msra.mxu0 %v3073
      %3135 = vmatprep.subr.bf16.mxu0 0
      %3136 = vmatpush1.bf16.msra.mxu0 %v3074
      %3137 = vmatprep.subr.bf16.mxu0 0
      %3138 = vmatpush1.bf16.msra.mxu0 %v3075
      %3139 = vmatprep.subr.bf16.mxu0 0
      %3140 = vmatpush1.bf16.msra.mxu0 %v3076
      %3141 = vmatprep.mubr.bf16.mxu0 %v1564
      %3142 = vmatmul.mubr.bf16.gmra.mrb[0].mxu0 %v1472
      %v3143 = vpop.f32.mrb[0].mxu0
      %v3144 = vadd.f32 %v2839, %v3143
      %v3145 = vpop.f32.mrb[0].mxu0
      %v3146 = vpop.f32.mrb[0].mxu0
      %v3147 = vadd.f32 %v2842, %v3146
      %v3148 = vpop.f32.mrb[0].mxu0
      %3149 = vmatprep.mubr.bf16.mxu0 %v1576
      %3150 = vmatmul.mubr.bf16.gmra.mrb[0].mxu0 %v1473
      %v3151 = vpop.f32.mrb[0].mxu0
      %v3152 = vadd.f32 %v2847, %v3151
      %v3153 = vpop.f32.mrb[0].mxu0
      %v3154 = vpop.f32.mrb[0].mxu0
      %v3155 = vadd.f32 %v2850, %v3154
      %v3156 = vpop.f32.mrb[0].mxu0
      %3157 = vmatprep.mubr.bf16.mxu0 %v1588
      %3158 = vmatmul.mubr.bf16.gmra.mrb[0].mxu0 %v1474
      %v3159 = vpop.f32.mrb[0].mxu0
      %v3160 = vadd.f32 %v2855, %v3159
      %v3161 = vpop.f32.mrb[0].mxu0
      %v3162 = vpop.f32.mrb[0].mxu0
      %v3163 = vadd.f32 %v2858, %v3162
      %v3164 = vpop.f32.mrb[0].mxu0
      %3165 = vmatprep.mubr.bf16.mxu0 %v1600
      %3166 = vmatmul.mubr.bf16.gmra.mrb[0].mxu0 %v1475
      %v3167 = vpop.f32.mrb[0].mxu0
      %v3168 = vadd.f32 %v2863, %v3167
      %v3169 = vpop.f32.mrb[0].mxu0
      %v3170 = vpop.f32.mrb[0].mxu0
      %v3171 = vadd.f32 %v2866, %v3170
      %v3172 = vpop.f32.mrb[0].mxu0
      %3173 = vmatprep.mubr.bf16.mxu0 %v1612
      %3174 = vmatmul.mubr.bf16.gmra.mrb[0].mxu0 %v1476
      %v3175 = vpop.f32.mrb[0].mxu0
      %v3176 = vadd.f32 %v2871, %v3175
      %v3177 = vpop.f32.mrb[0].mxu0
      %v3178 = vpop.f32.mrb[0].mxu0
      %v3179 = vadd.f32 %v2874, %v3178
      %v3180 = vpop.f32.mrb[0].mxu0
      %3181 = vmatprep.mubr.bf16.mxu0 %v1624
      %3182 = vmatmul.mubr.bf16.gmra.mrb[0].mxu0 %v1477
      %v3183 = vpop.f32.mrb[0].mxu0
      %v3184 = vadd.f32 %v2879, %v3183
      %v3185 = vpop.f32.mrb[0].mxu0
      %v3186 = vpop.f32.mrb[0].mxu0
      %v3187 = vadd.f32 %v2882, %v3186
      %v3188 = vpop.f32.mrb[0].mxu0
      %3189 = vmatprep.mubr.bf16.mxu0 %v1636
      %3190 = vmatmul.mubr.bf16.gmra.mrb[0].mxu0 %v1478
      %v3191 = vpop.f32.mrb[0].mxu0
      %v3192 = vadd.f32 %v2887, %v3191
      %v3193 = vpop.f32.mrb[0].mxu0
      %v3194 = vpop.f32.mrb[0].mxu0
      %v3195 = vadd.f32 %v2890, %v3194
      %v3196 = vpop.f32.mrb[0].mxu0
      %3197 = vmatprep.mubr.bf16.mxu0 %v1648
      %3198 = vmatmul.mubr.bf16.gmra.mrb[0].mxu0 %v1479
      %v3199 = vpop.f32.mrb[0].mxu0
      %v3200 = vadd.f32 %v2895, %v3199
      %v3201 = vpop.f32.mrb[0].mxu0
      %v3202 = vpop.f32.mrb[0].mxu0
      %v3203 = vadd.f32 %v2898, %v3202
      %v3204 = vpop.f32.mrb[0].mxu0
      %3205 = vmatprep.mubr.bf16.mxu0 %v1660
      %3206 = vmatmul.mubr.bf16.gmra.mrb[0].mxu0 %v1480
      %v3207 = vpop.f32.mrb[0].mxu0
      %v3208 = vadd.f32 %v2903, %v3207
      %v3209 = vpop.f32.mrb[0].mxu0
      %v3210 = vpop.f32.mrb[0].mxu0
      %v3211 = vadd.f32 %v2906, %v3210
      %v3212 = vpop.f32.mrb[0].mxu0
      %3213 = vmatprep.mubr.bf16.mxu0 %v1672
      %3214 = vmatmul.mubr.bf16.gmra.mrb[0].mxu0 %v1481
      %v3215 = vpop.f32.mrb[0].mxu0
      %v3216 = vadd.f32 %v2911, %v3215
      %v3217 = vpop.f32.mrb[0].mxu0
      %v3218 = vpop.f32.mrb[0].mxu0
      %v3219 = vadd.f32 %v2914, %v3218
      %v3220 = vpop.f32.mrb[0].mxu0
      %3221 = vmatprep.mubr.bf16.mxu0 %v1684
      %3222 = vmatmul.mubr.bf16.gmra.mrb[0].mxu0 %v1482
      %v3223 = vpop.f32.mrb[0].mxu0
      %v3224 = vadd.f32 %v2919, %v3223
      %v3225 = vpop.f32.mrb[0].mxu0
      %v3226 = vpop.f32.mrb[0].mxu0
      %v3227 = vadd.f32 %v2922, %v3226
      %v3228 = vpop.f32.mrb[0].mxu0
      %3229 = vmatprep.mubr.bf16.mxu0 %v1696
      %3230 = vmatmul.mubr.bf16.gmra.mrb[0].mxu0 %v1483
      %v3231 = vpop.f32.mrb[0].mxu0
      %v3232 = vadd.f32 %v2927, %v3231
      %v3233 = vpop.f32.mrb[0].mxu0
      %v3234 = vpop.f32.mrb[0].mxu0
      %v3235 = vadd.f32 %v2930, %v3234
      %v3236 = vpop.f32.mrb[0].mxu0
      %3237 = vmatprep.mubr.bf16.mxu0 %v1708
      %3238 = vmatmul.mubr.bf16.gmra.mrb[0].mxu0 %v1484
      %v3239 = vpop.f32.mrb[0].mxu0
      %v3240 = vadd.f32 %v2935, %v3239
      %v3241 = vpop.f32.mrb[0].mxu0
      %v3242 = vpop.f32.mrb[0].mxu0
      %v3243 = vadd.f32 %v2938, %v3242
      %v3244 = vpop.f32.mrb[0].mxu0
      %3245 = vmatprep.mubr.bf16.mxu0 %v1720
      %3246 = vmatmul.mubr.bf16.gmra.mrb[0].mxu0 %v1485
      %v3247 = vpop.f32.mrb[0].mxu0
      %v3248 = vadd.f32 %v2943, %v3247
      %v3249 = vpop.f32.mrb[0].mxu0
      %v3250 = vpop.f32.mrb[0].mxu0
      %v3251 = vadd.f32 %v2946, %v3250
      %v3252 = vpop.f32.mrb[0].mxu0
      %3253 = vmatprep.mubr.bf16.mxu0 %v1732
      %3254 = vmatmul.mubr.bf16.gmra.mrb[0].mxu0 %v1486
      %v3255 = vpop.f32.mrb[0].mxu0
      %v3256 = vadd.f32 %v2951, %v3255
      %v3257 = vpop.f32.mrb[0].mxu0
      %v3258 = vpop.f32.mrb[0].mxu0
      %v3259 = vadd.f32 %v2954, %v3258
      %v3260 = vpop.f32.mrb[0].mxu0
      %3261 = vmatprep.mubr.bf16.mxu0 %v1744
      %3262 = vmatmul.mubr.bf16.gmra.mrb[0].mxu0 %v1487
      %v3263 = vpop.f32.mrb[0].mxu0
      %v3264 = vadd.f32 %v2959, %v3263
      %v3265 = vpop.f32.mrb[0].mxu0
      %v3266 = vpop.f32.mrb[0].mxu0
      %v3267 = vadd.f32 %v2962, %v3266
      %v3268 = vpop.f32.mrb[0].mxu0
      %3269 = vdwg.mxu0
      %3270 = vmatprep.subr.bf16.mxu0 0
      %3271 = vmatpush1.bf16.msra.mxu0 %v3077
      %3272 = vmatprep.subr.bf16.mxu0 0
      %3273 = vmatpush1.bf16.msra.mxu0 %v3078
      %3274 = vmatprep.subr.bf16.mxu0 0
      %3275 = vmatpush1.bf16.msra.mxu0 %v3079
      %3276 = vmatprep.subr.bf16.mxu0 0
      %3277 = vmatpush1.bf16.msra.mxu0 %v3080
      %3278 = vmatprep.subr.bf16.mxu0 0
      %3279 = vmatpush1.bf16.msra.mxu0 %v3081
      %3280 = vmatprep.subr.bf16.mxu0 0
      %3281 = vmatpush1.bf16.msra.mxu0 %v3082
      %3282 = vmatprep.subr.bf16.mxu0 0
      %3283 = vmatpush1.bf16.msra.mxu0 %v3083
      %3284 = vmatprep.subr.bf16.mxu0 0
      %3285 = vmatpush1.bf16.msra.mxu0 %v3084
      %3286 = vmatprep.subr.bf16.mxu0 0
      %3287 = vmatpush1.bf16.msra.mxu0 0
      %3288 = vmatprep.subr.bf16.mxu0 0
      %3289 = vmatpush1.bf16.msra.mxu0 0
      %3290 = vmatprep.subr.bf16.mxu0 0
      %3291 = vmatpush1.bf16.msra.mxu0 0
      %3292 = vmatprep.subr.bf16.mxu0 0
      %3293 = vmatpush1.bf16.msra.mxu0 0
      %3294 = vmatprep.subr.bf16.mxu0 0
      %3295 = vmatpush1.bf16.msra.mxu0 0
      %3296 = vmatprep.subr.bf16.mxu0 0
      %3297 = vmatpush1.bf16.msra.mxu0 0
      %3298 = vmatprep.subr.bf16.mxu0 0
      %3299 = vmatpush1.bf16.msra.mxu0 0
      %3300 = vmatprep.subr.bf16.mxu0 0
      %3301 = vmatpush1.bf16.msra.mxu0 0
      %3302 = vmatprep.mubr.bf16.mxu0 0
      %3303 = vmatmul.mubr.bf16.gmra.mrb[0].mxu0 %v1812
      %v3304 = vpop.f32.mrb[0].mxu0
      %v3305 = vadd.f32 %v3144, %v3304
      %v3306 = vpop.f32.mrb[0].mxu0
      %v3307 = vpop.f32.mrb[0].mxu0
      %v3308 = vadd.f32 %v3147, %v3307
      %v3309 = vpop.f32.mrb[0].mxu0
      %3310 = vmatprep.mubr.bf16.mxu0 0
      %3311 = vmatmul.mubr.bf16.gmra.mrb[0].mxu0 %v1815
      %v3312 = vpop.f32.mrb[0].mxu0
      %v3313 = vadd.f32 %v3152, %v3312
      %v3314 = vpop.f32.mrb[0].mxu0
      %v3315 = vpop.f32.mrb[0].mxu0
      %v3316 = vadd.f32 %v3155, %v3315
      %v3317 = vpop.f32.mrb[0].mxu0
      %3318 = vmatprep.mubr.bf16.mxu0 0
      %3319 = vmatmul.mubr.bf16.gmra.mrb[0].mxu0 %v1818
      %v3320 = vpop.f32.mrb[0].mxu0
      %v3321 = vadd.f32 %v3160, %v3320
      %v3322 = vpop.f32.mrb[0].mxu0
      %v3323 = vpop.f32.mrb[0].mxu0
      %v3324 = vadd.f32 %v3163, %v3323
      %v3325 = vpop.f32.mrb[0].mxu0
      %3326 = vmatprep.mubr.bf16.mxu0 0
      %3327 = vmatmul.mubr.bf16.gmra.mrb[0].mxu0 %v1821
      %v3328 = vpop.f32.mrb[0].mxu0
      %v3329 = vadd.f32 %v3168, %v3328
      %v3330 = vpop.f32.mrb[0].mxu0
      %v3331 = vpop.f32.mrb[0].mxu0
      %v3332 = vadd.f32 %v3171, %v3331
      %v3333 = vpop.f32.mrb[0].mxu0
      %3334 = vmatprep.mubr.bf16.mxu0 0
      %3335 = vmatmul.mubr.bf16.gmra.mrb[0].mxu0 %v1824
      %v3336 = vpop.f32.mrb[0].mxu0
      %v3337 = vadd.f32 %v3176, %v3336
      %v3338 = vpop.f32.mrb[0].mxu0
      %v3339 = vpop.f32.mrb[0].mxu0
      %v3340 = vadd.f32 %v3179, %v3339
      %v3341 = vpop.f32.mrb[0].mxu0
      %3342 = vmatprep.mubr.bf16.mxu0 0
      %3343 = vmatmul.mubr.bf16.gmra.mrb[0].mxu0 %v1827
      %v3344 = vpop.f32.mrb[0].mxu0
      %v3345 = vadd.f32 %v3184, %v3344
      %v3346 = vpop.f32.mrb[0].mxu0
      %v3347 = vpop.f32.mrb[0].mxu0
      %v3348 = vadd.f32 %v3187, %v3347
      %v3349 = vpop.f32.mrb[0].mxu0
      %3350 = vmatprep.mubr.bf16.mxu0 0
      %3351 = vmatmul.mubr.bf16.gmra.mrb[0].mxu0 %v1830
      %v3352 = vpop.f32.mrb[0].mxu0
      %v3353 = vadd.f32 %v3192, %v3352
      %v3354 = vpop.f32.mrb[0].mxu0
      %v3355 = vpop.f32.mrb[0].mxu0
      %v3356 = vadd.f32 %v3195, %v3355
      %v3357 = vpop.f32.mrb[0].mxu0
      %3358 = vmatprep.mubr.bf16.mxu0 0
      %3359 = vmatmul.mubr.bf16.gmra.mrb[0].mxu0 %v1833
      %v3360 = vpop.f32.mrb[0].mxu0
      %v3361 = vadd.f32 %v3200, %v3360
      %v3362 = vpop.f32.mrb[0].mxu0
      %v3363 = vpop.f32.mrb[0].mxu0
      %v3364 = vadd.f32 %v3203, %v3363
      %v3365 = vpop.f32.mrb[0].mxu0
      %3366 = vmatprep.mubr.bf16.mxu0 0
      %3367 = vmatmul.mubr.bf16.gmra.mrb[0].mxu0 %v1836
      %v3368 = vpop.f32.mrb[0].mxu0
      %v3369 = vadd.f32 %v3208, %v3368
      %v3370 = vpop.f32.mrb[0].mxu0
      %v3371 = vpop.f32.mrb[0].mxu0
      %v3372 = vadd.f32 %v3211, %v3371
      %v3373 = vpop.f32.mrb[0].mxu0
      %3374 = vmatprep.mubr.bf16.mxu0 0
      %3375 = vmatmul.mubr.bf16.gmra.mrb[0].mxu0 %v1839
      %v3376 = vpop.f32.mrb[0].mxu0
      %v3377 = vadd.f32 %v3216, %v3376
      %v3378 = vpop.f32.mrb[0].mxu0
      %v3379 = vpop.f32.mrb[0].mxu0
      %v3380 = vadd.f32 %v3219, %v3379
      %v3381 = vpop.f32.mrb[0].mxu0
      %3382 = vmatprep.mubr.bf16.mxu0 0
      %3383 = vmatmul.mubr.bf16.gmra.mrb[0].mxu0 %v1842
      %v3384 = vpop.f32.mrb[0].mxu0
      %v3385 = vadd.f32 %v3224, %v3384
      %v3386 = vpop.f32.mrb[0].mxu0
      %v3387 = vpop.f32.mrb[0].mxu0
      %v3388 = vadd.f32 %v3227, %v3387
      %v3389 = vpop.f32.mrb[0].mxu0
      %3390 = vmatprep.mubr.bf16.mxu0 0
      %3391 = vmatmul.mubr.bf16.gmra.mrb[0].mxu0 %v1845
      %v3392 = vpop.f32.mrb[0].mxu0
      %v3393 = vadd.f32 %v3232, %v3392
      %v3394 = vpop.f32.mrb[0].mxu0
      %v3395 = vpop.f32.mrb[0].mxu0
      %v3396 = vadd.f32 %v3235, %v3395
      %v3397 = vpop.f32.mrb[0].mxu0
      %3398 = vmatprep.mubr.bf16.mxu0 0
      %3399 = vmatmul.mubr.bf16.gmra.mrb[0].mxu0 %v1848
      %v3400 = vpop.f32.mrb[0].mxu0
      %v3401 = vadd.f32 %v3240, %v3400
      %v3402 = vpop.f32.mrb[0].mxu0
      %v3403 = vpop.f32.mrb[0].mxu0
      %v3404 = vadd.f32 %v3243, %v3403
      %v3405 = vpop.f32.mrb[0].mxu0
      %3406 = vmatprep.mubr.bf16.mxu0 0
      %3407 = vmatmul.mubr.bf16.gmra.mrb[0].mxu0 %v1851
      %v3408 = vpop.f32.mrb[0].mxu0
      %v3409 = vadd.f32 %v3248, %v3408
      %v3410 = vpop.f32.mrb[0].mxu0
      %v3411 = vpop.f32.mrb[0].mxu0
      %v3412 = vadd.f32 %v3251, %v3411
      %v3413 = vpop.f32.mrb[0].mxu0
      %3414 = vmatprep.mubr.bf16.mxu0 0
      %3415 = vmatmul.mubr.bf16.gmra.mrb[0].mxu0 %v1854
      %v3416 = vpop.f32.mrb[0].mxu0
      %v3417 = vadd.f32 %v3256, %v3416
      %v3418 = vpop.f32.mrb[0].mxu0
      %v3419 = vpop.f32.mrb[0].mxu0
      %v3420 = vadd.f32 %v3259, %v3419
      %v3421 = vpop.f32.mrb[0].mxu0
      %3422 = vmatprep.mubr.bf16.mxu0 0
      %3423 = vmatmul.mubr.bf16.gmra.mrb[0].mxu0 %v1857
      %v3424 = vpop.f32.mrb[0].mxu0
      %v3425 = vadd.f32 %v3264, %v3424
      %v3426 = vpop.f32.mrb[0].mxu0
      %v3427 = vpop.f32.mrb[0].mxu0
      %v3428 = vadd.f32 %v3267, %v3427
      %v3429 = vpop.f32.mrb[0].mxu0
      %3430 = vdwg.mxu0
      %s3431 = scalar_lea.vmem [#allocation2], 24
      %v3432 = vld [vmem:[%s3431] sm:$0xf]
      %v3433 = vld [vmem:[%s3431 + $0x4] sm:$0xf]
      %v3434 = vld [vmem:[%s3431 + $0xc] sm:$0xf]
      %v3435 = vld [vmem:[%s3431 + $0x10] sm:$0xf]
      %v3436 = vld [vmem:[%s3431 + $0x18] sm:$0xf]
      %v3437 = vld [vmem:[%s3431 + $0x1c] sm:$0xf]
      %v3438 = vld [vmem:[%s3431 + $0x24] sm:$0xf]
      %v3439 = vld [vmem:[%s3431 + $0x28] sm:$0xf]
      %v3440 = vld [vmem:[%s3431 + $0x30] sm:$0xf]
      %v3441 = vld [vmem:[%s3431 + $0x34] sm:$0xf]
      %v3442 = vld [vmem:[%s3431 + $0x3c] sm:$0xf]
      %v3443 = vld [vmem:[%s3431 + $0x40] sm:$0xf]
      %v3444 = vld [vmem:[%s3431 + $0x48] sm:$0xf]
      %v3445 = vld [vmem:[%s3431 + $0x4c] sm:$0xf]
      %v3446 = vld [vmem:[%s3431 + $0x54] sm:$0xf]
      %v3447 = vld [vmem:[%s3431 + $0x58] sm:$0xf]
      %v3448 = vld [vmem:[%s3431 + $0x60] sm:$0xf]
      %v3449 = vld [vmem:[%s3431 + $0x64] sm:$0xf]
      %v3450 = vld [vmem:[%s3431 + $0x6c] sm:$0xf]
      %v3451 = vld [vmem:[%s3431 + $0x70] sm:$0xf]
      %v3452 = vld [vmem:[%s3431 + $0x78] sm:$0xf]
      %v3453 = vld [vmem:[%s3431 + $0x7c] sm:$0xf]
      %v3454 = vld [vmem:[%s3431 + $0x84] sm:$0xf]
      %v3455 = vld [vmem:[%s3431 + $0x88] sm:$0xf]
      %v3456 = vld [vmem:[%s3431 + $0x90] sm:$0xf]
      %v3457 = vld [vmem:[%s3431 + $0x94] sm:$0xf]
      %v3458 = vld [vmem:[%s3431 + $0x9c] sm:$0xf]
      %v3459 = vld [vmem:[%s3431 + $0xa0] sm:$0xf]
      %v3460 = vld [vmem:[%s3431 + $0xa8] sm:$0xf]
      %v3461 = vld [vmem:[%s3431 + $0xac] sm:$0xf]
      %v3462 = vld [vmem:[%s3431 + $0xb4] sm:$0xf]
      %v3463 = vld [vmem:[%s3431 + $0xb8] sm:$0xf]
      %v3464 = vld [vmem:[%s3431 + $0x8] sm:$0x1]
      %v3465 = vld [vmem:[%s3431 + $0x14] sm:$0x1]
      %v3466 = vld [vmem:[%s3431 + $0x20] sm:$0x1]
      %v3467 = vld [vmem:[%s3431 + $0x2c] sm:$0x1]
      %v3468 = vld [vmem:[%s3431 + $0x38] sm:$0x1]
      %v3469 = vld [vmem:[%s3431 + $0x44] sm:$0x1]
      %v3470 = vld [vmem:[%s3431 + $0x50] sm:$0x1]
      %v3471 = vld [vmem:[%s3431 + $0x5c] sm:$0x1]
      %v3472 = vld [vmem:[%s3431 + $0x68] sm:$0x1]
      %v3473 = vld [vmem:[%s3431 + $0x74] sm:$0x1]
      %v3474 = vld [vmem:[%s3431 + $0x80] sm:$0x1]
      %v3475 = vld [vmem:[%s3431 + $0x8c] sm:$0x1]
      %v3476 = vld [vmem:[%s3431 + $0x98] sm:$0x1]
      %v3477 = vld [vmem:[%s3431 + $0xa4] sm:$0x1]
      %v3478 = vld [vmem:[%s3431 + $0xb0] sm:$0x1]
      %v3479 = vld [vmem:[%s3431 + $0xbc] sm:$0x1]
      %v3480 = vld [vmem:[%s3431] sm:$0xe]
      %v3481 = vld [vmem:[%s3431 + $0xc] sm:$0xe]
      %v3482 = vld [vmem:[%s3431 + $0x18] sm:$0xe]
      %v3483 = vld [vmem:[%s3431 + $0x24] sm:$0xe]
      %v3484 = vld [vmem:[%s3431 + $0x30] sm:$0xe]
      %v3485 = vld [vmem:[%s3431 + $0x3c] sm:$0xe]
      %v3486 = vld [vmem:[%s3431 + $0x48] sm:$0xe]
      %v3487 = vld [vmem:[%s3431 + $0x54] sm:$0xe]
      %v3488 = vld [vmem:[%s3431 + $0x60] sm:$0xe]
      %v3489 = vld [vmem:[%s3431 + $0x6c] sm:$0xe]
      %v3490 = vld [vmem:[%s3431 + $0x78] sm:$0xe]
      %v3491 = vld [vmem:[%s3431 + $0x84] sm:$0xe]
      %v3492 = vld [vmem:[%s3431 + $0x90] sm:$0xe]
      %v3493 = vld [vmem:[%s3431 + $0x9c] sm:$0xe]
      %v3494 = vld [vmem:[%s3431 + $0xa8] sm:$0xe]
      %v3495 = vld [vmem:[%s3431 + $0xb4] sm:$0xe]
      %v3528 = vunpack.c.l.b16 %v3432
      %v3529 = vunpack.c.l.b16 %v3433
      %v3530 = vunpack.c.l.b16 %v3434
      %v3531 = vunpack.c.l.b16 %v3435
      %v3532 = vunpack.c.l.b16 %v3436
      %v3533 = vunpack.c.l.b16 %v3437
      %v3534 = vunpack.c.l.b16 %v3438
      %v3535 = vunpack.c.l.b16 %v3439
      %v3536 = vunpack.c.l.b16 %v3440
      %v3537 = vunpack.c.l.b16 %v3441
      %v3538 = vunpack.c.l.b16 %v3442
      %v3539 = vunpack.c.l.b16 %v3443
      %v3540 = vunpack.c.l.b16 %v3444
      %v3541 = vunpack.c.l.b16 %v3445
      %v3542 = vunpack.c.l.b16 %v3446
      %v3543 = vunpack.c.l.b16 %v3447
      %v3544 = vunpack.c.l.b16 %v3448
      %v3545 = vunpack.c.l.b16 %v3449
      %v3546 = vunpack.c.l.b16 %v3450
      %v3547 = vunpack.c.l.b16 %v3451
      %v3548 = vunpack.c.l.b16 %v3452
      %v3549 = vunpack.c.l.b16 %v3453
      %v3550 = vunpack.c.l.b16 %v3454
      %v3551 = vunpack.c.l.b16 %v3455
      %v3552 = vunpack.c.l.b16 %v3456
      %v3553 = vunpack.c.l.b16 %v3457
      %v3554 = vunpack.c.l.b16 %v3458
      %v3555 = vunpack.c.l.b16 %v3459
      %v3556 = vunpack.c.l.b16 %v3460
      %v3557 = vunpack.c.l.b16 %v3461
      %v3558 = vunpack.c.l.b16 %v3462
      %v3559 = vunpack.c.l.b16 %v3463
      %v3560 = vpack.c.b16 %v3529, %v3528
      %v3561 = vpack.c.b16 %v3531, %v3530
      %v3562 = vpack.c.b16 %v3533, %v3532
      %v3563 = vpack.c.b16 %v3535, %v3534
      %v3564 = vpack.c.b16 %v3537, %v3536
      %v3565 = vpack.c.b16 %v3539, %v3538
      %v3566 = vpack.c.b16 %v3541, %v3540
      %v3567 = vpack.c.b16 %v3543, %v3542
      %v3568 = vpack.c.b16 %v3545, %v3544
      %v3569 = vpack.c.b16 %v3547, %v3546
      %v3570 = vpack.c.b16 %v3549, %v3548
      %v3571 = vpack.c.b16 %v3551, %v3550
      %v3572 = vpack.c.b16 %v3553, %v3552
      %v3573 = vpack.c.b16 %v3555, %v3554
      %v3574 = vpack.c.b16 %v3557, %v3556
      %v3575 = vpack.c.b16 %v3559, %v3558
      %v3608 = vunpack.c.l.b16 %v3464
      %v3609 = vunpack.c.l.b16 %v3465
      %v3610 = vunpack.c.l.b16 %v3466
      %v3611 = vunpack.c.l.b16 %v3467
      %v3612 = vunpack.c.l.b16 %v3468
      %v3613 = vunpack.c.l.b16 %v3469
      %v3614 = vunpack.c.l.b16 %v3470
      %v3615 = vunpack.c.l.b16 %v3471
      %v3616 = vunpack.c.l.b16 %v3472
      %v3617 = vunpack.c.l.b16 %v3473
      %v3618 = vunpack.c.l.b16 %v3474
      %v3619 = vunpack.c.l.b16 %v3475
      %v3620 = vunpack.c.l.b16 %v3476
      %v3621 = vunpack.c.l.b16 %v3477
      %v3622 = vunpack.c.l.b16 %v3478
      %v3623 = vunpack.c.l.b16 %v3479
      %v3624 = vpack.c.b16 %v3608, %v3608
      %v3625 = vpack.c.b16 %v3609, %v3609
      %v3626 = vpack.c.b16 %v3610, %v3610
      %v3627 = vpack.c.b16 %v3611, %v3611
      %v3628 = vpack.c.b16 %v3612, %v3612
      %v3629 = vpack.c.b16 %v3613, %v3613
      %v3630 = vpack.c.b16 %v3614, %v3614
      %v3631 = vpack.c.b16 %v3615, %v3615
      %v3632 = vpack.c.b16 %v3616, %v3616
      %v3633 = vpack.c.b16 %v3617, %v3617
      %v3634 = vpack.c.b16 %v3618, %v3618
      %v3635 = vpack.c.b16 %v3619, %v3619
      %v3636 = vpack.c.b16 %v3620, %v3620
      %v3637 = vpack.c.b16 %v3621, %v3621
      %v3638 = vpack.c.b16 %v3622, %v3622
      %v3639 = vpack.c.b16 %v3623, %v3623
      %v3641 = vshrl.u32 %v3560, 16
      %v3643 = vshll.u32 %v3560, 16
      %v3645 = vrot.slane %v3643, 1
      %v3646 = vor.u32 %v3641, %v3645
      %v3648 = vshll.u32 %v3624, 16
      %v3650 = vrot.slane %v3648, 1
      %v3651 = vsel %vm1552, %v3646, %v3650
      %v3653 = vshrl.u32 %v3561, 16
      %v3655 = vshll.u32 %v3561, 16
      %v3657 = vrot.slane %v3655, 1
      %v3658 = vor.u32 %v3653, %v3657
      %v3660 = vshll.u32 %v3625, 16
      %v3662 = vrot.slane %v3660, 1
      %v3663 = vsel %vm1552, %v3658, %v3662
      %v3665 = vshrl.u32 %v3562, 16
      %v3667 = vshll.u32 %v3562, 16
      %v3669 = vrot.slane %v3667, 1
      %v3670 = vor.u32 %v3665, %v3669
      %v3672 = vshll.u32 %v3626, 16
      %v3674 = vrot.slane %v3672, 1
      %v3675 = vsel %vm1552, %v3670, %v3674
      %v3677 = vshrl.u32 %v3563, 16
      %v3679 = vshll.u32 %v3563, 16
      %v3681 = vrot.slane %v3679, 1
      %v3682 = vor.u32 %v3677, %v3681
      %v3684 = vshll.u32 %v3627, 16
      %v3686 = vrot.slane %v3684, 1
      %v3687 = vsel %vm1552, %v3682, %v3686
      %v3689 = vshrl.u32 %v3564, 16
      %v3691 = vshll.u32 %v3564, 16
      %v3693 = vrot.slane %v3691, 1
      %v3694 = vor.u32 %v3689, %v3693
      %v3696 = vshll.u32 %v3628, 16
      %v3698 = vrot.slane %v3696, 1
      %v3699 = vsel %vm1552, %v3694, %v3698
      %v3701 = vshrl.u32 %v3565, 16
      %v3703 = vshll.u32 %v3565, 16
      %v3705 = vrot.slane %v3703, 1
      %v3706 = vor.u32 %v3701, %v3705
      %v3708 = vshll.u32 %v3629, 16
      %v3710 = vrot.slane %v3708, 1
      %v3711 = vsel %vm1552, %v3706, %v3710
      %v3713 = vshrl.u32 %v3566, 16
      %v3715 = vshll.u32 %v3566, 16
      %v3717 = vrot.slane %v3715, 1
      %v3718 = vor.u32 %v3713, %v3717
      %v3720 = vshll.u32 %v3630, 16
      %v3722 = vrot.slane %v3720, 1
      %v3723 = vsel %vm1552, %v3718, %v3722
      %v3725 = vshrl.u32 %v3567, 16
      %v3727 = vshll.u32 %v3567, 16
      %v3729 = vrot.slane %v3727, 1
      %v3730 = vor.u32 %v3725, %v3729
      %v3732 = vshll.u32 %v3631, 16
      %v3734 = vrot.slane %v3732, 1
      %v3735 = vsel %vm1552, %v3730, %v3734
      %v3737 = vshrl.u32 %v3568, 16
      %v3739 = vshll.u32 %v3568, 16
      %v3741 = vrot.slane %v3739, 1
      %v3742 = vor.u32 %v3737, %v3741
      %v3744 = vshll.u32 %v3632, 16
      %v3746 = vrot.slane %v3744, 1
      %v3747 = vsel %vm1552, %v3742, %v3746
      %v3749 = vshrl.u32 %v3569, 16
      %v3751 = vshll.u32 %v3569, 16
      %v3753 = vrot.slane %v3751, 1
      %v3754 = vor.u32 %v3749, %v3753
      %v3756 = vshll.u32 %v3633, 16
      %v3758 = vrot.slane %v3756, 1
      %v3759 = vsel %vm1552, %v3754, %v3758
      %v3761 = vshrl.u32 %v3570, 16
      %v3763 = vshll.u32 %v3570, 16
      %v3765 = vrot.slane %v3763, 1
      %v3766 = vor.u32 %v3761, %v3765
      %v3768 = vshll.u32 %v3634, 16
      %v3770 = vrot.slane %v3768, 1
      %v3771 = vsel %vm1552, %v3766, %v3770
      %v3773 = vshrl.u32 %v3571, 16
      %v3775 = vshll.u32 %v3571, 16
      %v3777 = vrot.slane %v3775, 1
      %v3778 = vor.u32 %v3773, %v3777
      %v3780 = vshll.u32 %v3635, 16
      %v3782 = vrot.slane %v3780, 1
      %v3783 = vsel %vm1552, %v3778, %v3782
      %v3785 = vshrl.u32 %v3572, 16
      %v3787 = vshll.u32 %v3572, 16
      %v3789 = vrot.slane %v3787, 1
      %v3790 = vor.u32 %v3785, %v3789
      %v3792 = vshll.u32 %v3636, 16
      %v3794 = vrot.slane %v3792, 1
      %v3795 = vsel %vm1552, %v3790, %v3794
      %v3797 = vshrl.u32 %v3573, 16
      %v3799 = vshll.u32 %v3573, 16
      %v3801 = vrot.slane %v3799, 1
      %v3802 = vor.u32 %v3797, %v3801
      %v3804 = vshll.u32 %v3637, 16
      %v3806 = vrot.slane %v3804, 1
      %v3807 = vsel %vm1552, %v3802, %v3806
      %v3809 = vshrl.u32 %v3574, 16
      %v3811 = vshll.u32 %v3574, 16
      %v3813 = vrot.slane %v3811, 1
      %v3814 = vor.u32 %v3809, %v3813
      %v3816 = vshll.u32 %v3638, 16
      %v3818 = vrot.slane %v3816, 1
      %v3819 = vsel %vm1552, %v3814, %v3818
      %v3821 = vshrl.u32 %v3575, 16
      %v3823 = vshll.u32 %v3575, 16
      %v3825 = vrot.slane %v3823, 1
      %v3826 = vor.u32 %v3821, %v3825
      %v3828 = vshll.u32 %v3639, 16
      %v3830 = vrot.slane %v3828, 1
      %v3831 = vsel %vm1552, %v3826, %v3830
      %v3864 = vunpack.c.l.b16 %v3480
      %v3865 = vunpack.c.l.b16 %v3481
      %v3866 = vunpack.c.l.b16 %v3482
      %v3867 = vunpack.c.l.b16 %v3483
      %v3868 = vunpack.c.l.b16 %v3484
      %v3869 = vunpack.c.l.b16 %v3485
      %v3870 = vunpack.c.l.b16 %v3486
      %v3871 = vunpack.c.l.b16 %v3487
      %v3872 = vunpack.c.l.b16 %v3488
      %v3873 = vunpack.c.l.b16 %v3489
      %v3874 = vunpack.c.l.b16 %v3490
      %v3875 = vunpack.c.l.b16 %v3491
      %v3876 = vunpack.c.l.b16 %v3492
      %v3877 = vunpack.c.l.b16 %v3493
      %v3878 = vunpack.c.l.b16 %v3494
      %v3879 = vunpack.c.l.b16 %v3495
      %v3880 = vpack.c.b16 %v3529, %v3864
      %v3881 = vpack.c.b16 %v3531, %v3865
      %v3882 = vpack.c.b16 %v3533, %v3866
      %v3883 = vpack.c.b16 %v3535, %v3867
      %v3884 = vpack.c.b16 %v3537, %v3868
      %v3885 = vpack.c.b16 %v3539, %v3869
      %v3886 = vpack.c.b16 %v3541, %v3870
      %v3887 = vpack.c.b16 %v3543, %v3871
      %v3888 = vpack.c.b16 %v3545, %v3872
      %v3889 = vpack.c.b16 %v3547, %v3873
      %v3890 = vpack.c.b16 %v3549, %v3874
      %v3891 = vpack.c.b16 %v3551, %v3875
      %v3892 = vpack.c.b16 %v3553, %v3876
      %v3893 = vpack.c.b16 %v3555, %v3877
      %v3894 = vpack.c.b16 %v3557, %v3878
      %v3895 = vpack.c.b16 %v3559, %v3879
      %v3896 = vrot.slane %v3880, 1
      %v3897 = vrot.slane %v3624, 1
      %v3898 = vsel %vm1809, %v3896, %v3897
      %v3899 = vrot.slane %v3881, 1
      %v3900 = vrot.slane %v3625, 1
      %v3901 = vsel %vm1809, %v3899, %v3900
      %v3902 = vrot.slane %v3882, 1
      %v3903 = vrot.slane %v3626, 1
      %v3904 = vsel %vm1809, %v3902, %v3903
      %v3905 = vrot.slane %v3883, 1
      %v3906 = vrot.slane %v3627, 1
      %v3907 = vsel %vm1809, %v3905, %v3906
      %v3908 = vrot.slane %v3884, 1
      %v3909 = vrot.slane %v3628, 1
      %v3910 = vsel %vm1809, %v3908, %v3909
      %v3911 = vrot.slane %v3885, 1
      %v3912 = vrot.slane %v3629, 1
      %v3913 = vsel %vm1809, %v3911, %v3912
      %v3914 = vrot.slane %v3886, 1
      %v3915 = vrot.slane %v3630, 1
      %v3916 = vsel %vm1809, %v3914, %v3915
      %v3917 = vrot.slane %v3887, 1
      %v3918 = vrot.slane %v3631, 1
      %v3919 = vsel %vm1809, %v3917, %v3918
      %v3920 = vrot.slane %v3888, 1
      %v3921 = vrot.slane %v3632, 1
      %v3922 = vsel %vm1809, %v3920, %v3921
      %v3923 = vrot.slane %v3889, 1
      %v3924 = vrot.slane %v3633, 1
      %v3925 = vsel %vm1809, %v3923, %v3924
      %v3926 = vrot.slane %v3890, 1
      %v3927 = vrot.slane %v3634, 1
      %v3928 = vsel %vm1809, %v3926, %v3927
      %v3929 = vrot.slane %v3891, 1
      %v3930 = vrot.slane %v3635, 1
      %v3931 = vsel %vm1809, %v3929, %v3930
      %v3932 = vrot.slane %v3892, 1
      %v3933 = vrot.slane %v3636, 1
      %v3934 = vsel %vm1809, %v3932, %v3933
      %v3935 = vrot.slane %v3893, 1
      %v3936 = vrot.slane %v3637, 1
      %v3937 = vsel %vm1809, %v3935, %v3936
      %v3938 = vrot.slane %v3894, 1
      %v3939 = vrot.slane %v3638, 1
      %v3940 = vsel %vm1809, %v3938, %v3939
      %v3941 = vrot.slane %v3895, 1
      %v3942 = vrot.slane %v3639, 1
      %v3943 = vsel %vm1809, %v3941, %v3942
      %s3960 = scalar_lea.vmem %s5, 384
      %v3961 = vld [vmem:[%s3960] sm:$0xf]
      %v3962 = vld [vmem:[%s3960 + $0x4] sm:$0xf]
      %v3963 = vld [vmem:[%s3960 + $0x8] sm:$0xf]
      %v3964 = vld [vmem:[%s3960 + $0xc] sm:$0xf]
      %v3965 = vld [vmem:[%s3960 + $0x10] sm:$0xf]
      %v3966 = vld [vmem:[%s3960 + $0x14] sm:$0xf]
      %v3967 = vld [vmem:[%s3960 + $0x18] sm:$0xf]
      %v3968 = vld [vmem:[%s3960 + $0x1c] sm:$0xf]
      %v3969 = vld [vmem:[%s3960 + $0x20] sm:$0xf]
      %v3970 = vld [vmem:[%s3960 + $0x24] sm:$0xf]
      %v3971 = vld [vmem:[%s3960 + $0x28] sm:$0xf]
      %v3972 = vld [vmem:[%s3960 + $0x2c] sm:$0xf]
      %v3973 = vld [vmem:[%s3960 + $0x30] sm:$0xf]
      %v3974 = vld [vmem:[%s3960 + $0x34] sm:$0xf]
      %v3975 = vld [vmem:[%s3960 + $0x38] sm:$0xf]
      %v3976 = vld [vmem:[%s3960 + $0x3c] sm:$0xf]
      %v3977 = vld [vmem:[%s3960 + $0x40] sm:$0xf]
      %v3978 = vld [vmem:[%s3960 + $0x44] sm:$0xf]
      %v3979 = vld [vmem:[%s3960 + $0x48] sm:$0xf]
      %v3980 = vld [vmem:[%s3960 + $0x4c] sm:$0xf]
      %v3981 = vld [vmem:[%s3960 + $0x50] sm:$0xf]
      %v3982 = vld [vmem:[%s3960 + $0x54] sm:$0xf]
      %v3983 = vld [vmem:[%s3960 + $0x58] sm:$0xf]
      %v3984 = vld [vmem:[%s3960 + $0x5c] sm:$0xf]
      %v3985 = vld [vmem:[%s3960 + $0x60] sm:$0xf]
      %v3986 = vld [vmem:[%s3960 + $0x64] sm:$0xf]
      %v3987 = vld [vmem:[%s3960 + $0x68] sm:$0xf]
      %v3988 = vld [vmem:[%s3960 + $0x6c] sm:$0xf]
      %v3989 = vld [vmem:[%s3960 + $0x70] sm:$0xf]
      %v3990 = vld [vmem:[%s3960 + $0x74] sm:$0xf]
      %v3991 = vld [vmem:[%s3960 + $0x78] sm:$0xf]
      %v3992 = vld [vmem:[%s3960 + $0x7c] sm:$0xf]
      %v3993 = vld [vmem:[%s3960 + $0x80] sm:$0xf]
      %v3994 = vld [vmem:[%s3960 + $0x84] sm:$0xf]
      %v3995 = vld [vmem:[%s3960 + $0x88] sm:$0xf]
      %v3996 = vld [vmem:[%s3960 + $0x8c] sm:$0xf]
      %v3997 = vld [vmem:[%s3960 + $0x90] sm:$0xf]
      %v3998 = vld [vmem:[%s3960 + $0x94] sm:$0xf]
      %v3999 = vld [vmem:[%s3960 + $0x98] sm:$0xf]
      %v4000 = vld [vmem:[%s3960 + $0x9c] sm:$0xf]
      %v4001 = vld [vmem:[%s3960 + $0xa0] sm:$0xf]
      %v4002 = vld [vmem:[%s3960 + $0xa4] sm:$0xf]
      %v4003 = vld [vmem:[%s3960 + $0xa8] sm:$0xf]
      %v4004 = vld [vmem:[%s3960 + $0xac] sm:$0xf]
      %v4005 = vld [vmem:[%s3960 + $0xb0] sm:$0xf]
      %v4006 = vld [vmem:[%s3960 + $0xb4] sm:$0xf]
      %v4007 = vld [vmem:[%s3960 + $0xb8] sm:$0xf]
      %v4008 = vld [vmem:[%s3960 + $0xbc] sm:$0xf]
      %v4057 = vunpack.c.l.b16 %v3961
      %v4058 = vunpack.c.l.b16 %v3962
      %v4059 = vunpack.c.l.b16 %v3963
      %v4060 = vunpack.c.l.b16 %v3964
      %v4061 = vunpack.c.l.b16 %v3965
      %v4062 = vunpack.c.l.b16 %v3966
      %v4063 = vunpack.c.l.b16 %v3967
      %v4064 = vunpack.c.l.b16 %v3968
      %v4065 = vunpack.c.l.b16 %v3969
      %v4066 = vunpack.c.l.b16 %v3970
      %v4067 = vunpack.c.l.b16 %v3971
      %v4068 = vunpack.c.l.b16 %v3972
      %v4069 = vunpack.c.l.b16 %v3973
      %v4070 = vunpack.c.l.b16 %v3974
      %v4071 = vunpack.c.l.b16 %v3975
      %v4072 = vunpack.c.l.b16 %v3976
      %v4073 = vunpack.c.l.b16 %v3977
      %v4074 = vunpack.c.l.b16 %v3978
      %v4075 = vunpack.c.l.b16 %v3979
      %v4076 = vunpack.c.l.b16 %v3980
      %v4077 = vunpack.c.l.b16 %v3981
      %v4078 = vunpack.c.l.b16 %v3982
      %v4079 = vunpack.c.l.b16 %v3983
      %v4080 = vunpack.c.l.b16 %v3984
      %v4081 = vunpack.c.l.b16 %v3985
      %v4082 = vunpack.c.l.b16 %v3986
      %v4083 = vunpack.c.l.b16 %v3987
      %v4084 = vunpack.c.l.b16 %v3988
      %v4085 = vunpack.c.l.b16 %v3989
      %v4086 = vunpack.c.l.b16 %v3990
      %v4087 = vunpack.c.l.b16 %v3991
      %v4088 = vunpack.c.l.b16 %v3992
      %v4089 = vunpack.c.l.b16 %v3993
      %v4090 = vunpack.c.l.b16 %v3994
      %v4091 = vunpack.c.l.b16 %v3995
      %v4092 = vunpack.c.l.b16 %v3996
      %v4093 = vunpack.c.l.b16 %v3997
      %v4094 = vunpack.c.l.b16 %v3998
      %v4095 = vunpack.c.l.b16 %v3999
      %v4096 = vunpack.c.l.b16 %v4000
      %v4097 = vunpack.c.l.b16 %v4001
      %v4098 = vunpack.c.l.b16 %v4002
      %v4099 = vunpack.c.l.b16 %v4003
      %v4100 = vunpack.c.l.b16 %v4004
      %v4101 = vunpack.c.l.b16 %v4005
      %v4102 = vunpack.c.l.b16 %v4006
      %v4103 = vunpack.c.l.b16 %v4007
      %v4104 = vunpack.c.l.b16 %v4008
      %v4105 = vpack.c.b16 %v4058, %v4057
      %v4106 = vpack.c.b16 %v4060, %v4059
      %v4107 = vpack.c.b16 %v4062, %v4061
      %v4108 = vpack.c.b16 %v4064, %v4063
      %v4109 = vpack.c.b16 %v4066, %v4065
      %v4110 = vpack.c.b16 %v4068, %v4067
      %v4111 = vpack.c.b16 %v4070, %v4069
      %v4112 = vpack.c.b16 %v4072, %v4071
      %v4113 = vpack.c.b16 %v4074, %v4073
      %v4114 = vpack.c.b16 %v4076, %v4075
      %v4115 = vpack.c.b16 %v4078, %v4077
      %v4116 = vpack.c.b16 %v4080, %v4079
      %v4117 = vpack.c.b16 %v4082, %v4081
      %v4118 = vpack.c.b16 %v4084, %v4083
      %v4119 = vpack.c.b16 %v4086, %v4085
      %v4120 = vpack.c.b16 %v4088, %v4087
      %v4121 = vpack.c.b16 %v4090, %v4089
      %v4122 = vpack.c.b16 %v4092, %v4091
      %v4123 = vpack.c.b16 %v4094, %v4093
      %v4124 = vpack.c.b16 %v4096, %v4095
      %v4125 = vpack.c.b16 %v4098, %v4097
      %v4126 = vpack.c.b16 %v4100, %v4099
      %v4127 = vpack.c.b16 %v4102, %v4101
      %v4128 = vpack.c.b16 %v4104, %v4103
      %4153 = vmatprep.subr.bf16.mxu0 0
      %4154 = vmatpush1.bf16.msra.mxu0 %v4105
      %4155 = vmatprep.subr.bf16.mxu0 0
      %4156 = vmatpush1.bf16.msra.mxu0 %v4106
      %4157 = vmatprep.subr.bf16.mxu0 0
      %4158 = vmatpush1.bf16.msra.mxu0 %v4107
      %4159 = vmatprep.subr.bf16.mxu0 0
      %4160 = vmatpush1.bf16.msra.mxu0 %v4108
      %4161 = vmatprep.subr.bf16.mxu0 0
      %4162 = vmatpush1.bf16.msra.mxu0 %v4109
      %4163 = vmatprep.subr.bf16.mxu0 0
      %4164 = vmatpush1.bf16.msra.mxu0 %v4110
      %4165 = vmatprep.subr.bf16.mxu0 0
      %4166 = vmatpush1.bf16.msra.mxu0 %v4111
      %4167 = vmatprep.subr.bf16.mxu0 0
      %4168 = vmatpush1.bf16.msra.mxu0 %v4112
      %4169 = vmatprep.subr.bf16.mxu0 0
      %4170 = vmatpush1.bf16.msra.mxu0 %v4113
      %4171 = vmatprep.subr.bf16.mxu0 0
      %4172 = vmatpush1.bf16.msra.mxu0 %v4114
      %4173 = vmatprep.subr.bf16.mxu0 0
      %4174 = vmatpush1.bf16.msra.mxu0 %v4115
      %4175 = vmatprep.subr.bf16.mxu0 0
      %4176 = vmatpush1.bf16.msra.mxu0 %v4116
      %4177 = vmatprep.subr.bf16.mxu0 0
      %4178 = vmatpush1.bf16.msra.mxu0 %v4117
      %4179 = vmatprep.subr.bf16.mxu0 0
      %4180 = vmatpush1.bf16.msra.mxu0 %v4118
      %4181 = vmatprep.subr.bf16.mxu0 0
      %4182 = vmatpush1.bf16.msra.mxu0 %v4119
      %4183 = vmatprep.subr.bf16.mxu0 0
      %4184 = vmatpush1.bf16.msra.mxu0 %v4120
      %4185 = vmatprep.mubr.bf16.mxu0 %v3651
      %4186 = vmatmul.mubr.bf16.gmra.mrb[0].mxu0 %v3560
      %v4187 = vpop.f32.mrb[0].mxu0
      %v4188 = vadd.f32 0.0, %v4187
      %v4189 = vpop.f32.mrb[0].mxu0
      %v4190 = vpop.f32.mrb[0].mxu0
      %v4191 = vadd.f32 0.0, %v4190
      %v4192 = vpop.f32.mrb[0].mxu0
      %4193 = vmatprep.mubr.bf16.mxu0 %v3663
      %4194 = vmatmul.mubr.bf16.gmra.mrb[0].mxu0 %v3561
      %v4195 = vpop.f32.mrb[0].mxu0
      %v4196 = vadd.f32 0.0, %v4195
      %v4197 = vpop.f32.mrb[0].mxu0
      %v4198 = vpop.f32.mrb[0].mxu0
      %v4199 = vadd.f32 0.0, %v4198
      %v4200 = vpop.f32.mrb[0].mxu0
      %4201 = vmatprep.mubr.bf16.mxu0 %v3675
      %4202 = vmatmul.mubr.bf16.gmra.mrb[0].mxu0 %v3562
      %v4203 = vpop.f32.mrb[0].mxu0
      %v4204 = vadd.f32 0.0, %v4203
      %v4205 = vpop.f32.mrb[0].mxu0
      %v4206 = vpop.f32.mrb[0].mxu0
      %v4207 = vadd.f32 0.0, %v4206
      %v4208 = vpop.f32.mrb[0].mxu0
      %4209 = vmatprep.mubr.bf16.mxu0 %v3687
      %4210 = vmatmul.mubr.bf16.gmra.mrb[0].mxu0 %v3563
      %v4211 = vpop.f32.mrb[0].mxu0
      %v4212 = vadd.f32 0.0, %v4211
      %v4213 = vpop.f32.mrb[0].mxu0
      %v4214 = vpop.f32.mrb[0].mxu0
      %v4215 = vadd.f32 0.0, %v4214
      %v4216 = vpop.f32.mrb[0].mxu0
      %4217 = vmatprep.mubr.bf16.mxu0 %v3699
      %4218 = vmatmul.mubr.bf16.gmra.mrb[0].mxu0 %v3564
      %v4219 = vpop.f32.mrb[0].mxu0
      %v4220 = vadd.f32 0.0, %v4219
      %v4221 = vpop.f32.mrb[0].mxu0
      %v4222 = vpop.f32.mrb[0].mxu0
      %v4223 = vadd.f32 0.0, %v4222
      %v4224 = vpop.f32.mrb[0].mxu0
      %4225 = vmatprep.mubr.bf16.mxu0 %v3711
      %4226 = vmatmul.mubr.bf16.gmra.mrb[0].mxu0 %v3565
      %v4227 = vpop.f32.mrb[0].mxu0
      %v4228 = vadd.f32 0.0, %v4227
      %v4229 = vpop.f32.mrb[0].mxu0
      %v4230 = vpop.f32.mrb[0].mxu0
      %v4231 = vadd.f32 0.0, %v4230
      %v4232 = vpop.f32.mrb[0].mxu0
      %4233 = vmatprep.mubr.bf16.mxu0 %v3723
      %4234 = vmatmul.mubr.bf16.gmra.mrb[0].mxu0 %v3566
      %v4235 = vpop.f32.mrb[0].mxu0
      %v4236 = vadd.f32 0.0, %v4235
      %v4237 = vpop.f32.mrb[0].mxu0
      %v4238 = vpop.f32.mrb[0].mxu0
      %v4239 = vadd.f32 0.0, %v4238
      %v4240 = vpop.f32.mrb[0].mxu0
      %4241 = vmatprep.mubr.bf16.mxu0 %v3735
      %4242 = vmatmul.mubr.bf16.gmra.mrb[0].mxu0 %v3567
      %v4243 = vpop.f32.mrb[0].mxu0
      %v4244 = vadd.f32 0.0, %v4243
      %v4245 = vpop.f32.mrb[0].mxu0
      %v4246 = vpop.f32.mrb[0].mxu0
      %v4247 = vadd.f32 0.0, %v4246
      %v4248 = vpop.f32.mrb[0].mxu0
      %4249 = vmatprep.mubr.bf16.mxu0 %v3747
      %4250 = vmatmul.mubr.bf16.gmra.mrb[0].mxu0 %v3568
      %v4251 = vpop.f32.mrb[0].mxu0
      %v4252 = vadd.f32 0.0, %v4251
      %v4253 = vpop.f32.mrb[0].mxu0
      %v4254 = vpop.f32.mrb[0].mxu0
      %v4255 = vadd.f32 0.0, %v4254
      %v4256 = vpop.f32.mrb[0].mxu0
      %4257 = vmatprep.mubr.bf16.mxu0 %v3759
      %4258 = vmatmul.mubr.bf16.gmra.mrb[0].mxu0 %v3569
      %v4259 = vpop.f32.mrb[0].mxu0
      %v4260 = vadd.f32 0.0, %v4259
      %v4261 = vpop.f32.mrb[0].mxu0
      %v4262 = vpop.f32.mrb[0].mxu0
      %v4263 = vadd.f32 0.0, %v4262
      %v4264 = vpop.f32.mrb[0].mxu0
      %4265 = vmatprep.mubr.bf16.mxu0 %v3771
      %4266 = vmatmul.mubr.bf16.gmra.mrb[0].mxu0 %v3570
      %v4267 = vpop.f32.mrb[0].mxu0
      %v4268 = vadd.f32 0.0, %v4267
      %v4269 = vpop.f32.mrb[0].mxu0
      %v4270 = vpop.f32.mrb[0].mxu0
      %v4271 = vadd.f32 0.0, %v4270
      %v4272 = vpop.f32.mrb[0].mxu0
      %4273 = vmatprep.mubr.bf16.mxu0 %v3783
      %4274 = vmatmul.mubr.bf16.gmra.mrb[0].mxu0 %v3571
      %v4275 = vpop.f32.mrb[0].mxu0
      %v4276 = vadd.f32 0.0, %v4275
      %v4277 = vpop.f32.mrb[0].mxu0
      %v4278 = vpop.f32.mrb[0].mxu0
      %v4279 = vadd.f32 0.0, %v4278
      %v4280 = vpop.f32.mrb[0].mxu0
      %4281 = vmatprep.mubr.bf16.mxu0 %v3795
      %4282 = vmatmul.mubr.bf16.gmra.mrb[0].mxu0 %v3572
      %v4283 = vpop.f32.mrb[0].mxu0
      %v4284 = vadd.f32 0.0, %v4283
      %v4285 = vpop.f32.mrb[0].mxu0
      %v4286 = vpop.f32.mrb[0].mxu0
      %v4287 = vadd.f32 0.0, %v4286
      %v4288 = vpop.f32.mrb[0].mxu0
      %4289 = vmatprep.mubr.bf16.mxu0 %v3807
      %4290 = vmatmul.mubr.bf16.gmra.mrb[0].mxu0 %v3573
      %v4291 = vpop.f32.mrb[0].mxu0
      %v4292 = vadd.f32 0.0, %v4291
      %v4293 = vpop.f32.mrb[0].mxu0
      %v4294 = vpop.f32.mrb[0].mxu0
      %v4295 = vadd.f32 0.0, %v4294
      %v4296 = vpop.f32.mrb[0].mxu0
      %4297 = vmatprep.mubr.bf16.mxu0 %v3819
      %4298 = vmatmul.mubr.bf16.gmra.mrb[0].mxu0 %v3574
      %v4299 = vpop.f32.mrb[0].mxu0
      %v4300 = vadd.f32 0.0, %v4299
      %v4301 = vpop.f32.mrb[0].mxu0
      %v4302 = vpop.f32.mrb[0].mxu0
      %v4303 = vadd.f32 0.0, %v4302
      %v4304 = vpop.f32.mrb[0].mxu0
      %4305 = vmatprep.mubr.bf16.mxu0 %v3831
      %4306 = vmatmul.mubr.bf16.gmra.mrb[0].mxu0 %v3575
      %v4307 = vpop.f32.mrb[0].mxu0
      %v4308 = vadd.f32 0.0, %v4307
      %v4309 = vpop.f32.mrb[0].mxu0
      %v4310 = vpop.f32.mrb[0].mxu0
      %v4311 = vadd.f32 0.0, %v4310
      %v4312 = vpop.f32.mrb[0].mxu0
      %4313 = vdwg.mxu0
      %4314 = vmatprep.subr.bf16.mxu0 0
      %4315 = vmatpush1.bf16.msra.mxu0 %v4121
      %4316 = vmatprep.subr.bf16.mxu0 0
      %4317 = vmatpush1.bf16.msra.mxu0 %v4122
      %4318 = vmatprep.subr.bf16.mxu0 0
      %4319 = vmatpush1.bf16.msra.mxu0 %v4123
      %4320 = vmatprep.subr.bf16.mxu0 0
      %4321 = vmatpush1.bf16.msra.mxu0 %v4124
      %4322 = vmatprep.subr.bf16.mxu0 0
      %4323 = vmatpush1.bf16.msra.mxu0 %v4125
      %4324 = vmatprep.subr.bf16.mxu0 0
      %4325 = vmatpush1.bf16.msra.mxu0 %v4126
      %4326 = vmatprep.subr.bf16.mxu0 0
      %4327 = vmatpush1.bf16.msra.mxu0 %v4127
      %4328 = vmatprep.subr.bf16.mxu0 0
      %4329 = vmatpush1.bf16.msra.mxu0 %v4128
      %4330 = vmatprep.subr.bf16.mxu0 0
      %4331 = vmatpush1.bf16.msra.mxu0 0
      %4332 = vmatprep.subr.bf16.mxu0 0
      %4333 = vmatpush1.bf16.msra.mxu0 0
      %4334 = vmatprep.subr.bf16.mxu0 0
      %4335 = vmatpush1.bf16.msra.mxu0 0
      %4336 = vmatprep.subr.bf16.mxu0 0
      %4337 = vmatpush1.bf16.msra.mxu0 0
      %4338 = vmatprep.subr.bf16.mxu0 0
      %4339 = vmatpush1.bf16.msra.mxu0 0
      %4340 = vmatprep.subr.bf16.mxu0 0
      %4341 = vmatpush1.bf16.msra.mxu0 0
      %4342 = vmatprep.subr.bf16.mxu0 0
      %4343 = vmatpush1.bf16.msra.mxu0 0
      %4344 = vmatprep.subr.bf16.mxu0 0
      %4345 = vmatpush1.bf16.msra.mxu0 0
      %4346 = vmatprep.mubr.bf16.mxu0 0
      %4347 = vmatmul.mubr.bf16.gmra.mrb[0].mxu0 %v3898
      %v4348 = vpop.f32.mrb[0].mxu0
      %v4349 = vadd.f32 %v4188, %v4348
      %v4350 = vpop.f32.mrb[0].mxu0
      %v4351 = vpop.f32.mrb[0].mxu0
      %v4352 = vadd.f32 %v4191, %v4351
      %v4353 = vpop.f32.mrb[0].mxu0
      %4354 = vmatprep.mubr.bf16.mxu0 0
      %4355 = vmatmul.mubr.bf16.gmra.mrb[0].mxu0 %v3901
      %v4356 = vpop.f32.mrb[0].mxu0
      %v4357 = vadd.f32 %v4196, %v4356
      %v4358 = vpop.f32.mrb[0].mxu0
      %v4359 = vpop.f32.mrb[0].mxu0
      %v4360 = vadd.f32 %v4199, %v4359
      %v4361 = vpop.f32.mrb[0].mxu0
      %4362 = vmatprep.mubr.bf16.mxu0 0
      %4363 = vmatmul.mubr.bf16.gmra.mrb[0].mxu0 %v3904
      %v4364 = vpop.f32.mrb[0].mxu0
      %v4365 = vadd.f32 %v4204, %v4364
      %v4366 = vpop.f32.mrb[0].mxu0
      %v4367 = vpop.f32.mrb[0].mxu0
      %v4368 = vadd.f32 %v4207, %v4367
      %v4369 = vpop.f32.mrb[0].mxu0
      %4370 = vmatprep.mubr.bf16.mxu0 0
      %4371 = vmatmul.mubr.bf16.gmra.mrb[0].mxu0 %v3907
      %v4372 = vpop.f32.mrb[0].mxu0
      %v4373 = vadd.f32 %v4212, %v4372
      %v4374 = vpop.f32.mrb[0].mxu0
      %v4375 = vpop.f32.mrb[0].mxu0
      %v4376 = vadd.f32 %v4215, %v4375
      %v4377 = vpop.f32.mrb[0].mxu0
      %4378 = vmatprep.mubr.bf16.mxu0 0
      %4379 = vmatmul.mubr.bf16.gmra.mrb[0].mxu0 %v3910
      %v4380 = vpop.f32.mrb[0].mxu0
      %v4381 = vadd.f32 %v4220, %v4380
      %v4382 = vpop.f32.mrb[0].mxu0
      %v4383 = vpop.f32.mrb[0].mxu0
      %v4384 = vadd.f32 %v4223, %v4383
      %v4385 = vpop.f32.mrb[0].mxu0
      %4386 = vmatprep.mubr.bf16.mxu0 0
      %4387 = vmatmul.mubr.bf16.gmra.mrb[0].mxu0 %v3913
      %v4388 = vpop.f32.mrb[0].mxu0
      %v4389 = vadd.f32 %v4228, %v4388
      %v4390 = vpop.f32.mrb[0].mxu0
      %v4391 = vpop.f32.mrb[0].mxu0
      %v4392 = vadd.f32 %v4231, %v4391
      %v4393 = vpop.f32.mrb[0].mxu0
      %4394 = vmatprep.mubr.bf16.mxu0 0
      %4395 = vmatmul.mubr.bf16.gmra.mrb[0].mxu0 %v3916
      %v4396 = vpop.f32.mrb[0].mxu0
      %v4397 = vadd.f32 %v4236, %v4396
      %v4398 = vpop.f32.mrb[0].mxu0
      %v4399 = vpop.f32.mrb[0].mxu0
      %v4400 = vadd.f32 %v4239, %v4399
      %v4401 = vpop.f32.mrb[0].mxu0
      %4402 = vmatprep.mubr.bf16.mxu0 0
      %4403 = vmatmul.mubr.bf16.gmra.mrb[0].mxu0 %v3919
      %v4404 = vpop.f32.mrb[0].mxu0
      %v4405 = vadd.f32 %v4244, %v4404
      %v4406 = vpop.f32.mrb[0].mxu0
      %v4407 = vpop.f32.mrb[0].mxu0
      %v4408 = vadd.f32 %v4247, %v4407
      %v4409 = vpop.f32.mrb[0].mxu0
      %4410 = vmatprep.mubr.bf16.mxu0 0
      %4411 = vmatmul.mubr.bf16.gmra.mrb[0].mxu0 %v3922
      %v4412 = vpop.f32.mrb[0].mxu0
      %v4413 = vadd.f32 %v4252, %v4412
      %v4414 = vpop.f32.mrb[0].mxu0
      %v4415 = vpop.f32.mrb[0].mxu0
      %v4416 = vadd.f32 %v4255, %v4415
      %v4417 = vpop.f32.mrb[0].mxu0
      %4418 = vmatprep.mubr.bf16.mxu0 0
      %4419 = vmatmul.mubr.bf16.gmra.mrb[0].mxu0 %v3925
      %v4420 = vpop.f32.mrb[0].mxu0
      %v4421 = vadd.f32 %v4260, %v4420
      %v4422 = vpop.f32.mrb[0].mxu0
      %v4423 = vpop.f32.mrb[0].mxu0
      %v4424 = vadd.f32 %v4263, %v4423
      %v4425 = vpop.f32.mrb[0].mxu0
      %4426 = vmatprep.mubr.bf16.mxu0 0
      %4427 = vmatmul.mubr.bf16.gmra.mrb[0].mxu0 %v3928
      %v4428 = vpop.f32.mrb[0].mxu0
      %v4429 = vadd.f32 %v4268, %v4428
      %v4430 = vpop.f32.mrb[0].mxu0
      %v4431 = vpop.f32.mrb[0].mxu0
      %v4432 = vadd.f32 %v4271, %v4431
      %v4433 = vpop.f32.mrb[0].mxu0
      %4434 = vmatprep.mubr.bf16.mxu0 0
      %4435 = vmatmul.mubr.bf16.gmra.mrb[0].mxu0 %v3931
      %v4436 = vpop.f32.mrb[0].mxu0
      %v4437 = vadd.f32 %v4276, %v4436
      %v4438 = vpop.f32.mrb[0].mxu0
      %v4439 = vpop.f32.mrb[0].mxu0
      %v4440 = vadd.f32 %v4279, %v4439
      %v4441 = vpop.f32.mrb[0].mxu0
      %4442 = vmatprep.mubr.bf16.mxu0 0
      %4443 = vmatmul.mubr.bf16.gmra.mrb[0].mxu0 %v3934
      %v4444 = vpop.f32.mrb[0].mxu0
      %v4445 = vadd.f32 %v4284, %v4444
      %v4446 = vpop.f32.mrb[0].mxu0
      %v4447 = vpop.f32.mrb[0].mxu0
      %v4448 = vadd.f32 %v4287, %v4447
      %v4449 = vpop.f32.mrb[0].mxu0
      %4450 = vmatprep.mubr.bf16.mxu0 0
      %4451 = vmatmul.mubr.bf16.gmra.mrb[0].mxu0 %v3937
      %v4452 = vpop.f32.mrb[0].mxu0
      %v4453 = vadd.f32 %v4292, %v4452
      %v4454 = vpop.f32.mrb[0].mxu0
      %v4455 = vpop.f32.mrb[0].mxu0
      %v4456 = vadd.f32 %v4295, %v4455
      %v4457 = vpop.f32.mrb[0].mxu0
      %4458 = vmatprep.mubr.bf16.mxu0 0
      %4459 = vmatmul.mubr.bf16.gmra.mrb[0].mxu0 %v3940
      %v4460 = vpop.f32.mrb[0].mxu0
      %v4461 = vadd.f32 %v4300, %v4460
      %v4462 = vpop.f32.mrb[0].mxu0
      %v4463 = vpop.f32.mrb[0].mxu0
      %v4464 = vadd.f32 %v4303, %v4463
      %v4465 = vpop.f32.mrb[0].mxu0
      %4466 = vmatprep.mubr.bf16.mxu0 0
      %4467 = vmatmul.mubr.bf16.gmra.mrb[0].mxu0 %v3943
      %v4468 = vpop.f32.mrb[0].mxu0
      %v4469 = vadd.f32 %v4308, %v4468
      %v4470 = vpop.f32.mrb[0].mxu0
      %v4471 = vpop.f32.mrb[0].mxu0
      %v4472 = vadd.f32 %v4311, %v4471
      %v4473 = vpop.f32.mrb[0].mxu0
      %4474 = vdwg.mxu0
      %v4475 = vadd.f32 %v3305, %v4349
      %v4476 = vadd.f32 %v3308, %v4352
      %v4477 = vadd.f32 %v3313, %v4357
      %v4478 = vadd.f32 %v3316, %v4360
      %v4479 = vadd.f32 %v3321, %v4365
      %v4480 = vadd.f32 %v3324, %v4368
      %v4481 = vadd.f32 %v3329, %v4373
      %v4482 = vadd.f32 %v3332, %v4376
      %v4483 = vadd.f32 %v3337, %v4381
      %v4484 = vadd.f32 %v3340, %v4384
      %v4485 = vadd.f32 %v3345, %v4389
      %v4486 = vadd.f32 %v3348, %v4392
      %v4487 = vadd.f32 %v3353, %v4397
      %v4488 = vadd.f32 %v3356, %v4400
      %v4489 = vadd.f32 %v3361, %v4405
      %v4490 = vadd.f32 %v3364, %v4408
      %v4491 = vadd.f32 %v3369, %v4413
      %v4492 = vadd.f32 %v3372, %v4416
      %v4493 = vadd.f32 %v3377, %v4421
      %v4494 = vadd.f32 %v3380, %v4424
      %v4495 = vadd.f32 %v3385, %v4429
      %v4496 = vadd.f32 %v3388, %v4432
      %v4497 = vadd.f32 %v3393, %v4437
      %v4498 = vadd.f32 %v3396, %v4440
      %v4499 = vadd.f32 %v3401, %v4445
      %v4500 = vadd.f32 %v3404, %v4448
      %v4501 = vadd.f32 %v3409, %v4453
      %v4502 = vadd.f32 %v3412, %v4456
      %v4503 = vadd.f32 %v3417, %v4461
      %v4504 = vadd.f32 %v3420, %v4464
      %v4505 = vadd.f32 %v3425, %v4469
      %v4506 = vadd.f32 %v3428, %v4472
      %v4507 = vxor.u32 %v4475, 2147483648
      %v4508 = vxor.u32 %v4476, 2147483648
      %v4509 = vxor.u32 %v4477, 2147483648
      %v4510 = vxor.u32 %v4478, 2147483648
      %v4511 = vxor.u32 %v4479, 2147483648
      %v4512 = vxor.u32 %v4480, 2147483648
      %v4513 = vxor.u32 %v4481, 2147483648
      %v4514 = vxor.u32 %v4482, 2147483648
      %v4515 = vxor.u32 %v4483, 2147483648
      %v4516 = vxor.u32 %v4484, 2147483648
      %v4517 = vxor.u32 %v4485, 2147483648
      %v4518 = vxor.u32 %v4486, 2147483648
      %v4519 = vxor.u32 %v4487, 2147483648
      %v4520 = vxor.u32 %v4488, 2147483648
      %v4521 = vxor.u32 %v4489, 2147483648
      %v4522 = vxor.u32 %v4490, 2147483648
      %v4523 = vxor.u32 %v4491, 2147483648
      %v4524 = vxor.u32 %v4492, 2147483648
      %v4525 = vxor.u32 %v4493, 2147483648
      %v4526 = vxor.u32 %v4494, 2147483648
      %v4527 = vxor.u32 %v4495, 2147483648
      %v4528 = vxor.u32 %v4496, 2147483648
      %v4529 = vxor.u32 %v4497, 2147483648
      %v4530 = vxor.u32 %v4498, 2147483648
      %v4531 = vxor.u32 %v4499, 2147483648
      %v4532 = vxor.u32 %v4500, 2147483648
      %v4533 = vxor.u32 %v4501, 2147483648
      %v4534 = vxor.u32 %v4502, 2147483648
      %v4535 = vxor.u32 %v4503, 2147483648
      %v4536 = vxor.u32 %v4504, 2147483648
      %v4537 = vxor.u32 %v4505, 2147483648
      %v4538 = vxor.u32 %v4506, 2147483648
      %v4539 = vmul.f32 %v4507, 1.442695
      %v4540 = vpow.pop %v4539
      %v4541 = vmul.f32 %v4508, 1.442695
      %v4542 = vpow.pop %v4541
      %v4543 = vmul.f32 %v4509, 1.442695
      %v4544 = vpow.pop %v4543
      %v4545 = vmul.f32 %v4510, 1.442695
      %v4546 = vpow.pop %v4545
      %v4547 = vmul.f32 %v4511, 1.442695
      %v4548 = vpow.pop %v4547
      %v4549 = vmul.f32 %v4512, 1.442695
      %v4550 = vpow.pop %v4549
      %v4551 = vmul.f32 %v4513, 1.442695
      %v4552 = vpow.pop %v4551
      %v4553 = vmul.f32 %v4514, 1.442695
      %v4554 = vpow.pop %v4553
      %v4555 = vmul.f32 %v4515, 1.442695
      %v4556 = vpow.pop %v4555
      %v4557 = vmul.f32 %v4516, 1.442695
      %v4558 = vpow.pop %v4557
      %v4559 = vmul.f32 %v4517, 1.442695
      %v4560 = vpow.pop %v4559
      %v4561 = vmul.f32 %v4518, 1.442695
      %v4562 = vpow.pop %v4561
      %v4563 = vmul.f32 %v4519, 1.442695
      %v4564 = vpow.pop %v4563
      %v4565 = vmul.f32 %v4520, 1.442695
      %v4566 = vpow.pop %v4565
      %v4567 = vmul.f32 %v4521, 1.442695
      %v4568 = vpow.pop %v4567
      %v4569 = vmul.f32 %v4522, 1.442695
      %v4570 = vpow.pop %v4569
      %v4571 = vmul.f32 %v4523, 1.442695
      %v4572 = vpow.pop %v4571
      %v4573 = vmul.f32 %v4524, 1.442695
      %v4574 = vpow.pop %v4573
      %v4575 = vmul.f32 %v4525, 1.442695
      %v4576 = vpow.pop %v4575
      %v4577 = vmul.f32 %v4526, 1.442695
      %v4578 = vpow.pop %v4577
      %v4579 = vmul.f32 %v4527, 1.442695
      %v4580 = vpow.pop %v4579
      %v4581 = vmul.f32 %v4528, 1.442695
      %v4582 = vpow.pop %v4581
      %v4583 = vmul.f32 %v4529, 1.442695
      %v4584 = vpow.pop %v4583
      %v4585 = vmul.f32 %v4530, 1.442695
      %v4586 = vpow.pop %v4585
      %v4587 = vmul.f32 %v4531, 1.442695
      %v4588 = vpow.pop %v4587
      %v4589 = vmul.f32 %v4532, 1.442695
      %v4590 = vpow.pop %v4589
      %v4591 = vmul.f32 %v4533, 1.442695
      %v4592 = vpow.pop %v4591
      %v4593 = vmul.f32 %v4534, 1.442695
      %v4594 = vpow.pop %v4593
      %v4595 = vmul.f32 %v4535, 1.442695
      %v4596 = vpow.pop %v4595
      %v4597 = vmul.f32 %v4536, 1.442695
      %v4598 = vpow.pop %v4597
      %v4599 = vmul.f32 %v4537, 1.442695
      %v4600 = vpow.pop %v4599
      %v4601 = vmul.f32 %v4538, 1.442695
      %v4602 = vpow.pop %v4601
      %v4603 = vadd.f32 %v4540, 1.0
      %v4604 = vadd.f32 %v4542, 1.0
      %v4605 = vadd.f32 %v4544, 1.0
      %v4606 = vadd.f32 %v4546, 1.0
      %v4607 = vadd.f32 %v4548, 1.0
      %v4608 = vadd.f32 %v4550, 1.0
      %v4609 = vadd.f32 %v4552, 1.0
      %v4610 = vadd.f32 %v4554, 1.0
      %v4611 = vadd.f32 %v4556, 1.0
      %v4612 = vadd.f32 %v4558, 1.0
      %v4613 = vadd.f32 %v4560, 1.0
      %v4614 = vadd.f32 %v4562, 1.0
      %v4615 = vadd.f32 %v4564, 1.0
      %v4616 = vadd.f32 %v4566, 1.0
      %v4617 = vadd.f32 %v4568, 1.0
      %v4618 = vadd.f32 %v4570, 1.0
      %v4619 = vadd.f32 %v4572, 1.0
      %v4620 = vadd.f32 %v4574, 1.0
      %v4621 = vadd.f32 %v4576, 1.0
      %v4622 = vadd.f32 %v4578, 1.0
      %v4623 = vadd.f32 %v4580, 1.0
      %v4624 = vadd.f32 %v4582, 1.0
      %v4625 = vadd.f32 %v4584, 1.0
      %v4626 = vadd.f32 %v4586, 1.0
      %v4627 = vadd.f32 %v4588, 1.0
      %v4628 = vadd.f32 %v4590, 1.0
      %v4629 = vadd.f32 %v4592, 1.0
      %v4630 = vadd.f32 %v4594, 1.0
      %v4631 = vadd.f32 %v4596, 1.0
      %v4632 = vadd.f32 %v4598, 1.0
      %v4633 = vadd.f32 %v4600, 1.0
      %v4634 = vadd.f32 %v4602, 1.0
      %v4635 = vrcp.pop %v4603
      %v4636 = vmul.f32 1.0, %v4635
      %v4637 = vrcp.pop %v4604
      %v4638 = vmul.f32 1.0, %v4637
      %v4639 = vrcp.pop %v4605
      %v4640 = vmul.f32 1.0, %v4639
      %v4641 = vrcp.pop %v4606
      %v4642 = vmul.f32 1.0, %v4641
      %v4643 = vrcp.pop %v4607
      %v4644 = vmul.f32 1.0, %v4643
      %v4645 = vrcp.pop %v4608
      %v4646 = vmul.f32 1.0, %v4645
      %v4647 = vrcp.pop %v4609
      %v4648 = vmul.f32 1.0, %v4647
      %v4649 = vrcp.pop %v4610
      %v4650 = vmul.f32 1.0, %v4649
      %v4651 = vrcp.pop %v4611
      %v4652 = vmul.f32 1.0, %v4651
      %v4653 = vrcp.pop %v4612
      %v4654 = vmul.f32 1.0, %v4653
      %v4655 = vrcp.pop %v4613
      %v4656 = vmul.f32 1.0, %v4655
      %v4657 = vrcp.pop %v4614
      %v4658 = vmul.f32 1.0, %v4657
      %v4659 = vrcp.pop %v4615
      %v4660 = vmul.f32 1.0, %v4659
      %v4661 = vrcp.pop %v4616
      %v4662 = vmul.f32 1.0, %v4661
      %v4663 = vrcp.pop %v4617
      %v4664 = vmul.f32 1.0, %v4663
      %v4665 = vrcp.pop %v4618
      %v4666 = vmul.f32 1.0, %v4665
      %v4667 = vrcp.pop %v4619
      %v4668 = vmul.f32 1.0, %v4667
      %v4669 = vrcp.pop %v4620
      %v4670 = vmul.f32 1.0, %v4669
      %v4671 = vrcp.pop %v4621
      %v4672 = vmul.f32 1.0, %v4671
      %v4673 = vrcp.pop %v4622
      %v4674 = vmul.f32 1.0, %v4673
      %v4675 = vrcp.pop %v4623
      %v4676 = vmul.f32 1.0, %v4675
      %v4677 = vrcp.pop %v4624
      %v4678 = vmul.f32 1.0, %v4677
      %v4679 = vrcp.pop %v4625
      %v4680 = vmul.f32 1.0, %v4679
      %v4681 = vrcp.pop %v4626
      %v4682 = vmul.f32 1.0, %v4681
      %v4683 = vrcp.pop %v4627
      %v4684 = vmul.f32 1.0, %v4683
      %v4685 = vrcp.pop %v4628
      %v4686 = vmul.f32 1.0, %v4685
      %v4687 = vrcp.pop %v4629
      %v4688 = vmul.f32 1.0, %v4687
      %v4689 = vrcp.pop %v4630
      %v4690 = vmul.f32 1.0, %v4689
      %v4691 = vrcp.pop %v4631
      %v4692 = vmul.f32 1.0, %v4691
      %v4693 = vrcp.pop %v4632
      %v4694 = vmul.f32 1.0, %v4693
      %v4695 = vrcp.pop %v4633
      %v4696 = vmul.f32 1.0, %v4695
      %v4697 = vrcp.pop %v4634
      %v4698 = vmul.f32 1.0, %v4697
      %v4699 = vmul.f32 %v4475, %v4636
      %v4700 = vmul.f32 %v4476, %v4638
      %v4701 = vmul.f32 %v4477, %v4640
      %v4702 = vmul.f32 %v4478, %v4642
      %v4703 = vmul.f32 %v4479, %v4644
      %v4704 = vmul.f32 %v4480, %v4646
      %v4705 = vmul.f32 %v4481, %v4648
      %v4706 = vmul.f32 %v4482, %v4650
      %v4707 = vmul.f32 %v4483, %v4652
      %v4708 = vmul.f32 %v4484, %v4654
      %v4709 = vmul.f32 %v4485, %v4656
      %v4710 = vmul.f32 %v4486, %v4658
      %v4711 = vmul.f32 %v4487, %v4660
      %v4712 = vmul.f32 %v4488, %v4662
      %v4713 = vmul.f32 %v4489, %v4664
      %v4714 = vmul.f32 %v4490, %v4666
      %v4715 = vmul.f32 %v4491, %v4668
      %v4716 = vmul.f32 %v4492, %v4670
      %v4717 = vmul.f32 %v4493, %v4672
      %v4718 = vmul.f32 %v4494, %v4674
      %v4719 = vmul.f32 %v4495, %v4676
      %v4720 = vmul.f32 %v4496, %v4678
      %v4721 = vmul.f32 %v4497, %v4680
      %v4722 = vmul.f32 %v4498, %v4682
      %v4723 = vmul.f32 %v4499, %v4684
      %v4724 = vmul.f32 %v4500, %v4686
      %v4725 = vmul.f32 %v4501, %v4688
      %v4726 = vmul.f32 %v4502, %v4690
      %v4727 = vmul.f32 %v4503, %v4692
      %v4728 = vmul.f32 %v4504, %v4694
      %v4729 = vmul.f32 %v4505, %v4696
      %v4730 = vmul.f32 %v4506, %v4698
      %v4731 = vld [vmem:[%s470] sm:$0x1]
      %v4733 = vlaneseq
      %v4734 = vshrl.u32 %v4733, 7
      %v4735 = vsub.s32 0, %v4734
      %v4736 = vrot.slane %v4731, %v4735
      %v4738 = vadd.f32 %v4699, %v4736
      %v4739 = vadd.f32 %v4700, %v4736
      %v4740 = vadd.f32 %v4701, %v4736
      %v4741 = vadd.f32 %v4702, %v4736
      %v4742 = vadd.f32 %v4703, %v4736
      %v4743 = vadd.f32 %v4704, %v4736
      %v4744 = vadd.f32 %v4705, %v4736
      %v4745 = vadd.f32 %v4706, %v4736
      %v4746 = vadd.f32 %v4707, %v4736
      %v4747 = vadd.f32 %v4708, %v4736
      %v4748 = vadd.f32 %v4709, %v4736
      %v4749 = vadd.f32 %v4710, %v4736
      %v4750 = vadd.f32 %v4711, %v4736
      %v4751 = vadd.f32 %v4712, %v4736
      %v4752 = vadd.f32 %v4713, %v4736
      %v4753 = vadd.f32 %v4714, %v4736
      %v4754 = vadd.f32 %v4715, %v4736
      %v4755 = vadd.f32 %v4716, %v4736
      %v4756 = vadd.f32 %v4717, %v4736
      %v4757 = vadd.f32 %v4718, %v4736
      %v4758 = vadd.f32 %v4719, %v4736
      %v4759 = vadd.f32 %v4720, %v4736
      %v4760 = vadd.f32 %v4721, %v4736
      %v4761 = vadd.f32 %v4722, %v4736
      %v4762 = vadd.f32 %v4723, %v4736
      %v4763 = vadd.f32 %v4724, %v4736
      %v4764 = vadd.f32 %v4725, %v4736
      %v4765 = vadd.f32 %v4726, %v4736
      %v4766 = vadd.f32 %v4727, %v4736
      %v4767 = vadd.f32 %v4728, %v4736
      %v4768 = vadd.f32 %v4729, %v4736
      %v4769 = vadd.f32 %v4730, %v4736
      %v4770 = vadd.f32 %v4738, %v4739
      %v4771 = vadd.f32 %v4770, %v4740
      %v4772 = vadd.f32 %v4771, %v4741
      %v4773 = vadd.f32 %v4772, %v4742
      %v4774 = vadd.f32 %v4773, %v4743
      %v4775 = vadd.f32 %v4774, %v4744
      %v4776 = vadd.f32 %v4775, %v4745
      %v4777 = vadd.f32 %v4776, %v4746
      %v4778 = vadd.f32 %v4777, %v4747
      %v4779 = vadd.f32 %v4778, %v4748
      %v4780 = vadd.f32 %v4779, %v4749
      %v4781 = vadd.f32 %v4780, %v4750
      %v4782 = vadd.f32 %v4781, %v4751
      %v4783 = vadd.f32 %v4782, %v4752
      %v4784 = vadd.f32 %v4783, %v4753
      %v4785 = vadd.f32 %v4784, %v4754
      %v4786 = vadd.f32 %v4785, %v4755
      %v4787 = vadd.f32 %v4786, %v4756
      %v4788 = vadd.f32 %v4787, %v4757
      %v4789 = vadd.f32 %v4788, %v4758
      %v4790 = vadd.f32 %v4789, %v4759
      %v4791 = vadd.f32 %v4790, %v4760
      %v4792 = vadd.f32 %v4791, %v4761
      %v4793 = vadd.f32 %v4792, %v4762
      %v4794 = vadd.f32 %v4793, %v4763
      %v4795 = vadd.f32 %v4794, %v4764
      %v4796 = vadd.f32 %v4795, %v4765
      %v4797 = vadd.f32 %v4796, %v4766
      %v4798 = vadd.f32 %v4797, %v4767
      %v4799 = vadd.f32 %v4798, %v4768
      %v4800 = vadd.f32 %v4799, %v4769
      %v4801 = vrot.slane %v4800, 4
      %v4802 = vadd.f32 %v4800, %v4801
      %v4803 = vrot.slane %v4802, 2
      %v4804 = vadd.f32 %v4802, %v4803
      %v4805 = vrot.slane %v4804, 1
      %v4806 = vadd.f32 %v4804, %v4805
      %v4807 = vmul.f32 %v4738, %v4738
      %v4808 = vmul.f32 %v4739, %v4739
      %v4809 = vmul.f32 %v4740, %v4740
      %v4810 = vmul.f32 %v4741, %v4741
      %v4811 = vmul.f32 %v4742, %v4742
      %v4812 = vmul.f32 %v4743, %v4743
      %v4813 = vmul.f32 %v4744, %v4744
      %v4814 = vmul.f32 %v4745, %v4745
      %v4815 = vmul.f32 %v4746, %v4746
      %v4816 = vmul.f32 %v4747, %v4747
      %v4817 = vmul.f32 %v4748, %v4748
      %v4818 = vmul.f32 %v4749, %v4749
      %v4819 = vmul.f32 %v4750, %v4750
      %v4820 = vmul.f32 %v4751, %v4751
      %v4821 = vmul.f32 %v4752, %v4752
      %v4822 = vmul.f32 %v4753, %v4753
      %v4823 = vmul.f32 %v4754, %v4754
      %v4824 = vmul.f32 %v4755, %v4755
      %v4825 = vmul.f32 %v4756, %v4756
      %v4826 = vmul.f32 %v4757, %v4757
      %v4827 = vmul.f32 %v4758, %v4758
      %v4828 = vmul.f32 %v4759, %v4759
      %v4829 = vmul.f32 %v4760, %v4760
      %v4830 = vmul.f32 %v4761, %v4761
      %v4831 = vmul.f32 %v4762, %v4762
      %v4832 = vmul.f32 %v4763, %v4763
      %v4833 = vmul.f32 %v4764, %v4764
      %v4834 = vmul.f32 %v4765, %v4765
      %v4835 = vmul.f32 %v4766, %v4766
      %v4836 = vmul.f32 %v4767, %v4767
      %v4837 = vmul.f32 %v4768, %v4768
      %v4838 = vmul.f32 %v4769, %v4769
      %v4839 = vadd.f32 %v4807, %v4808
      %v4840 = vadd.f32 %v4839, %v4809
      %v4841 = vadd.f32 %v4840, %v4810
      %v4842 = vadd.f32 %v4841, %v4811
      %v4843 = vadd.f32 %v4842, %v4812
      %v4844 = vadd.f32 %v4843, %v4813
      %v4845 = vadd.f32 %v4844, %v4814
      %v4846 = vadd.f32 %v4845, %v4815
      %v4847 = vadd.f32 %v4846, %v4816
      %v4848 = vadd.f32 %v4847, %v4817
      %v4849 = vadd.f32 %v4848, %v4818
      %v4850 = vadd.f32 %v4849, %v4819
      %v4851 = vadd.f32 %v4850, %v4820
      %v4852 = vadd.f32 %v4851, %v4821
      %v4853 = vadd.f32 %v4852, %v4822
      %v4854 = vadd.f32 %v4853, %v4823
      %v4855 = vadd.f32 %v4854, %v4824
      %v4856 = vadd.f32 %v4855, %v4825
      %v4857 = vadd.f32 %v4856, %v4826
      %v4858 = vadd.f32 %v4857, %v4827
      %v4859 = vadd.f32 %v4858, %v4828
      %v4860 = vadd.f32 %v4859, %v4829
      %v4861 = vadd.f32 %v4860, %v4830
      %v4862 = vadd.f32 %v4861, %v4831
      %v4863 = vadd.f32 %v4862, %v4832
      %v4864 = vadd.f32 %v4863, %v4833
      %v4865 = vadd.f32 %v4864, %v4834
      %v4866 = vadd.f32 %v4865, %v4835
      %v4867 = vadd.f32 %v4866, %v4836
      %v4868 = vadd.f32 %v4867, %v4837
      %v4869 = vadd.f32 %v4868, %v4838
      %v4870 = vrot.slane %v4869, 4
      %v4871 = vadd.f32 %v4869, %v4870
      %v4872 = vrot.slane %v4871, 2
      %v4873 = vadd.f32 %v4871, %v4872
      %v4874 = vrot.slane %v4873, 1
      %v4875 = vadd.f32 %v4873, %v4874
      %vm4876 = vcmask 1040384
      %v4877 = vsel %vm4876, %v4806, 0.0
      %4878 = vst [vmem:[%s488] sm:$0xff] %v4877
      %v4879 = vsel %vm4876, %v4875, 0.0
      %4880 = vst [vmem:[%s495] sm:$0xff] %v4879
      %v4881 = vpack.c.bf16 %v4739, %v4738
      %v4882 = vpack.c.bf16 %v4741, %v4740
      %v4883 = vpack.c.bf16 %v4743, %v4742
      %v4884 = vpack.c.bf16 %v4745, %v4744
      %v4885 = vpack.c.bf16 %v4747, %v4746
      %v4886 = vpack.c.bf16 %v4749, %v4748
      %v4887 = vpack.c.bf16 %v4751, %v4750
      %v4888 = vpack.c.bf16 %v4753, %v4752
      %v4889 = vpack.c.bf16 %v4755, %v4754
      %v4890 = vpack.c.bf16 %v4757, %v4756
      %v4891 = vpack.c.bf16 %v4759, %v4758
      %v4892 = vpack.c.bf16 %v4761, %v4760
      %v4893 = vpack.c.bf16 %v4763, %v4762
      %v4894 = vpack.c.bf16 %v4765, %v4764
      %v4895 = vpack.c.bf16 %v4767, %v4766
      %v4896 = vpack.c.bf16 %v4769, %v4768
      %v4913 = vunpack.c.l.b16 %v4881
      %v4914 = vunpack.c.h.b16 %v4881
      %v4915 = vunpack.c.l.b16 %v4882
      %v4916 = vunpack.c.h.b16 %v4882
      %v4917 = vunpack.c.l.b16 %v4883
      %v4918 = vunpack.c.h.b16 %v4883
      %v4919 = vunpack.c.l.b16 %v4884
      %v4920 = vunpack.c.h.b16 %v4884
      %v4921 = vunpack.c.l.b16 %v4885
      %v4922 = vunpack.c.h.b16 %v4885
      %v4923 = vunpack.c.l.b16 %v4886
      %v4924 = vunpack.c.h.b16 %v4886
      %v4925 = vunpack.c.l.b16 %v4887
      %v4926 = vunpack.c.h.b16 %v4887
      %v4927 = vunpack.c.l.b16 %v4888
      %v4928 = vunpack.c.h.b16 %v4888
      %v4929 = vunpack.c.l.b16 %v4889
      %v4930 = vunpack.c.h.b16 %v4889
      %v4931 = vunpack.c.l.b16 %v4890
      %v4932 = vunpack.c.h.b16 %v4890
      %v4933 = vunpack.c.l.b16 %v4891
      %v4934 = vunpack.c.h.b16 %v4891
      %v4935 = vunpack.c.l.b16 %v4892
      %v4936 = vunpack.c.h.b16 %v4892
      %v4937 = vunpack.c.l.b16 %v4893
      %v4938 = vunpack.c.h.b16 %v4893
      %v4939 = vunpack.c.l.b16 %v4894
      %v4940 = vunpack.c.h.b16 %v4894
      %v4941 = vunpack.c.l.b16 %v4895
      %v4942 = vunpack.c.h.b16 %v4895
      %v4943 = vunpack.c.l.b16 %v4896
      %v4944 = vunpack.c.h.b16 %v4896
      %v4945 = vpack.c.b16 %v4913, %v4913
      %v4946 = vpack.c.b16 %v4914, %v4914
      %v4947 = vpack.c.b16 %v4915, %v4915
      %v4948 = vpack.c.b16 %v4916, %v4916
      %v4949 = vpack.c.b16 %v4917, %v4917
      %v4950 = vpack.c.b16 %v4918, %v4918
      %v4951 = vpack.c.b16 %v4919, %v4919
      %v4952 = vpack.c.b16 %v4920, %v4920
      %v4953 = vpack.c.b16 %v4921, %v4921
      %v4954 = vpack.c.b16 %v4922, %v4922
      %v4955 = vpack.c.b16 %v4923, %v4923
      %v4956 = vpack.c.b16 %v4924, %v4924
      %v4957 = vpack.c.b16 %v4925, %v4925
      %v4958 = vpack.c.b16 %v4926, %v4926
      %v4959 = vpack.c.b16 %v4927, %v4927
      %v4960 = vpack.c.b16 %v4928, %v4928
      %v4961 = vpack.c.b16 %v4929, %v4929
      %v4962 = vpack.c.b16 %v4930, %v4930
      %v4963 = vpack.c.b16 %v4931, %v4931
      %v4964 = vpack.c.b16 %v4932, %v4932
      %v4965 = vpack.c.b16 %v4933, %v4933
      %v4966 = vpack.c.b16 %v4934, %v4934
      %v4967 = vpack.c.b16 %v4935, %v4935
      %v4968 = vpack.c.b16 %v4936, %v4936
      %v4969 = vpack.c.b16 %v4937, %v4937
      %v4970 = vpack.c.b16 %v4938, %v4938
      %v4971 = vpack.c.b16 %v4939, %v4939
      %v4972 = vpack.c.b16 %v4940, %v4940
      %v4973 = vpack.c.b16 %v4941, %v4941
      %v4974 = vpack.c.b16 %v4942, %v4942
      %v4975 = vpack.c.b16 %v4943, %v4943
      %v4976 = vpack.c.b16 %v4944, %v4944
      %5009 = vst [vmem:[%s480] sm:$0xf] %v4945
      %5010 = vst [vmem:[%s480 + $0x4] sm:$0xf] %v4946
      %5011 = vst [vmem:[%s480 + $0x8] sm:$0xf] %v4947
      %5012 = vst [vmem:[%s480 + $0xc] sm:$0xf] %v4948
      %5013 = vst [vmem:[%s480 + $0x10] sm:$0xf] %v4949
      %5014 = vst [vmem:[%s480 + $0x14] sm:$0xf] %v4950
      %5015 = vst [vmem:[%s480 + $0x18] sm:$0xf] %v4951
      %5016 = vst [vmem:[%s480 + $0x1c] sm:$0xf] %v4952
      %5017 = vst [vmem:[%s480 + $0x20] sm:$0xf] %v4953
      %5018 = vst [vmem:[%s480 + $0x24] sm:$0xf] %v4954
      %5019 = vst [vmem:[%s480 + $0x28] sm:$0xf] %v4955
      %5020 = vst [vmem:[%s480 + $0x2c] sm:$0xf] %v4956
      %5021 = vst [vmem:[%s480 + $0x30] sm:$0xf] %v4957
      %5022 = vst [vmem:[%s480 + $0x34] sm:$0xf] %v4958
      %5023 = vst [vmem:[%s480 + $0x38] sm:$0xf] %v4959
      %5024 = vst [vmem:[%s480 + $0x3c] sm:$0xf] %v4960
      %5025 = vst [vmem:[%s480 + $0x40] sm:$0xf] %v4961
      %5026 = vst [vmem:[%s480 + $0x44] sm:$0xf] %v4962
      %5027 = vst [vmem:[%s480 + $0x48] sm:$0xf] %v4963
      %5028 = vst [vmem:[%s480 + $0x4c] sm:$0xf] %v4964
      %5029 = vst [vmem:[%s480 + $0x50] sm:$0xf] %v4965
      %5030 = vst [vmem:[%s480 + $0x54] sm:$0xf] %v4966
      %5031 = vst [vmem:[%s480 + $0x58] sm:$0xf] %v4967
      %5032 = vst [vmem:[%s480 + $0x5c] sm:$0xf] %v4968
      %5033 = vst [vmem:[%s480 + $0x60] sm:$0xf] %v4969
      %5034 = vst [vmem:[%s480 + $0x64] sm:$0xf] %v4970
      %5035 = vst [vmem:[%s480 + $0x68] sm:$0xf] %v4971
      %5036 = vst [vmem:[%s480 + $0x6c] sm:$0xf] %v4972
      %5037 = vst [vmem:[%s480 + $0x70] sm:$0xf] %v4973
      %5038 = vst [vmem:[%s480 + $0x74] sm:$0xf] %v4974
      %5039 = vst [vmem:[%s480 + $0x78] sm:$0xf] %v4975
      %5040 = vst [vmem:[%s480 + $0x7c] sm:$0xf] %v4976
      %s5041 = smul.u32 16, %s26
      %p5042 = scmp.lt.s32.totalorder %s25, 1
      %s5043 = scalar_select %p5042, %s25, 1
      %p5044 = scmp.lt.s32.totalorder %s5041, 15
      %s5045 = scalar_select %p5044, %s5041, 15
      %s5046 = smul.addr %s5045, 2
      %s5047 = smul.addr %s5043, 32
      %s5048 = sadd.s32 %s5046, %s5047
      %s5049 = smul.addr %s5048, 4
      %s5050 = scalar_lea.vmem %s7, %s5049
      %p5051 = scmp.lt.s32.totalorder %s25, 1
      %s5052 = scalar_select %p5051, %s25, 1
      %p5053 = scmp.lt.s32.totalorder %s26, 0
      %s5054 = scalar_select %p5053, %s26, 0
      %s5055 = sadd.s32 %s5054, %s5052
      %s5056 = smul.addr %s5055, 8
      %s5057 = scalar_lea.vmem %s8, %s5056
      %p5058 = scmp.lt.s32.totalorder %s25, 1
      %s5059 = scalar_select %p5058, %s25, 1
      %p5060 = scmp.lt.s32.totalorder %s26, 0
      %s5061 = scalar_select %p5060, %s26, 0
      %s5062 = sadd.s32 %s5061, %s5059
      %s5063 = smul.addr %s5062, 8
      %s5064 = scalar_lea.vmem %s9, %s5063
      // Predicated region
      $region49: #{double_conv_forward.4} parent=47 // pred_check
        %p5065 = pneg %p226
      $region50: #{double_conv_forward.4} parent=47 // pred_check_branch
        %5067 = sbr.rel (%p5065) target = $region52
      $region51: #{double_conv_forward.4} parent=47 // pred_region
        %s5068 = smul.u32 16, %s26
      $region52: #{double_conv_forward.4} parent=47 // pred_fallthru
        _
      // Predicated region
      $region53: #{double_conv_forward.4} parent=47 // pred_check
        %p5069 = pneg %p254
      $region54: #{double_conv_forward.4} parent=47 // pred_check_branch
        %5071 = sbr.rel (%p5069) target = $region56
      $region55: #{double_conv_forward.4} parent=47 // pred_region
        _
      $region56: #{double_conv_forward.4} parent=47 // pred_fallthru
        _
      // Predicated region
      $region57: #{double_conv_forward.4} parent=47 // pred_check
        %p5072 = pneg %p282
      $region58: #{double_conv_forward.4} parent=47 // pred_check_branch
        %5074 = sbr.rel (%p5072) target = $region60
      $region59: #{double_conv_forward.4} parent=47 // pred_region
        _
      $region60: #{double_conv_forward.4} parent=47 // pred_fallthru
        _
    $region48: #{double_conv_forward.4} parent=5 // pred_fallthru
      _
    %p5075 = scmp.le.s32.totalorder 2, %s16
    // Predicated region
    $region61: #{double_conv_forward.4} parent=5 // pred_check
      %p5076 = pneg %p5075
    $region62: #{double_conv_forward.4} parent=5 // pred_check_branch
      %5078 = sbr.rel (%p5076) target = $region64
    $region63: #{double_conv_forward.4} parent=5 // pred_region
      %s5079 = ssub.s32 %s16, 2
      // Predicated region
      $region65: #{double_conv_forward.4} parent=63 // pred_check
        %p5080 = pneg %p232
      $region66: #{double_conv_forward.4} parent=63 // pred_check_branch
        %5082 = sbr.rel (%p5080) target = $region68
      $region67: #{double_conv_forward.4} parent=63 // pred_region
        %s5083 = smul.u32 16, %s28
        %p5084 = scmp.lt.s32.totalorder %s27, 1
        %s5085 = scalar_select %p5084, %s27, 1
        %p5086 = scmp.lt.s32.totalorder %s5083, 15
        %s5087 = scalar_select %p5086, %s5083, 15
        %s5088 = smul.addr %s5087, 2
        %s5089 = smul.addr %s5085, 32
        %s5090 = sadd.s32 %s5088, %s5089
        %s5091 = smul.addr %s5090, 4
        %s5092 = scalar_lea.vmem %s7, %s5091
      $region68: #{double_conv_forward.4} parent=63 // pred_fallthru
        _
      // Predicated region
      $region69: #{double_conv_forward.4} parent=63 // pred_check
        %p5093 = pneg %p260
      $region70: #{double_conv_forward.4} parent=63 // pred_check_branch
        %5095 = sbr.rel (%p5093) target = $region72
      $region71: #{double_conv_forward.4} parent=63 // pred_region
        %p5096 = scmp.lt.s32.totalorder %s27, 1
        %s5097 = scalar_select %p5096, %s27, 1
        %p5098 = scmp.lt.s32.totalorder %s28, 0
        %s5099 = scalar_select %p5098, %s28, 0
        %s5100 = sadd.s32 %s5099, %s5097
        %s5101 = smul.addr %s5100, 8
        %s5102 = scalar_lea.vmem %s8, %s5101
      $region72: #{double_conv_forward.4} parent=63 // pred_fallthru
        _
      // Predicated region
      $region73: #{double_conv_forward.4} parent=63 // pred_check
        %p5103 = pneg %p288
      $region74: #{double_conv_forward.4} parent=63 // pred_check_branch
        %5105 = sbr.rel (%p5103) target = $region76
      $region75: #{double_conv_forward.4} parent=63 // pred_region
        %p5106 = scmp.lt.s32.totalorder %s27, 1
        %s5107 = scalar_select %p5106, %s27, 1
        %p5108 = scmp.lt.s32.totalorder %s28, 0
        %s5109 = scalar_select %p5108, %s28, 0
        %s5110 = sadd.s32 %s5109, %s5107
        %s5111 = smul.addr %s5110, 8
        %s5112 = scalar_lea.vmem %s9, %s5111
      $region76: #{double_conv_forward.4} parent=63 // pred_fallthru
        _
    $region64: #{double_conv_forward.4} parent=5 // pred_fallthru
      _
  $region6: #{double_conv_forward.4} parent=0 // loop_footer
    %s20 = sadd.s32 1, %s16
  $region7: #{double_conv_forward.4} parent=0 // loop_footer_branch
    %15 = sbr.rel target = $region3
  $region8: #{double_conv_forward.4} parent=0 // loop_exit
    _

// kernel: double_conv_forward.5
$region0: #{double_conv_forward.5}
  #allocation0 [shape = 'u32[]', space=smem, size = 0x4, offset = 0x4, fixed_abs, tag = 'smem constant byte address 0x4 - core index']
  #allocation1 [shape = 'u32[144,128]{1,0:T(1,128)}', space=vmem, size = 0x12000, scoped, tag = 'internal scratch']
  #allocation2 [shape = 'bf16[18,18,128]{2,1,0:T(8,128)(2,1)}', space=vmem, size = 0x1b000, scoped, tag = 'scratch operand']
  %s0 = inlined_call_operand.vmem [shape: bf16[2,16,16,128], index: 0, kind: input, shape index: {}]
  %s1 = inlined_call_operand.vmem [shape: bf16[2,1,16,128], index: 1, kind: input, shape index: {}, may-alias: {1,2}]
  %s2 = inlined_call_operand.vmem [shape: bf16[2,1,16,128], index: 2, kind: input, shape index: {}, may-alias: {1,2}]
  %s3 = inlined_call_operand.vmem [shape: f32[1,128], index: 3, kind: input, shape index: {}]
  %s4 = inlined_call_operand.vmem [shape: f32[1,128], index: 4, kind: input, shape index: {}]
  %s5 = inlined_call_operand.vmem [shape: bf16[3,384,128], index: 5, kind: input, shape index: {}]
  %s6 = inlined_call_operand.vmem [shape: bf16[2,16,16,128], index: 6, kind: input, shape index: {}]
  %s7 = inlined_call_operand.vmem [shape: bf16[128,128], index: 7, kind: input, shape index: {}]
  %s8 = inlined_call_operand.vmem [shape: f32[1,128], index: 8, kind: input, shape index: {}]
  %s9 = inlined_call_operand.vmem [shape: f32[2,16,16,128], index: 9, kind: output, shape index: {}]
  %s10 = sld [smem:[#allocation0]]
  $region69: #{double_conv_forward.5} parent=0
    _
  %s12 = ssub.s32 1, %s10
  %s13 = scalar_select 0, %s12, %s10
  loop: start=0, step=1, limit=4
  $region2: #{double_conv_forward.5} parent=0 // loop_pre_header
    _
  $region3: #{double_conv_forward.5} parent=0 // loop_header
    %s15 = sphi 0, %s19
    %p16 = scmp.ge.s32.totalorder %s15, 4
    %s22 = sphi 0, %s34
    %s23 = sphi 0, %s30
    %s24 = sphi 0, %s22
    %s25 = sphi 0, %s23
    %s26 = sphi 0, %s24
    %s27 = sphi 0, %s25
    %s39 = sphi 0, %s41
    %s42 = sphi 0, %s39
    %s43 = sphi 0, %s42
    %s59 = sphi 0, %s43
    %s67 = sphi 0, %s69
    %s70 = sphi 0, %s67
    %s71 = sphi 0, %s70
    %s87 = sphi 0, %s71
    %s95 = sphi 0, %s97
    %s98 = sphi 0, %s95
    %s99 = sphi 0, %s98
    %s115 = sphi 0, %s99
    %s119 = sphi 0, %s119
    %s121 = sphi 0, %s119
    %s122 = sphi 0, %s121
    %s136 = sphi 0, %s122
    %s140 = sphi 0, %s140
    %s142 = sphi 0, %s140
    %s143 = sphi 0, %s142
    %s157 = sphi 0, %s143
    %s161 = sphi 0, %s161
    %s163 = sphi 0, %s161
    %s164 = sphi 0, %s163
    %s178 = sphi 0, %s164
    %s186 = sphi 0, %s188
    %s189 = sphi 0, %s186
    %s190 = sphi 0, %s189
    %s206 = sphi 0, %s190
    %s210 = sphi 0, %s210
    %s212 = sphi 0, %s210
    %s213 = sphi 0, %s212
    %s227 = sphi 0, %s213
    %s231 = sphi 0, %s231
    %s233 = sphi 0, %s231
    %s234 = sphi 0, %s233
    %s248 = sphi 0, %s234
    %s256 = sphi 0, %s258
    %s259 = sphi 0, %s256
    %s260 = sphi 0, %s259
    %s276 = sphi 0, %s260
  $region4: #{double_conv_forward.5} parent=0 // loop_header_branch
    %18 = sbr.rel (%p16) target = $region8
  $region5: #{double_conv_forward.5} parent=0 // loop_body
    %s20 = ssub.s32 %s15, 1
    %s21 = ssub.s32 %s15, 2
    %s28 = sadd.s32 1, %s23
    %p29 = scmp.ge.s32.totalorder %s28, 1
    %s30 = scalar_select %p29, 0, %s28
    %s31 = sadd.s32 1, %s22
    %s32 = scalar_select %p29, %s31, %s22
    %p33 = scmp.ge.s32.totalorder %s32, 2
    %s34 = scalar_select %p33, 0, %s32
    %s35 = ssub.s32 %s22, %s34
    %s36 = ssub.s32 %s23, %s30
    %s37 = sor.u32 %s35, %s36
    %p38 = scmp.eq.s32.totalorder %s37, 0
    %s40 = sadd.s32 %s39, 1
    %s41 = scalar_select %p38, %s39, %s40
    %p44 = pneg %p38
    %p45 = scmp.eq.s32.totalorder %s15, 1
    %p46 = por %p44, %p45
    %p47 = scmp.ne.s32.totalorder %s39, %s42
    %p48 = scmp.eq.s32.totalorder %s15, 0
    %p49 = por %p47, %p48
    %p50 = scmp.ne.s32.totalorder %s39, %s42
    %p51 = scmp.eq.s32.totalorder %s20, 1
    %p52 = por %p50, %p51
    %p53 = scmp.ne.s32.totalorder %s42, %s43
    %p54 = scmp.eq.s32.totalorder %s20, 0
    %p55 = por %p53, %p54
    %p56 = scmp.ne.s32.totalorder %s42, %s43
    %p57 = scmp.eq.s32.totalorder %s21, 1
    %p58 = por %p56, %p57
    %p60 = scmp.ne.s32.totalorder %s43, %s59
    %p61 = scmp.eq.s32.totalorder %s21, 0
    %p62 = por %p60, %p61
    %s63 = ssub.s32 %s22, %s34
    %s64 = ssub.s32 %s23, %s30
    %s65 = sor.u32 %s63, %s64
    %p66 = scmp.eq.s32.totalorder %s65, 0
    %s68 = sadd.s32 %s67, 1
    %s69 = scalar_select %p66, %s67, %s68
    %p72 = pneg %p66
    %p73 = scmp.eq.s32.totalorder %s15, 1
    %p74 = por %p72, %p73
    %p75 = scmp.ne.s32.totalorder %s67, %s70
    %p76 = scmp.eq.s32.totalorder %s15, 0
    %p77 = por %p75, %p76
    %p78 = scmp.ne.s32.totalorder %s67, %s70
    %p79 = scmp.eq.s32.totalorder %s20, 1
    %p80 = por %p78, %p79
    %p81 = scmp.ne.s32.totalorder %s70, %s71
    %p82 = scmp.eq.s32.totalorder %s20, 0
    %p83 = por %p81, %p82
    %p84 = scmp.ne.s32.totalorder %s70, %s71
    %p85 = scmp.eq.s32.totalorder %s21, 1
    %p86 = por %p84, %p85
    %p88 = scmp.ne.s32.totalorder %s71, %s87
    %p89 = scmp.eq.s32.totalorder %s21, 0
    %p90 = por %p88, %p89
    %s91 = ssub.s32 %s22, %s34
    %s92 = ssub.s32 %s23, %s30
    %s93 = sor.u32 %s91, %s92
    %p94 = scmp.eq.s32.totalorder %s93, 0
    %s96 = sadd.s32 %s95, 1
    %s97 = scalar_select %p94, %s95, %s96
    %p100 = pneg %p94
    %p101 = scmp.eq.s32.totalorder %s15, 1
    %p102 = por %p100, %p101
    %p103 = scmp.ne.s32.totalorder %s95, %s98
    %p104 = scmp.eq.s32.totalorder %s15, 0
    %p105 = por %p103, %p104
    %p106 = scmp.ne.s32.totalorder %s95, %s98
    %p107 = scmp.eq.s32.totalorder %s20, 1
    %p108 = por %p106, %p107
    %p109 = scmp.ne.s32.totalorder %s98, %s99
    %p110 = scmp.eq.s32.totalorder %s20, 0
    %p111 = por %p109, %p110
    %p112 = scmp.ne.s32.totalorder %s98, %s99
    %p113 = scmp.eq.s32.totalorder %s21, 1
    %p114 = por %p112, %p113
    %p116 = scmp.ne.s32.totalorder %s99, %s115
    %p117 = scmp.eq.s32.totalorder %s21, 0
    %p118 = por %p116, %p117
    %s120 = sadd.s32 %s119, 1
    %p123 = scmp.eq.s32.totalorder %s15, 1
    %p124 = scmp.ne.s32.totalorder %s119, %s121
    %p125 = scmp.eq.s32.totalorder %s15, 0
    %p126 = por %p124, %p125
    %p127 = scmp.ne.s32.totalorder %s119, %s121
    %p128 = scmp.eq.s32.totalorder %s20, 1
    %p129 = por %p127, %p128
    %p130 = scmp.ne.s32.totalorder %s121, %s122
    %p131 = scmp.eq.s32.totalorder %s20, 0
    %p132 = por %p130, %p131
    %p133 = scmp.ne.s32.totalorder %s121, %s122
    %p134 = scmp.eq.s32.totalorder %s21, 1
    %p135 = por %p133, %p134
    %p137 = scmp.ne.s32.totalorder %s122, %s136
    %p138 = scmp.eq.s32.totalorder %s21, 0
    %p139 = por %p137, %p138
    %s141 = sadd.s32 %s140, 1
    %p144 = scmp.eq.s32.totalorder %s15, 1
    %p145 = scmp.ne.s32.totalorder %s140, %s142
    %p146 = scmp.eq.s32.totalorder %s15, 0
    %p147 = por %p145, %p146
    %p148 = scmp.ne.s32.totalorder %s140, %s142
    %p149 = scmp.eq.s32.totalorder %s20, 1
    %p150 = por %p148, %p149
    %p151 = scmp.ne.s32.totalorder %s142, %s143
    %p152 = scmp.eq.s32.totalorder %s20, 0
    %p153 = por %p151, %p152
    %p154 = scmp.ne.s32.totalorder %s142, %s143
    %p155 = scmp.eq.s32.totalorder %s21, 1
    %p156 = por %p154, %p155
    %p158 = scmp.ne.s32.totalorder %s143, %s157
    %p159 = scmp.eq.s32.totalorder %s21, 0
    %p160 = por %p158, %p159
    %s162 = sadd.s32 %s161, 1
    %p165 = scmp.eq.s32.totalorder %s15, 1
    %p166 = scmp.ne.s32.totalorder %s161, %s163
    %p167 = scmp.eq.s32.totalorder %s15, 0
    %p168 = por %p166, %p167
    %p169 = scmp.ne.s32.totalorder %s161, %s163
    %p170 = scmp.eq.s32.totalorder %s20, 1
    %p171 = por %p169, %p170
    %p172 = scmp.ne.s32.totalorder %s163, %s164
    %p173 = scmp.eq.s32.totalorder %s20, 0
    %p174 = por %p172, %p173
    %p175 = scmp.ne.s32.totalorder %s163, %s164
    %p176 = scmp.eq.s32.totalorder %s21, 1
    %p177 = por %p175, %p176
    %p179 = scmp.ne.s32.totalorder %s164, %s178
    %p180 = scmp.eq.s32.totalorder %s21, 0
    %p181 = por %p179, %p180
    %s182 = ssub.s32 %s22, %s34
    %s183 = ssub.s32 %s23, %s30
    %s184 = sor.u32 %s182, %s183
    %p185 = scmp.eq.s32.totalorder %s184, 0
    %s187 = sadd.s32 %s186, 1
    %s188 = scalar_select %p185, %s186, %s187
    %p191 = pneg %p185
    %p192 = scmp.eq.s32.totalorder %s15, 1
    %p193 = por %p191, %p192
    %p194 = scmp.ne.s32.totalorder %s186, %s189
    %p195 = scmp.eq.s32.totalorder %s15, 0
    %p196 = por %p194, %p195
    %p197 = scmp.ne.s32.totalorder %s186, %s189
    %p198 = scmp.eq.s32.totalorder %s20, 1
    %p199 = por %p197, %p198
    %p200 = scmp.ne.s32.totalorder %s189, %s190
    %p201 = scmp.eq.s32.totalorder %s20, 0
    %p202 = por %p200, %p201
    %p203 = scmp.ne.s32.totalorder %s189, %s190
    %p204 = scmp.eq.s32.totalorder %s21, 1
    %p205 = por %p203, %p204
    %p207 = scmp.ne.s32.totalorder %s190, %s206
    %p208 = scmp.eq.s32.totalorder %s21, 0
    %p209 = por %p207, %p208
    %s211 = sadd.s32 %s210, 1
    %p214 = scmp.eq.s32.totalorder %s15, 1
    %p215 = scmp.ne.s32.totalorder %s210, %s212
    %p216 = scmp.eq.s32.totalorder %s15, 0
    %p217 = por %p215, %p216
    %p218 = scmp.ne.s32.totalorder %s210, %s212
    %p219 = scmp.eq.s32.totalorder %s20, 1
    %p220 = por %p218, %p219
    %p221 = scmp.ne.s32.totalorder %s212, %s213
    %p222 = scmp.eq.s32.totalorder %s20, 0
    %p223 = por %p221, %p222
    %p224 = scmp.ne.s32.totalorder %s212, %s213
    %p225 = scmp.eq.s32.totalorder %s21, 1
    %p226 = por %p224, %p225
    %p228 = scmp.ne.s32.totalorder %s213, %s227
    %p229 = scmp.eq.s32.totalorder %s21, 0
    %p230 = por %p228, %p229
    %s232 = sadd.s32 %s231, 1
    %p235 = scmp.eq.s32.totalorder %s15, 1
    %p236 = scmp.ne.s32.totalorder %s231, %s233
    %p237 = scmp.eq.s32.totalorder %s15, 0
    %p238 = por %p236, %p237
    %p239 = scmp.ne.s32.totalorder %s231, %s233
    %p240 = scmp.eq.s32.totalorder %s20, 1
    %p241 = por %p239, %p240
    %p242 = scmp.ne.s32.totalorder %s233, %s234
    %p243 = scmp.eq.s32.totalorder %s20, 0
    %p244 = por %p242, %p243
    %p245 = scmp.ne.s32.totalorder %s233, %s234
    %p246 = scmp.eq.s32.totalorder %s21, 1
    %p247 = por %p245, %p246
    %p249 = scmp.ne.s32.totalorder %s234, %s248
    %p250 = scmp.eq.s32.totalorder %s21, 0
    %p251 = por %p249, %p250
    %s252 = ssub.s32 %s22, %s34
    %s253 = ssub.s32 %s23, %s30
    %s254 = sor.u32 %s252, %s253
    %p255 = scmp.eq.s32.totalorder %s254, 0
    %s257 = sadd.s32 %s256, 1
    %s258 = scalar_select %p255, %s256, %s257
    %p261 = pneg %p255
    %p262 = scmp.eq.s32.totalorder %s15, 1
    %p263 = por %p261, %p262
    %p264 = scmp.ne.s32.totalorder %s256, %s259
    %p265 = scmp.eq.s32.totalorder %s15, 0
    %p266 = por %p264, %p265
    %p267 = scmp.ne.s32.totalorder %s256, %s259
    %p268 = scmp.eq.s32.totalorder %s20, 1
    %p269 = por %p267, %p268
    %p270 = scmp.ne.s32.totalorder %s259, %s260
    %p271 = scmp.eq.s32.totalorder %s20, 0
    %p272 = por %p270, %p271
    %p273 = scmp.ne.s32.totalorder %s259, %s260
    %p274 = scmp.eq.s32.totalorder %s21, 1
    %p275 = por %p273, %p274
    %p277 = scmp.ne.s32.totalorder %s260, %s276
    %p278 = scmp.eq.s32.totalorder %s21, 0
    %p279 = por %p277, %p278
    %p280 = scmp.le.s32.totalorder 1, %s15
    %p281 = scmp.lt.s32.totalorder %s15, 3
    %p282 = pnand %p280, %p281
    %p283 = pneg %p282
    // Predicated region
    $region9: #{double_conv_forward.5} parent=5 // pred_check
      _
    $region10: #{double_conv_forward.5} parent=5 // pred_check_branch
      %285 = sbr.rel (%p282) target = $region12
    $region11: #{double_conv_forward.5} parent=5 // pred_region
      %s286 = ssub.s32 %s15, 1
      // Predicated region
      $region13: #{double_conv_forward.5} parent=11 // pred_check
        %p287 = pneg %p132
      $region14: #{double_conv_forward.5} parent=11 // pred_check_branch
        %289 = sbr.rel (%p287) target = $region16
      $region15: #{double_conv_forward.5} parent=11 // pred_region
        _
      $region16: #{double_conv_forward.5} parent=11 // pred_fallthru
        _
      // Predicated region
      $region17: #{double_conv_forward.5} parent=11 // pred_check
        %p290 = pneg %p153
      $region18: #{double_conv_forward.5} parent=11 // pred_check_branch
        %292 = sbr.rel (%p290) target = $region20
      $region19: #{double_conv_forward.5} parent=11 // pred_region
        _
      $region20: #{double_conv_forward.5} parent=11 // pred_fallthru
        _
      // Predicated region
      $region21: #{double_conv_forward.5} parent=11 // pred_check
        %p293 = pneg %p174
      $region22: #{double_conv_forward.5} parent=11 // pred_check_branch
        %295 = sbr.rel (%p293) target = $region24
      $region23: #{double_conv_forward.5} parent=11 // pred_region
        _
      $region24: #{double_conv_forward.5} parent=11 // pred_fallthru
        _
      // Predicated region
      $region25: #{double_conv_forward.5} parent=11 // pred_check
        %p296 = pneg %p223
      $region26: #{double_conv_forward.5} parent=11 // pred_check_branch
        %298 = sbr.rel (%p296) target = $region28
      $region27: #{double_conv_forward.5} parent=11 // pred_region
        _
      $region28: #{double_conv_forward.5} parent=11 // pred_fallthru
        _
      // Predicated region
      $region29: #{double_conv_forward.5} parent=11 // pred_check
        %p299 = pneg %p244
      $region30: #{double_conv_forward.5} parent=11 // pred_check_branch
        %301 = sbr.rel (%p299) target = $region32
      $region31: #{double_conv_forward.5} parent=11 // pred_region
        _
      $region32: #{double_conv_forward.5} parent=11 // pred_fallthru
        _
    $region12: #{double_conv_forward.5} parent=5 // pred_fallthru
      _
    %p302 = scmp.lt.s32.totalorder %s15, 2
    // Predicated region
    $region33: #{double_conv_forward.5} parent=5 // pred_check
      %p303 = pneg %p302
    $region34: #{double_conv_forward.5} parent=5 // pred_check_branch
      %305 = sbr.rel (%p303) target = $region36
    $region35: #{double_conv_forward.5} parent=5 // pred_region
      // Predicated region
      $region37: #{double_conv_forward.5} parent=35 // pred_check
        %p306 = pneg %p49
      $region38: #{double_conv_forward.5} parent=35 // pred_check_branch
        %308 = sbr.rel (%p306) target = $region40
      $region39: #{double_conv_forward.5} parent=35 // pred_region
        %s309 = smul.u32 16, %s23
        %p310 = scmp.lt.s32.totalorder %s22, 1
        %s311 = scalar_select %p310, %s22, 1
        %p312 = scmp.lt.s32.totalorder %s309, 15
        %s313 = scalar_select %p312, %s309, 15
        %s314 = smul.addr %s313, 2
        %s315 = smul.addr %s311, 32
        %s316 = sadd.s32 %s314, %s315
        %s317 = smul.addr %s316, 4
        %s318 = scalar_lea.vmem %s0, %s317
        %s319 = smul.u32 16, %s23
      $region40: #{double_conv_forward.5} parent=35 // pred_fallthru
        _
      // Predicated region
      $region41: #{double_conv_forward.5} parent=35 // pred_check
        %p320 = pneg %p77
      $region42: #{double_conv_forward.5} parent=35 // pred_check_branch
        %322 = sbr.rel (%p320) target = $region44
      $region43: #{double_conv_forward.5} parent=35 // pred_region
        %p323 = scmp.lt.s32.totalorder %s22, 1
        %s324 = scalar_select %p323, %s22, 1
        %p325 = scmp.lt.s32.totalorder %s23, 0
        %s326 = scalar_select %p325, %s23, 0
        %s327 = smul.addr %s326, 2
        %s328 = smul.addr %s324, 2
        %s329 = sadd.s32 %s327, %s328
        %s330 = smul.addr %s329, 4
        %s331 = scalar_lea.vmem %s1, %s330
      $region44: #{double_conv_forward.5} parent=35 // pred_fallthru
        _
      // Predicated region
      $region45: #{double_conv_forward.5} parent=35 // pred_check
        %p332 = pneg %p105
      $region46: #{double_conv_forward.5} parent=35 // pred_check_branch
        %334 = sbr.rel (%p332) target = $region48
      $region47: #{double_conv_forward.5} parent=35 // pred_region
        %p335 = scmp.lt.s32.totalorder %s22, 1
        %s336 = scalar_select %p335, %s22, 1
        %p337 = scmp.lt.s32.totalorder %s23, 0
        %s338 = scalar_select %p337, %s23, 0
        %s339 = smul.addr %s338, 2
        %s340 = smul.addr %s336, 2
        %s341 = sadd.s32 %s339, %s340
        %s342 = smul.addr %s341, 4
        %s343 = scalar_lea.vmem %s2, %s342
      $region48: #{double_conv_forward.5} parent=35 // pred_fallthru
        _
      // Predicated region
      $region49: #{double_conv_forward.5} parent=35 // pred_check
        %p344 = pneg %p196
      $region50: #{double_conv_forward.5} parent=35 // pred_check_branch
        %346 = sbr.rel (%p344) target = $region52
      $region51: #{double_conv_forward.5} parent=35 // pred_region
        %s347 = smul.u32 16, %s23
        %p348 = scmp.lt.s32.totalorder %s22, 1
        %s349 = scalar_select %p348, %s22, 1
        %p350 = scmp.lt.s32.totalorder %s347, 15
        %s351 = scalar_select %p350, %s347, 15
        %s352 = smul.addr %s351, 2
        %s353 = smul.addr %s349, 32
        %s354 = sadd.s32 %s352, %s353
        %s355 = smul.addr %s354, 4
        %s356 = scalar_lea.vmem %s6, %s355
        %s357 = smul.u32 16, %s23
      $region52: #{double_conv_forward.5} parent=35 // pred_fallthru
        _
    $region36: #{double_conv_forward.5} parent=5 // pred_fallthru
      _
    %p358 = scmp.le.s32.totalorder 1, %s15
    %p359 = scmp.lt.s32.totalorder %s15, 3
    %p360 = pnand %p358, %p359
    %p361 = pneg %p360
    // Predicated region
    $region53: #{double_conv_forward.5} parent=5 // pred_check
      _
    $region54: #{double_conv_forward.5} parent=5 // pred_check_branch
      %363 = sbr.rel (%p360) target = $region56
    $region55: #{double_conv_forward.5} parent=5 // pred_region
      %s364 = ssub.s32 %s15, 1
      %s365 = smul.u32 16, %s25
      %p366 = scmp.lt.s32.totalorder %s24, 1
      %s367 = scalar_select %p366, %s24, 1
      %p368 = scmp.lt.s32.totalorder %s365, 15
      %s369 = scalar_select %p368, %s365, 15
      %s370 = smul.addr %s369, 2
      %s371 = smul.addr %s367, 32
      %s372 = sadd.s32 %s370, %s371
      %s373 = smul.addr %s372, 4
      %s374 = scalar_lea.vmem %s0, %s373
      %p375 = pneg %p55
      %p376 = pneg %p52
      %p377 = scmp.lt.s32.totalorder %s24, 1
      %s378 = scalar_select %p377, %s24, 1
      %p379 = scmp.lt.s32.totalorder %s25, 0
      %s380 = scalar_select %p379, %s25, 0
      %s381 = smul.addr %s380, 2
      %s382 = smul.addr %s378, 2
      %s383 = sadd.s32 %s381, %s382
      %s384 = smul.addr %s383, 4
      %s385 = scalar_lea.vmem %s1, %s384
      %p386 = pneg %p83
      %p387 = pneg %p80
      %p388 = scmp.lt.s32.totalorder %s24, 1
      %s389 = scalar_select %p388, %s24, 1
      %p390 = scmp.lt.s32.totalorder %s25, 0
      %s391 = scalar_select %p390, %s25, 0
      %s392 = smul.addr %s391, 2
      %s393 = smul.addr %s389, 2
      %s394 = sadd.s32 %s392, %s393
      %s395 = smul.addr %s394, 4
      %s396 = scalar_lea.vmem %s2, %s395
      %p397 = pneg %p111
      %p398 = pneg %p108
      %p399 = pneg %p132
      %p400 = pneg %p129
      %p401 = pneg %p153
      %p402 = pneg %p150
      %p403 = pneg %p174
      %p404 = pneg %p171
      %s405 = smul.u32 16, %s25
      %p406 = scmp.lt.s32.totalorder %s24, 1
      %s407 = scalar_select %p406, %s24, 1
      %p408 = scmp.lt.s32.totalorder %s405, 15
      %s409 = scalar_select %p408, %s405, 15
      %s410 = smul.addr %s409, 2
      %s411 = smul.addr %s407, 32
      %s412 = sadd.s32 %s410, %s411
      %s413 = smul.addr %s412, 4
      %s414 = scalar_lea.vmem %s6, %s413
      %p415 = pneg %p202
      %p416 = pneg %p199
      %p417 = pneg %p223
      %p418 = pneg %p220
      %p419 = pneg %p244
      %p420 = pneg %p241
      %p421 = pneg %p272
      %p422 = pneg %p269
      %s423 = smul.u32 16, %s25
      %p424 = scmp.lt.s32.totalorder %s24, 1
      %s425 = scalar_select %p424, %s24, 1
      %p426 = scmp.lt.s32.totalorder %s423, 15
      %s427 = scalar_select %p426, %s423, 15
      %s428 = smul.addr %s427, 2
      %s429 = smul.addr %s425, 32
      %s430 = sadd.s32 %s428, %s429
      %s431 = smul.addr %s430, 8
      %s432 = scalar_lea.vmem %s9, %s431
      %s433 = smul.u32 16, %s25
      %p434 = scmp.lt.s32.totalorder %s24, 1
      %s435 = scalar_select %p434, %s24, 1
      %p436 = scmp.lt.s32.totalorder %s433, 15
      %s437 = scalar_select %p436, %s433, 15
      %s438 = smul.addr %s437, 2
      %s439 = smul.addr %s435, 32
      %s440 = sadd.s32 %s438, %s439
      %s441 = smul.addr %s440, 4
      %s442 = scalar_lea.vmem %s0, %s441
      %s443 = smul.u32 16, %s25
      %p444 = scmp.lt.s32.totalorder %s24, 1
      %s445 = scalar_select %p444, %s24, 1
      %p446 = scmp.lt.s32.totalorder %s25, 0
      %s447 = scalar_select %p446, %s25, 0
      %s448 = smul.addr %s447, 2
      %s449 = smul.addr %s445, 2
      %s450 = sadd.s32 %s448, %s449
      %s451 = smul.addr %s450, 4
      %s452 = scalar_lea.vmem %s1, %s451
      %p453 = scmp.lt.s32.totalorder %s24, 1
      %s454 = scalar_select %p453, %s24, 1
      %p455 = scmp.lt.s32.totalorder %s25, 0
      %s456 = scalar_select %p455, %s25, 0
      %s457 = smul.addr %s456, 2
      %s458 = smul.addr %s454, 2
      %s459 = sadd.s32 %s457, %s458
      %s460 = smul.addr %s459, 4
      %s461 = scalar_lea.vmem %s2, %s460
      %s462 = smul.u32 16, %s25
      %p463 = scmp.lt.s32.totalorder %s24, 1
      %s464 = scalar_select %p463, %s24, 1
      %p465 = scmp.lt.s32.totalorder %s462, 15
      %s466 = scalar_select %p465, %s462, 15
      %s467 = smul.addr %s466, 2
      %s468 = smul.addr %s464, 32
      %s469 = sadd.s32 %s467, %s468
      %s470 = smul.addr %s469, 4
      %s471 = scalar_lea.vmem %s6, %s470
      %s472 = smul.u32 16, %s25
      %s473 = smul.u32 16, %s25
      %p474 = scmp.lt.s32.totalorder %s24, 1
      %s475 = scalar_select %p474, %s24, 1
      %p476 = scmp.lt.s32.totalorder %s473, 15
      %s477 = scalar_select %p476, %s473, 15
      %s478 = smul.addr %s477, 2
      %s479 = smul.addr %s475, 32
      %s480 = sadd.s32 %s478, %s479
      %s481 = smul.addr %s480, 8
      %s482 = scalar_lea.vmem %s9, %s481
      %s483 = smul.u32 16, %s25
      %v485 = vld [vmem:[%s3] sm:$0x1]
      %v486 = vld [vmem:[%s4] sm:$0x1]
      %v487 = vld [vmem:[%s442] sm:$0xf]
      %v488 = vld [vmem:[%s442 + $0x4] sm:$0xf]
      %v489 = vld [vmem:[%s442 + $0x8] sm:$0xf]
      %v490 = vld [vmem:[%s442 + $0xc] sm:$0xf]
      %v491 = vld [vmem:[%s442 + $0x10] sm:$0xf]
      %v492 = vld [vmem:[%s442 + $0x14] sm:$0xf]
      %v493 = vld [vmem:[%s442 + $0x18] sm:$0xf]
      %v494 = vld [vmem:[%s442 + $0x1c] sm:$0xf]
      %v495 = vld [vmem:[%s442 + $0x20] sm:$0xf]
      %v496 = vld [vmem:[%s442 + $0x24] sm:$0xf]
      %v497 = vld [vmem:[%s442 + $0x28] sm:$0xf]
      %v498 = vld [vmem:[%s442 + $0x2c] sm:$0xf]
      %v499 = vld [vmem:[%s442 + $0x30] sm:$0xf]
      %v500 = vld [vmem:[%s442 + $0x34] sm:$0xf]
      %v501 = vld [vmem:[%s442 + $0x38] sm:$0xf]
      %v502 = vld [vmem:[%s442 + $0x3c] sm:$0xf]
      %v503 = vld [vmem:[%s442 + $0x40] sm:$0xf]
      %v504 = vld [vmem:[%s442 + $0x44] sm:$0xf]
      %v505 = vld [vmem:[%s442 + $0x48] sm:$0xf]
      %v506 = vld [vmem:[%s442 + $0x4c] sm:$0xf]
      %v507 = vld [vmem:[%s442 + $0x50] sm:$0xf]
      %v508 = vld [vmem:[%s442 + $0x54] sm:$0xf]
      %v509 = vld [vmem:[%s442 + $0x58] sm:$0xf]
      %v510 = vld [vmem:[%s442 + $0x5c] sm:$0xf]
      %v511 = vld [vmem:[%s442 + $0x60] sm:$0xf]
      %v512 = vld [vmem:[%s442 + $0x64] sm:$0xf]
      %v513 = vld [vmem:[%s442 + $0x68] sm:$0xf]
      %v514 = vld [vmem:[%s442 + $0x6c] sm:$0xf]
      %v515 = vld [vmem:[%s442 + $0x70] sm:$0xf]
      %v516 = vld [vmem:[%s442 + $0x74] sm:$0xf]
      %v517 = vld [vmem:[%s442 + $0x78] sm:$0xf]
      %v518 = vld [vmem:[%s442 + $0x7c] sm:$0xf]
      %v519 = vunpack.c.l.bf16 %v487
      %v520 = vunpack.c.l.bf16 %v488
      %v521 = vunpack.c.l.bf16 %v489
      %v522 = vunpack.c.l.bf16 %v490
      %v523 = vunpack.c.l.bf16 %v491
      %v524 = vunpack.c.l.bf16 %v492
      %v525 = vunpack.c.l.bf16 %v493
      %v526 = vunpack.c.l.bf16 %v494
      %v527 = vunpack.c.l.bf16 %v495
      %v528 = vunpack.c.l.bf16 %v496
      %v529 = vunpack.c.l.bf16 %v497
      %v530 = vunpack.c.l.bf16 %v498
      %v531 = vunpack.c.l.bf16 %v499
      %v532 = vunpack.c.l.bf16 %v500
      %v533 = vunpack.c.l.bf16 %v501
      %v534 = vunpack.c.l.bf16 %v502
      %v535 = vunpack.c.l.bf16 %v503
      %v536 = vunpack.c.l.bf16 %v504
      %v537 = vunpack.c.l.bf16 %v505
      %v538 = vunpack.c.l.bf16 %v506
      %v539 = vunpack.c.l.bf16 %v507
      %v540 = vunpack.c.l.bf16 %v508
      %v541 = vunpack.c.l.bf16 %v509
      %v542 = vunpack.c.l.bf16 %v510
      %v543 = vunpack.c.l.bf16 %v511
      %v544 = vunpack.c.l.bf16 %v512
      %v545 = vunpack.c.l.bf16 %v513
      %v546 = vunpack.c.l.bf16 %v514
      %v547 = vunpack.c.l.bf16 %v515
      %v548 = vunpack.c.l.bf16 %v516
      %v549 = vunpack.c.l.bf16 %v517
      %v550 = vunpack.c.l.bf16 %v518
      %v552 = vlaneseq
      %v553 = vshrl.u32 %v552, 7
      %v554 = vsub.s32 0, %v553
      %v555 = vrot.slane %v485, %v554
      %v557 = vmul.f32 %v519, %v555
      %v558 = vmul.f32 %v520, %v555
      %v559 = vmul.f32 %v521, %v555
      %v560 = vmul.f32 %v522, %v555
      %v561 = vmul.f32 %v523, %v555
      %v562 = vmul.f32 %v524, %v555
      %v563 = vmul.f32 %v525, %v555
      %v564 = vmul.f32 %v526, %v555
      %v565 = vmul.f32 %v527, %v555
      %v566 = vmul.f32 %v528, %v555
      %v567 = vmul.f32 %v529, %v555
      %v568 = vmul.f32 %v530, %v555
      %v569 = vmul.f32 %v531, %v555
      %v570 = vmul.f32 %v532, %v555
      %v571 = vmul.f32 %v533, %v555
      %v572 = vmul.f32 %v534, %v555
      %v573 = vmul.f32 %v535, %v555
      %v574 = vmul.f32 %v536, %v555
      %v575 = vmul.f32 %v537, %v555
      %v576 = vmul.f32 %v538, %v555
      %v577 = vmul.f32 %v539, %v555
      %v578 = vmul.f32 %v540, %v555
      %v579 = vmul.f32 %v541, %v555
      %v580 = vmul.f32 %v542, %v555
      %v581 = vmul.f32 %v543, %v555
      %v582 = vmul.f32 %v544, %v555
      %v583 = vmul.f32 %v545, %v555
      %v584 = vmul.f32 %v546, %v555
      %v585 = vmul.f32 %v547, %v555
      %v586 = vmul.f32 %v548, %v555
      %v587 = vmul.f32 %v549, %v555
      %v588 = vmul.f32 %v550, %v555
      %v590 = vlaneseq
      %v591 = vshrl.u32 %v590, 7
      %v592 = vsub.s32 0, %v591
      %v593 = vrot.slane %v486, %v592
      %v595 = vadd.f32 %v557, %v593
      %v596 = vadd.f32 %v558, %v593
      %v597 = vadd.f32 %v559, %v593
      %v598 = vadd.f32 %v560, %v593
      %v599 = vadd.f32 %v561, %v593
      %v600 = vadd.f32 %v562, %v593
      %v601 = vadd.f32 %v563, %v593
      %v602 = vadd.f32 %v564, %v593
      %v603 = vadd.f32 %v565, %v593
      %v604 = vadd.f32 %v566, %v593
      %v605 = vadd.f32 %v567, %v593
      %v606 = vadd.f32 %v568, %v593
      %v607 = vadd.f32 %v569, %v593
      %v608 = vadd.f32 %v570, %v593
      %v609 = vadd.f32 %v571, %v593
      %v610 = vadd.f32 %v572, %v593
      %v611 = vadd.f32 %v573, %v593
      %v612 = vadd.f32 %v574, %v593
      %v613 = vadd.f32 %v575, %v593
      %v614 = vadd.f32 %v576, %v593
      %v615 = vadd.f32 %v577, %v593
      %v616 = vadd.f32 %v578, %v593
      %v617 = vadd.f32 %v579, %v593
      %v618 = vadd.f32 %v580, %v593
      %v619 = vadd.f32 %v581, %v593
      %v620 = vadd.f32 %v582, %v593
      %v621 = vadd.f32 %v583, %v593
      %v622 = vadd.f32 %v584, %v593
      %v623 = vadd.f32 %v585, %v593
      %v624 = vadd.f32 %v586, %v593
      %v625 = vadd.f32 %v587, %v593
      %v626 = vadd.f32 %v588, %v593
      %v627 = vpack.c.bf16 %v596, %v595
      %v628 = vpack.c.bf16 %v598, %v597
      %v629 = vpack.c.bf16 %v600, %v599
      %v630 = vpack.c.bf16 %v602, %v601
      %v631 = vpack.c.bf16 %v604, %v603
      %v632 = vpack.c.bf16 %v606, %v605
      %v633 = vpack.c.bf16 %v608, %v607
      %v634 = vpack.c.bf16 %v610, %v609
      %v635 = vpack.c.bf16 %v612, %v611
      %v636 = vpack.c.bf16 %v614, %v613
      %v637 = vpack.c.bf16 %v616, %v615
      %v638 = vpack.c.bf16 %v618, %v617
      %v639 = vpack.c.bf16 %v620, %v619
      %v640 = vpack.c.bf16 %v622, %v621
      %v641 = vpack.c.bf16 %v624, %v623
      %v642 = vpack.c.bf16 %v626, %v625
      %v659 = vunpack.c.l.b16 %v627
      %v660 = vunpack.c.h.b16 %v627
      %v661 = vunpack.c.l.b16 %v628
      %v662 = vunpack.c.h.b16 %v628
      %v663 = vunpack.c.l.b16 %v629
      %v664 = vunpack.c.h.b16 %v629
      %v665 = vunpack.c.l.b16 %v630
      %v666 = vunpack.c.h.b16 %v630
      %v667 = vunpack.c.l.b16 %v631
      %v668 = vunpack.c.h.b16 %v631
      %v669 = vunpack.c.l.b16 %v632
      %v670 = vunpack.c.h.b16 %v632
      %v671 = vunpack.c.l.b16 %v633
      %v672 = vunpack.c.h.b16 %v633
      %v673 = vunpack.c.l.b16 %v634
      %v674 = vunpack.c.h.b16 %v634
      %v675 = vunpack.c.l.b16 %v635
      %v676 = vunpack.c.h.b16 %v635
      %v677 = vunpack.c.l.b16 %v636
      %v678 = vunpack.c.h.b16 %v636
      %v679 = vunpack.c.l.b16 %v637
      %v680 = vunpack.c.h.b16 %v637
      %v681 = vunpack.c.l.b16 %v638
      %v682 = vunpack.c.h.b16 %v638
      %v683 = vunpack.c.l.b16 %v639
      %v684 = vunpack.c.h.b16 %v639
      %v685 = vunpack.c.l.b16 %v640
      %v686 = vunpack.c.h.b16 %v640
      %v687 = vunpack.c.l.b16 %v641
      %v688 = vunpack.c.h.b16 %v641
      %v689 = vunpack.c.l.b16 %v642
      %v690 = vunpack.c.h.b16 %v642
      %v691 = vpack.c.b16 %v659, %v659
      %v692 = vpack.c.b16 %v660, %v660
      %v693 = vpack.c.b16 %v661, %v661
      %v694 = vpack.c.b16 %v662, %v662
      %v695 = vpack.c.b16 %v663, %v663
      %v696 = vpack.c.b16 %v664, %v664
      %v697 = vpack.c.b16 %v665, %v665
      %v698 = vpack.c.b16 %v666, %v666
      %v699 = vpack.c.b16 %v667, %v667
      %v700 = vpack.c.b16 %v668, %v668
      %v701 = vpack.c.b16 %v669, %v669
      %v702 = vpack.c.b16 %v670, %v670
      %v703 = vpack.c.b16 %v671, %v671
      %v704 = vpack.c.b16 %v672, %v672
      %v705 = vpack.c.b16 %v673, %v673
      %v706 = vpack.c.b16 %v674, %v674
      %v707 = vpack.c.b16 %v675, %v675
      %v708 = vpack.c.b16 %v676, %v676
      %v709 = vpack.c.b16 %v677, %v677
      %v710 = vpack.c.b16 %v678, %v678
      %v711 = vpack.c.b16 %v679, %v679
      %v712 = vpack.c.b16 %v680, %v680
      %v713 = vpack.c.b16 %v681, %v681
      %v714 = vpack.c.b16 %v682, %v682
      %v715 = vpack.c.b16 %v683, %v683
      %v716 = vpack.c.b16 %v684, %v684
      %v717 = vpack.c.b16 %v685, %v685
      %v718 = vpack.c.b16 %v686, %v686
      %v719 = vpack.c.b16 %v687, %v687
      %v720 = vpack.c.b16 %v688, %v688
      %v721 = vpack.c.b16 %v689, %v689
      %v722 = vpack.c.b16 %v690, %v690
      %vm723 = vsmask.f32 256
      %vm724 = vsmask.f32 4368
      %vm725 = vmor %vm723, %vm724
      %v727 = vshrl.u32 %v691, 16
      %v729 = vrot.slane %v727, 7
      %v730 = vshll.u32 %v691, 16
      %v732 = vor.u32 %v729, %v730
      %v733 = vrot.slane %v729, 4
      %v735 = vshrl.u32 %v692, 16
      %v737 = vrot.slane %v735, 7
      %v738 = vshll.u32 %v692, 16
      %v740 = vor.u32 %v737, %v738
      %v741 = vsel %vm725, %v733, %v740
      %v742 = vrot.slane %v737, 4
      %v744 = vshrl.u32 %v693, 16
      %v746 = vrot.slane %v744, 7
      %v747 = vshll.u32 %v693, 16
      %v749 = vor.u32 %v746, %v747
      %v750 = vrot.slane %v746, 4
      %v752 = vshrl.u32 %v694, 16
      %v754 = vrot.slane %v752, 7
      %v755 = vshll.u32 %v694, 16
      %v757 = vor.u32 %v754, %v755
      %v758 = vsel %vm725, %v750, %v757
      %v759 = vrot.slane %v754, 4
      %v761 = vshrl.u32 %v695, 16
      %v763 = vrot.slane %v761, 7
      %v764 = vshll.u32 %v695, 16
      %v766 = vor.u32 %v763, %v764
      %v767 = vrot.slane %v763, 4
      %v769 = vshrl.u32 %v696, 16
      %v771 = vrot.slane %v769, 7
      %v772 = vshll.u32 %v696, 16
      %v774 = vor.u32 %v771, %v772
      %v775 = vsel %vm725, %v767, %v774
      %v776 = vrot.slane %v771, 4
      %v778 = vshrl.u32 %v697, 16
      %v780 = vrot.slane %v778, 7
      %v781 = vshll.u32 %v697, 16
      %v783 = vor.u32 %v780, %v781
      %v784 = vrot.slane %v780, 4
      %v786 = vshrl.u32 %v698, 16
      %v788 = vrot.slane %v786, 7
      %v789 = vshll.u32 %v698, 16
      %v791 = vor.u32 %v788, %v789
      %v792 = vsel %vm725, %v784, %v791
      %v793 = vrot.slane %v788, 4
      %v795 = vshrl.u32 %v699, 16
      %v797 = vrot.slane %v795, 7
      %v798 = vshll.u32 %v699, 16
      %v800 = vor.u32 %v797, %v798
      %v801 = vrot.slane %v797, 4
      %v803 = vshrl.u32 %v700, 16
      %v805 = vrot.slane %v803, 7
      %v806 = vshll.u32 %v700, 16
      %v808 = vor.u32 %v805, %v806
      %v809 = vsel %vm725, %v801, %v808
      %v810 = vrot.slane %v805, 4
      %v812 = vshrl.u32 %v701, 16
      %v814 = vrot.slane %v812, 7
      %v815 = vshll.u32 %v701, 16
      %v817 = vor.u32 %v814, %v815
      %v818 = vrot.slane %v814, 4
      %v820 = vshrl.u32 %v702, 16
      %v822 = vrot.slane %v820, 7
      %v823 = vshll.u32 %v702, 16
      %v825 = vor.u32 %v822, %v823
      %v826 = vsel %vm725, %v818, %v825
      %v827 = vrot.slane %v822, 4
      %v829 = vshrl.u32 %v703, 16
      %v831 = vrot.slane %v829, 7
      %v832 = vshll.u32 %v703, 16
      %v834 = vor.u32 %v831, %v832
      %v835 = vrot.slane %v831, 4
      %v837 = vshrl.u32 %v704, 16
      %v839 = vrot.slane %v837, 7
      %v840 = vshll.u32 %v704, 16
      %v842 = vor.u32 %v839, %v840
      %v843 = vsel %vm725, %v835, %v842
      %v844 = vrot.slane %v839, 4
      %v846 = vshrl.u32 %v705, 16
      %v848 = vrot.slane %v846, 7
      %v849 = vshll.u32 %v705, 16
      %v851 = vor.u32 %v848, %v849
      %v852 = vrot.slane %v848, 4
      %v854 = vshrl.u32 %v706, 16
      %v856 = vrot.slane %v854, 7
      %v857 = vshll.u32 %v706, 16
      %v859 = vor.u32 %v856, %v857
      %v860 = vsel %vm725, %v852, %v859
      %v861 = vrot.slane %v856, 4
      %v863 = vshrl.u32 %v707, 16
      %v865 = vrot.slane %v863, 7
      %v866 = vshll.u32 %v707, 16
      %v868 = vor.u32 %v865, %v866
      %v869 = vrot.slane %v865, 4
      %v871 = vshrl.u32 %v708, 16
      %v873 = vrot.slane %v871, 7
      %v874 = vshll.u32 %v708, 16
      %v876 = vor.u32 %v873, %v874
      %v877 = vsel %vm725, %v869, %v876
      %v878 = vrot.slane %v873, 4
      %v880 = vshrl.u32 %v709, 16
      %v882 = vrot.slane %v880, 7
      %v883 = vshll.u32 %v709, 16
      %v885 = vor.u32 %v882, %v883
      %v886 = vrot.slane %v882, 4
      %v888 = vshrl.u32 %v710, 16
      %v890 = vrot.slane %v888, 7
      %v891 = vshll.u32 %v710, 16
      %v893 = vor.u32 %v890, %v891
      %v894 = vsel %vm725, %v886, %v893
      %v895 = vrot.slane %v890, 4
      %v897 = vshrl.u32 %v711, 16
      %v899 = vrot.slane %v897, 7
      %v900 = vshll.u32 %v711, 16
      %v902 = vor.u32 %v899, %v900
      %v903 = vrot.slane %v899, 4
      %v905 = vshrl.u32 %v712, 16
      %v907 = vrot.slane %v905, 7
      %v908 = vshll.u32 %v712, 16
      %v910 = vor.u32 %v907, %v908
      %v911 = vsel %vm725, %v903, %v910
      %v912 = vrot.slane %v907, 4
      %v914 = vshrl.u32 %v713, 16
      %v916 = vrot.slane %v914, 7
      %v917 = vshll.u32 %v713, 16
      %v919 = vor.u32 %v916, %v917
      %v920 = vrot.slane %v916, 4
      %v922 = vshrl.u32 %v714, 16
      %v924 = vrot.slane %v922, 7
      %v925 = vshll.u32 %v714, 16
      %v927 = vor.u32 %v924, %v925
      %v928 = vsel %vm725, %v920, %v927
      %v929 = vrot.slane %v924, 4
      %v931 = vshrl.u32 %v715, 16
      %v933 = vrot.slane %v931, 7
      %v934 = vshll.u32 %v715, 16
      %v936 = vor.u32 %v933, %v934
      %v937 = vrot.slane %v933, 4
      %v939 = vshrl.u32 %v716, 16
      %v941 = vrot.slane %v939, 7
      %v942 = vshll.u32 %v716, 16
      %v944 = vor.u32 %v941, %v942
      %v945 = vsel %vm725, %v937, %v944
      %v946 = vrot.slane %v941, 4
      %v948 = vshrl.u32 %v717, 16
      %v950 = vrot.slane %v948, 7
      %v951 = vshll.u32 %v717, 16
      %v953 = vor.u32 %v950, %v951
      %v954 = vrot.slane %v950, 4
      %v956 = vshrl.u32 %v718, 16
      %v958 = vrot.slane %v956, 7
      %v959 = vshll.u32 %v718, 16
      %v961 = vor.u32 %v958, %v959
      %v962 = vsel %vm725, %v954, %v961
      %v963 = vrot.slane %v958, 4
      %v965 = vshrl.u32 %v719, 16
      %v967 = vrot.slane %v965, 7
      %v968 = vshll.u32 %v719, 16
      %v970 = vor.u32 %v967, %v968
      %v971 = vrot.slane %v967, 4
      %v973 = vshrl.u32 %v720, 16
      %v975 = vrot.slane %v973, 7
      %v976 = vshll.u32 %v720, 16
      %v978 = vor.u32 %v975, %v976
      %v979 = vsel %vm725, %v971, %v978
      %v980 = vrot.slane %v975, 4
      %v982 = vshrl.u32 %v721, 16
      %v984 = vrot.slane %v982, 7
      %v985 = vshll.u32 %v721, 16
      %v987 = vor.u32 %v984, %v985
      %v988 = vrot.slane %v984, 4
      %v990 = vshrl.u32 %v722, 16
      %v992 = vrot.slane %v990, 7
      %v993 = vshll.u32 %v722, 16
      %v995 = vor.u32 %v992, %v993
      %v996 = vsel %vm725, %v988, %v995
      %v997 = vrot.slane %v992, 4
      %s1046 = scalar_lea.vmem [#allocation2], 12
      %vm1047 = vcmask 1043456
      %vm1048 = vsmask.f32 7938
      %vm1049 = vmand %vm1047, %vm1048
      %v1050 = vld [vmem:[%s1046] sm:$0xf]
      %v1051 = vsel %vm1049, %v732, %v1050
      %1052 = vst [vmem:[%s1046] sm:$0xf] %v1051
      %1053 = vst [vmem:[%s1046 + $0x4] sm:$0xf] %v741
      %vm1054 = vcmask 1040384
      %vm1055 = vmand %vm1054, %vm723
      %v1056 = vld [vmem:[%s1046 + $0x8] sm:$0x1]
      %v1057 = vsel %vm1055, %v742, %v1056
      %1058 = vst [vmem:[%s1046 + $0x8] sm:$0x1] %v1057
      %v1059 = vld [vmem:[%s1046 + $0xc] sm:$0xf]
      %v1060 = vsel %vm1049, %v749, %v1059
      %1061 = vst [vmem:[%s1046 + $0xc] sm:$0xf] %v1060
      %1062 = vst [vmem:[%s1046 + $0x10] sm:$0xf] %v758
      %v1063 = vld [vmem:[%s1046 + $0x14] sm:$0x1]
      %v1064 = vsel %vm1055, %v759, %v1063
      %1065 = vst [vmem:[%s1046 + $0x14] sm:$0x1] %v1064
      %v1066 = vld [vmem:[%s1046 + $0x18] sm:$0xf]
      %v1067 = vsel %vm1049, %v766, %v1066
      %1068 = vst [vmem:[%s1046 + $0x18] sm:$0xf] %v1067
      %1069 = vst [vmem:[%s1046 + $0x1c] sm:$0xf] %v775
      %v1070 = vld [vmem:[%s1046 + $0x20] sm:$0x1]
      %v1071 = vsel %vm1055, %v776, %v1070
      %1072 = vst [vmem:[%s1046 + $0x20] sm:$0x1] %v1071
      %v1073 = vld [vmem:[%s1046 + $0x24] sm:$0xf]
      %v1074 = vsel %vm1049, %v783, %v1073
      %1075 = vst [vmem:[%s1046 + $0x24] sm:$0xf] %v1074
      %1076 = vst [vmem:[%s1046 + $0x28] sm:$0xf] %v792
      %v1077 = vld [vmem:[%s1046 + $0x2c] sm:$0x1]
      %v1078 = vsel %vm1055, %v793, %v1077
      %1079 = vst [vmem:[%s1046 + $0x2c] sm:$0x1] %v1078
      %v1080 = vld [vmem:[%s1046 + $0x30] sm:$0xf]
      %v1081 = vsel %vm1049, %v800, %v1080
      %1082 = vst [vmem:[%s1046 + $0x30] sm:$0xf] %v1081
      %1083 = vst [vmem:[%s1046 + $0x34] sm:$0xf] %v809
      %v1084 = vld [vmem:[%s1046 + $0x38] sm:$0x1]
      %v1085 = vsel %vm1055, %v810, %v1084
      %1086 = vst [vmem:[%s1046 + $0x38] sm:$0x1] %v1085
      %v1087 = vld [vmem:[%s1046 + $0x3c] sm:$0xf]
      %v1088 = vsel %vm1049, %v817, %v1087
      %1089 = vst [vmem:[%s1046 + $0x3c] sm:$0xf] %v1088
      %1090 = vst [vmem:[%s1046 + $0x40] sm:$0xf] %v826
      %v1091 = vld [vmem:[%s1046 + $0x44] sm:$0x1]
      %v1092 = vsel %vm1055, %v827, %v1091
      %1093 = vst [vmem:[%s1046 + $0x44] sm:$0x1] %v1092
      %v1094 = vld [vmem:[%s1046 + $0x48] sm:$0xf]
      %v1095 = vsel %vm1049, %v834, %v1094
      %1096 = vst [vmem:[%s1046 + $0x48] sm:$0xf] %v1095
      %1097 = vst [vmem:[%s1046 + $0x4c] sm:$0xf] %v843
      %v1098 = vld [vmem:[%s1046 + $0x50] sm:$0x1]
      %v1099 = vsel %vm1055, %v844, %v1098
      %1100 = vst [vmem:[%s1046 + $0x50] sm:$0x1] %v1099
      %v1101 = vld [vmem:[%s1046 + $0x54] sm:$0xf]
      %v1102 = vsel %vm1049, %v851, %v1101
      %1103 = vst [vmem:[%s1046 + $0x54] sm:$0xf] %v1102
      %1104 = vst [vmem:[%s1046 + $0x58] sm:$0xf] %v860
      %v1105 = vld [vmem:[%s1046 + $0x5c] sm:$0x1]
      %v1106 = vsel %vm1055, %v861, %v1105
      %1107 = vst [vmem:[%s1046 + $0x5c] sm:$0x1] %v1106
      %v1108 = vld [vmem:[%s1046 + $0x60] sm:$0xf]
      %v1109 = vsel %vm1049, %v868, %v1108
      %1110 = vst [vmem:[%s1046 + $0x60] sm:$0xf] %v1109
      %1111 = vst [vmem:[%s1046 + $0x64] sm:$0xf] %v877
      %v1112 = vld [vmem:[%s1046 + $0x68] sm:$0x1]
      %v1113 = vsel %vm1055, %v878, %v1112
      %1114 = vst [vmem:[%s1046 + $0x68] sm:$0x1] %v1113
      %v1115 = vld [vmem:[%s1046 + $0x6c] sm:$0xf]
      %v1116 = vsel %vm1049, %v885, %v1115
      %1117 = vst [vmem:[%s1046 + $0x6c] sm:$0xf] %v1116
      %1118 = vst [vmem:[%s1046 + $0x70] sm:$0xf] %v894
      %v1119 = vld [vmem:[%s1046 + $0x74] sm:$0x1]
      %v1120 = vsel %vm1055, %v895, %v1119
      %1121 = vst [vmem:[%s1046 + $0x74] sm:$0x1] %v1120
      %v1122 = vld [vmem:[%s1046 + $0x78] sm:$0xf]
      %v1123 = vsel %vm1049, %v902, %v1122
      %1124 = vst [vmem:[%s1046 + $0x78] sm:$0xf] %v1123
      %1125 = vst [vmem:[%s1046 + $0x7c] sm:$0xf] %v911
      %v1126 = vld [vmem:[%s1046 + $0x80] sm:$0x1]
      %v1127 = vsel %vm1055, %v912, %v1126
      %1128 = vst [vmem:[%s1046 + $0x80] sm:$0x1] %v1127
      %v1129 = vld [vmem:[%s1046 + $0x84] sm:$0xf]
      %v1130 = vsel %vm1049, %v919, %v1129
      %1131 = vst [vmem:[%s1046 + $0x84] sm:$0xf] %v1130
      %1132 = vst [vmem:[%s1046 + $0x88] sm:$0xf] %v928
      %v1133 = vld [vmem:[%s1046 + $0x8c] sm:$0x1]
      %v1134 = vsel %vm1055, %v929, %v1133
      %1135 = vst [vmem:[%s1046 + $0x8c] sm:$0x1] %v1134
      %v1136 = vld [vmem:[%s1046 + $0x90] sm:$0xf]
      %v1137 = vsel %vm1049, %v936, %v1136
      %1138 = vst [vmem:[%s1046 + $0x90] sm:$0xf] %v1137
      %1139 = vst [vmem:[%s1046 + $0x94] sm:$0xf] %v945
      %v1140 = vld [vmem:[%s1046 + $0x98] sm:$0x1]
      %v1141 = vsel %vm1055, %v946, %v1140
      %1142 = vst [vmem:[%s1046 + $0x98] sm:$0x1] %v1141
      %v1143 = vld [vmem:[%s1046 + $0x9c] sm:$0xf]
      %v1144 = vsel %vm1049, %v953, %v1143
      %1145 = vst [vmem:[%s1046 + $0x9c] sm:$0xf] %v1144
      %1146 = vst [vmem:[%s1046 + $0xa0] sm:$0xf] %v962
      %v1147 = vld [vmem:[%s1046 + $0xa4] sm:$0x1]
      %v1148 = vsel %vm1055, %v963, %v1147
      %1149 = vst [vmem:[%s1046 + $0xa4] sm:$0x1] %v1148
      %v1150 = vld [vmem:[%s1046 + $0xa8] sm:$0xf]
      %v1151 = vsel %vm1049, %v970, %v1150
      %1152 = vst [vmem:[%s1046 + $0xa8] sm:$0xf] %v1151
      %1153 = vst [vmem:[%s1046 + $0xac] sm:$0xf] %v979
      %v1154 = vld [vmem:[%s1046 + $0xb0] sm:$0x1]
      %v1155 = vsel %vm1055, %v980, %v1154
      %1156 = vst [vmem:[%s1046 + $0xb0] sm:$0x1] %v1155
      %v1157 = vld [vmem:[%s1046 + $0xb4] sm:$0xf]
      %v1158 = vsel %vm1049, %v987, %v1157
      %1159 = vst [vmem:[%s1046 + $0xb4] sm:$0xf] %v1158
      %1160 = vst [vmem:[%s1046 + $0xb8] sm:$0xf] %v996
      %v1161 = vld [vmem:[%s1046 + $0xbc] sm:$0x1]
      %v1162 = vsel %vm1055, %v997, %v1161
      %1163 = vst [vmem:[%s1046 + $0xbc] sm:$0x1] %v1162
      %p1164 = scmp.gt.s32.totalorder %s25, 0
      %s1165 = scalar_select %p1164, 1, 0
      %s1166 = scvt.s32.f32 %s1165
      %p1167 = scmp.lt.s32.totalorder %s25, 0
      %s1168 = scalar_select %p1167, 1, 0
      %s1169 = scvt.s32.f32 %s1168
      %v1170 = vld [vmem:[%s452] sm:$0xf]
      %v1171 = vld [vmem:[%s452 + $0x4] sm:$0xf]
      %v1172 = vunpack.c.l.bf16 %v1170
      %v1173 = vunpack.c.l.bf16 %v1171
      %v1174 = vmul.f32 %v1172, %v555
      %v1175 = vmul.f32 %v1173, %v555
      %v1176 = vadd.f32 %v1174, %v593
      %v1177 = vadd.f32 %v1175, %v593
      %v1178 = vstv %s1166
      %v1179 = vmul.f32 %v1176, %v1178
      %v1180 = vmul.f32 %v1177, %v1178
      %v1181 = vld [vmem:[%s461] sm:$0xf]
      %v1182 = vld [vmem:[%s461 + $0x4] sm:$0xf]
      %v1183 = vunpack.c.l.bf16 %v1181
      %v1184 = vunpack.c.l.bf16 %v1182
      %v1185 = vmul.f32 %v1183, %v555
      %v1186 = vmul.f32 %v1184, %v555
      %v1187 = vadd.f32 %v1185, %v593
      %v1188 = vadd.f32 %v1186, %v593
      %v1189 = vstv %s1169
      %v1190 = vmul.f32 %v1187, %v1189
      %v1191 = vmul.f32 %v1188, %v1189
      %v1192 = vpack.c.bf16 %v1180, %v1179
      %v1194 = vunpack.c.l.b16 %v1192
      %v1195 = vunpack.c.h.b16 %v1192
      %v1196 = vpack.c.b16 %v1194, %v1194
      %v1197 = vpack.c.b16 %v1195, %v1195
      %v1199 = vshrl.u32 %v1196, 16
      %v1201 = vrot.slane %v1199, 7
      %v1202 = vshll.u32 %v1196, 16
      %v1204 = vor.u32 %v1201, %v1202
      %v1205 = vrot.slane %v1201, 4
      %v1207 = vshrl.u32 %v1197, 16
      %v1209 = vrot.slane %v1207, 7
      %v1210 = vshll.u32 %v1197, 16
      %v1212 = vor.u32 %v1209, %v1210
      %v1213 = vsel %vm725, %v1205, %v1212
      %v1214 = vrot.slane %v1209, 4
      %v1218 = vld [vmem:[#allocation2] sm:$0xf]
      %v1219 = vsel %vm1049, %v1204, %v1218
      %1220 = vst [vmem:[#allocation2] sm:$0xf] %v1219
      %1221 = vst [vmem:[#allocation2 + $0x4] sm:$0xf] %v1213
      %v1222 = vld [vmem:[#allocation2 + $0x8] sm:$0x1]
      %v1223 = vsel %vm1055, %v1214, %v1222
      %1224 = vst [vmem:[#allocation2 + $0x8] sm:$0x1] %v1223
      %v1225 = vpack.c.bf16 %v1191, %v1190
      %v1227 = vunpack.c.l.b16 %v1225
      %v1228 = vunpack.c.h.b16 %v1225
      %v1229 = vpack.c.b16 %v1227, %v1227
      %v1230 = vpack.c.b16 %v1228, %v1228
      %v1232 = vshrl.u32 %v1229, 16
      %v1234 = vrot.slane %v1232, 7
      %v1235 = vshll.u32 %v1229, 16
      %v1237 = vor.u32 %v1234, %v1235
      %v1238 = vrot.slane %v1234, 4
      %v1240 = vshrl.u32 %v1230, 16
      %v1242 = vrot.slane %v1240, 7
      %v1243 = vshll.u32 %v1230, 16
      %v1245 = vor.u32 %v1242, %v1243
      %v1246 = vsel %vm725, %v1238, %v1245
      %v1247 = vrot.slane %v1242, 4
      %s1251 = scalar_lea.vmem [#allocation2], 204
      %v1252 = vld [vmem:[%s1251] sm:$0xf]
      %v1253 = vsel %vm1049, %v1237, %v1252
      %1254 = vst [vmem:[%s1251] sm:$0xf] %v1253
      %1255 = vst [vmem:[%s1251 + $0x4] sm:$0xf] %v1246
      %v1256 = vld [vmem:[%s1251 + $0x8] sm:$0x1]
      %v1257 = vsel %vm1055, %v1247, %v1256
      %1258 = vst [vmem:[%s1251 + $0x8] sm:$0x1] %v1257
      %v1259 = vld [vmem:[#allocation2] sm:$0x1]
      %v1260 = vsel %vm1055, 0, %v1259
      %1261 = vst [vmem:[#allocation2] sm:$0x1] %v1260
      %v1262 = vld [vmem:[#allocation2 + $0xc] sm:$0x1]
      %v1263 = vsel %vm1055, 0, %v1262
      %1264 = vst [vmem:[#allocation2 + $0xc] sm:$0x1] %v1263
      %v1265 = vld [vmem:[#allocation2 + $0x18] sm:$0x1]
      %v1266 = vsel %vm1055, 0, %v1265
      %1267 = vst [vmem:[#allocation2 + $0x18] sm:$0x1] %v1266
      %v1268 = vld [vmem:[#allocation2 + $0x24] sm:$0x1]
      %v1269 = vsel %vm1055, 0, %v1268
      %1270 = vst [vmem:[#allocation2 + $0x24] sm:$0x1] %v1269
      %v1271 = vld [vmem:[#allocation2 + $0x30] sm:$0x1]
      %v1272 = vsel %vm1055, 0, %v1271
      %1273 = vst [vmem:[#allocation2 + $0x30] sm:$0x1] %v1272
      %v1274 = vld [vmem:[#allocation2 + $0x3c] sm:$0x1]
      %v1275 = vsel %vm1055, 0, %v1274
      %1276 = vst [vmem:[#allocation2 + $0x3c] sm:$0x1] %v1275
      %v1277 = vld [vmem:[#allocation2 + $0x48] sm:$0x1]
      %v1278 = vsel %vm1055, 0, %v1277
      %1279 = vst [vmem:[#allocation2 + $0x48] sm:$0x1] %v1278
      %v1280 = vld [vmem:[#allocation2 + $0x54] sm:$0x1]
      %v1281 = vsel %vm1055, 0, %v1280
      %1282 = vst [vmem:[#allocation2 + $0x54] sm:$0x1] %v1281
      %v1283 = vld [vmem:[#allocation2 + $0x60] sm:$0x1]
      %v1284 = vsel %vm1055, 0, %v1283
      %1285 = vst [vmem:[#allocation2 + $0x60] sm:$0x1] %v1284
      %v1286 = vld [vmem:[#allocation2 + $0x6c] sm:$0x1]
      %v1287 = vsel %vm1055, 0, %v1286
      %1288 = vst [vmem:[#allocation2 + $0x6c] sm:$0x1] %v1287
      %v1289 = vld [vmem:[#allocation2 + $0x78] sm:$0x1]
      %v1290 = vsel %vm1055, 0, %v1289
      %1291 = vst [vmem:[#allocation2 + $0x78] sm:$0x1] %v1290
      %v1292 = vld [vmem:[#allocation2 + $0x84] sm:$0x1]
      %v1293 = vsel %vm1055, 0, %v1292
      %1294 = vst [vmem:[#allocation2 + $0x84] sm:$0x1] %v1293
      %v1295 = vld [vmem:[#allocation2 + $0x90] sm:$0x1]
      %v1296 = vsel %vm1055, 0, %v1295
      %1297 = vst [vmem:[#allocation2 + $0x90] sm:$0x1] %v1296
      %v1298 = vld [vmem:[#allocation2 + $0x9c] sm:$0x1]
      %v1299 = vsel %vm1055, 0, %v1298
      %1300 = vst [vmem:[#allocation2 + $0x9c] sm:$0x1] %v1299
      %v1301 = vld [vmem:[#allocation2 + $0xa8] sm:$0x1]
      %v1302 = vsel %vm1055, 0, %v1301
      %1303 = vst [vmem:[#allocation2 + $0xa8] sm:$0x1] %v1302
      %v1304 = vld [vmem:[#allocation2 + $0xb4] sm:$0x1]
      %v1305 = vsel %vm1055, 0, %v1304
      %1306 = vst [vmem:[#allocation2 + $0xb4] sm:$0x1] %v1305
      %v1307 = vld [vmem:[#allocation2 + $0xc0] sm:$0x1]
      %v1308 = vsel %vm1055, 0, %v1307
      %1309 = vst [vmem:[#allocation2 + $0xc0] sm:$0x1] %v1308
      %v1310 = vld [vmem:[#allocation2 + $0xcc] sm:$0x1]
      %v1311 = vsel %vm1055, 0, %v1310
      %1312 = vst [vmem:[#allocation2 + $0xcc] sm:$0x1] %v1311
      %vm1313 = vmand %vm1054, %vm1048
      %v1314 = vld [vmem:[#allocation2 + $0x8] sm:$0x1]
      %v1315 = vsel %vm1313, 0, %v1314
      %1316 = vst [vmem:[#allocation2 + $0x8] sm:$0x1] %v1315
      %v1317 = vld [vmem:[#allocation2 + $0x14] sm:$0x1]
      %v1318 = vsel %vm1313, 0, %v1317
      %1319 = vst [vmem:[#allocation2 + $0x14] sm:$0x1] %v1318
      %v1320 = vld [vmem:[#allocation2 + $0x20] sm:$0x1]
      %v1321 = vsel %vm1313, 0, %v1320
      %1322 = vst [vmem:[#allocation2 + $0x20] sm:$0x1] %v1321
      %v1323 = vld [vmem:[#allocation2 + $0x2c] sm:$0x1]
      %v1324 = vsel %vm1313, 0, %v1323
      %1325 = vst [vmem:[#allocation2 + $0x2c] sm:$0x1] %v1324
      %v1326 = vld [vmem:[#allocation2 + $0x38] sm:$0x1]
      %v1327 = vsel %vm1313, 0, %v1326
      %1328 = vst [vmem:[#allocation2 + $0x38] sm:$0x1] %v1327
      %v1329 = vld [vmem:[#allocation2 + $0x44] sm:$0x1]
      %v1330 = vsel %vm1313, 0, %v1329
      %1331 = vst [vmem:[#allocation2 + $0x44] sm:$0x1] %v1330
      %v1332 = vld [vmem:[#allocation2 + $0x50] sm:$0x1]
      %v1333 = vsel %vm1313, 0, %v1332
      %1334 = vst [vmem:[#allocation2 + $0x50] sm:$0x1] %v1333
      %v1335 = vld [vmem:[#allocation2 + $0x5c] sm:$0x1]
      %v1336 = vsel %vm1313, 0, %v1335
      %1337 = vst [vmem:[#allocation2 + $0x5c] sm:$0x1] %v1336
      %v1338 = vld [vmem:[#allocation2 + $0x68] sm:$0x1]
      %v1339 = vsel %vm1313, 0, %v1338
      %1340 = vst [vmem:[#allocation2 + $0x68] sm:$0x1] %v1339
      %v1341 = vld [vmem:[#allocation2 + $0x74] sm:$0x1]
      %v1342 = vsel %vm1313, 0, %v1341
      %1343 = vst [vmem:[#allocation2 + $0x74] sm:$0x1] %v1342
      %v1344 = vld [vmem:[#allocation2 + $0x80] sm:$0x1]
      %v1345 = vsel %vm1313, 0, %v1344
      %1346 = vst [vmem:[#allocation2 + $0x80] sm:$0x1] %v1345
      %v1347 = vld [vmem:[#allocation2 + $0x8c] sm:$0x1]
      %v1348 = vsel %vm1313, 0, %v1347
      %1349 = vst [vmem:[#allocation2 + $0x8c] sm:$0x1] %v1348
      %v1350 = vld [vmem:[#allocation2 + $0x98] sm:$0x1]
      %v1351 = vsel %vm1313, 0, %v1350
      %1352 = vst [vmem:[#allocation2 + $0x98] sm:$0x1] %v1351
      %v1353 = vld [vmem:[#allocation2 + $0xa4] sm:$0x1]
      %v1354 = vsel %vm1313, 0, %v1353
      %1355 = vst [vmem:[#allocation2 + $0xa4] sm:$0x1] %v1354
      %v1356 = vld [vmem:[#allocation2 + $0xb0] sm:$0x1]
      %v1357 = vsel %vm1313, 0, %v1356
      %1358 = vst [vmem:[#allocation2 + $0xb0] sm:$0x1] %v1357
      %v1359 = vld [vmem:[#allocation2 + $0xbc] sm:$0x1]
      %v1360 = vsel %vm1313, 0, %v1359
      %1361 = vst [vmem:[#allocation2 + $0xbc] sm:$0x1] %v1360
      %v1362 = vld [vmem:[#allocation2 + $0xc8] sm:$0x1]
      %v1363 = vsel %vm1313, 0, %v1362
      %1364 = vst [vmem:[#allocation2 + $0xc8] sm:$0x1] %v1363
      %v1365 = vld [vmem:[#allocation2 + $0xd4] sm:$0x1]
      %v1366 = vsel %vm1313, 0, %v1365
      %1367 = vst [vmem:[#allocation2 + $0xd4] sm:$0x1] %v1366
      %v1368 = vld [vmem:[#allocation2] sm:$0xf]
      %v1369 = vld [vmem:[#allocation2 + $0x4] sm:$0xf]
      %v1370 = vld [vmem:[#allocation2 + $0xc] sm:$0xf]
      %v1371 = vld [vmem:[#allocation2 + $0x10] sm:$0xf]
      %v1372 = vld [vmem:[#allocation2 + $0x18] sm:$0xf]
      %v1373 = vld [vmem:[#allocation2 + $0x1c] sm:$0xf]
      %v1374 = vld [vmem:[#allocation2 + $0x24] sm:$0xf]
      %v1375 = vld [vmem:[#allocation2 + $0x28] sm:$0xf]
      %v1376 = vld [vmem:[#allocation2 + $0x30] sm:$0xf]
      %v1377 = vld [vmem:[#allocation2 + $0x34] sm:$0xf]
      %v1378 = vld [vmem:[#allocation2 + $0x3c] sm:$0xf]
      %v1379 = vld [vmem:[#allocation2 + $0x40] sm:$0xf]
      %v1380 = vld [vmem:[#allocation2 + $0x48] sm:$0xf]
      %v1381 = vld [vmem:[#allocation2 + $0x4c] sm:$0xf]
      %v1382 = vld [vmem:[#allocation2 + $0x54] sm:$0xf]
      %v1383 = vld [vmem:[#allocation2 + $0x58] sm:$0xf]
      %v1384 = vld [vmem:[#allocation2 + $0x60] sm:$0xf]
      %v1385 = vld [vmem:[#allocation2 + $0x64] sm:$0xf]
      %v1386 = vld [vmem:[#allocation2 + $0x6c] sm:$0xf]
      %v1387 = vld [vmem:[#allocation2 + $0x70] sm:$0xf]
      %v1388 = vld [vmem:[#allocation2 + $0x78] sm:$0xf]
      %v1389 = vld [vmem:[#allocation2 + $0x7c] sm:$0xf]
      %v1390 = vld [vmem:[#allocation2 + $0x84] sm:$0xf]
      %v1391 = vld [vmem:[#allocation2 + $0x88] sm:$0xf]
      %v1392 = vld [vmem:[#allocation2 + $0x90] sm:$0xf]
      %v1393 = vld [vmem:[#allocation2 + $0x94] sm:$0xf]
      %v1394 = vld [vmem:[#allocation2 + $0x9c] sm:$0xf]
      %v1395 = vld [vmem:[#allocation2 + $0xa0] sm:$0xf]
      %v1396 = vld [vmem:[#allocation2 + $0xa8] sm:$0xf]
      %v1397 = vld [vmem:[#allocation2 + $0xac] sm:$0xf]
      %v1398 = vld [vmem:[#allocation2 + $0xb4] sm:$0xf]
      %v1399 = vld [vmem:[#allocation2 + $0xb8] sm:$0xf]
      %v1400 = vld [vmem:[#allocation2 + $0x8] sm:$0x1]
      %v1401 = vld [vmem:[#allocation2 + $0x14] sm:$0x1]
      %v1402 = vld [vmem:[#allocation2 + $0x20] sm:$0x1]
      %v1403 = vld [vmem:[#allocation2 + $0x2c] sm:$0x1]
      %v1404 = vld [vmem:[#allocation2 + $0x38] sm:$0x1]
      %v1405 = vld [vmem:[#allocation2 + $0x44] sm:$0x1]
      %v1406 = vld [vmem:[#allocation2 + $0x50] sm:$0x1]
      %v1407 = vld [vmem:[#allocation2 + $0x5c] sm:$0x1]
      %v1408 = vld [vmem:[#allocation2 + $0x68] sm:$0x1]
      %v1409 = vld [vmem:[#allocation2 + $0x74] sm:$0x1]
      %v1410 = vld [vmem:[#allocation2 + $0x80] sm:$0x1]
      %v1411 = vld [vmem:[#allocation2 + $0x8c] sm:$0x1]
      %v1412 = vld [vmem:[#allocation2 + $0x98] sm:$0x1]
      %v1413 = vld [vmem:[#allocation2 + $0xa4] sm:$0x1]
      %v1414 = vld [vmem:[#allocation2 + $0xb0] sm:$0x1]
      %v1415 = vld [vmem:[#allocation2 + $0xbc] sm:$0x1]
      %v1416 = vld [vmem:[#allocation2] sm:$0xe]
      %v1417 = vld [vmem:[#allocation2 + $0xc] sm:$0xe]
      %v1418 = vld [vmem:[#allocation2 + $0x18] sm:$0xe]
      %v1419 = vld [vmem:[#allocation2 + $0x24] sm:$0xe]
      %v1420 = vld [vmem:[#allocation2 + $0x30] sm:$0xe]
      %v1421 = vld [vmem:[#allocation2 + $0x3c] sm:$0xe]
      %v1422 = vld [vmem:[#allocation2 + $0x48] sm:$0xe]
      %v1423 = vld [vmem:[#allocation2 + $0x54] sm:$0xe]
      %v1424 = vld [vmem:[#allocation2 + $0x60] sm:$0xe]
      %v1425 = vld [vmem:[#allocation2 + $0x6c] sm:$0xe]
      %v1426 = vld [vmem:[#allocation2 + $0x78] sm:$0xe]
      %v1427 = vld [vmem:[#allocation2 + $0x84] sm:$0xe]
      %v1428 = vld [vmem:[#allocation2 + $0x90] sm:$0xe]
      %v1429 = vld [vmem:[#allocation2 + $0x9c] sm:$0xe]
      %v1430 = vld [vmem:[#allocation2 + $0xa8] sm:$0xe]
      %v1431 = vld [vmem:[#allocation2 + $0xb4] sm:$0xe]
      %v1464 = vunpack.c.l.b16 %v1368
      %v1465 = vunpack.c.l.b16 %v1369
      %v1466 = vunpack.c.l.b16 %v1370
      %v1467 = vunpack.c.l.b16 %v1371
      %v1468 = vunpack.c.l.b16 %v1372
      %v1469 = vunpack.c.l.b16 %v1373
      %v1470 = vunpack.c.l.b16 %v1374
      %v1471 = vunpack.c.l.b16 %v1375
      %v1472 = vunpack.c.l.b16 %v1376
      %v1473 = vunpack.c.l.b16 %v1377
      %v1474 = vunpack.c.l.b16 %v1378
      %v1475 = vunpack.c.l.b16 %v1379
      %v1476 = vunpack.c.l.b16 %v1380
      %v1477 = vunpack.c.l.b16 %v1381
      %v1478 = vunpack.c.l.b16 %v1382
      %v1479 = vunpack.c.l.b16 %v1383
      %v1480 = vunpack.c.l.b16 %v1384
      %v1481 = vunpack.c.l.b16 %v1385
      %v1482 = vunpack.c.l.b16 %v1386
      %v1483 = vunpack.c.l.b16 %v1387
      %v1484 = vunpack.c.l.b16 %v1388
      %v1485 = vunpack.c.l.b16 %v1389
      %v1486 = vunpack.c.l.b16 %v1390
      %v1487 = vunpack.c.l.b16 %v1391
      %v1488 = vunpack.c.l.b16 %v1392
      %v1489 = vunpack.c.l.b16 %v1393
      %v1490 = vunpack.c.l.b16 %v1394
      %v1491 = vunpack.c.l.b16 %v1395
      %v1492 = vunpack.c.l.b16 %v1396
      %v1493 = vunpack.c.l.b16 %v1397
      %v1494 = vunpack.c.l.b16 %v1398
      %v1495 = vunpack.c.l.b16 %v1399
      %v1496 = vpack.c.b16 %v1465, %v1464
      %v1497 = vpack.c.b16 %v1467, %v1466
      %v1498 = vpack.c.b16 %v1469, %v1468
      %v1499 = vpack.c.b16 %v1471, %v1470
      %v1500 = vpack.c.b16 %v1473, %v1472
      %v1501 = vpack.c.b16 %v1475, %v1474
      %v1502 = vpack.c.b16 %v1477, %v1476
      %v1503 = vpack.c.b16 %v1479, %v1478
      %v1504 = vpack.c.b16 %v1481, %v1480
      %v1505 = vpack.c.b16 %v1483, %v1482
      %v1506 = vpack.c.b16 %v1485, %v1484
      %v1507 = vpack.c.b16 %v1487, %v1486
      %v1508 = vpack.c.b16 %v1489, %v1488
      %v1509 = vpack.c.b16 %v1491, %v1490
      %v1510 = vpack.c.b16 %v1493, %v1492
      %v1511 = vpack.c.b16 %v1495, %v1494
      %v1544 = vunpack.c.l.b16 %v1400
      %v1545 = vunpack.c.l.b16 %v1401
      %v1546 = vunpack.c.l.b16 %v1402
      %v1547 = vunpack.c.l.b16 %v1403
      %v1548 = vunpack.c.l.b16 %v1404
      %v1549 = vunpack.c.l.b16 %v1405
      %v1550 = vunpack.c.l.b16 %v1406
      %v1551 = vunpack.c.l.b16 %v1407
      %v1552 = vunpack.c.l.b16 %v1408
      %v1553 = vunpack.c.l.b16 %v1409
      %v1554 = vunpack.c.l.b16 %v1410
      %v1555 = vunpack.c.l.b16 %v1411
      %v1556 = vunpack.c.l.b16 %v1412
      %v1557 = vunpack.c.l.b16 %v1413
      %v1558 = vunpack.c.l.b16 %v1414
      %v1559 = vunpack.c.l.b16 %v1415
      %v1560 = vpack.c.b16 %v1544, %v1544
      %v1561 = vpack.c.b16 %v1545, %v1545
      %v1562 = vpack.c.b16 %v1546, %v1546
      %v1563 = vpack.c.b16 %v1547, %v1547
      %v1564 = vpack.c.b16 %v1548, %v1548
      %v1565 = vpack.c.b16 %v1549, %v1549
      %v1566 = vpack.c.b16 %v1550, %v1550
      %v1567 = vpack.c.b16 %v1551, %v1551
      %v1568 = vpack.c.b16 %v1552, %v1552
      %v1569 = vpack.c.b16 %v1553, %v1553
      %v1570 = vpack.c.b16 %v1554, %v1554
      %v1571 = vpack.c.b16 %v1555, %v1555
      %v1572 = vpack.c.b16 %v1556, %v1556
      %v1573 = vpack.c.b16 %v1557, %v1557
      %v1574 = vpack.c.b16 %v1558, %v1558
      %v1575 = vpack.c.b16 %v1559, %v1559
      %vm1576 = vsmask.f32 7424
      %v1578 = vshrl.u32 %v1496, 16
      %v1580 = vshll.u32 %v1496, 16
      %v1582 = vrot.slane %v1580, 1
      %v1583 = vor.u32 %v1578, %v1582
      %v1585 = vshll.u32 %v1560, 16
      %v1587 = vrot.slane %v1585, 1
      %v1588 = vsel %vm1576, %v1583, %v1587
      %v1590 = vshrl.u32 %v1497, 16
      %v1592 = vshll.u32 %v1497, 16
      %v1594 = vrot.slane %v1592, 1
      %v1595 = vor.u32 %v1590, %v1594
      %v1597 = vshll.u32 %v1561, 16
      %v1599 = vrot.slane %v1597, 1
      %v1600 = vsel %vm1576, %v1595, %v1599
      %v1602 = vshrl.u32 %v1498, 16
      %v1604 = vshll.u32 %v1498, 16
      %v1606 = vrot.slane %v1604, 1
      %v1607 = vor.u32 %v1602, %v1606
      %v1609 = vshll.u32 %v1562, 16
      %v1611 = vrot.slane %v1609, 1
      %v1612 = vsel %vm1576, %v1607, %v1611
      %v1614 = vshrl.u32 %v1499, 16
      %v1616 = vshll.u32 %v1499, 16
      %v1618 = vrot.slane %v1616, 1
      %v1619 = vor.u32 %v1614, %v1618
      %v1621 = vshll.u32 %v1563, 16
      %v1623 = vrot.slane %v1621, 1
      %v1624 = vsel %vm1576, %v1619, %v1623
      %v1626 = vshrl.u32 %v1500, 16
      %v1628 = vshll.u32 %v1500, 16
      %v1630 = vrot.slane %v1628, 1
      %v1631 = vor.u32 %v1626, %v1630
      %v1633 = vshll.u32 %v1564, 16
      %v1635 = vrot.slane %v1633, 1
      %v1636 = vsel %vm1576, %v1631, %v1635
      %v1638 = vshrl.u32 %v1501, 16
      %v1640 = vshll.u32 %v1501, 16
      %v1642 = vrot.slane %v1640, 1
      %v1643 = vor.u32 %v1638, %v1642
      %v1645 = vshll.u32 %v1565, 16
      %v1647 = vrot.slane %v1645, 1
      %v1648 = vsel %vm1576, %v1643, %v1647
      %v1650 = vshrl.u32 %v1502, 16
      %v1652 = vshll.u32 %v1502, 16
      %v1654 = vrot.slane %v1652, 1
      %v1655 = vor.u32 %v1650, %v1654
      %v1657 = vshll.u32 %v1566, 16
      %v1659 = vrot.slane %v1657, 1
      %v1660 = vsel %vm1576, %v1655, %v1659
      %v1662 = vshrl.u32 %v1503, 16
      %v1664 = vshll.u32 %v1503, 16
      %v1666 = vrot.slane %v1664, 1
      %v1667 = vor.u32 %v1662, %v1666
      %v1669 = vshll.u32 %v1567, 16
      %v1671 = vrot.slane %v1669, 1
      %v1672 = vsel %vm1576, %v1667, %v1671
      %v1674 = vshrl.u32 %v1504, 16
      %v1676 = vshll.u32 %v1504, 16
      %v1678 = vrot.slane %v1676, 1
      %v1679 = vor.u32 %v1674, %v1678
      %v1681 = vshll.u32 %v1568, 16
      %v1683 = vrot.slane %v1681, 1
      %v1684 = vsel %vm1576, %v1679, %v1683
      %v1686 = vshrl.u32 %v1505, 16
      %v1688 = vshll.u32 %v1505, 16
      %v1690 = vrot.slane %v1688, 1
      %v1691 = vor.u32 %v1686, %v1690
      %v1693 = vshll.u32 %v1569, 16
      %v1695 = vrot.slane %v1693, 1
      %v1696 = vsel %vm1576, %v1691, %v1695
      %v1698 = vshrl.u32 %v1506, 16
      %v1700 = vshll.u32 %v1506, 16
      %v1702 = vrot.slane %v1700, 1
      %v1703 = vor.u32 %v1698, %v1702
      %v1705 = vshll.u32 %v1570, 16
      %v1707 = vrot.slane %v1705, 1
      %v1708 = vsel %vm1576, %v1703, %v1707
      %v1710 = vshrl.u32 %v1507, 16
      %v1712 = vshll.u32 %v1507, 16
      %v1714 = vrot.slane %v1712, 1
      %v1715 = vor.u32 %v1710, %v1714
      %v1717 = vshll.u32 %v1571, 16
      %v1719 = vrot.slane %v1717, 1
      %v1720 = vsel %vm1576, %v1715, %v1719
      %v1722 = vshrl.u32 %v1508, 16
      %v1724 = vshll.u32 %v1508, 16
      %v1726 = vrot.slane %v1724, 1
      %v1727 = vor.u32 %v1722, %v1726
      %v1729 = vshll.u32 %v1572, 16
      %v1731 = vrot.slane %v1729, 1
      %v1732 = vsel %vm1576, %v1727, %v1731
      %v1734 = vshrl.u32 %v1509, 16
      %v1736 = vshll.u32 %v1509, 16
      %v1738 = vrot.slane %v1736, 1
      %v1739 = vor.u32 %v1734, %v1738
      %v1741 = vshll.u32 %v1573, 16
      %v1743 = vrot.slane %v1741, 1
      %v1744 = vsel %vm1576, %v1739, %v1743
      %v1746 = vshrl.u32 %v1510, 16
      %v1748 = vshll.u32 %v1510, 16
      %v1750 = vrot.slane %v1748, 1
      %v1751 = vor.u32 %v1746, %v1750
      %v1753 = vshll.u32 %v1574, 16
      %v1755 = vrot.slane %v1753, 1
      %v1756 = vsel %vm1576, %v1751, %v1755
      %v1758 = vshrl.u32 %v1511, 16
      %v1760 = vshll.u32 %v1511, 16
      %v1762 = vrot.slane %v1760, 1
      %v1763 = vor.u32 %v1758, %v1762
      %v1765 = vshll.u32 %v1575, 16
      %v1767 = vrot.slane %v1765, 1
      %v1768 = vsel %vm1576, %v1763, %v1767
      %v1801 = vunpack.c.l.b16 %v1416
      %v1802 = vunpack.c.l.b16 %v1417
      %v1803 = vunpack.c.l.b16 %v1418
      %v1804 = vunpack.c.l.b16 %v1419
      %v1805 = vunpack.c.l.b16 %v1420
      %v1806 = vunpack.c.l.b16 %v1421
      %v1807 = vunpack.c.l.b16 %v1422
      %v1808 = vunpack.c.l.b16 %v1423
      %v1809 = vunpack.c.l.b16 %v1424
      %v1810 = vunpack.c.l.b16 %v1425
      %v1811 = vunpack.c.l.b16 %v1426
      %v1812 = vunpack.c.l.b16 %v1427
      %v1813 = vunpack.c.l.b16 %v1428
      %v1814 = vunpack.c.l.b16 %v1429
      %v1815 = vunpack.c.l.b16 %v1430
      %v1816 = vunpack.c.l.b16 %v1431
      %v1817 = vpack.c.b16 %v1465, %v1801
      %v1818 = vpack.c.b16 %v1467, %v1802
      %v1819 = vpack.c.b16 %v1469, %v1803
      %v1820 = vpack.c.b16 %v1471, %v1804
      %v1821 = vpack.c.b16 %v1473, %v1805
      %v1822 = vpack.c.b16 %v1475, %v1806
      %v1823 = vpack.c.b16 %v1477, %v1807
      %v1824 = vpack.c.b16 %v1479, %v1808
      %v1825 = vpack.c.b16 %v1481, %v1809
      %v1826 = vpack.c.b16 %v1483, %v1810
      %v1827 = vpack.c.b16 %v1485, %v1811
      %v1828 = vpack.c.b16 %v1487, %v1812
      %v1829 = vpack.c.b16 %v1489, %v1813
      %v1830 = vpack.c.b16 %v1491, %v1814
      %v1831 = vpack.c.b16 %v1493, %v1815
      %v1832 = vpack.c.b16 %v1495, %v1816
      %vm1833 = vcmask 1046528
      %v1834 = vrot.slane %v1817, 1
      %v1835 = vrot.slane %v1560, 1
      %v1836 = vsel %vm1833, %v1834, %v1835
      %v1837 = vrot.slane %v1818, 1
      %v1838 = vrot.slane %v1561, 1
      %v1839 = vsel %vm1833, %v1837, %v1838
      %v1840 = vrot.slane %v1819, 1
      %v1841 = vrot.slane %v1562, 1
      %v1842 = vsel %vm1833, %v1840, %v1841
      %v1843 = vrot.slane %v1820, 1
      %v1844 = vrot.slane %v1563, 1
      %v1845 = vsel %vm1833, %v1843, %v1844
      %v1846 = vrot.slane %v1821, 1
      %v1847 = vrot.slane %v1564, 1
      %v1848 = vsel %vm1833, %v1846, %v1847
      %v1849 = vrot.slane %v1822, 1
      %v1850 = vrot.slane %v1565, 1
      %v1851 = vsel %vm1833, %v1849, %v1850
      %v1852 = vrot.slane %v1823, 1
      %v1853 = vrot.slane %v1566, 1
      %v1854 = vsel %vm1833, %v1852, %v1853
      %v1855 = vrot.slane %v1824, 1
      %v1856 = vrot.slane %v1567, 1
      %v1857 = vsel %vm1833, %v1855, %v1856
      %v1858 = vrot.slane %v1825, 1
      %v1859 = vrot.slane %v1568, 1
      %v1860 = vsel %vm1833, %v1858, %v1859
      %v1861 = vrot.slane %v1826, 1
      %v1862 = vrot.slane %v1569, 1
      %v1863 = vsel %vm1833, %v1861, %v1862
      %v1864 = vrot.slane %v1827, 1
      %v1865 = vrot.slane %v1570, 1
      %v1866 = vsel %vm1833, %v1864, %v1865
      %v1867 = vrot.slane %v1828, 1
      %v1868 = vrot.slane %v1571, 1
      %v1869 = vsel %vm1833, %v1867, %v1868
      %v1870 = vrot.slane %v1829, 1
      %v1871 = vrot.slane %v1572, 1
      %v1872 = vsel %vm1833, %v1870, %v1871
      %v1873 = vrot.slane %v1830, 1
      %v1874 = vrot.slane %v1573, 1
      %v1875 = vsel %vm1833, %v1873, %v1874
      %v1876 = vrot.slane %v1831, 1
      %v1877 = vrot.slane %v1574, 1
      %v1878 = vsel %vm1833, %v1876, %v1877
      %v1879 = vrot.slane %v1832, 1
      %v1880 = vrot.slane %v1575, 1
      %v1881 = vsel %vm1833, %v1879, %v1880
      %v1898 = vld [vmem:[%s5] sm:$0xf]
      %v1899 = vld [vmem:[%s5 + $0x4] sm:$0xf]
      %v1900 = vld [vmem:[%s5 + $0x8] sm:$0xf]
      %v1901 = vld [vmem:[%s5 + $0xc] sm:$0xf]
      %v1902 = vld [vmem:[%s5 + $0x10] sm:$0xf]
      %v1903 = vld [vmem:[%s5 + $0x14] sm:$0xf]
      %v1904 = vld [vmem:[%s5 + $0x18] sm:$0xf]
      %v1905 = vld [vmem:[%s5 + $0x1c] sm:$0xf]
      %v1906 = vld [vmem:[%s5 + $0x20] sm:$0xf]
      %v1907 = vld [vmem:[%s5 + $0x24] sm:$0xf]
      %v1908 = vld [vmem:[%s5 + $0x28] sm:$0xf]
      %v1909 = vld [vmem:[%s5 + $0x2c] sm:$0xf]
      %v1910 = vld [vmem:[%s5 + $0x30] sm:$0xf]
      %v1911 = vld [vmem:[%s5 + $0x34] sm:$0xf]
      %v1912 = vld [vmem:[%s5 + $0x38] sm:$0xf]
      %v1913 = vld [vmem:[%s5 + $0x3c] sm:$0xf]
      %v1914 = vld [vmem:[%s5 + $0x40] sm:$0xf]
      %v1915 = vld [vmem:[%s5 + $0x44] sm:$0xf]
      %v1916 = vld [vmem:[%s5 + $0x48] sm:$0xf]
      %v1917 = vld [vmem:[%s5 + $0x4c] sm:$0xf]
      %v1918 = vld [vmem:[%s5 + $0x50] sm:$0xf]
      %v1919 = vld [vmem:[%s5 + $0x54] sm:$0xf]
      %v1920 = vld [vmem:[%s5 + $0x58] sm:$0xf]
      %v1921 = vld [vmem:[%s5 + $0x5c] sm:$0xf]
      %v1922 = vld [vmem:[%s5 + $0x60] sm:$0xf]
      %v1923 = vld [vmem:[%s5 + $0x64] sm:$0xf]
      %v1924 = vld [vmem:[%s5 + $0x68] sm:$0xf]
      %v1925 = vld [vmem:[%s5 + $0x6c] sm:$0xf]
      %v1926 = vld [vmem:[%s5 + $0x70] sm:$0xf]
      %v1927 = vld [vmem:[%s5 + $0x74] sm:$0xf]
      %v1928 = vld [vmem:[%s5 + $0x78] sm:$0xf]
      %v1929 = vld [vmem:[%s5 + $0x7c] sm:$0xf]
      %v1930 = vld [vmem:[%s5 + $0x80] sm:$0xf]
      %v1931 = vld [vmem:[%s5 + $0x84] sm:$0xf]
      %v1932 = vld [vmem:[%s5 + $0x88] sm:$0xf]
      %v1933 = vld [vmem:[%s5 + $0x8c] sm:$0xf]
      %v1934 = vld [vmem:[%s5 + $0x90] sm:$0xf]
      %v1935 = vld [vmem:[%s5 + $0x94] sm:$0xf]
      %v1936 = vld [vmem:[%s5 + $0x98] sm:$0xf]
      %v1937 = vld [vmem:[%s5 + $0x9c] sm:$0xf]
      %v1938 = vld [vmem:[%s5 + $0xa0] sm:$0xf]
      %v1939 = vld [vmem:[%s5 + $0xa4] sm:$0xf]
      %v1940 = vld [vmem:[%s5 + $0xa8] sm:$0xf]
      %v1941 = vld [vmem:[%s5 + $0xac] sm:$0xf]
      %v1942 = vld [vmem:[%s5 + $0xb0] sm:$0xf]
      %v1943 = vld [vmem:[%s5 + $0xb4] sm:$0xf]
      %v1944 = vld [vmem:[%s5 + $0xb8] sm:$0xf]
      %v1945 = vld [vmem:[%s5 + $0xbc] sm:$0xf]
      %v1946 = vld [vmem:[%s1046] sm:$0xf]
      %v1947 = vld [vmem:[%s1046 + $0x4] sm:$0xf]
      %v1948 = vld [vmem:[%s1046 + $0xc] sm:$0xf]
      %v1949 = vld [vmem:[%s1046 + $0x10] sm:$0xf]
      %v1950 = vld [vmem:[%s1046 + $0x18] sm:$0xf]
      %v1951 = vld [vmem:[%s1046 + $0x1c] sm:$0xf]
      %v1952 = vld [vmem:[%s1046 + $0x24] sm:$0xf]
      %v1953 = vld [vmem:[%s1046 + $0x28] sm:$0xf]
      %v1954 = vld [vmem:[%s1046 + $0x30] sm:$0xf]
      %v1955 = vld [vmem:[%s1046 + $0x34] sm:$0xf]
      %v1956 = vld [vmem:[%s1046 + $0x3c] sm:$0xf]
      %v1957 = vld [vmem:[%s1046 + $0x40] sm:$0xf]
      %v1958 = vld [vmem:[%s1046 + $0x48] sm:$0xf]
      %v1959 = vld [vmem:[%s1046 + $0x4c] sm:$0xf]
      %v1960 = vld [vmem:[%s1046 + $0x54] sm:$0xf]
      %v1961 = vld [vmem:[%s1046 + $0x58] sm:$0xf]
      %v1962 = vld [vmem:[%s1046 + $0x60] sm:$0xf]
      %v1963 = vld [vmem:[%s1046 + $0x64] sm:$0xf]
      %v1964 = vld [vmem:[%s1046 + $0x6c] sm:$0xf]
      %v1965 = vld [vmem:[%s1046 + $0x70] sm:$0xf]
      %v1966 = vld [vmem:[%s1046 + $0x78] sm:$0xf]
      %v1967 = vld [vmem:[%s1046 + $0x7c] sm:$0xf]
      %v1968 = vld [vmem:[%s1046 + $0x84] sm:$0xf]
      %v1969 = vld [vmem:[%s1046 + $0x88] sm:$0xf]
      %v1970 = vld [vmem:[%s1046 + $0x90] sm:$0xf]
      %v1971 = vld [vmem:[%s1046 + $0x94] sm:$0xf]
      %v1972 = vld [vmem:[%s1046 + $0x9c] sm:$0xf]
      %v1973 = vld [vmem:[%s1046 + $0xa0] sm:$0xf]
      %v1974 = vld [vmem:[%s1046 + $0xa8] sm:$0xf]
      %v1975 = vld [vmem:[%s1046 + $0xac] sm:$0xf]
      %v1976 = vld [vmem:[%s1046 + $0xb4] sm:$0xf]
      %v1977 = vld [vmem:[%s1046 + $0xb8] sm:$0xf]
      %v1978 = vld [vmem:[%s1046 + $0x8] sm:$0x1]
      %v1979 = vld [vmem:[%s1046 + $0x14] sm:$0x1]
      %v1980 = vld [vmem:[%s1046 + $0x20] sm:$0x1]
      %v1981 = vld [vmem:[%s1046 + $0x2c] sm:$0x1]
      %v1982 = vld [vmem:[%s1046 + $0x38] sm:$0x1]
      %v1983 = vld [vmem:[%s1046 + $0x44] sm:$0x1]
      %v1984 = vld [vmem:[%s1046 + $0x50] sm:$0x1]
      %v1985 = vld [vmem:[%s1046 + $0x5c] sm:$0x1]
      %v1986 = vld [vmem:[%s1046 + $0x68] sm:$0x1]
      %v1987 = vld [vmem:[%s1046 + $0x74] sm:$0x1]
      %v1988 = vld [vmem:[%s1046 + $0x80] sm:$0x1]
      %v1989 = vld [vmem:[%s1046 + $0x8c] sm:$0x1]
      %v1990 = vld [vmem:[%s1046 + $0x98] sm:$0x1]
      %v1991 = vld [vmem:[%s1046 + $0xa4] sm:$0x1]
      %v1992 = vld [vmem:[%s1046 + $0xb0] sm:$0x1]
      %v1993 = vld [vmem:[%s1046 + $0xbc] sm:$0x1]
      %v1994 = vld [vmem:[%s1046] sm:$0xe]
      %v1995 = vld [vmem:[%s1046 + $0xc] sm:$0xe]
      %v1996 = vld [vmem:[%s1046 + $0x18] sm:$0xe]
      %v1997 = vld [vmem:[%s1046 + $0x24] sm:$0xe]
      %v1998 = vld [vmem:[%s1046 + $0x30] sm:$0xe]
      %v1999 = vld [vmem:[%s1046 + $0x3c] sm:$0xe]
      %v2000 = vld [vmem:[%s1046 + $0x48] sm:$0xe]
      %v2001 = vld [vmem:[%s1046 + $0x54] sm:$0xe]
      %v2002 = vld [vmem:[%s1046 + $0x60] sm:$0xe]
      %v2003 = vld [vmem:[%s1046 + $0x6c] sm:$0xe]
      %v2004 = vld [vmem:[%s1046 + $0x78] sm:$0xe]
      %v2005 = vld [vmem:[%s1046 + $0x84] sm:$0xe]
      %v2006 = vld [vmem:[%s1046 + $0x90] sm:$0xe]
      %v2007 = vld [vmem:[%s1046 + $0x9c] sm:$0xe]
      %v2008 = vld [vmem:[%s1046 + $0xa8] sm:$0xe]
      %v2009 = vld [vmem:[%s1046 + $0xb4] sm:$0xe]
      %v2042 = vunpack.c.l.b16 %v1946
      %v2043 = vunpack.c.l.b16 %v1947
      %v2044 = vunpack.c.l.b16 %v1948
      %v2045 = vunpack.c.l.b16 %v1949
      %v2046 = vunpack.c.l.b16 %v1950
      %v2047 = vunpack.c.l.b16 %v1951
      %v2048 = vunpack.c.l.b16 %v1952
      %v2049 = vunpack.c.l.b16 %v1953
      %v2050 = vunpack.c.l.b16 %v1954
      %v2051 = vunpack.c.l.b16 %v1955
      %v2052 = vunpack.c.l.b16 %v1956
      %v2053 = vunpack.c.l.b16 %v1957
      %v2054 = vunpack.c.l.b16 %v1958
      %v2055 = vunpack.c.l.b16 %v1959
      %v2056 = vunpack.c.l.b16 %v1960
      %v2057 = vunpack.c.l.b16 %v1961
      %v2058 = vunpack.c.l.b16 %v1962
      %v2059 = vunpack.c.l.b16 %v1963
      %v2060 = vunpack.c.l.b16 %v1964
      %v2061 = vunpack.c.l.b16 %v1965
      %v2062 = vunpack.c.l.b16 %v1966
      %v2063 = vunpack.c.l.b16 %v1967
      %v2064 = vunpack.c.l.b16 %v1968
      %v2065 = vunpack.c.l.b16 %v1969
      %v2066 = vunpack.c.l.b16 %v1970
      %v2067 = vunpack.c.l.b16 %v1971
      %v2068 = vunpack.c.l.b16 %v1972
      %v2069 = vunpack.c.l.b16 %v1973
      %v2070 = vunpack.c.l.b16 %v1974
      %v2071 = vunpack.c.l.b16 %v1975
      %v2072 = vunpack.c.l.b16 %v1976
      %v2073 = vunpack.c.l.b16 %v1977
      %v2074 = vpack.c.b16 %v2043, %v2042
      %v2075 = vpack.c.b16 %v2045, %v2044
      %v2076 = vpack.c.b16 %v2047, %v2046
      %v2077 = vpack.c.b16 %v2049, %v2048
      %v2078 = vpack.c.b16 %v2051, %v2050
      %v2079 = vpack.c.b16 %v2053, %v2052
      %v2080 = vpack.c.b16 %v2055, %v2054
      %v2081 = vpack.c.b16 %v2057, %v2056
      %v2082 = vpack.c.b16 %v2059, %v2058
      %v2083 = vpack.c.b16 %v2061, %v2060
      %v2084 = vpack.c.b16 %v2063, %v2062
      %v2085 = vpack.c.b16 %v2065, %v2064
      %v2086 = vpack.c.b16 %v2067, %v2066
      %v2087 = vpack.c.b16 %v2069, %v2068
      %v2088 = vpack.c.b16 %v2071, %v2070
      %v2089 = vpack.c.b16 %v2073, %v2072
      %v2122 = vunpack.c.l.b16 %v1978
      %v2123 = vunpack.c.l.b16 %v1979
      %v2124 = vunpack.c.l.b16 %v1980
      %v2125 = vunpack.c.l.b16 %v1981
      %v2126 = vunpack.c.l.b16 %v1982
      %v2127 = vunpack.c.l.b16 %v1983
      %v2128 = vunpack.c.l.b16 %v1984
      %v2129 = vunpack.c.l.b16 %v1985
      %v2130 = vunpack.c.l.b16 %v1986
      %v2131 = vunpack.c.l.b16 %v1987
      %v2132 = vunpack.c.l.b16 %v1988
      %v2133 = vunpack.c.l.b16 %v1989
      %v2134 = vunpack.c.l.b16 %v1990
      %v2135 = vunpack.c.l.b16 %v1991
      %v2136 = vunpack.c.l.b16 %v1992
      %v2137 = vunpack.c.l.b16 %v1993
      %v2138 = vpack.c.b16 %v2122, %v2122
      %v2139 = vpack.c.b16 %v2123, %v2123
      %v2140 = vpack.c.b16 %v2124, %v2124
      %v2141 = vpack.c.b16 %v2125, %v2125
      %v2142 = vpack.c.b16 %v2126, %v2126
      %v2143 = vpack.c.b16 %v2127, %v2127
      %v2144 = vpack.c.b16 %v2128, %v2128
      %v2145 = vpack.c.b16 %v2129, %v2129
      %v2146 = vpack.c.b16 %v2130, %v2130
      %v2147 = vpack.c.b16 %v2131, %v2131
      %v2148 = vpack.c.b16 %v2132, %v2132
      %v2149 = vpack.c.b16 %v2133, %v2133
      %v2150 = vpack.c.b16 %v2134, %v2134
      %v2151 = vpack.c.b16 %v2135, %v2135
      %v2152 = vpack.c.b16 %v2136, %v2136
      %v2153 = vpack.c.b16 %v2137, %v2137
      %v2155 = vshrl.u32 %v2074, 16
      %v2157 = vshll.u32 %v2074, 16
      %v2159 = vrot.slane %v2157, 1
      %v2160 = vor.u32 %v2155, %v2159
      %v2162 = vshll.u32 %v2138, 16
      %v2164 = vrot.slane %v2162, 1
      %v2165 = vsel %vm1576, %v2160, %v2164
      %v2167 = vshrl.u32 %v2075, 16
      %v2169 = vshll.u32 %v2075, 16
      %v2171 = vrot.slane %v2169, 1
      %v2172 = vor.u32 %v2167, %v2171
      %v2174 = vshll.u32 %v2139, 16
      %v2176 = vrot.slane %v2174, 1
      %v2177 = vsel %vm1576, %v2172, %v2176
      %v2179 = vshrl.u32 %v2076, 16
      %v2181 = vshll.u32 %v2076, 16
      %v2183 = vrot.slane %v2181, 1
      %v2184 = vor.u32 %v2179, %v2183
      %v2186 = vshll.u32 %v2140, 16
      %v2188 = vrot.slane %v2186, 1
      %v2189 = vsel %vm1576, %v2184, %v2188
      %v2191 = vshrl.u32 %v2077, 16
      %v2193 = vshll.u32 %v2077, 16
      %v2195 = vrot.slane %v2193, 1
      %v2196 = vor.u32 %v2191, %v2195
      %v2198 = vshll.u32 %v2141, 16
      %v2200 = vrot.slane %v2198, 1
      %v2201 = vsel %vm1576, %v2196, %v2200
      %v2203 = vshrl.u32 %v2078, 16
      %v2205 = vshll.u32 %v2078, 16
      %v2207 = vrot.slane %v2205, 1
      %v2208 = vor.u32 %v2203, %v2207
      %v2210 = vshll.u32 %v2142, 16
      %v2212 = vrot.slane %v2210, 1
      %v2213 = vsel %vm1576, %v2208, %v2212
      %v2215 = vshrl.u32 %v2079, 16
      %v2217 = vshll.u32 %v2079, 16
      %v2219 = vrot.slane %v2217, 1
      %v2220 = vor.u32 %v2215, %v2219
      %v2222 = vshll.u32 %v2143, 16
      %v2224 = vrot.slane %v2222, 1
      %v2225 = vsel %vm1576, %v2220, %v2224
      %v2227 = vshrl.u32 %v2080, 16
      %v2229 = vshll.u32 %v2080, 16
      %v2231 = vrot.slane %v2229, 1
      %v2232 = vor.u32 %v2227, %v2231
      %v2234 = vshll.u32 %v2144, 16
      %v2236 = vrot.slane %v2234, 1
      %v2237 = vsel %vm1576, %v2232, %v2236
      %v2239 = vshrl.u32 %v2081, 16
      %v2241 = vshll.u32 %v2081, 16
      %v2243 = vrot.slane %v2241, 1
      %v2244 = vor.u32 %v2239, %v2243
      %v2246 = vshll.u32 %v2145, 16
      %v2248 = vrot.slane %v2246, 1
      %v2249 = vsel %vm1576, %v2244, %v2248
      %v2251 = vshrl.u32 %v2082, 16
      %v2253 = vshll.u32 %v2082, 16
      %v2255 = vrot.slane %v2253, 1
      %v2256 = vor.u32 %v2251, %v2255
      %v2258 = vshll.u32 %v2146, 16
      %v2260 = vrot.slane %v2258, 1
      %v2261 = vsel %vm1576, %v2256, %v2260
      %v2263 = vshrl.u32 %v2083, 16
      %v2265 = vshll.u32 %v2083, 16
      %v2267 = vrot.slane %v2265, 1
      %v2268 = vor.u32 %v2263, %v2267
      %v2270 = vshll.u32 %v2147, 16
      %v2272 = vrot.slane %v2270, 1
      %v2273 = vsel %vm1576, %v2268, %v2272
      %v2275 = vshrl.u32 %v2084, 16
      %v2277 = vshll.u32 %v2084, 16
      %v2279 = vrot.slane %v2277, 1
      %v2280 = vor.u32 %v2275, %v2279
      %v2282 = vshll.u32 %v2148, 16
      %v2284 = vrot.slane %v2282, 1
      %v2285 = vsel %vm1576, %v2280, %v2284
      %v2287 = vshrl.u32 %v2085, 16
      %v2289 = vshll.u32 %v2085, 16
      %v2291 = vrot.slane %v2289, 1
      %v2292 = vor.u32 %v2287, %v2291
      %v2294 = vshll.u32 %v2149, 16
      %v2296 = vrot.slane %v2294, 1
      %v2297 = vsel %vm1576, %v2292, %v2296
      %v2299 = vshrl.u32 %v2086, 16
      %v2301 = vshll.u32 %v2086, 16
      %v2303 = vrot.slane %v2301, 1
      %v2304 = vor.u32 %v2299, %v2303
      %v2306 = vshll.u32 %v2150, 16
      %v2308 = vrot.slane %v2306, 1
      %v2309 = vsel %vm1576, %v2304, %v2308
      %v2311 = vshrl.u32 %v2087, 16
      %v2313 = vshll.u32 %v2087, 16
      %v2315 = vrot.slane %v2313, 1
      %v2316 = vor.u32 %v2311, %v2315
      %v2318 = vshll.u32 %v2151, 16
      %v2320 = vrot.slane %v2318, 1
      %v2321 = vsel %vm1576, %v2316, %v2320
      %v2323 = vshrl.u32 %v2088, 16
      %v2325 = vshll.u32 %v2088, 16
      %v2327 = vrot.slane %v2325, 1
      %v2328 = vor.u32 %v2323, %v2327
      %v2330 = vshll.u32 %v2152, 16
      %v2332 = vrot.slane %v2330, 1
      %v2333 = vsel %vm1576, %v2328, %v2332
      %v2335 = vshrl.u32 %v2089, 16
      %v2337 = vshll.u32 %v2089, 16
      %v2339 = vrot.slane %v2337, 1
      %v2340 = vor.u32 %v2335, %v2339
      %v2342 = vshll.u32 %v2153, 16
      %v2344 = vrot.slane %v2342, 1
      %v2345 = vsel %vm1576, %v2340, %v2344
      %v2378 = vunpack.c.l.b16 %v1994
      %v2379 = vunpack.c.l.b16 %v1995
      %v2380 = vunpack.c.l.b16 %v1996
      %v2381 = vunpack.c.l.b16 %v1997
      %v2382 = vunpack.c.l.b16 %v1998
      %v2383 = vunpack.c.l.b16 %v1999
      %v2384 = vunpack.c.l.b16 %v2000
      %v2385 = vunpack.c.l.b16 %v2001
      %v2386 = vunpack.c.l.b16 %v2002
      %v2387 = vunpack.c.l.b16 %v2003
      %v2388 = vunpack.c.l.b16 %v2004
      %v2389 = vunpack.c.l.b16 %v2005
      %v2390 = vunpack.c.l.b16 %v2006
      %v2391 = vunpack.c.l.b16 %v2007
      %v2392 = vunpack.c.l.b16 %v2008
      %v2393 = vunpack.c.l.b16 %v2009
      %v2394 = vpack.c.b16 %v2043, %v2378
      %v2395 = vpack.c.b16 %v2045, %v2379
      %v2396 = vpack.c.b16 %v2047, %v2380
      %v2397 = vpack.c.b16 %v2049, %v2381
      %v2398 = vpack.c.b16 %v2051, %v2382
      %v2399 = vpack.c.b16 %v2053, %v2383
      %v2400 = vpack.c.b16 %v2055, %v2384
      %v2401 = vpack.c.b16 %v2057, %v2385
      %v2402 = vpack.c.b16 %v2059, %v2386
      %v2403 = vpack.c.b16 %v2061, %v2387
      %v2404 = vpack.c.b16 %v2063, %v2388
      %v2405 = vpack.c.b16 %v2065, %v2389
      %v2406 = vpack.c.b16 %v2067, %v2390
      %v2407 = vpack.c.b16 %v2069, %v2391
      %v2408 = vpack.c.b16 %v2071, %v2392
      %v2409 = vpack.c.b16 %v2073, %v2393
      %v2410 = vrot.slane %v2394, 1
      %v2411 = vrot.slane %v2138, 1
      %v2412 = vsel %vm1833, %v2410, %v2411
      %v2413 = vrot.slane %v2395, 1
      %v2414 = vrot.slane %v2139, 1
      %v2415 = vsel %vm1833, %v2413, %v2414
      %v2416 = vrot.slane %v2396, 1
      %v2417 = vrot.slane %v2140, 1
      %v2418 = vsel %vm1833, %v2416, %v2417
      %v2419 = vrot.slane %v2397, 1
      %v2420 = vrot.slane %v2141, 1
      %v2421 = vsel %vm1833, %v2419, %v2420
      %v2422 = vrot.slane %v2398, 1
      %v2423 = vrot.slane %v2142, 1
      %v2424 = vsel %vm1833, %v2422, %v2423
      %v2425 = vrot.slane %v2399, 1
      %v2426 = vrot.slane %v2143, 1
      %v2427 = vsel %vm1833, %v2425, %v2426
      %v2428 = vrot.slane %v2400, 1
      %v2429 = vrot.slane %v2144, 1
      %v2430 = vsel %vm1833, %v2428, %v2429
      %v2431 = vrot.slane %v2401, 1
      %v2432 = vrot.slane %v2145, 1
      %v2433 = vsel %vm1833, %v2431, %v2432
      %v2434 = vrot.slane %v2402, 1
      %v2435 = vrot.slane %v2146, 1
      %v2436 = vsel %vm1833, %v2434, %v2435
      %v2437 = vrot.slane %v2403, 1
      %v2438 = vrot.slane %v2147, 1
      %v2439 = vsel %vm1833, %v2437, %v2438
      %v2440 = vrot.slane %v2404, 1
      %v2441 = vrot.slane %v2148, 1
      %v2442 = vsel %vm1833, %v2440, %v2441
      %v2443 = vrot.slane %v2405, 1
      %v2444 = vrot.slane %v2149, 1
      %v2445 = vsel %vm1833, %v2443, %v2444
      %v2446 = vrot.slane %v2406, 1
      %v2447 = vrot.slane %v2150, 1
      %v2448 = vsel %vm1833, %v2446, %v2447
      %v2449 = vrot.slane %v2407, 1
      %v2450 = vrot.slane %v2151, 1
      %v2451 = vsel %vm1833, %v2449, %v2450
      %v2452 = vrot.slane %v2408, 1
      %v2453 = vrot.slane %v2152, 1
      %v2454 = vsel %vm1833, %v2452, %v2453
      %v2455 = vrot.slane %v2409, 1
      %v2456 = vrot.slane %v2153, 1
      %v2457 = vsel %vm1833, %v2455, %v2456
      %s2474 = scalar_lea.vmem %s5, 192
      %v2475 = vld [vmem:[%s2474] sm:$0xf]
      %v2476 = vld [vmem:[%s2474 + $0x4] sm:$0xf]
      %v2477 = vld [vmem:[%s2474 + $0x8] sm:$0xf]
      %v2478 = vld [vmem:[%s2474 + $0xc] sm:$0xf]
      %v2479 = vld [vmem:[%s2474 + $0x10] sm:$0xf]
      %v2480 = vld [vmem:[%s2474 + $0x14] sm:$0xf]
      %v2481 = vld [vmem:[%s2474 + $0x18] sm:$0xf]
      %v2482 = vld [vmem:[%s2474 + $0x1c] sm:$0xf]
      %v2483 = vld [vmem:[%s2474 + $0x20] sm:$0xf]
      %v2484 = vld [vmem:[%s2474 + $0x24] sm:$0xf]
      %v2485 = vld [vmem:[%s2474 + $0x28] sm:$0xf]
      %v2486 = vld [vmem:[%s2474 + $0x2c] sm:$0xf]
      %v2487 = vld [vmem:[%s2474 + $0x30] sm:$0xf]
      %v2488 = vld [vmem:[%s2474 + $0x34] sm:$0xf]
      %v2489 = vld [vmem:[%s2474 + $0x38] sm:$0xf]
      %v2490 = vld [vmem:[%s2474 + $0x3c] sm:$0xf]
      %v2491 = vld [vmem:[%s2474 + $0x40] sm:$0xf]
      %v2492 = vld [vmem:[%s2474 + $0x44] sm:$0xf]
      %v2493 = vld [vmem:[%s2474 + $0x48] sm:$0xf]
      %v2494 = vld [vmem:[%s2474 + $0x4c] sm:$0xf]
      %v2495 = vld [vmem:[%s2474 + $0x50] sm:$0xf]
      %v2496 = vld [vmem:[%s2474 + $0x54] sm:$0xf]
      %v2497 = vld [vmem:[%s2474 + $0x58] sm:$0xf]
      %v2498 = vld [vmem:[%s2474 + $0x5c] sm:$0xf]
      %v2499 = vld [vmem:[%s2474 + $0x60] sm:$0xf]
      %v2500 = vld [vmem:[%s2474 + $0x64] sm:$0xf]
      %v2501 = vld [vmem:[%s2474 + $0x68] sm:$0xf]
      %v2502 = vld [vmem:[%s2474 + $0x6c] sm:$0xf]
      %v2503 = vld [vmem:[%s2474 + $0x70] sm:$0xf]
      %v2504 = vld [vmem:[%s2474 + $0x74] sm:$0xf]
      %v2505 = vld [vmem:[%s2474 + $0x78] sm:$0xf]
      %v2506 = vld [vmem:[%s2474 + $0x7c] sm:$0xf]
      %v2507 = vld [vmem:[%s2474 + $0x80] sm:$0xf]
      %v2508 = vld [vmem:[%s2474 + $0x84] sm:$0xf]
      %v2509 = vld [vmem:[%s2474 + $0x88] sm:$0xf]
      %v2510 = vld [vmem:[%s2474 + $0x8c] sm:$0xf]
      %v2511 = vld [vmem:[%s2474 + $0x90] sm:$0xf]
      %v2512 = vld [vmem:[%s2474 + $0x94] sm:$0xf]
      %v2513 = vld [vmem:[%s2474 + $0x98] sm:$0xf]
      %v2514 = vld [vmem:[%s2474 + $0x9c] sm:$0xf]
      %v2515 = vld [vmem:[%s2474 + $0xa0] sm:$0xf]
      %v2516 = vld [vmem:[%s2474 + $0xa4] sm:$0xf]
      %v2517 = vld [vmem:[%s2474 + $0xa8] sm:$0xf]
      %v2518 = vld [vmem:[%s2474 + $0xac] sm:$0xf]
      %v2519 = vld [vmem:[%s2474 + $0xb0] sm:$0xf]
      %v2520 = vld [vmem:[%s2474 + $0xb4] sm:$0xf]
      %v2521 = vld [vmem:[%s2474 + $0xb8] sm:$0xf]
      %v2522 = vld [vmem:[%s2474 + $0xbc] sm:$0xf]
      %v2571 = vunpack.c.l.b16 %v2475
      %v2572 = vunpack.c.l.b16 %v2476
      %v2573 = vunpack.c.l.b16 %v2477
      %v2574 = vunpack.c.l.b16 %v2478
      %v2575 = vunpack.c.l.b16 %v2479
      %v2576 = vunpack.c.l.b16 %v2480
      %v2577 = vunpack.c.l.b16 %v2481
      %v2578 = vunpack.c.l.b16 %v2482
      %v2579 = vunpack.c.l.b16 %v2483
      %v2580 = vunpack.c.l.b16 %v2484
      %v2581 = vunpack.c.l.b16 %v2485
      %v2582 = vunpack.c.l.b16 %v2486
      %v2583 = vunpack.c.l.b16 %v2487
      %v2584 = vunpack.c.l.b16 %v2488
      %v2585 = vunpack.c.l.b16 %v2489
      %v2586 = vunpack.c.l.b16 %v2490
      %v2587 = vunpack.c.l.b16 %v2491
      %v2588 = vunpack.c.l.b16 %v2492
      %v2589 = vunpack.c.l.b16 %v2493
      %v2590 = vunpack.c.l.b16 %v2494
      %v2591 = vunpack.c.l.b16 %v2495
      %v2592 = vunpack.c.l.b16 %v2496
      %v2593 = vunpack.c.l.b16 %v2497
      %v2594 = vunpack.c.l.b16 %v2498
      %v2595 = vunpack.c.l.b16 %v2499
      %v2596 = vunpack.c.l.b16 %v2500
      %v2597 = vunpack.c.l.b16 %v2501
      %v2598 = vunpack.c.l.b16 %v2502
      %v2599 = vunpack.c.l.b16 %v2503
      %v2600 = vunpack.c.l.b16 %v2504
      %v2601 = vunpack.c.l.b16 %v2505
      %v2602 = vunpack.c.l.b16 %v2506
      %v2603 = vunpack.c.l.b16 %v2507
      %v2604 = vunpack.c.l.b16 %v2508
      %v2605 = vunpack.c.l.b16 %v2509
      %v2606 = vunpack.c.l.b16 %v2510
      %v2607 = vunpack.c.l.b16 %v2511
      %v2608 = vunpack.c.l.b16 %v2512
      %v2609 = vunpack.c.l.b16 %v2513
      %v2610 = vunpack.c.l.b16 %v2514
      %v2611 = vunpack.c.l.b16 %v2515
      %v2612 = vunpack.c.l.b16 %v2516
      %v2613 = vunpack.c.l.b16 %v2517
      %v2614 = vunpack.c.l.b16 %v2518
      %v2615 = vunpack.c.l.b16 %v2519
      %v2616 = vunpack.c.l.b16 %v2520
      %v2617 = vunpack.c.l.b16 %v2521
      %v2618 = vunpack.c.l.b16 %v2522
      %v2619 = vpack.c.b16 %v2572, %v2571
      %v2620 = vpack.c.b16 %v2574, %v2573
      %v2621 = vpack.c.b16 %v2576, %v2575
      %v2622 = vpack.c.b16 %v2578, %v2577
      %v2623 = vpack.c.b16 %v2580, %v2579
      %v2624 = vpack.c.b16 %v2582, %v2581
      %v2625 = vpack.c.b16 %v2584, %v2583
      %v2626 = vpack.c.b16 %v2586, %v2585
      %v2627 = vpack.c.b16 %v2588, %v2587
      %v2628 = vpack.c.b16 %v2590, %v2589
      %v2629 = vpack.c.b16 %v2592, %v2591
      %v2630 = vpack.c.b16 %v2594, %v2593
      %v2631 = vpack.c.b16 %v2596, %v2595
      %v2632 = vpack.c.b16 %v2598, %v2597
      %v2633 = vpack.c.b16 %v2600, %v2599
      %v2634 = vpack.c.b16 %v2602, %v2601
      %v2635 = vpack.c.b16 %v2604, %v2603
      %v2636 = vpack.c.b16 %v2606, %v2605
      %v2637 = vpack.c.b16 %v2608, %v2607
      %v2638 = vpack.c.b16 %v2610, %v2609
      %v2639 = vpack.c.b16 %v2612, %v2611
      %v2640 = vpack.c.b16 %v2614, %v2613
      %v2641 = vpack.c.b16 %v2616, %v2615
      %v2642 = vpack.c.b16 %v2618, %v2617
      %2667 = vmatprep.subr.bf16.mxu0 0
      %2668 = vmatpush1.bf16.msra.mxu0 %v2619
      %2669 = vmatprep.subr.bf16.mxu0 0
      %2670 = vmatpush1.bf16.msra.mxu0 %v2620
      %2671 = vmatprep.subr.bf16.mxu0 0
      %2672 = vmatpush1.bf16.msra.mxu0 %v2621
      %2673 = vmatprep.subr.bf16.mxu0 0
      %2674 = vmatpush1.bf16.msra.mxu0 %v2622
      %2675 = vmatprep.subr.bf16.mxu0 0
      %2676 = vmatpush1.bf16.msra.mxu0 %v2623
      %2677 = vmatprep.subr.bf16.mxu0 0
      %2678 = vmatpush1.bf16.msra.mxu0 %v2624
      %2679 = vmatprep.subr.bf16.mxu0 0
      %2680 = vmatpush1.bf16.msra.mxu0 %v2625
      %2681 = vmatprep.subr.bf16.mxu0 0
      %2682 = vmatpush1.bf16.msra.mxu0 %v2626
      %2683 = vmatprep.subr.bf16.mxu0 0
      %2684 = vmatpush1.bf16.msra.mxu0 %v2627
      %2685 = vmatprep.subr.bf16.mxu0 0
      %2686 = vmatpush1.bf16.msra.mxu0 %v2628
      %2687 = vmatprep.subr.bf16.mxu0 0
      %2688 = vmatpush1.bf16.msra.mxu0 %v2629
      %2689 = vmatprep.subr.bf16.mxu0 0
      %2690 = vmatpush1.bf16.msra.mxu0 %v2630
      %2691 = vmatprep.subr.bf16.mxu0 0
      %2692 = vmatpush1.bf16.msra.mxu0 %v2631
      %2693 = vmatprep.subr.bf16.mxu0 0
      %2694 = vmatpush1.bf16.msra.mxu0 %v2632
      %2695 = vmatprep.subr.bf16.mxu0 0
      %2696 = vmatpush1.bf16.msra.mxu0 %v2633
      %2697 = vmatprep.subr.bf16.mxu0 0
      %2698 = vmatpush1.bf16.msra.mxu0 %v2634
      %2699 = vmatprep.mubr.bf16.mxu0 %v2165
      %2700 = vmatmul.mubr.bf16.gmra.mrb[0].mxu0 %v2074
      %v2701 = vpop.f32.mrb[0].mxu0
      %v2702 = vadd.f32 0.0, %v2701
      %v2703 = vpop.f32.mrb[0].mxu0
      %v2704 = vpop.f32.mrb[0].mxu0
      %v2705 = vadd.f32 0.0, %v2704
      %v2706 = vpop.f32.mrb[0].mxu0
      %2707 = vmatprep.mubr.bf16.mxu0 %v2177
      %2708 = vmatmul.mubr.bf16.gmra.mrb[0].mxu0 %v2075
      %v2709 = vpop.f32.mrb[0].mxu0
      %v2710 = vadd.f32 0.0, %v2709
      %v2711 = vpop.f32.mrb[0].mxu0
      %v2712 = vpop.f32.mrb[0].mxu0
      %v2713 = vadd.f32 0.0, %v2712
      %v2714 = vpop.f32.mrb[0].mxu0
      %2715 = vmatprep.mubr.bf16.mxu0 %v2189
      %2716 = vmatmul.mubr.bf16.gmra.mrb[0].mxu0 %v2076
      %v2717 = vpop.f32.mrb[0].mxu0
      %v2718 = vadd.f32 0.0, %v2717
      %v2719 = vpop.f32.mrb[0].mxu0
      %v2720 = vpop.f32.mrb[0].mxu0
      %v2721 = vadd.f32 0.0, %v2720
      %v2722 = vpop.f32.mrb[0].mxu0
      %2723 = vmatprep.mubr.bf16.mxu0 %v2201
      %2724 = vmatmul.mubr.bf16.gmra.mrb[0].mxu0 %v2077
      %v2725 = vpop.f32.mrb[0].mxu0
      %v2726 = vadd.f32 0.0, %v2725
      %v2727 = vpop.f32.mrb[0].mxu0
      %v2728 = vpop.f32.mrb[0].mxu0
      %v2729 = vadd.f32 0.0, %v2728
      %v2730 = vpop.f32.mrb[0].mxu0
      %2731 = vmatprep.mubr.bf16.mxu0 %v2213
      %2732 = vmatmul.mubr.bf16.gmra.mrb[0].mxu0 %v2078
      %v2733 = vpop.f32.mrb[0].mxu0
      %v2734 = vadd.f32 0.0, %v2733
      %v2735 = vpop.f32.mrb[0].mxu0
      %v2736 = vpop.f32.mrb[0].mxu0
      %v2737 = vadd.f32 0.0, %v2736
      %v2738 = vpop.f32.mrb[0].mxu0
      %2739 = vmatprep.mubr.bf16.mxu0 %v2225
      %2740 = vmatmul.mubr.bf16.gmra.mrb[0].mxu0 %v2079
      %v2741 = vpop.f32.mrb[0].mxu0
      %v2742 = vadd.f32 0.0, %v2741
      %v2743 = vpop.f32.mrb[0].mxu0
      %v2744 = vpop.f32.mrb[0].mxu0
      %v2745 = vadd.f32 0.0, %v2744
      %v2746 = vpop.f32.mrb[0].mxu0
      %2747 = vmatprep.mubr.bf16.mxu0 %v2237
      %2748 = vmatmul.mubr.bf16.gmra.mrb[0].mxu0 %v2080
      %v2749 = vpop.f32.mrb[0].mxu0
      %v2750 = vadd.f32 0.0, %v2749
      %v2751 = vpop.f32.mrb[0].mxu0
      %v2752 = vpop.f32.mrb[0].mxu0
      %v2753 = vadd.f32 0.0, %v2752
      %v2754 = vpop.f32.mrb[0].mxu0
      %2755 = vmatprep.mubr.bf16.mxu0 %v2249
      %2756 = vmatmul.mubr.bf16.gmra.mrb[0].mxu0 %v2081
      %v2757 = vpop.f32.mrb[0].mxu0
      %v2758 = vadd.f32 0.0, %v2757
      %v2759 = vpop.f32.mrb[0].mxu0
      %v2760 = vpop.f32.mrb[0].mxu0
      %v2761 = vadd.f32 0.0, %v2760
      %v2762 = vpop.f32.mrb[0].mxu0
      %2763 = vmatprep.mubr.bf16.mxu0 %v2261
      %2764 = vmatmul.mubr.bf16.gmra.mrb[0].mxu0 %v2082
      %v2765 = vpop.f32.mrb[0].mxu0
      %v2766 = vadd.f32 0.0, %v2765
      %v2767 = vpop.f32.mrb[0].mxu0
      %v2768 = vpop.f32.mrb[0].mxu0
      %v2769 = vadd.f32 0.0, %v2768
      %v2770 = vpop.f32.mrb[0].mxu0
      %2771 = vmatprep.mubr.bf16.mxu0 %v2273
      %2772 = vmatmul.mubr.bf16.gmra.mrb[0].mxu0 %v2083
      %v2773 = vpop.f32.mrb[0].mxu0
      %v2774 = vadd.f32 0.0, %v2773
      %v2775 = vpop.f32.mrb[0].mxu0
      %v2776 = vpop.f32.mrb[0].mxu0
      %v2777 = vadd.f32 0.0, %v2776
      %v2778 = vpop.f32.mrb[0].mxu0
      %2779 = vmatprep.mubr.bf16.mxu0 %v2285
      %2780 = vmatmul.mubr.bf16.gmra.mrb[0].mxu0 %v2084
      %v2781 = vpop.f32.mrb[0].mxu0
      %v2782 = vadd.f32 0.0, %v2781
      %v2783 = vpop.f32.mrb[0].mxu0
      %v2784 = vpop.f32.mrb[0].mxu0
      %v2785 = vadd.f32 0.0, %v2784
      %v2786 = vpop.f32.mrb[0].mxu0
      %2787 = vmatprep.mubr.bf16.mxu0 %v2297
      %2788 = vmatmul.mubr.bf16.gmra.mrb[0].mxu0 %v2085
      %v2789 = vpop.f32.mrb[0].mxu0
      %v2790 = vadd.f32 0.0, %v2789
      %v2791 = vpop.f32.mrb[0].mxu0
      %v2792 = vpop.f32.mrb[0].mxu0
      %v2793 = vadd.f32 0.0, %v2792
      %v2794 = vpop.f32.mrb[0].mxu0
      %2795 = vmatprep.mubr.bf16.mxu0 %v2309
      %2796 = vmatmul.mubr.bf16.gmra.mrb[0].mxu0 %v2086
      %v2797 = vpop.f32.mrb[0].mxu0
      %v2798 = vadd.f32 0.0, %v2797
      %v2799 = vpop.f32.mrb[0].mxu0
      %v2800 = vpop.f32.mrb[0].mxu0
      %v2801 = vadd.f32 0.0, %v2800
      %v2802 = vpop.f32.mrb[0].mxu0
      %2803 = vmatprep.mubr.bf16.mxu0 %v2321
      %2804 = vmatmul.mubr.bf16.gmra.mrb[0].mxu0 %v2087
      %v2805 = vpop.f32.mrb[0].mxu0
      %v2806 = vadd.f32 0.0, %v2805
      %v2807 = vpop.f32.mrb[0].mxu0
      %v2808 = vpop.f32.mrb[0].mxu0
      %v2809 = vadd.f32 0.0, %v2808
      %v2810 = vpop.f32.mrb[0].mxu0
      %2811 = vmatprep.mubr.bf16.mxu0 %v2333
      %2812 = vmatmul.mubr.bf16.gmra.mrb[0].mxu0 %v2088
      %v2813 = vpop.f32.mrb[0].mxu0
      %v2814 = vadd.f32 0.0, %v2813
      %v2815 = vpop.f32.mrb[0].mxu0
      %v2816 = vpop.f32.mrb[0].mxu0
      %v2817 = vadd.f32 0.0, %v2816
      %v2818 = vpop.f32.mrb[0].mxu0
      %2819 = vmatprep.mubr.bf16.mxu0 %v2345
      %2820 = vmatmul.mubr.bf16.gmra.mrb[0].mxu0 %v2089
      %v2821 = vpop.f32.mrb[0].mxu0
      %v2822 = vadd.f32 0.0, %v2821
      %v2823 = vpop.f32.mrb[0].mxu0
      %v2824 = vpop.f32.mrb[0].mxu0
      %v2825 = vadd.f32 0.0, %v2824
      %v2826 = vpop.f32.mrb[0].mxu0
      %2827 = vdwg.mxu0
      %2828 = vmatprep.subr.bf16.mxu0 0
      %2829 = vmatpush1.bf16.msra.mxu0 %v2635
      %2830 = vmatprep.subr.bf16.mxu0 0
      %2831 = vmatpush1.bf16.msra.mxu0 %v2636
      %2832 = vmatprep.subr.bf16.mxu0 0
      %2833 = vmatpush1.bf16.msra.mxu0 %v2637
      %2834 = vmatprep.subr.bf16.mxu0 0
      %2835 = vmatpush1.bf16.msra.mxu0 %v2638
      %2836 = vmatprep.subr.bf16.mxu0 0
      %2837 = vmatpush1.bf16.msra.mxu0 %v2639
      %2838 = vmatprep.subr.bf16.mxu0 0
      %2839 = vmatpush1.bf16.msra.mxu0 %v2640
      %2840 = vmatprep.subr.bf16.mxu0 0
      %2841 = vmatpush1.bf16.msra.mxu0 %v2641
      %2842 = vmatprep.subr.bf16.mxu0 0
      %2843 = vmatpush1.bf16.msra.mxu0 %v2642
      %2844 = vmatprep.subr.bf16.mxu0 0
      %2845 = vmatpush1.bf16.msra.mxu0 0
      %2846 = vmatprep.subr.bf16.mxu0 0
      %2847 = vmatpush1.bf16.msra.mxu0 0
      %2848 = vmatprep.subr.bf16.mxu0 0
      %2849 = vmatpush1.bf16.msra.mxu0 0
      %2850 = vmatprep.subr.bf16.mxu0 0
      %2851 = vmatpush1.bf16.msra.mxu0 0
      %2852 = vmatprep.subr.bf16.mxu0 0
      %2853 = vmatpush1.bf16.msra.mxu0 0
      %2854 = vmatprep.subr.bf16.mxu0 0
      %2855 = vmatpush1.bf16.msra.mxu0 0
      %2856 = vmatprep.subr.bf16.mxu0 0
      %2857 = vmatpush1.bf16.msra.mxu0 0
      %2858 = vmatprep.subr.bf16.mxu0 0
      %2859 = vmatpush1.bf16.msra.mxu0 0
      %2860 = vmatprep.mubr.bf16.mxu0 0
      %2861 = vmatmul.mubr.bf16.gmra.mrb[0].mxu0 %v2412
      %v2862 = vpop.f32.mrb[0].mxu0
      %v2863 = vadd.f32 %v2702, %v2862
      %v2864 = vpop.f32.mrb[0].mxu0
      %v2865 = vpop.f32.mrb[0].mxu0
      %v2866 = vadd.f32 %v2705, %v2865
      %v2867 = vpop.f32.mrb[0].mxu0
      %2868 = vmatprep.mubr.bf16.mxu0 0
      %2869 = vmatmul.mubr.bf16.gmra.mrb[0].mxu0 %v2415
      %v2870 = vpop.f32.mrb[0].mxu0
      %v2871 = vadd.f32 %v2710, %v2870
      %v2872 = vpop.f32.mrb[0].mxu0
      %v2873 = vpop.f32.mrb[0].mxu0
      %v2874 = vadd.f32 %v2713, %v2873
      %v2875 = vpop.f32.mrb[0].mxu0
      %2876 = vmatprep.mubr.bf16.mxu0 0
      %2877 = vmatmul.mubr.bf16.gmra.mrb[0].mxu0 %v2418
      %v2878 = vpop.f32.mrb[0].mxu0
      %v2879 = vadd.f32 %v2718, %v2878
      %v2880 = vpop.f32.mrb[0].mxu0
      %v2881 = vpop.f32.mrb[0].mxu0
      %v2882 = vadd.f32 %v2721, %v2881
      %v2883 = vpop.f32.mrb[0].mxu0
      %2884 = vmatprep.mubr.bf16.mxu0 0
      %2885 = vmatmul.mubr.bf16.gmra.mrb[0].mxu0 %v2421
      %v2886 = vpop.f32.mrb[0].mxu0
      %v2887 = vadd.f32 %v2726, %v2886
      %v2888 = vpop.f32.mrb[0].mxu0
      %v2889 = vpop.f32.mrb[0].mxu0
      %v2890 = vadd.f32 %v2729, %v2889
      %v2891 = vpop.f32.mrb[0].mxu0
      %2892 = vmatprep.mubr.bf16.mxu0 0
      %2893 = vmatmul.mubr.bf16.gmra.mrb[0].mxu0 %v2424
      %v2894 = vpop.f32.mrb[0].mxu0
      %v2895 = vadd.f32 %v2734, %v2894
      %v2896 = vpop.f32.mrb[0].mxu0
      %v2897 = vpop.f32.mrb[0].mxu0
      %v2898 = vadd.f32 %v2737, %v2897
      %v2899 = vpop.f32.mrb[0].mxu0
      %2900 = vmatprep.mubr.bf16.mxu0 0
      %2901 = vmatmul.mubr.bf16.gmra.mrb[0].mxu0 %v2427
      %v2902 = vpop.f32.mrb[0].mxu0
      %v2903 = vadd.f32 %v2742, %v2902
      %v2904 = vpop.f32.mrb[0].mxu0
      %v2905 = vpop.f32.mrb[0].mxu0
      %v2906 = vadd.f32 %v2745, %v2905
      %v2907 = vpop.f32.mrb[0].mxu0
      %2908 = vmatprep.mubr.bf16.mxu0 0
      %2909 = vmatmul.mubr.bf16.gmra.mrb[0].mxu0 %v2430
      %v2910 = vpop.f32.mrb[0].mxu0
      %v2911 = vadd.f32 %v2750, %v2910
      %v2912 = vpop.f32.mrb[0].mxu0
      %v2913 = vpop.f32.mrb[0].mxu0
      %v2914 = vadd.f32 %v2753, %v2913
      %v2915 = vpop.f32.mrb[0].mxu0
      %2916 = vmatprep.mubr.bf16.mxu0 0
      %2917 = vmatmul.mubr.bf16.gmra.mrb[0].mxu0 %v2433
      %v2918 = vpop.f32.mrb[0].mxu0
      %v2919 = vadd.f32 %v2758, %v2918
      %v2920 = vpop.f32.mrb[0].mxu0
      %v2921 = vpop.f32.mrb[0].mxu0
      %v2922 = vadd.f32 %v2761, %v2921
      %v2923 = vpop.f32.mrb[0].mxu0
      %2924 = vmatprep.mubr.bf16.mxu0 0
      %2925 = vmatmul.mubr.bf16.gmra.mrb[0].mxu0 %v2436
      %v2926 = vpop.f32.mrb[0].mxu0
      %v2927 = vadd.f32 %v2766, %v2926
      %v2928 = vpop.f32.mrb[0].mxu0
      %v2929 = vpop.f32.mrb[0].mxu0
      %v2930 = vadd.f32 %v2769, %v2929
      %v2931 = vpop.f32.mrb[0].mxu0
      %2932 = vmatprep.mubr.bf16.mxu0 0
      %2933 = vmatmul.mubr.bf16.gmra.mrb[0].mxu0 %v2439
      %v2934 = vpop.f32.mrb[0].mxu0
      %v2935 = vadd.f32 %v2774, %v2934
      %v2936 = vpop.f32.mrb[0].mxu0
      %v2937 = vpop.f32.mrb[0].mxu0
      %v2938 = vadd.f32 %v2777, %v2937
      %v2939 = vpop.f32.mrb[0].mxu0
      %2940 = vmatprep.mubr.bf16.mxu0 0
      %2941 = vmatmul.mubr.bf16.gmra.mrb[0].mxu0 %v2442
      %v2942 = vpop.f32.mrb[0].mxu0
      %v2943 = vadd.f32 %v2782, %v2942
      %v2944 = vpop.f32.mrb[0].mxu0
      %v2945 = vpop.f32.mrb[0].mxu0
      %v2946 = vadd.f32 %v2785, %v2945
      %v2947 = vpop.f32.mrb[0].mxu0
      %2948 = vmatprep.mubr.bf16.mxu0 0
      %2949 = vmatmul.mubr.bf16.gmra.mrb[0].mxu0 %v2445
      %v2950 = vpop.f32.mrb[0].mxu0
      %v2951 = vadd.f32 %v2790, %v2950
      %v2952 = vpop.f32.mrb[0].mxu0
      %v2953 = vpop.f32.mrb[0].mxu0
      %v2954 = vadd.f32 %v2793, %v2953
      %v2955 = vpop.f32.mrb[0].mxu0
      %2956 = vmatprep.mubr.bf16.mxu0 0
      %2957 = vmatmul.mubr.bf16.gmra.mrb[0].mxu0 %v2448
      %v2958 = vpop.f32.mrb[0].mxu0
      %v2959 = vadd.f32 %v2798, %v2958
      %v2960 = vpop.f32.mrb[0].mxu0
      %v2961 = vpop.f32.mrb[0].mxu0
      %v2962 = vadd.f32 %v2801, %v2961
      %v2963 = vpop.f32.mrb[0].mxu0
      %2964 = vmatprep.mubr.bf16.mxu0 0
      %2965 = vmatmul.mubr.bf16.gmra.mrb[0].mxu0 %v2451
      %v2966 = vpop.f32.mrb[0].mxu0
      %v2967 = vadd.f32 %v2806, %v2966
      %v2968 = vpop.f32.mrb[0].mxu0
      %v2969 = vpop.f32.mrb[0].mxu0
      %v2970 = vadd.f32 %v2809, %v2969
      %v2971 = vpop.f32.mrb[0].mxu0
      %2972 = vmatprep.mubr.bf16.mxu0 0
      %2973 = vmatmul.mubr.bf16.gmra.mrb[0].mxu0 %v2454
      %v2974 = vpop.f32.mrb[0].mxu0
      %v2975 = vadd.f32 %v2814, %v2974
      %v2976 = vpop.f32.mrb[0].mxu0
      %v2977 = vpop.f32.mrb[0].mxu0
      %v2978 = vadd.f32 %v2817, %v2977
      %v2979 = vpop.f32.mrb[0].mxu0
      %2980 = vmatprep.mubr.bf16.mxu0 0
      %2981 = vmatmul.mubr.bf16.gmra.mrb[0].mxu0 %v2457
      %v2982 = vpop.f32.mrb[0].mxu0
      %v2983 = vadd.f32 %v2822, %v2982
      %v2984 = vpop.f32.mrb[0].mxu0
      %v2985 = vpop.f32.mrb[0].mxu0
      %v2986 = vadd.f32 %v2825, %v2985
      %v2987 = vpop.f32.mrb[0].mxu0
      %2988 = vdwg.mxu0
      %v3037 = vunpack.c.l.b16 %v1898
      %v3038 = vunpack.c.l.b16 %v1899
      %v3039 = vunpack.c.l.b16 %v1900
      %v3040 = vunpack.c.l.b16 %v1901
      %v3041 = vunpack.c.l.b16 %v1902
      %v3042 = vunpack.c.l.b16 %v1903
      %v3043 = vunpack.c.l.b16 %v1904
      %v3044 = vunpack.c.l.b16 %v1905
      %v3045 = vunpack.c.l.b16 %v1906
      %v3046 = vunpack.c.l.b16 %v1907
      %v3047 = vunpack.c.l.b16 %v1908
      %v3048 = vunpack.c.l.b16 %v1909
      %v3049 = vunpack.c.l.b16 %v1910
      %v3050 = vunpack.c.l.b16 %v1911
      %v3051 = vunpack.c.l.b16 %v1912
      %v3052 = vunpack.c.l.b16 %v1913
      %v3053 = vunpack.c.l.b16 %v1914
      %v3054 = vunpack.c.l.b16 %v1915
      %v3055 = vunpack.c.l.b16 %v1916
      %v3056 = vunpack.c.l.b16 %v1917
      %v3057 = vunpack.c.l.b16 %v1918
      %v3058 = vunpack.c.l.b16 %v1919
      %v3059 = vunpack.c.l.b16 %v1920
      %v3060 = vunpack.c.l.b16 %v1921
      %v3061 = vunpack.c.l.b16 %v1922
      %v3062 = vunpack.c.l.b16 %v1923
      %v3063 = vunpack.c.l.b16 %v1924
      %v3064 = vunpack.c.l.b16 %v1925
      %v3065 = vunpack.c.l.b16 %v1926
      %v3066 = vunpack.c.l.b16 %v1927
      %v3067 = vunpack.c.l.b16 %v1928
      %v3068 = vunpack.c.l.b16 %v1929
      %v3069 = vunpack.c.l.b16 %v1930
      %v3070 = vunpack.c.l.b16 %v1931
      %v3071 = vunpack.c.l.b16 %v1932
      %v3072 = vunpack.c.l.b16 %v1933
      %v3073 = vunpack.c.l.b16 %v1934
      %v3074 = vunpack.c.l.b16 %v1935
      %v3075 = vunpack.c.l.b16 %v1936
      %v3076 = vunpack.c.l.b16 %v1937
      %v3077 = vunpack.c.l.b16 %v1938
      %v3078 = vunpack.c.l.b16 %v1939
      %v3079 = vunpack.c.l.b16 %v1940
      %v3080 = vunpack.c.l.b16 %v1941
      %v3081 = vunpack.c.l.b16 %v1942
      %v3082 = vunpack.c.l.b16 %v1943
      %v3083 = vunpack.c.l.b16 %v1944
      %v3084 = vunpack.c.l.b16 %v1945
      %v3085 = vpack.c.b16 %v3038, %v3037
      %v3086 = vpack.c.b16 %v3040, %v3039
      %v3087 = vpack.c.b16 %v3042, %v3041
      %v3088 = vpack.c.b16 %v3044, %v3043
      %v3089 = vpack.c.b16 %v3046, %v3045
      %v3090 = vpack.c.b16 %v3048, %v3047
      %v3091 = vpack.c.b16 %v3050, %v3049
      %v3092 = vpack.c.b16 %v3052, %v3051
      %v3093 = vpack.c.b16 %v3054, %v3053
      %v3094 = vpack.c.b16 %v3056, %v3055
      %v3095 = vpack.c.b16 %v3058, %v3057
      %v3096 = vpack.c.b16 %v3060, %v3059
      %v3097 = vpack.c.b16 %v3062, %v3061
      %v3098 = vpack.c.b16 %v3064, %v3063
      %v3099 = vpack.c.b16 %v3066, %v3065
      %v3100 = vpack.c.b16 %v3068, %v3067
      %v3101 = vpack.c.b16 %v3070, %v3069
      %v3102 = vpack.c.b16 %v3072, %v3071
      %v3103 = vpack.c.b16 %v3074, %v3073
      %v3104 = vpack.c.b16 %v3076, %v3075
      %v3105 = vpack.c.b16 %v3078, %v3077
      %v3106 = vpack.c.b16 %v3080, %v3079
      %v3107 = vpack.c.b16 %v3082, %v3081
      %v3108 = vpack.c.b16 %v3084, %v3083
      %3133 = vmatprep.subr.bf16.mxu0 0
      %3134 = vmatpush1.bf16.msra.mxu0 %v3085
      %3135 = vmatprep.subr.bf16.mxu0 0
      %3136 = vmatpush1.bf16.msra.mxu0 %v3086
      %3137 = vmatprep.subr.bf16.mxu0 0
      %3138 = vmatpush1.bf16.msra.mxu0 %v3087
      %3139 = vmatprep.subr.bf16.mxu0 0
      %3140 = vmatpush1.bf16.msra.mxu0 %v3088
      %3141 = vmatprep.subr.bf16.mxu0 0
      %3142 = vmatpush1.bf16.msra.mxu0 %v3089
      %3143 = vmatprep.subr.bf16.mxu0 0
      %3144 = vmatpush1.bf16.msra.mxu0 %v3090
      %3145 = vmatprep.subr.bf16.mxu0 0
      %3146 = vmatpush1.bf16.msra.mxu0 %v3091
      %3147 = vmatprep.subr.bf16.mxu0 0
      %3148 = vmatpush1.bf16.msra.mxu0 %v3092
      %3149 = vmatprep.subr.bf16.mxu0 0
      %3150 = vmatpush1.bf16.msra.mxu0 %v3093
      %3151 = vmatprep.subr.bf16.mxu0 0
      %3152 = vmatpush1.bf16.msra.mxu0 %v3094
      %3153 = vmatprep.subr.bf16.mxu0 0
      %3154 = vmatpush1.bf16.msra.mxu0 %v3095
      %3155 = vmatprep.subr.bf16.mxu0 0
      %3156 = vmatpush1.bf16.msra.mxu0 %v3096
      %3157 = vmatprep.subr.bf16.mxu0 0
      %3158 = vmatpush1.bf16.msra.mxu0 %v3097
      %3159 = vmatprep.subr.bf16.mxu0 0
      %3160 = vmatpush1.bf16.msra.mxu0 %v3098
      %3161 = vmatprep.subr.bf16.mxu0 0
      %3162 = vmatpush1.bf16.msra.mxu0 %v3099
      %3163 = vmatprep.subr.bf16.mxu0 0
      %3164 = vmatpush1.bf16.msra.mxu0 %v3100
      %3165 = vmatprep.mubr.bf16.mxu0 %v1588
      %3166 = vmatmul.mubr.bf16.gmra.mrb[0].mxu0 %v1496
      %v3167 = vpop.f32.mrb[0].mxu0
      %v3168 = vadd.f32 %v2863, %v3167
      %v3169 = vpop.f32.mrb[0].mxu0
      %v3170 = vpop.f32.mrb[0].mxu0
      %v3171 = vadd.f32 %v2866, %v3170
      %v3172 = vpop.f32.mrb[0].mxu0
      %3173 = vmatprep.mubr.bf16.mxu0 %v1600
      %3174 = vmatmul.mubr.bf16.gmra.mrb[0].mxu0 %v1497
      %v3175 = vpop.f32.mrb[0].mxu0
      %v3176 = vadd.f32 %v2871, %v3175
      %v3177 = vpop.f32.mrb[0].mxu0
      %v3178 = vpop.f32.mrb[0].mxu0
      %v3179 = vadd.f32 %v2874, %v3178
      %v3180 = vpop.f32.mrb[0].mxu0
      %3181 = vmatprep.mubr.bf16.mxu0 %v1612
      %3182 = vmatmul.mubr.bf16.gmra.mrb[0].mxu0 %v1498
      %v3183 = vpop.f32.mrb[0].mxu0
      %v3184 = vadd.f32 %v2879, %v3183
      %v3185 = vpop.f32.mrb[0].mxu0
      %v3186 = vpop.f32.mrb[0].mxu0
      %v3187 = vadd.f32 %v2882, %v3186
      %v3188 = vpop.f32.mrb[0].mxu0
      %3189 = vmatprep.mubr.bf16.mxu0 %v1624
      %3190 = vmatmul.mubr.bf16.gmra.mrb[0].mxu0 %v1499
      %v3191 = vpop.f32.mrb[0].mxu0
      %v3192 = vadd.f32 %v2887, %v3191
      %v3193 = vpop.f32.mrb[0].mxu0
      %v3194 = vpop.f32.mrb[0].mxu0
      %v3195 = vadd.f32 %v2890, %v3194
      %v3196 = vpop.f32.mrb[0].mxu0
      %3197 = vmatprep.mubr.bf16.mxu0 %v1636
      %3198 = vmatmul.mubr.bf16.gmra.mrb[0].mxu0 %v1500
      %v3199 = vpop.f32.mrb[0].mxu0
      %v3200 = vadd.f32 %v2895, %v3199
      %v3201 = vpop.f32.mrb[0].mxu0
      %v3202 = vpop.f32.mrb[0].mxu0
      %v3203 = vadd.f32 %v2898, %v3202
      %v3204 = vpop.f32.mrb[0].mxu0
      %3205 = vmatprep.mubr.bf16.mxu0 %v1648
      %3206 = vmatmul.mubr.bf16.gmra.mrb[0].mxu0 %v1501
      %v3207 = vpop.f32.mrb[0].mxu0
      %v3208 = vadd.f32 %v2903, %v3207
      %v3209 = vpop.f32.mrb[0].mxu0
      %v3210 = vpop.f32.mrb[0].mxu0
      %v3211 = vadd.f32 %v2906, %v3210
      %v3212 = vpop.f32.mrb[0].mxu0
      %3213 = vmatprep.mubr.bf16.mxu0 %v1660
      %3214 = vmatmul.mubr.bf16.gmra.mrb[0].mxu0 %v1502
      %v3215 = vpop.f32.mrb[0].mxu0
      %v3216 = vadd.f32 %v2911, %v3215
      %v3217 = vpop.f32.mrb[0].mxu0
      %v3218 = vpop.f32.mrb[0].mxu0
      %v3219 = vadd.f32 %v2914, %v3218
      %v3220 = vpop.f32.mrb[0].mxu0
      %3221 = vmatprep.mubr.bf16.mxu0 %v1672
      %3222 = vmatmul.mubr.bf16.gmra.mrb[0].mxu0 %v1503
      %v3223 = vpop.f32.mrb[0].mxu0
      %v3224 = vadd.f32 %v2919, %v3223
      %v3225 = vpop.f32.mrb[0].mxu0
      %v3226 = vpop.f32.mrb[0].mxu0
      %v3227 = vadd.f32 %v2922, %v3226
      %v3228 = vpop.f32.mrb[0].mxu0
      %3229 = vmatprep.mubr.bf16.mxu0 %v1684
      %3230 = vmatmul.mubr.bf16.gmra.mrb[0].mxu0 %v1504
      %v3231 = vpop.f32.mrb[0].mxu0
      %v3232 = vadd.f32 %v2927, %v3231
      %v3233 = vpop.f32.mrb[0].mxu0
      %v3234 = vpop.f32.mrb[0].mxu0
      %v3235 = vadd.f32 %v2930, %v3234
      %v3236 = vpop.f32.mrb[0].mxu0
      %3237 = vmatprep.mubr.bf16.mxu0 %v1696
      %3238 = vmatmul.mubr.bf16.gmra.mrb[0].mxu0 %v1505
      %v3239 = vpop.f32.mrb[0].mxu0
      %v3240 = vadd.f32 %v2935, %v3239
      %v3241 = vpop.f32.mrb[0].mxu0
      %v3242 = vpop.f32.mrb[0].mxu0
      %v3243 = vadd.f32 %v2938, %v3242
      %v3244 = vpop.f32.mrb[0].mxu0
      %3245 = vmatprep.mubr.bf16.mxu0 %v1708
      %3246 = vmatmul.mubr.bf16.gmra.mrb[0].mxu0 %v1506
      %v3247 = vpop.f32.mrb[0].mxu0
      %v3248 = vadd.f32 %v2943, %v3247
      %v3249 = vpop.f32.mrb[0].mxu0
      %v3250 = vpop.f32.mrb[0].mxu0
      %v3251 = vadd.f32 %v2946, %v3250
      %v3252 = vpop.f32.mrb[0].mxu0
      %3253 = vmatprep.mubr.bf16.mxu0 %v1720
      %3254 = vmatmul.mubr.bf16.gmra.mrb[0].mxu0 %v1507
      %v3255 = vpop.f32.mrb[0].mxu0
      %v3256 = vadd.f32 %v2951, %v3255
      %v3257 = vpop.f32.mrb[0].mxu0
      %v3258 = vpop.f32.mrb[0].mxu0
      %v3259 = vadd.f32 %v2954, %v3258
      %v3260 = vpop.f32.mrb[0].mxu0
      %3261 = vmatprep.mubr.bf16.mxu0 %v1732
      %3262 = vmatmul.mubr.bf16.gmra.mrb[0].mxu0 %v1508
      %v3263 = vpop.f32.mrb[0].mxu0
      %v3264 = vadd.f32 %v2959, %v3263
      %v3265 = vpop.f32.mrb[0].mxu0
      %v3266 = vpop.f32.mrb[0].mxu0
      %v3267 = vadd.f32 %v2962, %v3266
      %v3268 = vpop.f32.mrb[0].mxu0
      %3269 = vmatprep.mubr.bf16.mxu0 %v1744
      %3270 = vmatmul.mubr.bf16.gmra.mrb[0].mxu0 %v1509
      %v3271 = vpop.f32.mrb[0].mxu0
      %v3272 = vadd.f32 %v2967, %v3271
      %v3273 = vpop.f32.mrb[0].mxu0
      %v3274 = vpop.f32.mrb[0].mxu0
      %v3275 = vadd.f32 %v2970, %v3274
      %v3276 = vpop.f32.mrb[0].mxu0
      %3277 = vmatprep.mubr.bf16.mxu0 %v1756
      %3278 = vmatmul.mubr.bf16.gmra.mrb[0].mxu0 %v1510
      %v3279 = vpop.f32.mrb[0].mxu0
      %v3280 = vadd.f32 %v2975, %v3279
      %v3281 = vpop.f32.mrb[0].mxu0
      %v3282 = vpop.f32.mrb[0].mxu0
      %v3283 = vadd.f32 %v2978, %v3282
      %v3284 = vpop.f32.mrb[0].mxu0
      %3285 = vmatprep.mubr.bf16.mxu0 %v1768
      %3286 = vmatmul.mubr.bf16.gmra.mrb[0].mxu0 %v1511
      %v3287 = vpop.f32.mrb[0].mxu0
      %v3288 = vadd.f32 %v2983, %v3287
      %v3289 = vpop.f32.mrb[0].mxu0
      %v3290 = vpop.f32.mrb[0].mxu0
      %v3291 = vadd.f32 %v2986, %v3290
      %v3292 = vpop.f32.mrb[0].mxu0
      %3293 = vdwg.mxu0
      %3294 = vmatprep.subr.bf16.mxu0 0
      %3295 = vmatpush1.bf16.msra.mxu0 %v3101
      %3296 = vmatprep.subr.bf16.mxu0 0
      %3297 = vmatpush1.bf16.msra.mxu0 %v3102
      %3298 = vmatprep.subr.bf16.mxu0 0
      %3299 = vmatpush1.bf16.msra.mxu0 %v3103
      %3300 = vmatprep.subr.bf16.mxu0 0
      %3301 = vmatpush1.bf16.msra.mxu0 %v3104
      %3302 = vmatprep.subr.bf16.mxu0 0
      %3303 = vmatpush1.bf16.msra.mxu0 %v3105
      %3304 = vmatprep.subr.bf16.mxu0 0
      %3305 = vmatpush1.bf16.msra.mxu0 %v3106
      %3306 = vmatprep.subr.bf16.mxu0 0
      %3307 = vmatpush1.bf16.msra.mxu0 %v3107
      %3308 = vmatprep.subr.bf16.mxu0 0
      %3309 = vmatpush1.bf16.msra.mxu0 %v3108
      %3310 = vmatprep.subr.bf16.mxu0 0
      %3311 = vmatpush1.bf16.msra.mxu0 0
      %3312 = vmatprep.subr.bf16.mxu0 0
      %3313 = vmatpush1.bf16.msra.mxu0 0
      %3314 = vmatprep.subr.bf16.mxu0 0
      %3315 = vmatpush1.bf16.msra.mxu0 0
      %3316 = vmatprep.subr.bf16.mxu0 0
      %3317 = vmatpush1.bf16.msra.mxu0 0
      %3318 = vmatprep.subr.bf16.mxu0 0
      %3319 = vmatpush1.bf16.msra.mxu0 0
      %3320 = vmatprep.subr.bf16.mxu0 0
      %3321 = vmatpush1.bf16.msra.mxu0 0
      %3322 = vmatprep.subr.bf16.mxu0 0
      %3323 = vmatpush1.bf16.msra.mxu0 0
      %3324 = vmatprep.subr.bf16.mxu0 0
      %3325 = vmatpush1.bf16.msra.mxu0 0
      %3326 = vmatprep.mubr.bf16.mxu0 0
      %3327 = vmatmul.mubr.bf16.gmra.mrb[0].mxu0 %v1836
      %v3328 = vpop.f32.mrb[0].mxu0
      %v3329 = vadd.f32 %v3168, %v3328
      %v3330 = vpop.f32.mrb[0].mxu0
      %v3331 = vpop.f32.mrb[0].mxu0
      %v3332 = vadd.f32 %v3171, %v3331
      %v3333 = vpop.f32.mrb[0].mxu0
      %3334 = vmatprep.mubr.bf16.mxu0 0
      %3335 = vmatmul.mubr.bf16.gmra.mrb[0].mxu0 %v1839
      %v3336 = vpop.f32.mrb[0].mxu0
      %v3337 = vadd.f32 %v3176, %v3336
      %v3338 = vpop.f32.mrb[0].mxu0
      %v3339 = vpop.f32.mrb[0].mxu0
      %v3340 = vadd.f32 %v3179, %v3339
      %v3341 = vpop.f32.mrb[0].mxu0
      %3342 = vmatprep.mubr.bf16.mxu0 0
      %3343 = vmatmul.mubr.bf16.gmra.mrb[0].mxu0 %v1842
      %v3344 = vpop.f32.mrb[0].mxu0
      %v3345 = vadd.f32 %v3184, %v3344
      %v3346 = vpop.f32.mrb[0].mxu0
      %v3347 = vpop.f32.mrb[0].mxu0
      %v3348 = vadd.f32 %v3187, %v3347
      %v3349 = vpop.f32.mrb[0].mxu0
      %3350 = vmatprep.mubr.bf16.mxu0 0
      %3351 = vmatmul.mubr.bf16.gmra.mrb[0].mxu0 %v1845
      %v3352 = vpop.f32.mrb[0].mxu0
      %v3353 = vadd.f32 %v3192, %v3352
      %v3354 = vpop.f32.mrb[0].mxu0
      %v3355 = vpop.f32.mrb[0].mxu0
      %v3356 = vadd.f32 %v3195, %v3355
      %v3357 = vpop.f32.mrb[0].mxu0
      %3358 = vmatprep.mubr.bf16.mxu0 0
      %3359 = vmatmul.mubr.bf16.gmra.mrb[0].mxu0 %v1848
      %v3360 = vpop.f32.mrb[0].mxu0
      %v3361 = vadd.f32 %v3200, %v3360
      %v3362 = vpop.f32.mrb[0].mxu0
      %v3363 = vpop.f32.mrb[0].mxu0
      %v3364 = vadd.f32 %v3203, %v3363
      %v3365 = vpop.f32.mrb[0].mxu0
      %3366 = vmatprep.mubr.bf16.mxu0 0
      %3367 = vmatmul.mubr.bf16.gmra.mrb[0].mxu0 %v1851
      %v3368 = vpop.f32.mrb[0].mxu0
      %v3369 = vadd.f32 %v3208, %v3368
      %v3370 = vpop.f32.mrb[0].mxu0
      %v3371 = vpop.f32.mrb[0].mxu0
      %v3372 = vadd.f32 %v3211, %v3371
      %v3373 = vpop.f32.mrb[0].mxu0
      %3374 = vmatprep.mubr.bf16.mxu0 0
      %3375 = vmatmul.mubr.bf16.gmra.mrb[0].mxu0 %v1854
      %v3376 = vpop.f32.mrb[0].mxu0
      %v3377 = vadd.f32 %v3216, %v3376
      %v3378 = vpop.f32.mrb[0].mxu0
      %v3379 = vpop.f32.mrb[0].mxu0
      %v3380 = vadd.f32 %v3219, %v3379
      %v3381 = vpop.f32.mrb[0].mxu0
      %3382 = vmatprep.mubr.bf16.mxu0 0
      %3383 = vmatmul.mubr.bf16.gmra.mrb[0].mxu0 %v1857
      %v3384 = vpop.f32.mrb[0].mxu0
      %v3385 = vadd.f32 %v3224, %v3384
      %v3386 = vpop.f32.mrb[0].mxu0
      %v3387 = vpop.f32.mrb[0].mxu0
      %v3388 = vadd.f32 %v3227, %v3387
      %v3389 = vpop.f32.mrb[0].mxu0
      %3390 = vmatprep.mubr.bf16.mxu0 0
      %3391 = vmatmul.mubr.bf16.gmra.mrb[0].mxu0 %v1860
      %v3392 = vpop.f32.mrb[0].mxu0
      %v3393 = vadd.f32 %v3232, %v3392
      %v3394 = vpop.f32.mrb[0].mxu0
      %v3395 = vpop.f32.mrb[0].mxu0
      %v3396 = vadd.f32 %v3235, %v3395
      %v3397 = vpop.f32.mrb[0].mxu0
      %3398 = vmatprep.mubr.bf16.mxu0 0
      %3399 = vmatmul.mubr.bf16.gmra.mrb[0].mxu0 %v1863
      %v3400 = vpop.f32.mrb[0].mxu0
      %v3401 = vadd.f32 %v3240, %v3400
      %v3402 = vpop.f32.mrb[0].mxu0
      %v3403 = vpop.f32.mrb[0].mxu0
      %v3404 = vadd.f32 %v3243, %v3403
      %v3405 = vpop.f32.mrb[0].mxu0
      %3406 = vmatprep.mubr.bf16.mxu0 0
      %3407 = vmatmul.mubr.bf16.gmra.mrb[0].mxu0 %v1866
      %v3408 = vpop.f32.mrb[0].mxu0
      %v3409 = vadd.f32 %v3248, %v3408
      %v3410 = vpop.f32.mrb[0].mxu0
      %v3411 = vpop.f32.mrb[0].mxu0
      %v3412 = vadd.f32 %v3251, %v3411
      %v3413 = vpop.f32.mrb[0].mxu0
      %3414 = vmatprep.mubr.bf16.mxu0 0
      %3415 = vmatmul.mubr.bf16.gmra.mrb[0].mxu0 %v1869
      %v3416 = vpop.f32.mrb[0].mxu0
      %v3417 = vadd.f32 %v3256, %v3416
      %v3418 = vpop.f32.mrb[0].mxu0
      %v3419 = vpop.f32.mrb[0].mxu0
      %v3420 = vadd.f32 %v3259, %v3419
      %v3421 = vpop.f32.mrb[0].mxu0
      %3422 = vmatprep.mubr.bf16.mxu0 0
      %3423 = vmatmul.mubr.bf16.gmra.mrb[0].mxu0 %v1872
      %v3424 = vpop.f32.mrb[0].mxu0
      %v3425 = vadd.f32 %v3264, %v3424
      %v3426 = vpop.f32.mrb[0].mxu0
      %v3427 = vpop.f32.mrb[0].mxu0
      %v3428 = vadd.f32 %v3267, %v3427
      %v3429 = vpop.f32.mrb[0].mxu0
      %3430 = vmatprep.mubr.bf16.mxu0 0
      %3431 = vmatmul.mubr.bf16.gmra.mrb[0].mxu0 %v1875
      %v3432 = vpop.f32.mrb[0].mxu0
      %v3433 = vadd.f32 %v3272, %v3432
      %v3434 = vpop.f32.mrb[0].mxu0
      %v3435 = vpop.f32.mrb[0].mxu0
      %v3436 = vadd.f32 %v3275, %v3435
      %v3437 = vpop.f32.mrb[0].mxu0
      %3438 = vmatprep.mubr.bf16.mxu0 0
      %3439 = vmatmul.mubr.bf16.gmra.mrb[0].mxu0 %v1878
      %v3440 = vpop.f32.mrb[0].mxu0
      %v3441 = vadd.f32 %v3280, %v3440
      %v3442 = vpop.f32.mrb[0].mxu0
      %v3443 = vpop.f32.mrb[0].mxu0
      %v3444 = vadd.f32 %v3283, %v3443
      %v3445 = vpop.f32.mrb[0].mxu0
      %3446 = vmatprep.mubr.bf16.mxu0 0
      %3447 = vmatmul.mubr.bf16.gmra.mrb[0].mxu0 %v1881
      %v3448 = vpop.f32.mrb[0].mxu0
      %v3449 = vadd.f32 %v3288, %v3448
      %v3450 = vpop.f32.mrb[0].mxu0
      %v3451 = vpop.f32.mrb[0].mxu0
      %v3452 = vadd.f32 %v3291, %v3451
      %v3453 = vpop.f32.mrb[0].mxu0
      %3454 = vdwg.mxu0
      %s3455 = scalar_lea.vmem [#allocation2], 24
      %v3456 = vld [vmem:[%s3455] sm:$0xf]
      %v3457 = vld [vmem:[%s3455 + $0x4] sm:$0xf]
      %v3458 = vld [vmem:[%s3455 + $0xc] sm:$0xf]
      %v3459 = vld [vmem:[%s3455 + $0x10] sm:$0xf]
      %v3460 = vld [vmem:[%s3455 + $0x18] sm:$0xf]
      %v3461 = vld [vmem:[%s3455 + $0x1c] sm:$0xf]
      %v3462 = vld [vmem:[%s3455 + $0x24] sm:$0xf]
      %v3463 = vld [vmem:[%s3455 + $0x28] sm:$0xf]
      %v3464 = vld [vmem:[%s3455 + $0x30] sm:$0xf]
      %v3465 = vld [vmem:[%s3455 + $0x34] sm:$0xf]
      %v3466 = vld [vmem:[%s3455 + $0x3c] sm:$0xf]
      %v3467 = vld [vmem:[%s3455 + $0x40] sm:$0xf]
      %v3468 = vld [vmem:[%s3455 + $0x48] sm:$0xf]
      %v3469 = vld [vmem:[%s3455 + $0x4c] sm:$0xf]
      %v3470 = vld [vmem:[%s3455 + $0x54] sm:$0xf]
      %v3471 = vld [vmem:[%s3455 + $0x58] sm:$0xf]
      %v3472 = vld [vmem:[%s3455 + $0x60] sm:$0xf]
      %v3473 = vld [vmem:[%s3455 + $0x64] sm:$0xf]
      %v3474 = vld [vmem:[%s3455 + $0x6c] sm:$0xf]
      %v3475 = vld [vmem:[%s3455 + $0x70] sm:$0xf]
      %v3476 = vld [vmem:[%s3455 + $0x78] sm:$0xf]
      %v3477 = vld [vmem:[%s3455 + $0x7c] sm:$0xf]
      %v3478 = vld [vmem:[%s3455 + $0x84] sm:$0xf]
      %v3479 = vld [vmem:[%s3455 + $0x88] sm:$0xf]
      %v3480 = vld [vmem:[%s3455 + $0x90] sm:$0xf]
      %v3481 = vld [vmem:[%s3455 + $0x94] sm:$0xf]
      %v3482 = vld [vmem:[%s3455 + $0x9c] sm:$0xf]
      %v3483 = vld [vmem:[%s3455 + $0xa0] sm:$0xf]
      %v3484 = vld [vmem:[%s3455 + $0xa8] sm:$0xf]
      %v3485 = vld [vmem:[%s3455 + $0xac] sm:$0xf]
      %v3486 = vld [vmem:[%s3455 + $0xb4] sm:$0xf]
      %v3487 = vld [vmem:[%s3455 + $0xb8] sm:$0xf]
      %v3488 = vld [vmem:[%s3455 + $0x8] sm:$0x1]
      %v3489 = vld [vmem:[%s3455 + $0x14] sm:$0x1]
      %v3490 = vld [vmem:[%s3455 + $0x20] sm:$0x1]
      %v3491 = vld [vmem:[%s3455 + $0x2c] sm:$0x1]
      %v3492 = vld [vmem:[%s3455 + $0x38] sm:$0x1]
      %v3493 = vld [vmem:[%s3455 + $0x44] sm:$0x1]
      %v3494 = vld [vmem:[%s3455 + $0x50] sm:$0x1]
      %v3495 = vld [vmem:[%s3455 + $0x5c] sm:$0x1]
      %v3496 = vld [vmem:[%s3455 + $0x68] sm:$0x1]
      %v3497 = vld [vmem:[%s3455 + $0x74] sm:$0x1]
      %v3498 = vld [vmem:[%s3455 + $0x80] sm:$0x1]
      %v3499 = vld [vmem:[%s3455 + $0x8c] sm:$0x1]
      %v3500 = vld [vmem:[%s3455 + $0x98] sm:$0x1]
      %v3501 = vld [vmem:[%s3455 + $0xa4] sm:$0x1]
      %v3502 = vld [vmem:[%s3455 + $0xb0] sm:$0x1]
      %v3503 = vld [vmem:[%s3455 + $0xbc] sm:$0x1]
      %v3504 = vld [vmem:[%s3455] sm:$0xe]
      %v3505 = vld [vmem:[%s3455 + $0xc] sm:$0xe]
      %v3506 = vld [vmem:[%s3455 + $0x18] sm:$0xe]
      %v3507 = vld [vmem:[%s3455 + $0x24] sm:$0xe]
      %v3508 = vld [vmem:[%s3455 + $0x30] sm:$0xe]
      %v3509 = vld [vmem:[%s3455 + $0x3c] sm:$0xe]
      %v3510 = vld [vmem:[%s3455 + $0x48] sm:$0xe]
      %v3511 = vld [vmem:[%s3455 + $0x54] sm:$0xe]
      %v3512 = vld [vmem:[%s3455 + $0x60] sm:$0xe]
      %v3513 = vld [vmem:[%s3455 + $0x6c] sm:$0xe]
      %v3514 = vld [vmem:[%s3455 + $0x78] sm:$0xe]
      %v3515 = vld [vmem:[%s3455 + $0x84] sm:$0xe]
      %v3516 = vld [vmem:[%s3455 + $0x90] sm:$0xe]
      %v3517 = vld [vmem:[%s3455 + $0x9c] sm:$0xe]
      %v3518 = vld [vmem:[%s3455 + $0xa8] sm:$0xe]
      %v3519 = vld [vmem:[%s3455 + $0xb4] sm:$0xe]
      %v3552 = vunpack.c.l.b16 %v3456
      %v3553 = vunpack.c.l.b16 %v3457
      %v3554 = vunpack.c.l.b16 %v3458
      %v3555 = vunpack.c.l.b16 %v3459
      %v3556 = vunpack.c.l.b16 %v3460
      %v3557 = vunpack.c.l.b16 %v3461
      %v3558 = vunpack.c.l.b16 %v3462
      %v3559 = vunpack.c.l.b16 %v3463
      %v3560 = vunpack.c.l.b16 %v3464
      %v3561 = vunpack.c.l.b16 %v3465
      %v3562 = vunpack.c.l.b16 %v3466
      %v3563 = vunpack.c.l.b16 %v3467
      %v3564 = vunpack.c.l.b16 %v3468
      %v3565 = vunpack.c.l.b16 %v3469
      %v3566 = vunpack.c.l.b16 %v3470
      %v3567 = vunpack.c.l.b16 %v3471
      %v3568 = vunpack.c.l.b16 %v3472
      %v3569 = vunpack.c.l.b16 %v3473
      %v3570 = vunpack.c.l.b16 %v3474
      %v3571 = vunpack.c.l.b16 %v3475
      %v3572 = vunpack.c.l.b16 %v3476
      %v3573 = vunpack.c.l.b16 %v3477
      %v3574 = vunpack.c.l.b16 %v3478
      %v3575 = vunpack.c.l.b16 %v3479
      %v3576 = vunpack.c.l.b16 %v3480
      %v3577 = vunpack.c.l.b16 %v3481
      %v3578 = vunpack.c.l.b16 %v3482
      %v3579 = vunpack.c.l.b16 %v3483
      %v3580 = vunpack.c.l.b16 %v3484
      %v3581 = vunpack.c.l.b16 %v3485
      %v3582 = vunpack.c.l.b16 %v3486
      %v3583 = vunpack.c.l.b16 %v3487
      %v3584 = vpack.c.b16 %v3553, %v3552
      %v3585 = vpack.c.b16 %v3555, %v3554
      %v3586 = vpack.c.b16 %v3557, %v3556
      %v3587 = vpack.c.b16 %v3559, %v3558
      %v3588 = vpack.c.b16 %v3561, %v3560
      %v3589 = vpack.c.b16 %v3563, %v3562
      %v3590 = vpack.c.b16 %v3565, %v3564
      %v3591 = vpack.c.b16 %v3567, %v3566
      %v3592 = vpack.c.b16 %v3569, %v3568
      %v3593 = vpack.c.b16 %v3571, %v3570
      %v3594 = vpack.c.b16 %v3573, %v3572
      %v3595 = vpack.c.b16 %v3575, %v3574
      %v3596 = vpack.c.b16 %v3577, %v3576
      %v3597 = vpack.c.b16 %v3579, %v3578
      %v3598 = vpack.c.b16 %v3581, %v3580
      %v3599 = vpack.c.b16 %v3583, %v3582
      %v3632 = vunpack.c.l.b16 %v3488
      %v3633 = vunpack.c.l.b16 %v3489
      %v3634 = vunpack.c.l.b16 %v3490
      %v3635 = vunpack.c.l.b16 %v3491
      %v3636 = vunpack.c.l.b16 %v3492
      %v3637 = vunpack.c.l.b16 %v3493
      %v3638 = vunpack.c.l.b16 %v3494
      %v3639 = vunpack.c.l.b16 %v3495
      %v3640 = vunpack.c.l.b16 %v3496
      %v3641 = vunpack.c.l.b16 %v3497
      %v3642 = vunpack.c.l.b16 %v3498
      %v3643 = vunpack.c.l.b16 %v3499
      %v3644 = vunpack.c.l.b16 %v3500
      %v3645 = vunpack.c.l.b16 %v3501
      %v3646 = vunpack.c.l.b16 %v3502
      %v3647 = vunpack.c.l.b16 %v3503
      %v3648 = vpack.c.b16 %v3632, %v3632
      %v3649 = vpack.c.b16 %v3633, %v3633
      %v3650 = vpack.c.b16 %v3634, %v3634
      %v3651 = vpack.c.b16 %v3635, %v3635
      %v3652 = vpack.c.b16 %v3636, %v3636
      %v3653 = vpack.c.b16 %v3637, %v3637
      %v3654 = vpack.c.b16 %v3638, %v3638
      %v3655 = vpack.c.b16 %v3639, %v3639
      %v3656 = vpack.c.b16 %v3640, %v3640
      %v3657 = vpack.c.b16 %v3641, %v3641
      %v3658 = vpack.c.b16 %v3642, %v3642
      %v3659 = vpack.c.b16 %v3643, %v3643
      %v3660 = vpack.c.b16 %v3644, %v3644
      %v3661 = vpack.c.b16 %v3645, %v3645
      %v3662 = vpack.c.b16 %v3646, %v3646
      %v3663 = vpack.c.b16 %v3647, %v3647
      %v3665 = vshrl.u32 %v3584, 16
      %v3667 = vshll.u32 %v3584, 16
      %v3669 = vrot.slane %v3667, 1
      %v3670 = vor.u32 %v3665, %v3669
      %v3672 = vshll.u32 %v3648, 16
      %v3674 = vrot.slane %v3672, 1
      %v3675 = vsel %vm1576, %v3670, %v3674
      %v3677 = vshrl.u32 %v3585, 16
      %v3679 = vshll.u32 %v3585, 16
      %v3681 = vrot.slane %v3679, 1
      %v3682 = vor.u32 %v3677, %v3681
      %v3684 = vshll.u32 %v3649, 16
      %v3686 = vrot.slane %v3684, 1
      %v3687 = vsel %vm1576, %v3682, %v3686
      %v3689 = vshrl.u32 %v3586, 16
      %v3691 = vshll.u32 %v3586, 16
      %v3693 = vrot.slane %v3691, 1
      %v3694 = vor.u32 %v3689, %v3693
      %v3696 = vshll.u32 %v3650, 16
      %v3698 = vrot.slane %v3696, 1
      %v3699 = vsel %vm1576, %v3694, %v3698
      %v3701 = vshrl.u32 %v3587, 16
      %v3703 = vshll.u32 %v3587, 16
      %v3705 = vrot.slane %v3703, 1
      %v3706 = vor.u32 %v3701, %v3705
      %v3708 = vshll.u32 %v3651, 16
      %v3710 = vrot.slane %v3708, 1
      %v3711 = vsel %vm1576, %v3706, %v3710
      %v3713 = vshrl.u32 %v3588, 16
      %v3715 = vshll.u32 %v3588, 16
      %v3717 = vrot.slane %v3715, 1
      %v3718 = vor.u32 %v3713, %v3717
      %v3720 = vshll.u32 %v3652, 16
      %v3722 = vrot.slane %v3720, 1
      %v3723 = vsel %vm1576, %v3718, %v3722
      %v3725 = vshrl.u32 %v3589, 16
      %v3727 = vshll.u32 %v3589, 16
      %v3729 = vrot.slane %v3727, 1
      %v3730 = vor.u32 %v3725, %v3729
      %v3732 = vshll.u32 %v3653, 16
      %v3734 = vrot.slane %v3732, 1
      %v3735 = vsel %vm1576, %v3730, %v3734
      %v3737 = vshrl.u32 %v3590, 16
      %v3739 = vshll.u32 %v3590, 16
      %v3741 = vrot.slane %v3739, 1
      %v3742 = vor.u32 %v3737, %v3741
      %v3744 = vshll.u32 %v3654, 16
      %v3746 = vrot.slane %v3744, 1
      %v3747 = vsel %vm1576, %v3742, %v3746
      %v3749 = vshrl.u32 %v3591, 16
      %v3751 = vshll.u32 %v3591, 16
      %v3753 = vrot.slane %v3751, 1
      %v3754 = vor.u32 %v3749, %v3753
      %v3756 = vshll.u32 %v3655, 16
      %v3758 = vrot.slane %v3756, 1
      %v3759 = vsel %vm1576, %v3754, %v3758
      %v3761 = vshrl.u32 %v3592, 16
      %v3763 = vshll.u32 %v3592, 16
      %v3765 = vrot.slane %v3763, 1
      %v3766 = vor.u32 %v3761, %v3765
      %v3768 = vshll.u32 %v3656, 16
      %v3770 = vrot.slane %v3768, 1
      %v3771 = vsel %vm1576, %v3766, %v3770
      %v3773 = vshrl.u32 %v3593, 16
      %v3775 = vshll.u32 %v3593, 16
      %v3777 = vrot.slane %v3775, 1
      %v3778 = vor.u32 %v3773, %v3777
      %v3780 = vshll.u32 %v3657, 16
      %v3782 = vrot.slane %v3780, 1
      %v3783 = vsel %vm1576, %v3778, %v3782
      %v3785 = vshrl.u32 %v3594, 16
      %v3787 = vshll.u32 %v3594, 16
      %v3789 = vrot.slane %v3787, 1
      %v3790 = vor.u32 %v3785, %v3789
      %v3792 = vshll.u32 %v3658, 16
      %v3794 = vrot.slane %v3792, 1
      %v3795 = vsel %vm1576, %v3790, %v3794
      %v3797 = vshrl.u32 %v3595, 16
      %v3799 = vshll.u32 %v3595, 16
      %v3801 = vrot.slane %v3799, 1
      %v3802 = vor.u32 %v3797, %v3801
      %v3804 = vshll.u32 %v3659, 16
      %v3806 = vrot.slane %v3804, 1
      %v3807 = vsel %vm1576, %v3802, %v3806
      %v3809 = vshrl.u32 %v3596, 16
      %v3811 = vshll.u32 %v3596, 16
      %v3813 = vrot.slane %v3811, 1
      %v3814 = vor.u32 %v3809, %v3813
      %v3816 = vshll.u32 %v3660, 16
      %v3818 = vrot.slane %v3816, 1
      %v3819 = vsel %vm1576, %v3814, %v3818
      %v3821 = vshrl.u32 %v3597, 16
      %v3823 = vshll.u32 %v3597, 16
      %v3825 = vrot.slane %v3823, 1
      %v3826 = vor.u32 %v3821, %v3825
      %v3828 = vshll.u32 %v3661, 16
      %v3830 = vrot.slane %v3828, 1
      %v3831 = vsel %vm1576, %v3826, %v3830
      %v3833 = vshrl.u32 %v3598, 16
      %v3835 = vshll.u32 %v3598, 16
      %v3837 = vrot.slane %v3835, 1
      %v3838 = vor.u32 %v3833, %v3837
      %v3840 = vshll.u32 %v3662, 16
      %v3842 = vrot.slane %v3840, 1
      %v3843 = vsel %vm1576, %v3838, %v3842
      %v3845 = vshrl.u32 %v3599, 16
      %v3847 = vshll.u32 %v3599, 16
      %v3849 = vrot.slane %v3847, 1
      %v3850 = vor.u32 %v3845, %v3849
      %v3852 = vshll.u32 %v3663, 16
      %v3854 = vrot.slane %v3852, 1
      %v3855 = vsel %vm1576, %v3850, %v3854
      %v3888 = vunpack.c.l.b16 %v3504
      %v3889 = vunpack.c.l.b16 %v3505
      %v3890 = vunpack.c.l.b16 %v3506
      %v3891 = vunpack.c.l.b16 %v3507
      %v3892 = vunpack.c.l.b16 %v3508
      %v3893 = vunpack.c.l.b16 %v3509
      %v3894 = vunpack.c.l.b16 %v3510
      %v3895 = vunpack.c.l.b16 %v3511
      %v3896 = vunpack.c.l.b16 %v3512
      %v3897 = vunpack.c.l.b16 %v3513
      %v3898 = vunpack.c.l.b16 %v3514
      %v3899 = vunpack.c.l.b16 %v3515
      %v3900 = vunpack.c.l.b16 %v3516
      %v3901 = vunpack.c.l.b16 %v3517
      %v3902 = vunpack.c.l.b16 %v3518
      %v3903 = vunpack.c.l.b16 %v3519
      %v3904 = vpack.c.b16 %v3553, %v3888
      %v3905 = vpack.c.b16 %v3555, %v3889
      %v3906 = vpack.c.b16 %v3557, %v3890
      %v3907 = vpack.c.b16 %v3559, %v3891
      %v3908 = vpack.c.b16 %v3561, %v3892
      %v3909 = vpack.c.b16 %v3563, %v3893
      %v3910 = vpack.c.b16 %v3565, %v3894
      %v3911 = vpack.c.b16 %v3567, %v3895
      %v3912 = vpack.c.b16 %v3569, %v3896
      %v3913 = vpack.c.b16 %v3571, %v3897
      %v3914 = vpack.c.b16 %v3573, %v3898
      %v3915 = vpack.c.b16 %v3575, %v3899
      %v3916 = vpack.c.b16 %v3577, %v3900
      %v3917 = vpack.c.b16 %v3579, %v3901
      %v3918 = vpack.c.b16 %v3581, %v3902
      %v3919 = vpack.c.b16 %v3583, %v3903
      %v3920 = vrot.slane %v3904, 1
      %v3921 = vrot.slane %v3648, 1
      %v3922 = vsel %vm1833, %v3920, %v3921
      %v3923 = vrot.slane %v3905, 1
      %v3924 = vrot.slane %v3649, 1
      %v3925 = vsel %vm1833, %v3923, %v3924
      %v3926 = vrot.slane %v3906, 1
      %v3927 = vrot.slane %v3650, 1
      %v3928 = vsel %vm1833, %v3926, %v3927
      %v3929 = vrot.slane %v3907, 1
      %v3930 = vrot.slane %v3651, 1
      %v3931 = vsel %vm1833, %v3929, %v3930
      %v3932 = vrot.slane %v3908, 1
      %v3933 = vrot.slane %v3652, 1
      %v3934 = vsel %vm1833, %v3932, %v3933
      %v3935 = vrot.slane %v3909, 1
      %v3936 = vrot.slane %v3653, 1
      %v3937 = vsel %vm1833, %v3935, %v3936
      %v3938 = vrot.slane %v3910, 1
      %v3939 = vrot.slane %v3654, 1
      %v3940 = vsel %vm1833, %v3938, %v3939
      %v3941 = vrot.slane %v3911, 1
      %v3942 = vrot.slane %v3655, 1
      %v3943 = vsel %vm1833, %v3941, %v3942
      %v3944 = vrot.slane %v3912, 1
      %v3945 = vrot.slane %v3656, 1
      %v3946 = vsel %vm1833, %v3944, %v3945
      %v3947 = vrot.slane %v3913, 1
      %v3948 = vrot.slane %v3657, 1
      %v3949 = vsel %vm1833, %v3947, %v3948
      %v3950 = vrot.slane %v3914, 1
      %v3951 = vrot.slane %v3658, 1
      %v3952 = vsel %vm1833, %v3950, %v3951
      %v3953 = vrot.slane %v3915, 1
      %v3954 = vrot.slane %v3659, 1
      %v3955 = vsel %vm1833, %v3953, %v3954
      %v3956 = vrot.slane %v3916, 1
      %v3957 = vrot.slane %v3660, 1
      %v3958 = vsel %vm1833, %v3956, %v3957
      %v3959 = vrot.slane %v3917, 1
      %v3960 = vrot.slane %v3661, 1
      %v3961 = vsel %vm1833, %v3959, %v3960
      %v3962 = vrot.slane %v3918, 1
      %v3963 = vrot.slane %v3662, 1
      %v3964 = vsel %vm1833, %v3962, %v3963
      %v3965 = vrot.slane %v3919, 1
      %v3966 = vrot.slane %v3663, 1
      %v3967 = vsel %vm1833, %v3965, %v3966
      %s3984 = scalar_lea.vmem %s5, 384
      %v3985 = vld [vmem:[%s3984] sm:$0xf]
      %v3986 = vld [vmem:[%s3984 + $0x4] sm:$0xf]
      %v3987 = vld [vmem:[%s3984 + $0x8] sm:$0xf]
      %v3988 = vld [vmem:[%s3984 + $0xc] sm:$0xf]
      %v3989 = vld [vmem:[%s3984 + $0x10] sm:$0xf]
      %v3990 = vld [vmem:[%s3984 + $0x14] sm:$0xf]
      %v3991 = vld [vmem:[%s3984 + $0x18] sm:$0xf]
      %v3992 = vld [vmem:[%s3984 + $0x1c] sm:$0xf]
      %v3993 = vld [vmem:[%s3984 + $0x20] sm:$0xf]
      %v3994 = vld [vmem:[%s3984 + $0x24] sm:$0xf]
      %v3995 = vld [vmem:[%s3984 + $0x28] sm:$0xf]
      %v3996 = vld [vmem:[%s3984 + $0x2c] sm:$0xf]
      %v3997 = vld [vmem:[%s3984 + $0x30] sm:$0xf]
      %v3998 = vld [vmem:[%s3984 + $0x34] sm:$0xf]
      %v3999 = vld [vmem:[%s3984 + $0x38] sm:$0xf]
      %v4000 = vld [vmem:[%s3984 + $0x3c] sm:$0xf]
      %v4001 = vld [vmem:[%s3984 + $0x40] sm:$0xf]
      %v4002 = vld [vmem:[%s3984 + $0x44] sm:$0xf]
      %v4003 = vld [vmem:[%s3984 + $0x48] sm:$0xf]
      %v4004 = vld [vmem:[%s3984 + $0x4c] sm:$0xf]
      %v4005 = vld [vmem:[%s3984 + $0x50] sm:$0xf]
      %v4006 = vld [vmem:[%s3984 + $0x54] sm:$0xf]
      %v4007 = vld [vmem:[%s3984 + $0x58] sm:$0xf]
      %v4008 = vld [vmem:[%s3984 + $0x5c] sm:$0xf]
      %v4009 = vld [vmem:[%s3984 + $0x60] sm:$0xf]
      %v4010 = vld [vmem:[%s3984 + $0x64] sm:$0xf]
      %v4011 = vld [vmem:[%s3984 + $0x68] sm:$0xf]
      %v4012 = vld [vmem:[%s3984 + $0x6c] sm:$0xf]
      %v4013 = vld [vmem:[%s3984 + $0x70] sm:$0xf]
      %v4014 = vld [vmem:[%s3984 + $0x74] sm:$0xf]
      %v4015 = vld [vmem:[%s3984 + $0x78] sm:$0xf]
      %v4016 = vld [vmem:[%s3984 + $0x7c] sm:$0xf]
      %v4017 = vld [vmem:[%s3984 + $0x80] sm:$0xf]
      %v4018 = vld [vmem:[%s3984 + $0x84] sm:$0xf]
      %v4019 = vld [vmem:[%s3984 + $0x88] sm:$0xf]
      %v4020 = vld [vmem:[%s3984 + $0x8c] sm:$0xf]
      %v4021 = vld [vmem:[%s3984 + $0x90] sm:$0xf]
      %v4022 = vld [vmem:[%s3984 + $0x94] sm:$0xf]
      %v4023 = vld [vmem:[%s3984 + $0x98] sm:$0xf]
      %v4024 = vld [vmem:[%s3984 + $0x9c] sm:$0xf]
      %v4025 = vld [vmem:[%s3984 + $0xa0] sm:$0xf]
      %v4026 = vld [vmem:[%s3984 + $0xa4] sm:$0xf]
      %v4027 = vld [vmem:[%s3984 + $0xa8] sm:$0xf]
      %v4028 = vld [vmem:[%s3984 + $0xac] sm:$0xf]
      %v4029 = vld [vmem:[%s3984 + $0xb0] sm:$0xf]
      %v4030 = vld [vmem:[%s3984 + $0xb4] sm:$0xf]
      %v4031 = vld [vmem:[%s3984 + $0xb8] sm:$0xf]
      %v4032 = vld [vmem:[%s3984 + $0xbc] sm:$0xf]
      %v4081 = vunpack.c.l.b16 %v3985
      %v4082 = vunpack.c.l.b16 %v3986
      %v4083 = vunpack.c.l.b16 %v3987
      %v4084 = vunpack.c.l.b16 %v3988
      %v4085 = vunpack.c.l.b16 %v3989
      %v4086 = vunpack.c.l.b16 %v3990
      %v4087 = vunpack.c.l.b16 %v3991
      %v4088 = vunpack.c.l.b16 %v3992
      %v4089 = vunpack.c.l.b16 %v3993
      %v4090 = vunpack.c.l.b16 %v3994
      %v4091 = vunpack.c.l.b16 %v3995
      %v4092 = vunpack.c.l.b16 %v3996
      %v4093 = vunpack.c.l.b16 %v3997
      %v4094 = vunpack.c.l.b16 %v3998
      %v4095 = vunpack.c.l.b16 %v3999
      %v4096 = vunpack.c.l.b16 %v4000
      %v4097 = vunpack.c.l.b16 %v4001
      %v4098 = vunpack.c.l.b16 %v4002
      %v4099 = vunpack.c.l.b16 %v4003
      %v4100 = vunpack.c.l.b16 %v4004
      %v4101 = vunpack.c.l.b16 %v4005
      %v4102 = vunpack.c.l.b16 %v4006
      %v4103 = vunpack.c.l.b16 %v4007
      %v4104 = vunpack.c.l.b16 %v4008
      %v4105 = vunpack.c.l.b16 %v4009
      %v4106 = vunpack.c.l.b16 %v4010
      %v4107 = vunpack.c.l.b16 %v4011
      %v4108 = vunpack.c.l.b16 %v4012
      %v4109 = vunpack.c.l.b16 %v4013
      %v4110 = vunpack.c.l.b16 %v4014
      %v4111 = vunpack.c.l.b16 %v4015
      %v4112 = vunpack.c.l.b16 %v4016
      %v4113 = vunpack.c.l.b16 %v4017
      %v4114 = vunpack.c.l.b16 %v4018
      %v4115 = vunpack.c.l.b16 %v4019
      %v4116 = vunpack.c.l.b16 %v4020
      %v4117 = vunpack.c.l.b16 %v4021
      %v4118 = vunpack.c.l.b16 %v4022
      %v4119 = vunpack.c.l.b16 %v4023
      %v4120 = vunpack.c.l.b16 %v4024
      %v4121 = vunpack.c.l.b16 %v4025
      %v4122 = vunpack.c.l.b16 %v4026
      %v4123 = vunpack.c.l.b16 %v4027
      %v4124 = vunpack.c.l.b16 %v4028
      %v4125 = vunpack.c.l.b16 %v4029
      %v4126 = vunpack.c.l.b16 %v4030
      %v4127 = vunpack.c.l.b16 %v4031
      %v4128 = vunpack.c.l.b16 %v4032
      %v4129 = vpack.c.b16 %v4082, %v4081
      %v4130 = vpack.c.b16 %v4084, %v4083
      %v4131 = vpack.c.b16 %v4086, %v4085
      %v4132 = vpack.c.b16 %v4088, %v4087
      %v4133 = vpack.c.b16 %v4090, %v4089
      %v4134 = vpack.c.b16 %v4092, %v4091
      %v4135 = vpack.c.b16 %v4094, %v4093
      %v4136 = vpack.c.b16 %v4096, %v4095
      %v4137 = vpack.c.b16 %v4098, %v4097
      %v4138 = vpack.c.b16 %v4100, %v4099
      %v4139 = vpack.c.b16 %v4102, %v4101
      %v4140 = vpack.c.b16 %v4104, %v4103
      %v4141 = vpack.c.b16 %v4106, %v4105
      %v4142 = vpack.c.b16 %v4108, %v4107
      %v4143 = vpack.c.b16 %v4110, %v4109
      %v4144 = vpack.c.b16 %v4112, %v4111
      %v4145 = vpack.c.b16 %v4114, %v4113
      %v4146 = vpack.c.b16 %v4116, %v4115
      %v4147 = vpack.c.b16 %v4118, %v4117
      %v4148 = vpack.c.b16 %v4120, %v4119
      %v4149 = vpack.c.b16 %v4122, %v4121
      %v4150 = vpack.c.b16 %v4124, %v4123
      %v4151 = vpack.c.b16 %v4126, %v4125
      %v4152 = vpack.c.b16 %v4128, %v4127
      %4177 = vmatprep.subr.bf16.mxu0 0
      %4178 = vmatpush1.bf16.msra.mxu0 %v4129
      %4179 = vmatprep.subr.bf16.mxu0 0
      %4180 = vmatpush1.bf16.msra.mxu0 %v4130
      %4181 = vmatprep.subr.bf16.mxu0 0
      %4182 = vmatpush1.bf16.msra.mxu0 %v4131
      %4183 = vmatprep.subr.bf16.mxu0 0
      %4184 = vmatpush1.bf16.msra.mxu0 %v4132
      %4185 = vmatprep.subr.bf16.mxu0 0
      %4186 = vmatpush1.bf16.msra.mxu0 %v4133
      %4187 = vmatprep.subr.bf16.mxu0 0
      %4188 = vmatpush1.bf16.msra.mxu0 %v4134
      %4189 = vmatprep.subr.bf16.mxu0 0
      %4190 = vmatpush1.bf16.msra.mxu0 %v4135
      %4191 = vmatprep.subr.bf16.mxu0 0
      %4192 = vmatpush1.bf16.msra.mxu0 %v4136
      %4193 = vmatprep.subr.bf16.mxu0 0
      %4194 = vmatpush1.bf16.msra.mxu0 %v4137
      %4195 = vmatprep.subr.bf16.mxu0 0
      %4196 = vmatpush1.bf16.msra.mxu0 %v4138
      %4197 = vmatprep.subr.bf16.mxu0 0
      %4198 = vmatpush1.bf16.msra.mxu0 %v4139
      %4199 = vmatprep.subr.bf16.mxu0 0
      %4200 = vmatpush1.bf16.msra.mxu0 %v4140
      %4201 = vmatprep.subr.bf16.mxu0 0
      %4202 = vmatpush1.bf16.msra.mxu0 %v4141
      %4203 = vmatprep.subr.bf16.mxu0 0
      %4204 = vmatpush1.bf16.msra.mxu0 %v4142
      %4205 = vmatprep.subr.bf16.mxu0 0
      %4206 = vmatpush1.bf16.msra.mxu0 %v4143
      %4207 = vmatprep.subr.bf16.mxu0 0
      %4208 = vmatpush1.bf16.msra.mxu0 %v4144
      %4209 = vmatprep.mubr.bf16.mxu0 %v3675
      %4210 = vmatmul.mubr.bf16.gmra.mrb[0].mxu0 %v3584
      %v4211 = vpop.f32.mrb[0].mxu0
      %v4212 = vadd.f32 0.0, %v4211
      %v4213 = vpop.f32.mrb[0].mxu0
      %v4214 = vpop.f32.mrb[0].mxu0
      %v4215 = vadd.f32 0.0, %v4214
      %v4216 = vpop.f32.mrb[0].mxu0
      %4217 = vmatprep.mubr.bf16.mxu0 %v3687
      %4218 = vmatmul.mubr.bf16.gmra.mrb[0].mxu0 %v3585
      %v4219 = vpop.f32.mrb[0].mxu0
      %v4220 = vadd.f32 0.0, %v4219
      %v4221 = vpop.f32.mrb[0].mxu0
      %v4222 = vpop.f32.mrb[0].mxu0
      %v4223 = vadd.f32 0.0, %v4222
      %v4224 = vpop.f32.mrb[0].mxu0
      %4225 = vmatprep.mubr.bf16.mxu0 %v3699
      %4226 = vmatmul.mubr.bf16.gmra.mrb[0].mxu0 %v3586
      %v4227 = vpop.f32.mrb[0].mxu0
      %v4228 = vadd.f32 0.0, %v4227
      %v4229 = vpop.f32.mrb[0].mxu0
      %v4230 = vpop.f32.mrb[0].mxu0
      %v4231 = vadd.f32 0.0, %v4230
      %v4232 = vpop.f32.mrb[0].mxu0
      %4233 = vmatprep.mubr.bf16.mxu0 %v3711
      %4234 = vmatmul.mubr.bf16.gmra.mrb[0].mxu0 %v3587
      %v4235 = vpop.f32.mrb[0].mxu0
      %v4236 = vadd.f32 0.0, %v4235
      %v4237 = vpop.f32.mrb[0].mxu0
      %v4238 = vpop.f32.mrb[0].mxu0
      %v4239 = vadd.f32 0.0, %v4238
      %v4240 = vpop.f32.mrb[0].mxu0
      %4241 = vmatprep.mubr.bf16.mxu0 %v3723
      %4242 = vmatmul.mubr.bf16.gmra.mrb[0].mxu0 %v3588
      %v4243 = vpop.f32.mrb[0].mxu0
      %v4244 = vadd.f32 0.0, %v4243
      %v4245 = vpop.f32.mrb[0].mxu0
      %v4246 = vpop.f32.mrb[0].mxu0
      %v4247 = vadd.f32 0.0, %v4246
      %v4248 = vpop.f32.mrb[0].mxu0
      %4249 = vmatprep.mubr.bf16.mxu0 %v3735
      %4250 = vmatmul.mubr.bf16.gmra.mrb[0].mxu0 %v3589
      %v4251 = vpop.f32.mrb[0].mxu0
      %v4252 = vadd.f32 0.0, %v4251
      %v4253 = vpop.f32.mrb[0].mxu0
      %v4254 = vpop.f32.mrb[0].mxu0
      %v4255 = vadd.f32 0.0, %v4254
      %v4256 = vpop.f32.mrb[0].mxu0
      %4257 = vmatprep.mubr.bf16.mxu0 %v3747
      %4258 = vmatmul.mubr.bf16.gmra.mrb[0].mxu0 %v3590
      %v4259 = vpop.f32.mrb[0].mxu0
      %v4260 = vadd.f32 0.0, %v4259
      %v4261 = vpop.f32.mrb[0].mxu0
      %v4262 = vpop.f32.mrb[0].mxu0
      %v4263 = vadd.f32 0.0, %v4262
      %v4264 = vpop.f32.mrb[0].mxu0
      %4265 = vmatprep.mubr.bf16.mxu0 %v3759
      %4266 = vmatmul.mubr.bf16.gmra.mrb[0].mxu0 %v3591
      %v4267 = vpop.f32.mrb[0].mxu0
      %v4268 = vadd.f32 0.0, %v4267
      %v4269 = vpop.f32.mrb[0].mxu0
      %v4270 = vpop.f32.mrb[0].mxu0
      %v4271 = vadd.f32 0.0, %v4270
      %v4272 = vpop.f32.mrb[0].mxu0
      %4273 = vmatprep.mubr.bf16.mxu0 %v3771
      %4274 = vmatmul.mubr.bf16.gmra.mrb[0].mxu0 %v3592
      %v4275 = vpop.f32.mrb[0].mxu0
      %v4276 = vadd.f32 0.0, %v4275
      %v4277 = vpop.f32.mrb[0].mxu0
      %v4278 = vpop.f32.mrb[0].mxu0
      %v4279 = vadd.f32 0.0, %v4278
      %v4280 = vpop.f32.mrb[0].mxu0
      %4281 = vmatprep.mubr.bf16.mxu0 %v3783
      %4282 = vmatmul.mubr.bf16.gmra.mrb[0].mxu0 %v3593
      %v4283 = vpop.f32.mrb[0].mxu0
      %v4284 = vadd.f32 0.0, %v4283
      %v4285 = vpop.f32.mrb[0].mxu0
      %v4286 = vpop.f32.mrb[0].mxu0
      %v4287 = vadd.f32 0.0, %v4286
      %v4288 = vpop.f32.mrb[0].mxu0
      %4289 = vmatprep.mubr.bf16.mxu0 %v3795
      %4290 = vmatmul.mubr.bf16.gmra.mrb[0].mxu0 %v3594
      %v4291 = vpop.f32.mrb[0].mxu0
      %v4292 = vadd.f32 0.0, %v4291
      %v4293 = vpop.f32.mrb[0].mxu0
      %v4294 = vpop.f32.mrb[0].mxu0
      %v4295 = vadd.f32 0.0, %v4294
      %v4296 = vpop.f32.mrb[0].mxu0
      %4297 = vmatprep.mubr.bf16.mxu0 %v3807
      %4298 = vmatmul.mubr.bf16.gmra.mrb[0].mxu0 %v3595
      %v4299 = vpop.f32.mrb[0].mxu0
      %v4300 = vadd.f32 0.0, %v4299
      %v4301 = vpop.f32.mrb[0].mxu0
      %v4302 = vpop.f32.mrb[0].mxu0
      %v4303 = vadd.f32 0.0, %v4302
      %v4304 = vpop.f32.mrb[0].mxu0
      %4305 = vmatprep.mubr.bf16.mxu0 %v3819
      %4306 = vmatmul.mubr.bf16.gmra.mrb[0].mxu0 %v3596
      %v4307 = vpop.f32.mrb[0].mxu0
      %v4308 = vadd.f32 0.0, %v4307
      %v4309 = vpop.f32.mrb[0].mxu0
      %v4310 = vpop.f32.mrb[0].mxu0
      %v4311 = vadd.f32 0.0, %v4310
      %v4312 = vpop.f32.mrb[0].mxu0
      %4313 = vmatprep.mubr.bf16.mxu0 %v3831
      %4314 = vmatmul.mubr.bf16.gmra.mrb[0].mxu0 %v3597
      %v4315 = vpop.f32.mrb[0].mxu0
      %v4316 = vadd.f32 0.0, %v4315
      %v4317 = vpop.f32.mrb[0].mxu0
      %v4318 = vpop.f32.mrb[0].mxu0
      %v4319 = vadd.f32 0.0, %v4318
      %v4320 = vpop.f32.mrb[0].mxu0
      %4321 = vmatprep.mubr.bf16.mxu0 %v3843
      %4322 = vmatmul.mubr.bf16.gmra.mrb[0].mxu0 %v3598
      %v4323 = vpop.f32.mrb[0].mxu0
      %v4324 = vadd.f32 0.0, %v4323
      %v4325 = vpop.f32.mrb[0].mxu0
      %v4326 = vpop.f32.mrb[0].mxu0
      %v4327 = vadd.f32 0.0, %v4326
      %v4328 = vpop.f32.mrb[0].mxu0
      %4329 = vmatprep.mubr.bf16.mxu0 %v3855
      %4330 = vmatmul.mubr.bf16.gmra.mrb[0].mxu0 %v3599
      %v4331 = vpop.f32.mrb[0].mxu0
      %v4332 = vadd.f32 0.0, %v4331
      %v4333 = vpop.f32.mrb[0].mxu0
      %v4334 = vpop.f32.mrb[0].mxu0
      %v4335 = vadd.f32 0.0, %v4334
      %v4336 = vpop.f32.mrb[0].mxu0
      %4337 = vdwg.mxu0
      %4338 = vmatprep.subr.bf16.mxu0 0
      %4339 = vmatpush1.bf16.msra.mxu0 %v4145
      %4340 = vmatprep.subr.bf16.mxu0 0
      %4341 = vmatpush1.bf16.msra.mxu0 %v4146
      %4342 = vmatprep.subr.bf16.mxu0 0
      %4343 = vmatpush1.bf16.msra.mxu0 %v4147
      %4344 = vmatprep.subr.bf16.mxu0 0
      %4345 = vmatpush1.bf16.msra.mxu0 %v4148
      %4346 = vmatprep.subr.bf16.mxu0 0
      %4347 = vmatpush1.bf16.msra.mxu0 %v4149
      %4348 = vmatprep.subr.bf16.mxu0 0
      %4349 = vmatpush1.bf16.msra.mxu0 %v4150
      %4350 = vmatprep.subr.bf16.mxu0 0
      %4351 = vmatpush1.bf16.msra.mxu0 %v4151
      %4352 = vmatprep.subr.bf16.mxu0 0
      %4353 = vmatpush1.bf16.msra.mxu0 %v4152
      %4354 = vmatprep.subr.bf16.mxu0 0
      %4355 = vmatpush1.bf16.msra.mxu0 0
      %4356 = vmatprep.subr.bf16.mxu0 0
      %4357 = vmatpush1.bf16.msra.mxu0 0
      %4358 = vmatprep.subr.bf16.mxu0 0
      %4359 = vmatpush1.bf16.msra.mxu0 0
      %4360 = vmatprep.subr.bf16.mxu0 0
      %4361 = vmatpush1.bf16.msra.mxu0 0
      %4362 = vmatprep.subr.bf16.mxu0 0
      %4363 = vmatpush1.bf16.msra.mxu0 0
      %4364 = vmatprep.subr.bf16.mxu0 0
      %4365 = vmatpush1.bf16.msra.mxu0 0
      %4366 = vmatprep.subr.bf16.mxu0 0
      %4367 = vmatpush1.bf16.msra.mxu0 0
      %4368 = vmatprep.subr.bf16.mxu0 0
      %4369 = vmatpush1.bf16.msra.mxu0 0
      %4370 = vmatprep.mubr.bf16.mxu0 0
      %4371 = vmatmul.mubr.bf16.gmra.mrb[0].mxu0 %v3922
      %v4372 = vpop.f32.mrb[0].mxu0
      %v4373 = vadd.f32 %v4212, %v4372
      %v4374 = vpop.f32.mrb[0].mxu0
      %v4375 = vpop.f32.mrb[0].mxu0
      %v4376 = vadd.f32 %v4215, %v4375
      %v4377 = vpop.f32.mrb[0].mxu0
      %4378 = vmatprep.mubr.bf16.mxu0 0
      %4379 = vmatmul.mubr.bf16.gmra.mrb[0].mxu0 %v3925
      %v4380 = vpop.f32.mrb[0].mxu0
      %v4381 = vadd.f32 %v4220, %v4380
      %v4382 = vpop.f32.mrb[0].mxu0
      %v4383 = vpop.f32.mrb[0].mxu0
      %v4384 = vadd.f32 %v4223, %v4383
      %v4385 = vpop.f32.mrb[0].mxu0
      %4386 = vmatprep.mubr.bf16.mxu0 0
      %4387 = vmatmul.mubr.bf16.gmra.mrb[0].mxu0 %v3928
      %v4388 = vpop.f32.mrb[0].mxu0
      %v4389 = vadd.f32 %v4228, %v4388
      %v4390 = vpop.f32.mrb[0].mxu0
      %v4391 = vpop.f32.mrb[0].mxu0
      %v4392 = vadd.f32 %v4231, %v4391
      %v4393 = vpop.f32.mrb[0].mxu0
      %4394 = vmatprep.mubr.bf16.mxu0 0
      %4395 = vmatmul.mubr.bf16.gmra.mrb[0].mxu0 %v3931
      %v4396 = vpop.f32.mrb[0].mxu0
      %v4397 = vadd.f32 %v4236, %v4396
      %v4398 = vpop.f32.mrb[0].mxu0
      %v4399 = vpop.f32.mrb[0].mxu0
      %v4400 = vadd.f32 %v4239, %v4399
      %v4401 = vpop.f32.mrb[0].mxu0
      %4402 = vmatprep.mubr.bf16.mxu0 0
      %4403 = vmatmul.mubr.bf16.gmra.mrb[0].mxu0 %v3934
      %v4404 = vpop.f32.mrb[0].mxu0
      %v4405 = vadd.f32 %v4244, %v4404
      %v4406 = vpop.f32.mrb[0].mxu0
      %v4407 = vpop.f32.mrb[0].mxu0
      %v4408 = vadd.f32 %v4247, %v4407
      %v4409 = vpop.f32.mrb[0].mxu0
      %4410 = vmatprep.mubr.bf16.mxu0 0
      %4411 = vmatmul.mubr.bf16.gmra.mrb[0].mxu0 %v3937
      %v4412 = vpop.f32.mrb[0].mxu0
      %v4413 = vadd.f32 %v4252, %v4412
      %v4414 = vpop.f32.mrb[0].mxu0
      %v4415 = vpop.f32.mrb[0].mxu0
      %v4416 = vadd.f32 %v4255, %v4415
      %v4417 = vpop.f32.mrb[0].mxu0
      %4418 = vmatprep.mubr.bf16.mxu0 0
      %4419 = vmatmul.mubr.bf16.gmra.mrb[0].mxu0 %v3940
      %v4420 = vpop.f32.mrb[0].mxu0
      %v4421 = vadd.f32 %v4260, %v4420
      %v4422 = vpop.f32.mrb[0].mxu0
      %v4423 = vpop.f32.mrb[0].mxu0
      %v4424 = vadd.f32 %v4263, %v4423
      %v4425 = vpop.f32.mrb[0].mxu0
      %4426 = vmatprep.mubr.bf16.mxu0 0
      %4427 = vmatmul.mubr.bf16.gmra.mrb[0].mxu0 %v3943
      %v4428 = vpop.f32.mrb[0].mxu0
      %v4429 = vadd.f32 %v4268, %v4428
      %v4430 = vpop.f32.mrb[0].mxu0
      %v4431 = vpop.f32.mrb[0].mxu0
      %v4432 = vadd.f32 %v4271, %v4431
      %v4433 = vpop.f32.mrb[0].mxu0
      %4434 = vmatprep.mubr.bf16.mxu0 0
      %4435 = vmatmul.mubr.bf16.gmra.mrb[0].mxu0 %v3946
      %v4436 = vpop.f32.mrb[0].mxu0
      %v4437 = vadd.f32 %v4276, %v4436
      %v4438 = vpop.f32.mrb[0].mxu0
      %v4439 = vpop.f32.mrb[0].mxu0
      %v4440 = vadd.f32 %v4279, %v4439
      %v4441 = vpop.f32.mrb[0].mxu0
      %4442 = vmatprep.mubr.bf16.mxu0 0
      %4443 = vmatmul.mubr.bf16.gmra.mrb[0].mxu0 %v3949
      %v4444 = vpop.f32.mrb[0].mxu0
      %v4445 = vadd.f32 %v4284, %v4444
      %v4446 = vpop.f32.mrb[0].mxu0
      %v4447 = vpop.f32.mrb[0].mxu0
      %v4448 = vadd.f32 %v4287, %v4447
      %v4449 = vpop.f32.mrb[0].mxu0
      %4450 = vmatprep.mubr.bf16.mxu0 0
      %4451 = vmatmul.mubr.bf16.gmra.mrb[0].mxu0 %v3952
      %v4452 = vpop.f32.mrb[0].mxu0
      %v4453 = vadd.f32 %v4292, %v4452
      %v4454 = vpop.f32.mrb[0].mxu0
      %v4455 = vpop.f32.mrb[0].mxu0
      %v4456 = vadd.f32 %v4295, %v4455
      %v4457 = vpop.f32.mrb[0].mxu0
      %4458 = vmatprep.mubr.bf16.mxu0 0
      %4459 = vmatmul.mubr.bf16.gmra.mrb[0].mxu0 %v3955
      %v4460 = vpop.f32.mrb[0].mxu0
      %v4461 = vadd.f32 %v4300, %v4460
      %v4462 = vpop.f32.mrb[0].mxu0
      %v4463 = vpop.f32.mrb[0].mxu0
      %v4464 = vadd.f32 %v4303, %v4463
      %v4465 = vpop.f32.mrb[0].mxu0
      %4466 = vmatprep.mubr.bf16.mxu0 0
      %4467 = vmatmul.mubr.bf16.gmra.mrb[0].mxu0 %v3958
      %v4468 = vpop.f32.mrb[0].mxu0
      %v4469 = vadd.f32 %v4308, %v4468
      %v4470 = vpop.f32.mrb[0].mxu0
      %v4471 = vpop.f32.mrb[0].mxu0
      %v4472 = vadd.f32 %v4311, %v4471
      %v4473 = vpop.f32.mrb[0].mxu0
      %4474 = vmatprep.mubr.bf16.mxu0 0
      %4475 = vmatmul.mubr.bf16.gmra.mrb[0].mxu0 %v3961
      %v4476 = vpop.f32.mrb[0].mxu0
      %v4477 = vadd.f32 %v4316, %v4476
      %v4478 = vpop.f32.mrb[0].mxu0
      %v4479 = vpop.f32.mrb[0].mxu0
      %v4480 = vadd.f32 %v4319, %v4479
      %v4481 = vpop.f32.mrb[0].mxu0
      %4482 = vmatprep.mubr.bf16.mxu0 0
      %4483 = vmatmul.mubr.bf16.gmra.mrb[0].mxu0 %v3964
      %v4484 = vpop.f32.mrb[0].mxu0
      %v4485 = vadd.f32 %v4324, %v4484
      %v4486 = vpop.f32.mrb[0].mxu0
      %v4487 = vpop.f32.mrb[0].mxu0
      %v4488 = vadd.f32 %v4327, %v4487
      %v4489 = vpop.f32.mrb[0].mxu0
      %4490 = vmatprep.mubr.bf16.mxu0 0
      %4491 = vmatmul.mubr.bf16.gmra.mrb[0].mxu0 %v3967
      %v4492 = vpop.f32.mrb[0].mxu0
      %v4493 = vadd.f32 %v4332, %v4492
      %v4494 = vpop.f32.mrb[0].mxu0
      %v4495 = vpop.f32.mrb[0].mxu0
      %v4496 = vadd.f32 %v4335, %v4495
      %v4497 = vpop.f32.mrb[0].mxu0
      %4498 = vdwg.mxu0
      %v4499 = vadd.f32 %v3329, %v4373
      %v4500 = vadd.f32 %v3332, %v4376
      %v4501 = vadd.f32 %v3337, %v4381
      %v4502 = vadd.f32 %v3340, %v4384
      %v4503 = vadd.f32 %v3345, %v4389
      %v4504 = vadd.f32 %v3348, %v4392
      %v4505 = vadd.f32 %v3353, %v4397
      %v4506 = vadd.f32 %v3356, %v4400
      %v4507 = vadd.f32 %v3361, %v4405
      %v4508 = vadd.f32 %v3364, %v4408
      %v4509 = vadd.f32 %v3369, %v4413
      %v4510 = vadd.f32 %v3372, %v4416
      %v4511 = vadd.f32 %v3377, %v4421
      %v4512 = vadd.f32 %v3380, %v4424
      %v4513 = vadd.f32 %v3385, %v4429
      %v4514 = vadd.f32 %v3388, %v4432
      %v4515 = vadd.f32 %v3393, %v4437
      %v4516 = vadd.f32 %v3396, %v4440
      %v4517 = vadd.f32 %v3401, %v4445
      %v4518 = vadd.f32 %v3404, %v4448
      %v4519 = vadd.f32 %v3409, %v4453
      %v4520 = vadd.f32 %v3412, %v4456
      %v4521 = vadd.f32 %v3417, %v4461
      %v4522 = vadd.f32 %v3420, %v4464
      %v4523 = vadd.f32 %v3425, %v4469
      %v4524 = vadd.f32 %v3428, %v4472
      %v4525 = vadd.f32 %v3433, %v4477
      %v4526 = vadd.f32 %v3436, %v4480
      %v4527 = vadd.f32 %v3441, %v4485
      %v4528 = vadd.f32 %v3444, %v4488
      %v4529 = vadd.f32 %v3449, %v4493
      %v4530 = vadd.f32 %v3452, %v4496
      %v4531 = vxor.u32 %v4499, 2147483648
      %v4532 = vxor.u32 %v4500, 2147483648
      %v4533 = vxor.u32 %v4501, 2147483648
      %v4534 = vxor.u32 %v4502, 2147483648
      %v4535 = vxor.u32 %v4503, 2147483648
      %v4536 = vxor.u32 %v4504, 2147483648
      %v4537 = vxor.u32 %v4505, 2147483648
      %v4538 = vxor.u32 %v4506, 2147483648
      %v4539 = vxor.u32 %v4507, 2147483648
      %v4540 = vxor.u32 %v4508, 2147483648
      %v4541 = vxor.u32 %v4509, 2147483648
      %v4542 = vxor.u32 %v4510, 2147483648
      %v4543 = vxor.u32 %v4511, 2147483648
      %v4544 = vxor.u32 %v4512, 2147483648
      %v4545 = vxor.u32 %v4513, 2147483648
      %v4546 = vxor.u32 %v4514, 2147483648
      %v4547 = vxor.u32 %v4515, 2147483648
      %v4548 = vxor.u32 %v4516, 2147483648
      %v4549 = vxor.u32 %v4517, 2147483648
      %v4550 = vxor.u32 %v4518, 2147483648
      %v4551 = vxor.u32 %v4519, 2147483648
      %v4552 = vxor.u32 %v4520, 2147483648
      %v4553 = vxor.u32 %v4521, 2147483648
      %v4554 = vxor.u32 %v4522, 2147483648
      %v4555 = vxor.u32 %v4523, 2147483648
      %v4556 = vxor.u32 %v4524, 2147483648
      %v4557 = vxor.u32 %v4525, 2147483648
      %v4558 = vxor.u32 %v4526, 2147483648
      %v4559 = vxor.u32 %v4527, 2147483648
      %v4560 = vxor.u32 %v4528, 2147483648
      %v4561 = vxor.u32 %v4529, 2147483648
      %v4562 = vxor.u32 %v4530, 2147483648
      %v4563 = vmul.f32 %v4531, 1.442695
      %v4564 = vpow.pop %v4563
      %v4565 = vmul.f32 %v4532, 1.442695
      %v4566 = vpow.pop %v4565
      %v4567 = vmul.f32 %v4533, 1.442695
      %v4568 = vpow.pop %v4567
      %v4569 = vmul.f32 %v4534, 1.442695
      %v4570 = vpow.pop %v4569
      %v4571 = vmul.f32 %v4535, 1.442695
      %v4572 = vpow.pop %v4571
      %v4573 = vmul.f32 %v4536, 1.442695
      %v4574 = vpow.pop %v4573
      %v4575 = vmul.f32 %v4537, 1.442695
      %v4576 = vpow.pop %v4575
      %v4577 = vmul.f32 %v4538, 1.442695
      %v4578 = vpow.pop %v4577
      %v4579 = vmul.f32 %v4539, 1.442695
      %v4580 = vpow.pop %v4579
      %v4581 = vmul.f32 %v4540, 1.442695
      %v4582 = vpow.pop %v4581
      %v4583 = vmul.f32 %v4541, 1.442695
      %v4584 = vpow.pop %v4583
      %v4585 = vmul.f32 %v4542, 1.442695
      %v4586 = vpow.pop %v4585
      %v4587 = vmul.f32 %v4543, 1.442695
      %v4588 = vpow.pop %v4587
      %v4589 = vmul.f32 %v4544, 1.442695
      %v4590 = vpow.pop %v4589
      %v4591 = vmul.f32 %v4545, 1.442695
      %v4592 = vpow.pop %v4591
      %v4593 = vmul.f32 %v4546, 1.442695
      %v4594 = vpow.pop %v4593
      %v4595 = vmul.f32 %v4547, 1.442695
      %v4596 = vpow.pop %v4595
      %v4597 = vmul.f32 %v4548, 1.442695
      %v4598 = vpow.pop %v4597
      %v4599 = vmul.f32 %v4549, 1.442695
      %v4600 = vpow.pop %v4599
      %v4601 = vmul.f32 %v4550, 1.442695
      %v4602 = vpow.pop %v4601
      %v4603 = vmul.f32 %v4551, 1.442695
      %v4604 = vpow.pop %v4603
      %v4605 = vmul.f32 %v4552, 1.442695
      %v4606 = vpow.pop %v4605
      %v4607 = vmul.f32 %v4553, 1.442695
      %v4608 = vpow.pop %v4607
      %v4609 = vmul.f32 %v4554, 1.442695
      %v4610 = vpow.pop %v4609
      %v4611 = vmul.f32 %v4555, 1.442695
      %v4612 = vpow.pop %v4611
      %v4613 = vmul.f32 %v4556, 1.442695
      %v4614 = vpow.pop %v4613
      %v4615 = vmul.f32 %v4557, 1.442695
      %v4616 = vpow.pop %v4615
      %v4617 = vmul.f32 %v4558, 1.442695
      %v4618 = vpow.pop %v4617
      %v4619 = vmul.f32 %v4559, 1.442695
      %v4620 = vpow.pop %v4619
      %v4621 = vmul.f32 %v4560, 1.442695
      %v4622 = vpow.pop %v4621
      %v4623 = vmul.f32 %v4561, 1.442695
      %v4624 = vpow.pop %v4623
      %v4625 = vmul.f32 %v4562, 1.442695
      %v4626 = vpow.pop %v4625
      %v4627 = vadd.f32 %v4564, 1.0
      %v4628 = vadd.f32 %v4566, 1.0
      %v4629 = vadd.f32 %v4568, 1.0
      %v4630 = vadd.f32 %v4570, 1.0
      %v4631 = vadd.f32 %v4572, 1.0
      %v4632 = vadd.f32 %v4574, 1.0
      %v4633 = vadd.f32 %v4576, 1.0
      %v4634 = vadd.f32 %v4578, 1.0
      %v4635 = vadd.f32 %v4580, 1.0
      %v4636 = vadd.f32 %v4582, 1.0
      %v4637 = vadd.f32 %v4584, 1.0
      %v4638 = vadd.f32 %v4586, 1.0
      %v4639 = vadd.f32 %v4588, 1.0
      %v4640 = vadd.f32 %v4590, 1.0
      %v4641 = vadd.f32 %v4592, 1.0
      %v4642 = vadd.f32 %v4594, 1.0
      %v4643 = vadd.f32 %v4596, 1.0
      %v4644 = vadd.f32 %v4598, 1.0
      %v4645 = vadd.f32 %v4600, 1.0
      %v4646 = vadd.f32 %v4602, 1.0
      %v4647 = vadd.f32 %v4604, 1.0
      %v4648 = vadd.f32 %v4606, 1.0
      %v4649 = vadd.f32 %v4608, 1.0
      %v4650 = vadd.f32 %v4610, 1.0
      %v4651 = vadd.f32 %v4612, 1.0
      %v4652 = vadd.f32 %v4614, 1.0
      %v4653 = vadd.f32 %v4616, 1.0
      %v4654 = vadd.f32 %v4618, 1.0
      %v4655 = vadd.f32 %v4620, 1.0
      %v4656 = vadd.f32 %v4622, 1.0
      %v4657 = vadd.f32 %v4624, 1.0
      %v4658 = vadd.f32 %v4626, 1.0
      %v4659 = vrcp.pop %v4627
      %v4660 = vmul.f32 1.0, %v4659
      %v4661 = vrcp.pop %v4628
      %v4662 = vmul.f32 1.0, %v4661
      %v4663 = vrcp.pop %v4629
      %v4664 = vmul.f32 1.0, %v4663
      %v4665 = vrcp.pop %v4630
      %v4666 = vmul.f32 1.0, %v4665
      %v4667 = vrcp.pop %v4631
      %v4668 = vmul.f32 1.0, %v4667
      %v4669 = vrcp.pop %v4632
      %v4670 = vmul.f32 1.0, %v4669
      %v4671 = vrcp.pop %v4633
      %v4672 = vmul.f32 1.0, %v4671
      %v4673 = vrcp.pop %v4634
      %v4674 = vmul.f32 1.0, %v4673
      %v4675 = vrcp.pop %v4635
      %v4676 = vmul.f32 1.0, %v4675
      %v4677 = vrcp.pop %v4636
      %v4678 = vmul.f32 1.0, %v4677
      %v4679 = vrcp.pop %v4637
      %v4680 = vmul.f32 1.0, %v4679
      %v4681 = vrcp.pop %v4638
      %v4682 = vmul.f32 1.0, %v4681
      %v4683 = vrcp.pop %v4639
      %v4684 = vmul.f32 1.0, %v4683
      %v4685 = vrcp.pop %v4640
      %v4686 = vmul.f32 1.0, %v4685
      %v4687 = vrcp.pop %v4641
      %v4688 = vmul.f32 1.0, %v4687
      %v4689 = vrcp.pop %v4642
      %v4690 = vmul.f32 1.0, %v4689
      %v4691 = vrcp.pop %v4643
      %v4692 = vmul.f32 1.0, %v4691
      %v4693 = vrcp.pop %v4644
      %v4694 = vmul.f32 1.0, %v4693
      %v4695 = vrcp.pop %v4645
      %v4696 = vmul.f32 1.0, %v4695
      %v4697 = vrcp.pop %v4646
      %v4698 = vmul.f32 1.0, %v4697
      %v4699 = vrcp.pop %v4647
      %v4700 = vmul.f32 1.0, %v4699
      %v4701 = vrcp.pop %v4648
      %v4702 = vmul.f32 1.0, %v4701
      %v4703 = vrcp.pop %v4649
      %v4704 = vmul.f32 1.0, %v4703
      %v4705 = vrcp.pop %v4650
      %v4706 = vmul.f32 1.0, %v4705
      %v4707 = vrcp.pop %v4651
      %v4708 = vmul.f32 1.0, %v4707
      %v4709 = vrcp.pop %v4652
      %v4710 = vmul.f32 1.0, %v4709
      %v4711 = vrcp.pop %v4653
      %v4712 = vmul.f32 1.0, %v4711
      %v4713 = vrcp.pop %v4654
      %v4714 = vmul.f32 1.0, %v4713
      %v4715 = vrcp.pop %v4655
      %v4716 = vmul.f32 1.0, %v4715
      %v4717 = vrcp.pop %v4656
      %v4718 = vmul.f32 1.0, %v4717
      %v4719 = vrcp.pop %v4657
      %v4720 = vmul.f32 1.0, %v4719
      %v4721 = vrcp.pop %v4658
      %v4722 = vmul.f32 1.0, %v4721
      %v4723 = vmul.f32 %v4499, %v4660
      %v4724 = vmul.f32 %v4500, %v4662
      %v4725 = vmul.f32 %v4501, %v4664
      %v4726 = vmul.f32 %v4502, %v4666
      %v4727 = vmul.f32 %v4503, %v4668
      %v4728 = vmul.f32 %v4504, %v4670
      %v4729 = vmul.f32 %v4505, %v4672
      %v4730 = vmul.f32 %v4506, %v4674
      %v4731 = vmul.f32 %v4507, %v4676
      %v4732 = vmul.f32 %v4508, %v4678
      %v4733 = vmul.f32 %v4509, %v4680
      %v4734 = vmul.f32 %v4510, %v4682
      %v4735 = vmul.f32 %v4511, %v4684
      %v4736 = vmul.f32 %v4512, %v4686
      %v4737 = vmul.f32 %v4513, %v4688
      %v4738 = vmul.f32 %v4514, %v4690
      %v4739 = vmul.f32 %v4515, %v4692
      %v4740 = vmul.f32 %v4516, %v4694
      %v4741 = vmul.f32 %v4517, %v4696
      %v4742 = vmul.f32 %v4518, %v4698
      %v4743 = vmul.f32 %v4519, %v4700
      %v4744 = vmul.f32 %v4520, %v4702
      %v4745 = vmul.f32 %v4521, %v4704
      %v4746 = vmul.f32 %v4522, %v4706
      %v4747 = vmul.f32 %v4523, %v4708
      %v4748 = vmul.f32 %v4524, %v4710
      %v4749 = vmul.f32 %v4525, %v4712
      %v4750 = vmul.f32 %v4526, %v4714
      %v4751 = vmul.f32 %v4527, %v4716
      %v4752 = vmul.f32 %v4528, %v4718
      %v4753 = vmul.f32 %v4529, %v4720
      %v4754 = vmul.f32 %v4530, %v4722
      %v4755 = vld [vmem:[%s471] sm:$0xf]
      %v4756 = vld [vmem:[%s471 + $0x4] sm:$0xf]
      %v4757 = vld [vmem:[%s471 + $0x8] sm:$0xf]
      %v4758 = vld [vmem:[%s471 + $0xc] sm:$0xf]
      %v4759 = vld [vmem:[%s471 + $0x10] sm:$0xf]
      %v4760 = vld [vmem:[%s471 + $0x14] sm:$0xf]
      %v4761 = vld [vmem:[%s471 + $0x18] sm:$0xf]
      %v4762 = vld [vmem:[%s471 + $0x1c] sm:$0xf]
      %v4763 = vld [vmem:[%s471 + $0x20] sm:$0xf]
      %v4764 = vld [vmem:[%s471 + $0x24] sm:$0xf]
      %v4765 = vld [vmem:[%s471 + $0x28] sm:$0xf]
      %v4766 = vld [vmem:[%s471 + $0x2c] sm:$0xf]
      %v4767 = vld [vmem:[%s471 + $0x30] sm:$0xf]
      %v4768 = vld [vmem:[%s471 + $0x34] sm:$0xf]
      %v4769 = vld [vmem:[%s471 + $0x38] sm:$0xf]
      %v4770 = vld [vmem:[%s471 + $0x3c] sm:$0xf]
      %v4771 = vld [vmem:[%s471 + $0x40] sm:$0xf]
      %v4772 = vld [vmem:[%s471 + $0x44] sm:$0xf]
      %v4773 = vld [vmem:[%s471 + $0x48] sm:$0xf]
      %v4774 = vld [vmem:[%s471 + $0x4c] sm:$0xf]
      %v4775 = vld [vmem:[%s471 + $0x50] sm:$0xf]
      %v4776 = vld [vmem:[%s471 + $0x54] sm:$0xf]
      %v4777 = vld [vmem:[%s471 + $0x58] sm:$0xf]
      %v4778 = vld [vmem:[%s471 + $0x5c] sm:$0xf]
      %v4779 = vld [vmem:[%s471 + $0x60] sm:$0xf]
      %v4780 = vld [vmem:[%s471 + $0x64] sm:$0xf]
      %v4781 = vld [vmem:[%s471 + $0x68] sm:$0xf]
      %v4782 = vld [vmem:[%s471 + $0x6c] sm:$0xf]
      %v4783 = vld [vmem:[%s471 + $0x70] sm:$0xf]
      %v4784 = vld [vmem:[%s471 + $0x74] sm:$0xf]
      %v4785 = vld [vmem:[%s471 + $0x78] sm:$0xf]
      %v4786 = vld [vmem:[%s471 + $0x7c] sm:$0xf]
      %v4787 = vld [vmem:[%s7] sm:$0xf]
      %v4788 = vld [vmem:[%s7 + $0x4] sm:$0xf]
      %v4789 = vld [vmem:[%s7 + $0x8] sm:$0xf]
      %v4790 = vld [vmem:[%s7 + $0xc] sm:$0xf]
      %v4791 = vld [vmem:[%s7 + $0x10] sm:$0xf]
      %v4792 = vld [vmem:[%s7 + $0x14] sm:$0xf]
      %v4793 = vld [vmem:[%s7 + $0x18] sm:$0xf]
      %v4794 = vld [vmem:[%s7 + $0x1c] sm:$0xf]
      %v4795 = vld [vmem:[%s7 + $0x20] sm:$0xf]
      %v4796 = vld [vmem:[%s7 + $0x24] sm:$0xf]
      %v4797 = vld [vmem:[%s7 + $0x28] sm:$0xf]
      %v4798 = vld [vmem:[%s7 + $0x2c] sm:$0xf]
      %v4799 = vld [vmem:[%s7 + $0x30] sm:$0xf]
      %v4800 = vld [vmem:[%s7 + $0x34] sm:$0xf]
      %v4801 = vld [vmem:[%s7 + $0x38] sm:$0xf]
      %v4802 = vld [vmem:[%s7 + $0x3c] sm:$0xf]
      %v4803 = vld [vmem:[%s8] sm:$0x1]
      %v4805 = vlaneseq
      %v4806 = vshrl.u32 %v4805, 7
      %v4807 = vsub.s32 0, %v4806
      %v4808 = vrot.slane %v4803, %v4807
      %v4842 = vunpack.c.l.b16 %v4755
      %v4843 = vunpack.c.l.b16 %v4756
      %v4844 = vunpack.c.l.b16 %v4757
      %v4845 = vunpack.c.l.b16 %v4758
      %v4846 = vunpack.c.l.b16 %v4759
      %v4847 = vunpack.c.l.b16 %v4760
      %v4848 = vunpack.c.l.b16 %v4761
      %v4849 = vunpack.c.l.b16 %v4762
      %v4850 = vunpack.c.l.b16 %v4763
      %v4851 = vunpack.c.l.b16 %v4764
      %v4852 = vunpack.c.l.b16 %v4765
      %v4853 = vunpack.c.l.b16 %v4766
      %v4854 = vunpack.c.l.b16 %v4767
      %v4855 = vunpack.c.l.b16 %v4768
      %v4856 = vunpack.c.l.b16 %v4769
      %v4857 = vunpack.c.l.b16 %v4770
      %v4858 = vunpack.c.l.b16 %v4771
      %v4859 = vunpack.c.l.b16 %v4772
      %v4860 = vunpack.c.l.b16 %v4773
      %v4861 = vunpack.c.l.b16 %v4774
      %v4862 = vunpack.c.l.b16 %v4775
      %v4863 = vunpack.c.l.b16 %v4776
      %v4864 = vunpack.c.l.b16 %v4777
      %v4865 = vunpack.c.l.b16 %v4778
      %v4866 = vunpack.c.l.b16 %v4779
      %v4867 = vunpack.c.l.b16 %v4780
      %v4868 = vunpack.c.l.b16 %v4781
      %v4869 = vunpack.c.l.b16 %v4782
      %v4870 = vunpack.c.l.b16 %v4783
      %v4871 = vunpack.c.l.b16 %v4784
      %v4872 = vunpack.c.l.b16 %v4785
      %v4873 = vunpack.c.l.b16 %v4786
      %v4874 = vpack.c.b16 %v4843, %v4842
      %v4875 = vpack.c.b16 %v4845, %v4844
      %v4876 = vpack.c.b16 %v4847, %v4846
      %v4877 = vpack.c.b16 %v4849, %v4848
      %v4878 = vpack.c.b16 %v4851, %v4850
      %v4879 = vpack.c.b16 %v4853, %v4852
      %v4880 = vpack.c.b16 %v4855, %v4854
      %v4881 = vpack.c.b16 %v4857, %v4856
      %v4882 = vpack.c.b16 %v4859, %v4858
      %v4883 = vpack.c.b16 %v4861, %v4860
      %v4884 = vpack.c.b16 %v4863, %v4862
      %v4885 = vpack.c.b16 %v4865, %v4864
      %v4886 = vpack.c.b16 %v4867, %v4866
      %v4887 = vpack.c.b16 %v4869, %v4868
      %v4888 = vpack.c.b16 %v4871, %v4870
      %v4889 = vpack.c.b16 %v4873, %v4872
      %v4922 = vunpack.c.l.b16 %v4787
      %v4923 = vunpack.c.l.b16 %v4788
      %v4924 = vunpack.c.l.b16 %v4789
      %v4925 = vunpack.c.l.b16 %v4790
      %v4926 = vunpack.c.l.b16 %v4791
      %v4927 = vunpack.c.l.b16 %v4792
      %v4928 = vunpack.c.l.b16 %v4793
      %v4929 = vunpack.c.l.b16 %v4794
      %v4930 = vunpack.c.l.b16 %v4795
      %v4931 = vunpack.c.l.b16 %v4796
      %v4932 = vunpack.c.l.b16 %v4797
      %v4933 = vunpack.c.l.b16 %v4798
      %v4934 = vunpack.c.l.b16 %v4799
      %v4935 = vunpack.c.l.b16 %v4800
      %v4936 = vunpack.c.l.b16 %v4801
      %v4937 = vunpack.c.l.b16 %v4802
      %v4938 = vpack.c.b16 %v4923, %v4922
      %v4939 = vpack.c.b16 %v4925, %v4924
      %v4940 = vpack.c.b16 %v4927, %v4926
      %v4941 = vpack.c.b16 %v4929, %v4928
      %v4942 = vpack.c.b16 %v4931, %v4930
      %v4943 = vpack.c.b16 %v4933, %v4932
      %v4944 = vpack.c.b16 %v4935, %v4934
      %v4945 = vpack.c.b16 %v4937, %v4936
      %4954 = vmatprep.subr.bf16.mxu0 0
      %4955 = vmatpush1.bf16.msra.mxu0 %v4938
      %4956 = vmatprep.subr.bf16.mxu0 0
      %4957 = vmatpush1.bf16.msra.mxu0 %v4939
      %4958 = vmatprep.subr.bf16.mxu0 0
      %4959 = vmatpush1.bf16.msra.mxu0 %v4940
      %4960 = vmatprep.subr.bf16.mxu0 0
      %4961 = vmatpush1.bf16.msra.mxu0 %v4941
      %4962 = vmatprep.subr.bf16.mxu0 0
      %4963 = vmatpush1.bf16.msra.mxu0 %v4942
      %4964 = vmatprep.subr.bf16.mxu0 0
      %4965 = vmatpush1.bf16.msra.mxu0 %v4943
      %4966 = vmatprep.subr.bf16.mxu0 0
      %4967 = vmatpush1.bf16.msra.mxu0 %v4944
      %4968 = vmatprep.subr.bf16.mxu0 0
      %4969 = vmatpush1.bf16.msra.mxu0 %v4945
      %4970 = vmatprep.subr.bf16.mxu0 0
      %4971 = vmatpush1.bf16.msra.mxu0 0
      %4972 = vmatprep.subr.bf16.mxu0 0
      %4973 = vmatpush1.bf16.msra.mxu0 0
      %4974 = vmatprep.subr.bf16.mxu0 0
      %4975 = vmatpush1.bf16.msra.mxu0 0
      %4976 = vmatprep.subr.bf16.mxu0 0
      %4977 = vmatpush1.bf16.msra.mxu0 0
      %4978 = vmatprep.subr.bf16.mxu0 0
      %4979 = vmatpush1.bf16.msra.mxu0 0
      %4980 = vmatprep.subr.bf16.mxu0 0
      %4981 = vmatpush1.bf16.msra.mxu0 0
      %4982 = vmatprep.subr.bf16.mxu0 0
      %4983 = vmatpush1.bf16.msra.mxu0 0
      %4984 = vmatprep.subr.bf16.mxu0 0
      %4985 = vmatpush1.bf16.msra.mxu0 0
      %4986 = vmatprep.mubr.bf16.mxu0 0
      %4987 = vmatmul.mubr.bf16.gmra.mrb[0].mxu0 %v4874
      %v4988 = vpop.f32.mrb[0].mxu0
      %v4989 = vadd.f32 %v4808, %v4988
      %v4990 = vpop.f32.mrb[0].mxu0
      %v4991 = vpop.f32.mrb[0].mxu0
      %v4992 = vadd.f32 %v4808, %v4991
      %v4993 = vpop.f32.mrb[0].mxu0
      %4994 = vmatprep.mubr.bf16.mxu0 0
      %4995 = vmatmul.mubr.bf16.gmra.mrb[0].mxu0 %v4875
      %v4996 = vpop.f32.mrb[0].mxu0
      %v4997 = vadd.f32 %v4808, %v4996
      %v4998 = vpop.f32.mrb[0].mxu0
      %v4999 = vpop.f32.mrb[0].mxu0
      %v5000 = vadd.f32 %v4808, %v4999
      %v5001 = vpop.f32.mrb[0].mxu0
      %5002 = vmatprep.mubr.bf16.mxu0 0
      %5003 = vmatmul.mubr.bf16.gmra.mrb[0].mxu0 %v4876
      %v5004 = vpop.f32.mrb[0].mxu0
      %v5005 = vadd.f32 %v4808, %v5004
      %v5006 = vpop.f32.mrb[0].mxu0
      %v5007 = vpop.f32.mrb[0].mxu0
      %v5008 = vadd.f32 %v4808, %v5007
      %v5009 = vpop.f32.mrb[0].mxu0
      %5010 = vmatprep.mubr.bf16.mxu0 0
      %5011 = vmatmul.mubr.bf16.gmra.mrb[0].mxu0 %v4877
      %v5012 = vpop.f32.mrb[0].mxu0
      %v5013 = vadd.f32 %v4808, %v5012
      %v5014 = vpop.f32.mrb[0].mxu0
      %v5015 = vpop.f32.mrb[0].mxu0
      %v5016 = vadd.f32 %v4808, %v5015
      %v5017 = vpop.f32.mrb[0].mxu0
      %5018 = vmatprep.mubr.bf16.mxu0 0
      %5019 = vmatmul.mubr.bf16.gmra.mrb[0].mxu0 %v4878
      %v5020 = vpop.f32.mrb[0].mxu0
      %v5021 = vadd.f32 %v4808, %v5020
      %v5022 = vpop.f32.mrb[0].mxu0
      %v5023 = vpop.f32.mrb[0].mxu0
      %v5024 = vadd.f32 %v4808, %v5023
      %v5025 = vpop.f32.mrb[0].mxu0
      %5026 = vmatprep.mubr.bf16.mxu0 0
      %5027 = vmatmul.mubr.bf16.gmra.mrb[0].mxu0 %v4879
      %v5028 = vpop.f32.mrb[0].mxu0
      %v5029 = vadd.f32 %v4808, %v5028
      %v5030 = vpop.f32.mrb[0].mxu0
      %v5031 = vpop.f32.mrb[0].mxu0
      %v5032 = vadd.f32 %v4808, %v5031
      %v5033 = vpop.f32.mrb[0].mxu0
      %5034 = vmatprep.mubr.bf16.mxu0 0
      %5035 = vmatmul.mubr.bf16.gmra.mrb[0].mxu0 %v4880
      %v5036 = vpop.f32.mrb[0].mxu0
      %v5037 = vadd.f32 %v4808, %v5036
      %v5038 = vpop.f32.mrb[0].mxu0
      %v5039 = vpop.f32.mrb[0].mxu0
      %v5040 = vadd.f32 %v4808, %v5039
      %v5041 = vpop.f32.mrb[0].mxu0
      %5042 = vmatprep.mubr.bf16.mxu0 0
      %5043 = vmatmul.mubr.bf16.gmra.mrb[0].mxu0 %v4881
      %v5044 = vpop.f32.mrb[0].mxu0
      %v5045 = vadd.f32 %v4808, %v5044
      %v5046 = vpop.f32.mrb[0].mxu0
      %v5047 = vpop.f32.mrb[0].mxu0
      %v5048 = vadd.f32 %v4808, %v5047
      %v5049 = vpop.f32.mrb[0].mxu0
      %5050 = vmatprep.mubr.bf16.mxu0 0
      %5051 = vmatmul.mubr.bf16.gmra.mrb[0].mxu0 %v4882
      %v5052 = vpop.f32.mrb[0].mxu0
      %v5053 = vadd.f32 %v4808, %v5052
      %v5054 = vpop.f32.mrb[0].mxu0
      %v5055 = vpop.f32.mrb[0].mxu0
      %v5056 = vadd.f32 %v4808, %v5055
      %v5057 = vpop.f32.mrb[0].mxu0
      %5058 = vmatprep.mubr.bf16.mxu0 0
      %5059 = vmatmul.mubr.bf16.gmra.mrb[0].mxu0 %v4883
      %v5060 = vpop.f32.mrb[0].mxu0
      %v5061 = vadd.f32 %v4808, %v5060
      %v5062 = vpop.f32.mrb[0].mxu0
      %v5063 = vpop.f32.mrb[0].mxu0
      %v5064 = vadd.f32 %v4808, %v5063
      %v5065 = vpop.f32.mrb[0].mxu0
      %5066 = vmatprep.mubr.bf16.mxu0 0
      %5067 = vmatmul.mubr.bf16.gmra.mrb[0].mxu0 %v4884
      %v5068 = vpop.f32.mrb[0].mxu0
      %v5069 = vadd.f32 %v4808, %v5068
      %v5070 = vpop.f32.mrb[0].mxu0
      %v5071 = vpop.f32.mrb[0].mxu0
      %v5072 = vadd.f32 %v4808, %v5071
      %v5073 = vpop.f32.mrb[0].mxu0
      %5074 = vmatprep.mubr.bf16.mxu0 0
      %5075 = vmatmul.mubr.bf16.gmra.mrb[0].mxu0 %v4885
      %v5076 = vpop.f32.mrb[0].mxu0
      %v5077 = vadd.f32 %v4808, %v5076
      %v5078 = vpop.f32.mrb[0].mxu0
      %v5079 = vpop.f32.mrb[0].mxu0
      %v5080 = vadd.f32 %v4808, %v5079
      %v5081 = vpop.f32.mrb[0].mxu0
      %5082 = vmatprep.mubr.bf16.mxu0 0
      %5083 = vmatmul.mubr.bf16.gmra.mrb[0].mxu0 %v4886
      %v5084 = vpop.f32.mrb[0].mxu0
      %v5085 = vadd.f32 %v4808, %v5084
      %v5086 = vpop.f32.mrb[0].mxu0
      %v5087 = vpop.f32.mrb[0].mxu0
      %v5088 = vadd.f32 %v4808, %v5087
      %v5089 = vpop.f32.mrb[0].mxu0
      %5090 = vmatprep.mubr.bf16.mxu0 0
      %5091 = vmatmul.mubr.bf16.gmra.mrb[0].mxu0 %v4887
      %v5092 = vpop.f32.mrb[0].mxu0
      %v5093 = vadd.f32 %v4808, %v5092
      %v5094 = vpop.f32.mrb[0].mxu0
      %v5095 = vpop.f32.mrb[0].mxu0
      %v5096 = vadd.f32 %v4808, %v5095
      %v5097 = vpop.f32.mrb[0].mxu0
      %5098 = vmatprep.mubr.bf16.mxu0 0
      %5099 = vmatmul.mubr.bf16.gmra.mrb[0].mxu0 %v4888
      %v5100 = vpop.f32.mrb[0].mxu0
      %v5101 = vadd.f32 %v4808, %v5100
      %v5102 = vpop.f32.mrb[0].mxu0
      %v5103 = vpop.f32.mrb[0].mxu0
      %v5104 = vadd.f32 %v4808, %v5103
      %v5105 = vpop.f32.mrb[0].mxu0
      %5106 = vmatprep.mubr.bf16.mxu0 0
      %5107 = vmatmul.mubr.bf16.gmra.mrb[0].mxu0 %v4889
      %v5108 = vpop.f32.mrb[0].mxu0
      %v5109 = vadd.f32 %v4808, %v5108
      %v5110 = vpop.f32.mrb[0].mxu0
      %v5111 = vpop.f32.mrb[0].mxu0
      %v5112 = vadd.f32 %v4808, %v5111
      %v5113 = vpop.f32.mrb[0].mxu0
      %5114 = vdwg.mxu0
      %v5115 = vadd.f32 %v4723, %v4989
      %v5116 = vadd.f32 %v4724, %v4992
      %v5117 = vadd.f32 %v4725, %v4997
      %v5118 = vadd.f32 %v4726, %v5000
      %v5119 = vadd.f32 %v4727, %v5005
      %v5120 = vadd.f32 %v4728, %v5008
      %v5121 = vadd.f32 %v4729, %v5013
      %v5122 = vadd.f32 %v4730, %v5016
      %v5123 = vadd.f32 %v4731, %v5021
      %v5124 = vadd.f32 %v4732, %v5024
      %v5125 = vadd.f32 %v4733, %v5029
      %v5126 = vadd.f32 %v4734, %v5032
      %v5127 = vadd.f32 %v4735, %v5037
      %v5128 = vadd.f32 %v4736, %v5040
      %v5129 = vadd.f32 %v4737, %v5045
      %v5130 = vadd.f32 %v4738, %v5048
      %v5131 = vadd.f32 %v4739, %v5053
      %v5132 = vadd.f32 %v4740, %v5056
      %v5133 = vadd.f32 %v4741, %v5061
      %v5134 = vadd.f32 %v4742, %v5064
      %v5135 = vadd.f32 %v4743, %v5069
      %v5136 = vadd.f32 %v4744, %v5072
      %v5137 = vadd.f32 %v4745, %v5077
      %v5138 = vadd.f32 %v4746, %v5080
      %v5139 = vadd.f32 %v4747, %v5085
      %v5140 = vadd.f32 %v4748, %v5088
      %v5141 = vadd.f32 %v4749, %v5093
      %v5142 = vadd.f32 %v4750, %v5096
      %v5143 = vadd.f32 %v4751, %v5101
      %v5144 = vadd.f32 %v4752, %v5104
      %v5145 = vadd.f32 %v4753, %v5109
      %v5146 = vadd.f32 %v4754, %v5112
      %5147 = vst [vmem:[%s482] sm:$0xff] %v5115
      %5148 = vst [vmem:[%s482 + $0x8] sm:$0xff] %v5116
      %5149 = vst [vmem:[%s482 + $0x10] sm:$0xff] %v5117
      %5150 = vst [vmem:[%s482 + $0x18] sm:$0xff] %v5118
      %5151 = vst [vmem:[%s482 + $0x20] sm:$0xff] %v5119
      %5152 = vst [vmem:[%s482 + $0x28] sm:$0xff] %v5120
      %5153 = vst [vmem:[%s482 + $0x30] sm:$0xff] %v5121
      %5154 = vst [vmem:[%s482 + $0x38] sm:$0xff] %v5122
      %5155 = vst [vmem:[%s482 + $0x40] sm:$0xff] %v5123
      %5156 = vst [vmem:[%s482 + $0x48] sm:$0xff] %v5124
      %5157 = vst [vmem:[%s482 + $0x50] sm:$0xff] %v5125
      %5158 = vst [vmem:[%s482 + $0x58] sm:$0xff] %v5126
      %5159 = vst [vmem:[%s482 + $0x60] sm:$0xff] %v5127
      %5160 = vst [vmem:[%s482 + $0x68] sm:$0xff] %v5128
      %5161 = vst [vmem:[%s482 + $0x70] sm:$0xff] %v5129
      %5162 = vst [vmem:[%s482 + $0x78] sm:$0xff] %v5130
      %5163 = vst [vmem:[%s482 + $0x80] sm:$0xff] %v5131
      %5164 = vst [vmem:[%s482 + $0x88] sm:$0xff] %v5132
      %5165 = vst [vmem:[%s482 + $0x90] sm:$0xff] %v5133
      %5166 = vst [vmem:[%s482 + $0x98] sm:$0xff] %v5134
      %5167 = vst [vmem:[%s482 + $0xa0] sm:$0xff] %v5135
      %5168 = vst [vmem:[%s482 + $0xa8] sm:$0xff] %v5136
      %5169 = vst [vmem:[%s482 + $0xb0] sm:$0xff] %v5137
      %5170 = vst [vmem:[%s482 + $0xb8] sm:$0xff] %v5138
      %5171 = vst [vmem:[%s482 + $0xc0] sm:$0xff] %v5139
      %5172 = vst [vmem:[%s482 + $0xc8] sm:$0xff] %v5140
      %5173 = vst [vmem:[%s482 + $0xd0] sm:$0xff] %v5141
      %5174 = vst [vmem:[%s482 + $0xd8] sm:$0xff] %v5142
      %5175 = vst [vmem:[%s482 + $0xe0] sm:$0xff] %v5143
      %5176 = vst [vmem:[%s482 + $0xe8] sm:$0xff] %v5144
      %5177 = vst [vmem:[%s482 + $0xf0] sm:$0xff] %v5145
      %5178 = vst [vmem:[%s482 + $0xf8] sm:$0xff] %v5146
      %s5179 = smul.u32 16, %s25
      %p5180 = scmp.lt.s32.totalorder %s24, 1
      %s5181 = scalar_select %p5180, %s24, 1
      %p5182 = scmp.lt.s32.totalorder %s5179, 15
      %s5183 = scalar_select %p5182, %s5179, 15
      %s5184 = smul.addr %s5183, 2
      %s5185 = smul.addr %s5181, 32
      %s5186 = sadd.s32 %s5184, %s5185
      %s5187 = smul.addr %s5186, 8
      %s5188 = scalar_lea.vmem %s9, %s5187
      // Predicated region
      $region57: #{double_conv_forward.5} parent=55 // pred_check
        %p5189 = pneg %p269
      $region58: #{double_conv_forward.5} parent=55 // pred_check_branch
        %5191 = sbr.rel (%p5189) target = $region60
      $region59: #{double_conv_forward.5} parent=55 // pred_region
        %s5192 = smul.u32 16, %s25
      $region60: #{double_conv_forward.5} parent=55 // pred_fallthru
        _
    $region56: #{double_conv_forward.5} parent=5 // pred_fallthru
      _
    %p5193 = scmp.le.s32.totalorder 2, %s15
    // Predicated region
    $region61: #{double_conv_forward.5} parent=5 // pred_check
      %p5194 = pneg %p5193
    $region62: #{double_conv_forward.5} parent=5 // pred_check_branch
      %5196 = sbr.rel (%p5194) target = $region64
    $region63: #{double_conv_forward.5} parent=5 // pred_region
      %s5197 = ssub.s32 %s15, 2
      // Predicated region
      $region65: #{double_conv_forward.5} parent=63 // pred_check
        %p5198 = pneg %p275
      $region66: #{double_conv_forward.5} parent=63 // pred_check_branch
        %5200 = sbr.rel (%p5198) target = $region68
      $region67: #{double_conv_forward.5} parent=63 // pred_region
        %s5201 = smul.u32 16, %s27
        %p5202 = scmp.lt.s32.totalorder %s26, 1
        %s5203 = scalar_select %p5202, %s26, 1
        %p5204 = scmp.lt.s32.totalorder %s5201, 15
        %s5205 = scalar_select %p5204, %s5201, 15
        %s5206 = smul.addr %s5205, 2
        %s5207 = smul.addr %s5203, 32
        %s5208 = sadd.s32 %s5206, %s5207
        %s5209 = smul.addr %s5208, 8
        %s5210 = scalar_lea.vmem %s9, %s5209
      $region68: #{double_conv_forward.5} parent=63 // pred_fallthru
        _
    $region64: #{double_conv_forward.5} parent=5 // pred_fallthru
      _
  $region6: #{double_conv_forward.5} parent=0 // loop_footer
    %s19 = sadd.s32 1, %s15
  $region7: #{double_conv_forward.5} parent=0 // loop_footer_branch
    %14 = sbr.rel target = $region3
  $region8: #{double_conv_forward.5} parent=0 // loop_exit
    _

</llo_original>
